<compile_context>
chip_gen: v7x
topology: tpu7x:2x2x1
jax: 0.10.0
libtpu: 0.0.40
codegen_flags: <defaults>
</compile_context>

<pallas_src>
import jax
import jax.numpy as jnp
from jax import lax
from jax.experimental import pallas as pl
from jax.experimental.pallas import tpu as pltpu

# Static model configuration (from PoseEncoderDr).
K = 15            # conv kernel size (all stages)
PAD = 7           # 'same' padding
POOL = 5          # max-pool kernel == stride
LEAD = PAD + 1    # leading zero rows in the padded scratch (8 -> sublane aligned)
C_IN = 20         # raw pose features
C1P_IN = 128      # stage-1 input channels, zero-padded to a lane multiple
C1_OUT = 160      # real stage-1 output channels (80 grouped + 80 ungrouped)
C1P_OUT = 256     # padded stage-1 output channels
C2_OUT = 128      # stage-2 output channels (already lane aligned)
C3_OUT = 64       # stage-3 output channels


def _stage(x_val, xp_ref, xc_ref, w_ref, b_ref, *, L, Cp):
    """conv1d(K=15, 'same') + bias + ReLU + max_pool1d(5,5) for one batch elem.

    x_val  : (L, Creal) f32 value, Creal <= Cp (extra channels are zero padded)
    xp_ref : (L + 2*PAD + 1, Cp) f32 VMEM scratch (length halo + channel pad)
    xc_ref : (L, K*Cp) bf16 VMEM scratch (im2col slab)
    w_ref  : (K*Cp, Cout) bf16,  b_ref: (1, Cout) f32
    returns: (L // POOL, Cout) f32 pooled activations.
    """
    creal = x_val.shape[1]
    # Zero-fill then copy: gives both the 'same' length halo and the channel
    # zero padding, entirely in VMEM, with a sublane-aligned store offset.
    xp_ref[...] = jnp.zeros_like(xp_ref)
    xp_ref[LEAD:LEAD + L, 0:creal] = x_val
    xp = xp_ref[...]                                     # (L + 2*PAD + 1, Cp)

    # im2col: K shifted windows written at 128-aligned lane offsets.
    for k in range(K):
        off = k + LEAD - PAD                             # 1 .. 15
        xc_ref[:, k * Cp:(k + 1) * Cp] = xp[off:off + L, :].astype(jnp.bfloat16)

    # One deep MXU matmul (bf16 inputs, f32 accumulation) + bias + ReLU.
    acc = jnp.dot(xc_ref[...], w_ref[...], preferred_element_type=jnp.float32)
    acc = jnp.maximum(acc + b_ref[...], 0.0)             # (L, Cout) f32

    # max_pool1d(kernel=POOL, stride=POOL): sliding-window max over contiguous
    # shifts, then pick rows 0, POOL, 2*POOL, ... with a one-hot matmul.
    Lw = L - POOL + 1
    wmax = acc[0:Lw, :]
    for j in range(1, POOL):
        wmax = jnp.maximum(wmax, acc[j:j + Lw, :])
    Lout = L // POOL
    if Lout == 1:
        return wmax[0:1, :]
    rows = lax.broadcasted_iota(jnp.int32, (Lout, Lw), 0)
    cols = lax.broadcasted_iota(jnp.int32, (Lout, Lw), 1)
    sel = (cols == rows * POOL).astype(jnp.float32)      # exact row selection
    return jnp.dot(sel, wmax, preferred_element_type=jnp.float32)


def _make_kernel(L1):
    LO1 = L1 // POOL
    L2 = LO1
    LO2 = L2 // POOL
    L3 = LO2
    LO3 = L3 // POOL
    assert LO3 >= 1, "sequence too short for three pool(5) stages"

    def kernel(x_ref, w1_ref, b1_ref, w2_ref, b2_ref, w3_ref, b3_ref,
               h1_ref, h3_ref, xp1, xc1, xp2, xc2, xp3, xc3):
        x = x_ref[0]                                                 # (L1, 20) f32
        p1 = _stage(x, xp1, xc1, w1_ref, b1_ref, L=L1, Cp=C1P_IN)    # (LO1, 256)
        h1_ref[0] = p1[:, 0:C1_OUT].astype(h1_ref.dtype)             # dense slab
        p2 = _stage(p1, xp2, xc2, w2_ref, b2_ref, L=L2, Cp=C1P_OUT)  # (LO2, 128)
        p3 = _stage(p2, xp3, xc3, w3_ref, b3_ref, L=L3, Cp=C2_OUT)   # (LO3, 64)
        h3_ref[0] = p3.astype(h3_ref.dtype)

    scratch = [
        pltpu.VMEM((L1 + 2 * PAD + 1, C1P_IN), jnp.float32),
        pltpu.VMEM((L1, K * C1P_IN), jnp.bfloat16),
        pltpu.VMEM((L2 + 2 * PAD + 1, C1P_OUT), jnp.float32),
        pltpu.VMEM((L2, K * C1P_OUT), jnp.bfloat16),
        pltpu.VMEM((L3 + 2 * PAD + 1, C2_OUT), jnp.float32),
        pltpu.VMEM((L3, K * C2_OUT), jnp.bfloat16),
    ]
    return kernel, scratch, LO1, LO3


@jax.jit
def pose_encoder_dr(y, W):
    """y: (B, L, 20) f32 -> (h3: (B, L//125, 64), h1: (B, L//5, 160))."""
    B, L, Cin = y.shape
    kernel, scratch, LO1, LO3 = _make_kernel(L)
    h1, h3 = pl.pallas_call(
        kernel,
        out_shape=(jax.ShapeDtypeStruct((B, LO1, C1_OUT), y.dtype),
                   jax.ShapeDtypeStruct((B, LO3, C3_OUT), y.dtype)),
        grid=(B,),
        in_specs=[
            pl.BlockSpec((1, L, Cin), lambda b: (b, 0, 0)),
            pl.BlockSpec(W["w1"].shape, lambda b: (0, 0)),
            pl.BlockSpec(W["b1"].shape, lambda b: (0, 0)),
            pl.BlockSpec(W["w2"].shape, lambda b: (0, 0)),
            pl.BlockSpec(W["b2"].shape, lambda b: (0, 0)),
            pl.BlockSpec(W["w3"].shape, lambda b: (0, 0)),
            pl.BlockSpec(W["b3"].shape, lambda b: (0, 0)),
        ],
        out_specs=(pl.BlockSpec((1, LO1, C1_OUT), lambda b: (b, 0, 0)),
                   pl.BlockSpec((1, LO3, C3_OUT), lambda b: (b, 0, 0))),
        scratch_shapes=scratch,
        compiler_params=pltpu.CompilerParams(
            dimension_semantics=("parallel",)),  # v7x: one batch element per TC
    )(y, W["w1"], W["b1"], W["w2"], W["b2"], W["w3"], W["b3"])
    return h3, h1


# ----------------------------- parameter glue -----------------------------

def init_params(key):
    """Deterministic synthetic parameters matching PoseEncoderDr.__init__ shapes."""
    ks = jax.random.split(key, 8)
    scale = 0.05
    return {
        # PyTorch Conv1d weight layout: (out_channels, in_channels/groups, K)
        "w1_group": jax.random.normal(ks[0], (80, 1, 15), jnp.float32) * scale,
        "b1_group": jax.random.normal(ks[1], (80,), jnp.float32) * scale,
        "w1_nogroup": jax.random.normal(ks[2], (80, 20, 15), jnp.float32) * scale,
        "b1_nogroup": jax.random.normal(ks[3], (80,), jnp.float32) * scale,
        "w2": jax.random.normal(ks[4], (128, 160, 15), jnp.float32) * scale,
        "b2": jax.random.normal(ks[5], (128,), jnp.float32) * scale,
        "w3": jax.random.normal(ks[6], (64, 128, 15), jnp.float32) * scale,
        "b3": jax.random.normal(ks[7], (64,), jnp.float32) * scale,
    }


def _im2col_weight(w_ocik, cin_pad, cout_pad):
    """(Cout, Cin, K) PyTorch conv weight -> (K*cin_pad, cout_pad) bf16 im2col matrix."""
    cout, cin, k = w_ocik.shape
    wt = jnp.transpose(w_ocik, (2, 1, 0))                       # (K, Cin, Cout)
    wt = jnp.pad(wt, ((0, 0), (0, cin_pad - cin), (0, cout_pad - cout)))
    return wt.reshape(k * cin_pad, cout_pad).astype(jnp.bfloat16)


def _pad_bias(b, cout_pad):
    return jnp.pad(b, (0, cout_pad - b.shape[0])).reshape(1, cout_pad).astype(jnp.float32)


def build_fused_weights(p):
    # Densify the grouped conv (groups=20, 4 out channels per group) into a
    # dense (80, 20, 15) weight with zeros off the group diagonal -- exact.
    oc = jnp.arange(80)
    mask = (jnp.arange(20)[None, :] == (oc // 4)[:, None]).astype(jnp.float32)
    w1g_dense = mask[:, :, None] * p["w1_group"][:, 0, :][:, None, :]   # (80,20,15)
    # torch.cat([h1_group, h1_nogroup], dim=channels) == single 20 -> 160 conv.
    w1 = jnp.concatenate([w1g_dense, p["w1_nogroup"]], axis=0)          # (160,20,15)
    b1 = jnp.concatenate([p["b1_group"], p["b1_nogroup"]], axis=0)      # (160,)
    return {
        "w1": _im2col_weight(w1, C1P_IN, C1P_OUT),        # (1920, 256) bf16
        "b1": _pad_bias(b1, C1P_OUT),                     # (1, 256)    f32
        "w2": _im2col_weight(p["w2"], C1P_OUT, C2_OUT),   # (3840, 128) bf16
        "b2": _pad_bias(p["b2"], C2_OUT),
        "w3": _im2col_weight(p["w3"], C2_OUT, C3_OUT),    # (1920, 64)  bf16
        "b3": _pad_bias(p["b3"], C3_OUT),
    }


# --------------------- pure-JAX reference (f32, XLA) ----------------------

def _conv1d_same(x_ncw, w, b, groups=1):
    out = lax.conv_general_dilated(
        x_ncw, w, window_strides=(1,), padding=[(PAD, PAD)],
        dimension_numbers=("NCH", "OIH", "NCH"), feature_group_count=groups)
    return out + b[None, :, None]


def _maxpool_ncw(x):
    b, c, l = x.shape
    lo = l // POOL
    return jnp.max(x[:, :, :lo * POOL].reshape(b, c, lo, POOL), axis=-1)


def reference_forward(y, p):
    x = jnp.transpose(y, (0, 2, 1))                                     # NCW
    h1g = _conv1d_same(x, p["w1_group"], p["b1_group"], groups=20)
    h1n = _conv1d_same(x, p["w1_nogroup"], p["b1_nogroup"])
    h1 = _maxpool_ncw(jnp.maximum(jnp.concatenate([h1g, h1n], axis=1), 0.0))
    h2 = _maxpool_ncw(jnp.maximum(_conv1d_same(h1, p["w2"], p["b2"]), 0.0))
    h3 = _maxpool_ncw(jnp.maximum(_conv1d_same(h2, p["w3"], p["b3"]), 0.0))
    return jnp.transpose(h3, (0, 2, 1)), jnp.transpose(h1, (0, 2, 1))


if __name__ == "__main__":
    key = jax.random.PRNGKey(0)
    k_param, k_data = jax.random.split(key)

    B, SEQ, FEAT = 2, 125, 20  # SEQ chosen so all three pool(5) stages are exact
    y = jax.random.normal(k_data, (B, SEQ, FEAT), jnp.float32)

    params = init_params(k_param)
    W = build_fused_weights(params)

    h3, h1 = pose_encoder_dr(y, W)
    jax.block_until_ready((h3, h1))

    assert h3.shape == (B, SEQ // 125, C3_OUT), h3.shape
    assert h1.shape == (B, SEQ // 5, C1_OUT), h1.shape

    # Sanity check vs f32 XLA reference (kernel matmuls are bf16-in / f32-acc).
    h3_ref, h1_ref = reference_forward(y, params)
    for got, ref in ((h1, h1_ref), (h3, h3_ref)):
        err = jnp.max(jnp.abs(got - ref)) / (jnp.max(jnp.abs(ref)) + 1e-6)
        assert float(err) < 6e-2, float(err)

    print("KERNEL_OK")
</pallas_src>

<mosaic_0001>
module attributes {stable_mosaic.version = 11 : i64} {
  func.func @kernel(%arg0: i32, %arg1: memref<1x125x20xf32, #tpu.memory_space<vmem>>, %arg2: memref<1920x256xbf16, #tpu.memory_space<vmem>>, %arg3: memref<1x256xf32, #tpu.memory_space<vmem>>, %arg4: memref<3840x128xbf16, #tpu.memory_space<vmem>>, %arg5: memref<1x128xf32, #tpu.memory_space<vmem>>, %arg6: memref<1920x64xbf16, #tpu.memory_space<vmem>>, %arg7: memref<1x64xf32, #tpu.memory_space<vmem>>, %arg8: memref<1x25x160xf32, #tpu.memory_space<vmem>>, %arg9: memref<1x1x64xf32, #tpu.memory_space<vmem>>, %arg10: memref<140x128xf32, #tpu.memory_space<vmem>>, %arg11: memref<125x1920xbf16, #tpu.memory_space<vmem>>, %arg12: memref<40x256xf32, #tpu.memory_space<vmem>>, %arg13: memref<25x3840xbf16, #tpu.memory_space<vmem>>, %arg14: memref<20x128xf32, #tpu.memory_space<vmem>>, %arg15: memref<5x1920xbf16, #tpu.memory_space<vmem>>) attributes {dimension_semantics = [#tpu.dimension_semantics<parallel>], iteration_bounds = array<i64: 2>, scalar_prefetch = 0 : i64, scratch_operands = 6 : i64, tpu.core_type = #tpu.core_type<tc>, window_params = [{transform_indices = @transform_0, window_bounds = array<i64: 1, 125, 20>}, {pipeline_mode = #tpu.pipeline_mode<synchronous>, transform_indices = @transform_1, window_bounds = array<i64: 1920, 256>}, {pipeline_mode = #tpu.pipeline_mode<synchronous>, transform_indices = @transform_2, window_bounds = array<i64: 1, 256>}, {pipeline_mode = #tpu.pipeline_mode<synchronous>, transform_indices = @transform_3, window_bounds = array<i64: 3840, 128>}, {pipeline_mode = #tpu.pipeline_mode<synchronous>, transform_indices = @transform_4, window_bounds = array<i64: 1, 128>}, {pipeline_mode = #tpu.pipeline_mode<synchronous>, transform_indices = @transform_5, window_bounds = array<i64: 1920, 64>}, {pipeline_mode = #tpu.pipeline_mode<synchronous>, transform_indices = @transform_6, window_bounds = array<i64: 1, 64>}, {transform_indices = @transform_7, window_bounds = array<i64: 1, 25, 160>}, {transform_indices = @transform_8, window_bounds = array<i64: 1, 1, 64>}]} {
    %c0 = arith.constant 0 : index
    %c0_0 = arith.constant 0 : index
    %c0_1 = arith.constant 0 : index
    %0 = vector.load %arg1[%c0, %c0_0, %c0_1] : memref<1x125x20xf32, #tpu.memory_space<vmem>>, vector<1x125x20xf32>
    %1 = vector.shape_cast %0 : vector<1x125x20xf32> to vector<125x20xf32>
    %cst = arith.constant 0.000000e+00 : f32
    %2 = vector.broadcast %cst : f32 to vector<140x128xf32>
    %c0_2 = arith.constant 0 : index
    %c0_3 = arith.constant 0 : index
    %3 = vector.load %arg10[%c0_2, %c0_3] : memref<140x128xf32, #tpu.memory_space<vmem>>, vector<140x128xf32>
    tpu.vector_store %arg10[%c0_2, %c0_3], %2 {strides = array<i32>} : memref<140x128xf32, #tpu.memory_space<vmem>>, vector<140x128xf32>,
    %c8 = arith.constant 8 : index
    %c0_4 = arith.constant 0 : index
    %4 = vector.load %arg10[%c8, %c0_4] : memref<140x128xf32, #tpu.memory_space<vmem>>, vector<125x20xf32>
    tpu.vector_store %arg10[%c8, %c0_4], %1 {strides = array<i32>} : memref<140x128xf32, #tpu.memory_space<vmem>>, vector<125x20xf32>,
    %c0_5 = arith.constant 0 : index
    %c0_6 = arith.constant 0 : index
    %5 = vector.load %arg10[%c0_5, %c0_6] : memref<140x128xf32, #tpu.memory_space<vmem>>, vector<140x128xf32>
    %6 = vector.extract_strided_slice %5 {offsets = [1, 0], sizes = [125, 128], strides = [1, 1]} : vector<140x128xf32> to vector<125x128xf32>
    %7 = arith.truncf %6 : vector<125x128xf32> to vector<125x128xbf16>
    %c0_7 = arith.constant 0 : index
    %c0_8 = arith.constant 0 : index
    %8 = vector.load %arg11[%c0_7, %c0_8] : memref<125x1920xbf16, #tpu.memory_space<vmem>>, vector<125x128xbf16>
    tpu.vector_store %arg11[%c0_7, %c0_8], %7 {strides = array<i32>} : memref<125x1920xbf16, #tpu.memory_space<vmem>>, vector<125x128xbf16>,
    %9 = vector.extract_strided_slice %5 {offsets = [2, 0], sizes = [125, 128], strides = [1, 1]} : vector<140x128xf32> to vector<125x128xf32>
    %10 = arith.truncf %9 : vector<125x128xf32> to vector<125x128xbf16>
    %c0_9 = arith.constant 0 : index
    %c128 = arith.constant 128 : index
    %11 = vector.load %arg11[%c0_9, %c128] : memref<125x1920xbf16, #tpu.memory_space<vmem>>, vector<125x128xbf16>
    tpu.vector_store %arg11[%c0_9, %c128], %10 {strides = array<i32>} : memref<125x1920xbf16, #tpu.memory_space<vmem>>, vector<125x128xbf16>,
    %12 = vector.extract_strided_slice %5 {offsets = [3, 0], sizes = [125, 128], strides = [1, 1]} : vector<140x128xf32> to vector<125x128xf32>
    %13 = arith.truncf %12 : vector<125x128xf32> to vector<125x128xbf16>
    %c0_10 = arith.constant 0 : index
    %c256 = arith.constant 256 : index
    %14 = vector.load %arg11[%c0_10, %c256] : memref<125x1920xbf16, #tpu.memory_space<vmem>>, vector<125x128xbf16>
    tpu.vector_store %arg11[%c0_10, %c256], %13 {strides = array<i32>} : memref<125x1920xbf16, #tpu.memory_space<vmem>>, vector<125x128xbf16>,
    %15 = vector.extract_strided_slice %5 {offsets = [4, 0], sizes = [125, 128], strides = [1, 1]} : vector<140x128xf32> to vector<125x128xf32>
    %16 = arith.truncf %15 : vector<125x128xf32> to vector<125x128xbf16>
    %c0_11 = arith.constant 0 : index
    %c384 = arith.constant 384 : index
    %17 = vector.load %arg11[%c0_11, %c384] : memref<125x1920xbf16, #tpu.memory_space<vmem>>, vector<125x128xbf16>
    tpu.vector_store %arg11[%c0_11, %c384], %16 {strides = array<i32>} : memref<125x1920xbf16, #tpu.memory_space<vmem>>, vector<125x128xbf16>,
    %18 = vector.extract_strided_slice %5 {offsets = [5, 0], sizes = [125, 128], strides = [1, 1]} : vector<140x128xf32> to vector<125x128xf32>
    %19 = arith.truncf %18 : vector<125x128xf32> to vector<125x128xbf16>
    %c0_12 = arith.constant 0 : index
    %c512 = arith.constant 512 : index
    %20 = vector.load %arg11[%c0_12, %c512] : memref<125x1920xbf16, #tpu.memory_space<vmem>>, vector<125x128xbf16>
    tpu.vector_store %arg11[%c0_12, %c512], %19 {strides = array<i32>} : memref<125x1920xbf16, #tpu.memory_space<vmem>>, vector<125x128xbf16>,
    %21 = vector.extract_strided_slice %5 {offsets = [6, 0], sizes = [125, 128], strides = [1, 1]} : vector<140x128xf32> to vector<125x128xf32>
    %22 = arith.truncf %21 : vector<125x128xf32> to vector<125x128xbf16>
    %c0_13 = arith.constant 0 : index
    %c640 = arith.constant 640 : index
    %23 = vector.load %arg11[%c0_13, %c640] : memref<125x1920xbf16, #tpu.memory_space<vmem>>, vector<125x128xbf16>
    tpu.vector_store %arg11[%c0_13, %c640], %22 {strides = array<i32>} : memref<125x1920xbf16, #tpu.memory_space<vmem>>, vector<125x128xbf16>,
    %24 = vector.extract_strided_slice %5 {offsets = [7, 0], sizes = [125, 128], strides = [1, 1]} : vector<140x128xf32> to vector<125x128xf32>
    %25 = arith.truncf %24 : vector<125x128xf32> to vector<125x128xbf16>
    %c0_14 = arith.constant 0 : index
    %c768 = arith.constant 768 : index
    %26 = vector.load %arg11[%c0_14, %c768] : memref<125x1920xbf16, #tpu.memory_space<vmem>>, vector<125x128xbf16>
    tpu.vector_store %arg11[%c0_14, %c768], %25 {strides = array<i32>} : memref<125x1920xbf16, #tpu.memory_space<vmem>>, vector<125x128xbf16>,
    %27 = vector.extract_strided_slice %5 {offsets = [8, 0], sizes = [125, 128], strides = [1, 1]} : vector<140x128xf32> to vector<125x128xf32>
    %28 = arith.truncf %27 : vector<125x128xf32> to vector<125x128xbf16>
    %c0_15 = arith.constant 0 : index
    %c896 = arith.constant 896 : index
    %29 = vector.load %arg11[%c0_15, %c896] : memref<125x1920xbf16, #tpu.memory_space<vmem>>, vector<125x128xbf16>
    tpu.vector_store %arg11[%c0_15, %c896], %28 {strides = array<i32>} : memref<125x1920xbf16, #tpu.memory_space<vmem>>, vector<125x128xbf16>,
    %30 = vector.extract_strided_slice %5 {offsets = [9, 0], sizes = [125, 128], strides = [1, 1]} : vector<140x128xf32> to vector<125x128xf32>
    %31 = arith.truncf %30 : vector<125x128xf32> to vector<125x128xbf16>
    %c0_16 = arith.constant 0 : index
    %c1024 = arith.constant 1024 : index
    %32 = vector.load %arg11[%c0_16, %c1024] : memref<125x1920xbf16, #tpu.memory_space<vmem>>, vector<125x128xbf16>
    tpu.vector_store %arg11[%c0_16, %c1024], %31 {strides = array<i32>} : memref<125x1920xbf16, #tpu.memory_space<vmem>>, vector<125x128xbf16>,
    %33 = vector.extract_strided_slice %5 {offsets = [10, 0], sizes = [125, 128], strides = [1, 1]} : vector<140x128xf32> to vector<125x128xf32>
    %34 = arith.truncf %33 : vector<125x128xf32> to vector<125x128xbf16>
    %c0_17 = arith.constant 0 : index
    %c1152 = arith.constant 1152 : index
    %35 = vector.load %arg11[%c0_17, %c1152] : memref<125x1920xbf16, #tpu.memory_space<vmem>>, vector<125x128xbf16>
    tpu.vector_store %arg11[%c0_17, %c1152], %34 {strides = array<i32>} : memref<125x1920xbf16, #tpu.memory_space<vmem>>, vector<125x128xbf16>,
    %36 = vector.extract_strided_slice %5 {offsets = [11, 0], sizes = [125, 128], strides = [1, 1]} : vector<140x128xf32> to vector<125x128xf32>
    %37 = arith.truncf %36 : vector<125x128xf32> to vector<125x128xbf16>
    %c0_18 = arith.constant 0 : index
    %c1280 = arith.constant 1280 : index
    %38 = vector.load %arg11[%c0_18, %c1280] : memref<125x1920xbf16, #tpu.memory_space<vmem>>, vector<125x128xbf16>
    tpu.vector_store %arg11[%c0_18, %c1280], %37 {strides = array<i32>} : memref<125x1920xbf16, #tpu.memory_space<vmem>>, vector<125x128xbf16>,
    %39 = vector.extract_strided_slice %5 {offsets = [12, 0], sizes = [125, 128], strides = [1, 1]} : vector<140x128xf32> to vector<125x128xf32>
    %40 = arith.truncf %39 : vector<125x128xf32> to vector<125x128xbf16>
    %c0_19 = arith.constant 0 : index
    %c1408 = arith.constant 1408 : index
    %41 = vector.load %arg11[%c0_19, %c1408] : memref<125x1920xbf16, #tpu.memory_space<vmem>>, vector<125x128xbf16>
    tpu.vector_store %arg11[%c0_19, %c1408], %40 {strides = array<i32>} : memref<125x1920xbf16, #tpu.memory_space<vmem>>, vector<125x128xbf16>,
    %42 = vector.extract_strided_slice %5 {offsets = [13, 0], sizes = [125, 128], strides = [1, 1]} : vector<140x128xf32> to vector<125x128xf32>
    %43 = arith.truncf %42 : vector<125x128xf32> to vector<125x128xbf16>
    %c0_20 = arith.constant 0 : index
    %c1536 = arith.constant 1536 : index
    %44 = vector.load %arg11[%c0_20, %c1536] : memref<125x1920xbf16, #tpu.memory_space<vmem>>, vector<125x128xbf16>
    tpu.vector_store %arg11[%c0_20, %c1536], %43 {strides = array<i32>} : memref<125x1920xbf16, #tpu.memory_space<vmem>>, vector<125x128xbf16>,
    %45 = vector.extract_strided_slice %5 {offsets = [14, 0], sizes = [125, 128], strides = [1, 1]} : vector<140x128xf32> to vector<125x128xf32>
    %46 = arith.truncf %45 : vector<125x128xf32> to vector<125x128xbf16>
    %c0_21 = arith.constant 0 : index
    %c1664 = arith.constant 1664 : index
    %47 = vector.load %arg11[%c0_21, %c1664] : memref<125x1920xbf16, #tpu.memory_space<vmem>>, vector<125x128xbf16>
    tpu.vector_store %arg11[%c0_21, %c1664], %46 {strides = array<i32>} : memref<125x1920xbf16, #tpu.memory_space<vmem>>, vector<125x128xbf16>,
    %48 = vector.extract_strided_slice %5 {offsets = [15, 0], sizes = [125, 128], strides = [1, 1]} : vector<140x128xf32> to vector<125x128xf32>
    %49 = arith.truncf %48 : vector<125x128xf32> to vector<125x128xbf16>
    %c0_22 = arith.constant 0 : index
    %c1792 = arith.constant 1792 : index
    %50 = vector.load %arg11[%c0_22, %c1792] : memref<125x1920xbf16, #tpu.memory_space<vmem>>, vector<125x128xbf16>
    tpu.vector_store %arg11[%c0_22, %c1792], %49 {strides = array<i32>} : memref<125x1920xbf16, #tpu.memory_space<vmem>>, vector<125x128xbf16>,
    %c0_23 = arith.constant 0 : index
    %c0_24 = arith.constant 0 : index
    %51 = vector.load %arg11[%c0_23, %c0_24] : memref<125x1920xbf16, #tpu.memory_space<vmem>>, vector<125x1920xbf16>
    %c0_25 = arith.constant 0 : index
    %c0_26 = arith.constant 0 : index
    %52 = vector.load %arg2[%c0_25, %c0_26] : memref<1920x256xbf16, #tpu.memory_space<vmem>>, vector<1920x256xbf16>
    %cst_27 = arith.constant dense<0.000000e+00> : vector<125x256xf32>
    %53 = tpu.matmul %51, %52, %cst_27 {dimension_numbers = #tpu.dot_dimension_numbers<[1], [0], [0], [1], [0, 0, 1, 1], [], []>} : vector<125x1920xbf16>, vector<1920x256xbf16>, vector<125x256xf32> -> vector<125x256xf32>
    %c0_28 = arith.constant 0 : index
    %c0_29 = arith.constant 0 : index
    %54 = vector.load %arg3[%c0_28, %c0_29] : memref<1x256xf32, #tpu.memory_space<vmem>>, vector<1x256xf32>
    %55 = vector.broadcast %54 : vector<1x256xf32> to vector<125x256xf32>
    %56 = arith.addf %53, %55 : vector<125x256xf32>
    %cst_30 = arith.constant 0.000000e+00 : f32
    %57 = vector.broadcast %cst_30 : f32 to vector<125x256xf32>
    %58 = arith.maximumf %56, %57 : vector<125x256xf32>
    %59 = vector.extract_strided_slice %58 {offsets = [0, 0], sizes = [121, 256], strides = [1, 1]} : vector<125x256xf32> to vector<121x256xf32>
    %60 = vector.extract_strided_slice %58 {offsets = [1, 0], sizes = [121, 256], strides = [1, 1]} : vector<125x256xf32> to vector<121x256xf32>
    %61 = arith.maximumf %59, %60 : vector<121x256xf32>
    %62 = vector.extract_strided_slice %58 {offsets = [2, 0], sizes = [121, 256], strides = [1, 1]} : vector<125x256xf32> to vector<121x256xf32>
    %63 = arith.maximumf %61, %62 : vector<121x256xf32>
    %64 = vector.extract_strided_slice %58 {offsets = [3, 0], sizes = [121, 256], strides = [1, 1]} : vector<125x256xf32> to vector<121x256xf32>
    %65 = arith.maximumf %63, %64 : vector<121x256xf32>
    %66 = vector.extract_strided_slice %58 {offsets = [4, 0], sizes = [121, 256], strides = [1, 1]} : vector<125x256xf32> to vector<121x256xf32>
    %67 = arith.maximumf %65, %66 : vector<121x256xf32>
    %68 = tpu.iota {dimensions = array<i32: 0>} : vector<25x121xi32>
    %69 = tpu.iota {dimensions = array<i32: 1>} : vector<25x121xi32>
    %c5_i32 = arith.constant 5 : i32
    %70 = vector.broadcast %c5_i32 : i32 to vector<25x121xi32>
    %71 = arith.muli %68, %70 : vector<25x121xi32>
    %72 = arith.cmpi eq, %69, %71 : vector<25x121xi32>
    %73 = arith.extui %72 : vector<25x121xi1> to vector<25x121xi32>
    %74 = arith.sitofp %73 : vector<25x121xi32> to vector<25x121xf32>
    %cst_31 = arith.constant dense<0.000000e+00> : vector<25x256xf32>
    %75 = tpu.matmul %74, %67, %cst_31 {dimension_numbers = #tpu.dot_dimension_numbers<[1], [0], [0], [1], [0, 0, 1, 1], [], []>} : vector<25x121xf32>, vector<121x256xf32>, vector<25x256xf32> -> vector<25x256xf32>
    %76 = vector.extract_strided_slice %75 {offsets = [0, 0], sizes = [25, 160], strides = [1, 1]} : vector<25x256xf32> to vector<25x160xf32>
    %c0_32 = arith.constant 0 : index
    %c0_33 = arith.constant 0 : index
    %c0_34 = arith.constant 0 : index
    %77 = vector.load %arg8[%c0_32, %c0_33, %c0_34] : memref<1x25x160xf32, #tpu.memory_space<vmem>>, vector<1x25x160xf32>
    %78 = vector.shape_cast %77 : vector<1x25x160xf32> to vector<25x160xf32>
    %79 = vector.shape_cast %76 : vector<25x160xf32> to vector<1x25x160xf32>
    tpu.vector_store %arg8[%c0_32, %c0_33, %c0_34], %79 {strides = array<i32>} : memref<1x25x160xf32, #tpu.memory_space<vmem>>, vector<1x25x160xf32>,
    %cst_35 = arith.constant 0.000000e+00 : f32
    %80 = vector.broadcast %cst_35 : f32 to vector<40x256xf32>
    %c0_36 = arith.constant 0 : index
    %c0_37 = arith.constant 0 : index
    %81 = vector.load %arg12[%c0_36, %c0_37] : memref<40x256xf32, #tpu.memory_space<vmem>>, vector<40x256xf32>
    tpu.vector_store %arg12[%c0_36, %c0_37], %80 {strides = array<i32>} : memref<40x256xf32, #tpu.memory_space<vmem>>, vector<40x256xf32>,
    %c8_38 = arith.constant 8 : index
    %c0_39 = arith.constant 0 : index
    %82 = vector.load %arg12[%c8_38, %c0_39] : memref<40x256xf32, #tpu.memory_space<vmem>>, vector<25x256xf32>
    tpu.vector_store %arg12[%c8_38, %c0_39], %75 {strides = array<i32>} : memref<40x256xf32, #tpu.memory_space<vmem>>, vector<25x256xf32>,
    %c0_40 = arith.constant 0 : index
    %c0_41 = arith.constant 0 : index
    %83 = vector.load %arg12[%c0_40, %c0_41] : memref<40x256xf32, #tpu.memory_space<vmem>>, vector<40x256xf32>
    %84 = vector.extract_strided_slice %83 {offsets = [1, 0], sizes = [25, 256], strides = [1, 1]} : vector<40x256xf32> to vector<25x256xf32>
    %85 = arith.truncf %84 : vector<25x256xf32> to vector<25x256xbf16>
    %c0_42 = arith.constant 0 : index
    %c0_43 = arith.constant 0 : index
    %86 = vector.load %arg13[%c0_42, %c0_43] : memref<25x3840xbf16, #tpu.memory_space<vmem>>, vector<25x256xbf16>
    tpu.vector_store %arg13[%c0_42, %c0_43], %85 {strides = array<i32>} : memref<25x3840xbf16, #tpu.memory_space<vmem>>, vector<25x256xbf16>,
    %87 = vector.extract_strided_slice %83 {offsets = [2, 0], sizes = [25, 256], strides = [1, 1]} : vector<40x256xf32> to vector<25x256xf32>
    %88 = arith.truncf %87 : vector<25x256xf32> to vector<25x256xbf16>
    %c0_44 = arith.constant 0 : index
    %c256_45 = arith.constant 256 : index
    %89 = vector.load %arg13[%c0_44, %c256_45] : memref<25x3840xbf16, #tpu.memory_space<vmem>>, vector<25x256xbf16>
    tpu.vector_store %arg13[%c0_44, %c256_45], %88 {strides = array<i32>} : memref<25x3840xbf16, #tpu.memory_space<vmem>>, vector<25x256xbf16>,
    %90 = vector.extract_strided_slice %83 {offsets = [3, 0], sizes = [25, 256], strides = [1, 1]} : vector<40x256xf32> to vector<25x256xf32>
    %91 = arith.truncf %90 : vector<25x256xf32> to vector<25x256xbf16>
    %c0_46 = arith.constant 0 : index
    %c512_47 = arith.constant 512 : index
    %92 = vector.load %arg13[%c0_46, %c512_47] : memref<25x3840xbf16, #tpu.memory_space<vmem>>, vector<25x256xbf16>
    tpu.vector_store %arg13[%c0_46, %c512_47], %91 {strides = array<i32>} : memref<25x3840xbf16, #tpu.memory_space<vmem>>, vector<25x256xbf16>,
    %93 = vector.extract_strided_slice %83 {offsets = [4, 0], sizes = [25, 256], strides = [1, 1]} : vector<40x256xf32> to vector<25x256xf32>
    %94 = arith.truncf %93 : vector<25x256xf32> to vector<25x256xbf16>
    %c0_48 = arith.constant 0 : index
    %c768_49 = arith.constant 768 : index
    %95 = vector.load %arg13[%c0_48, %c768_49] : memref<25x3840xbf16, #tpu.memory_space<vmem>>, vector<25x256xbf16>
    tpu.vector_store %arg13[%c0_48, %c768_49], %94 {strides = array<i32>} : memref<25x3840xbf16, #tpu.memory_space<vmem>>, vector<25x256xbf16>,
    %96 = vector.extract_strided_slice %83 {offsets = [5, 0], sizes = [25, 256], strides = [1, 1]} : vector<40x256xf32> to vector<25x256xf32>
    %97 = arith.truncf %96 : vector<25x256xf32> to vector<25x256xbf16>
    %c0_50 = arith.constant 0 : index
    %c1024_51 = arith.constant 1024 : index
    %98 = vector.load %arg13[%c0_50, %c1024_51] : memref<25x3840xbf16, #tpu.memory_space<vmem>>, vector<25x256xbf16>
    tpu.vector_store %arg13[%c0_50, %c1024_51], %97 {strides = array<i32>} : memref<25x3840xbf16, #tpu.memory_space<vmem>>, vector<25x256xbf16>,
    %99 = vector.extract_strided_slice %83 {offsets = [6, 0], sizes = [25, 256], strides = [1, 1]} : vector<40x256xf32> to vector<25x256xf32>
    %100 = arith.truncf %99 : vector<25x256xf32> to vector<25x256xbf16>
    %c0_52 = arith.constant 0 : index
    %c1280_53 = arith.constant 1280 : index
    %101 = vector.load %arg13[%c0_52, %c1280_53] : memref<25x3840xbf16, #tpu.memory_space<vmem>>, vector<25x256xbf16>
    tpu.vector_store %arg13[%c0_52, %c1280_53], %100 {strides = array<i32>} : memref<25x3840xbf16, #tpu.memory_space<vmem>>, vector<25x256xbf16>,
    %102 = vector.extract_strided_slice %83 {offsets = [7, 0], sizes = [25, 256], strides = [1, 1]} : vector<40x256xf32> to vector<25x256xf32>
    %103 = arith.truncf %102 : vector<25x256xf32> to vector<25x256xbf16>
    %c0_54 = arith.constant 0 : index
    %c1536_55 = arith.constant 1536 : index
    %104 = vector.load %arg13[%c0_54, %c1536_55] : memref<25x3840xbf16, #tpu.memory_space<vmem>>, vector<25x256xbf16>
    tpu.vector_store %arg13[%c0_54, %c1536_55], %103 {strides = array<i32>} : memref<25x3840xbf16, #tpu.memory_space<vmem>>, vector<25x256xbf16>,
    %105 = vector.extract_strided_slice %83 {offsets = [8, 0], sizes = [25, 256], strides = [1, 1]} : vector<40x256xf32> to vector<25x256xf32>
    %106 = arith.truncf %105 : vector<25x256xf32> to vector<25x256xbf16>
    %c0_56 = arith.constant 0 : index
    %c1792_57 = arith.constant 1792 : index
    %107 = vector.load %arg13[%c0_56, %c1792_57] : memref<25x3840xbf16, #tpu.memory_space<vmem>>, vector<25x256xbf16>
    tpu.vector_store %arg13[%c0_56, %c1792_57], %106 {strides = array<i32>} : memref<25x3840xbf16, #tpu.memory_space<vmem>>, vector<25x256xbf16>,
    %108 = vector.extract_strided_slice %83 {offsets = [9, 0], sizes = [25, 256], strides = [1, 1]} : vector<40x256xf32> to vector<25x256xf32>
    %109 = arith.truncf %108 : vector<25x256xf32> to vector<25x256xbf16>
    %c0_58 = arith.constant 0 : index
    %c2048 = arith.constant 2048 : index
    %110 = vector.load %arg13[%c0_58, %c2048] : memref<25x3840xbf16, #tpu.memory_space<vmem>>, vector<25x256xbf16>
    tpu.vector_store %arg13[%c0_58, %c2048], %109 {strides = array<i32>} : memref<25x3840xbf16, #tpu.memory_space<vmem>>, vector<25x256xbf16>,
    %111 = vector.extract_strided_slice %83 {offsets = [10, 0], sizes = [25, 256], strides = [1, 1]} : vector<40x256xf32> to vector<25x256xf32>
    %112 = arith.truncf %111 : vector<25x256xf32> to vector<25x256xbf16>
    %c0_59 = arith.constant 0 : index
    %c2304 = arith.constant 2304 : index
    %113 = vector.load %arg13[%c0_59, %c2304] : memref<25x3840xbf16, #tpu.memory_space<vmem>>, vector<25x256xbf16>
    tpu.vector_store %arg13[%c0_59, %c2304], %112 {strides = array<i32>} : memref<25x3840xbf16, #tpu.memory_space<vmem>>, vector<25x256xbf16>,
    %114 = vector.extract_strided_slice %83 {offsets = [11, 0], sizes = [25, 256], strides = [1, 1]} : vector<40x256xf32> to vector<25x256xf32>
    %115 = arith.truncf %114 : vector<25x256xf32> to vector<25x256xbf16>
    %c0_60 = arith.constant 0 : index
    %c2560 = arith.constant 2560 : index
    %116 = vector.load %arg13[%c0_60, %c2560] : memref<25x3840xbf16, #tpu.memory_space<vmem>>, vector<25x256xbf16>
    tpu.vector_store %arg13[%c0_60, %c2560], %115 {strides = array<i32>} : memref<25x3840xbf16, #tpu.memory_space<vmem>>, vector<25x256xbf16>,
    %117 = vector.extract_strided_slice %83 {offsets = [12, 0], sizes = [25, 256], strides = [1, 1]} : vector<40x256xf32> to vector<25x256xf32>
    %118 = arith.truncf %117 : vector<25x256xf32> to vector<25x256xbf16>
    %c0_61 = arith.constant 0 : index
    %c2816 = arith.constant 2816 : index
    %119 = vector.load %arg13[%c0_61, %c2816] : memref<25x3840xbf16, #tpu.memory_space<vmem>>, vector<25x256xbf16>
    tpu.vector_store %arg13[%c0_61, %c2816], %118 {strides = array<i32>} : memref<25x3840xbf16, #tpu.memory_space<vmem>>, vector<25x256xbf16>,
    %120 = vector.extract_strided_slice %83 {offsets = [13, 0], sizes = [25, 256], strides = [1, 1]} : vector<40x256xf32> to vector<25x256xf32>
    %121 = arith.truncf %120 : vector<25x256xf32> to vector<25x256xbf16>
    %c0_62 = arith.constant 0 : index
    %c3072 = arith.constant 3072 : index
    %122 = vector.load %arg13[%c0_62, %c3072] : memref<25x3840xbf16, #tpu.memory_space<vmem>>, vector<25x256xbf16>
    tpu.vector_store %arg13[%c0_62, %c3072], %121 {strides = array<i32>} : memref<25x3840xbf16, #tpu.memory_space<vmem>>, vector<25x256xbf16>,
    %123 = vector.extract_strided_slice %83 {offsets = [14, 0], sizes = [25, 256], strides = [1, 1]} : vector<40x256xf32> to vector<25x256xf32>
    %124 = arith.truncf %123 : vector<25x256xf32> to vector<25x256xbf16>
    %c0_63 = arith.constant 0 : index
    %c3328 = arith.constant 3328 : index
    %125 = vector.load %arg13[%c0_63, %c3328] : memref<25x3840xbf16, #tpu.memory_space<vmem>>, vector<25x256xbf16>
    tpu.vector_store %arg13[%c0_63, %c3328], %124 {strides = array<i32>} : memref<25x3840xbf16, #tpu.memory_space<vmem>>, vector<25x256xbf16>,
    %126 = vector.extract_strided_slice %83 {offsets = [15, 0], sizes = [25, 256], strides = [1, 1]} : vector<40x256xf32> to vector<25x256xf32>
    %127 = arith.truncf %126 : vector<25x256xf32> to vector<25x256xbf16>
    %c0_64 = arith.constant 0 : index
    %c3584 = arith.constant 3584 : index
    %128 = vector.load %arg13[%c0_64, %c3584] : memref<25x3840xbf16, #tpu.memory_space<vmem>>, vector<25x256xbf16>
    tpu.vector_store %arg13[%c0_64, %c3584], %127 {strides = array<i32>} : memref<25x3840xbf16, #tpu.memory_space<vmem>>, vector<25x256xbf16>,
    %c0_65 = arith.constant 0 : index
    %c0_66 = arith.constant 0 : index
    %129 = vector.load %arg13[%c0_65, %c0_66] : memref<25x3840xbf16, #tpu.memory_space<vmem>>, vector<25x3840xbf16>
    %c0_67 = arith.constant 0 : index
    %c0_68 = arith.constant 0 : index
    %130 = vector.load %arg4[%c0_67, %c0_68] : memref<3840x128xbf16, #tpu.memory_space<vmem>>, vector<3840x128xbf16>
    %cst_69 = arith.constant dense<0.000000e+00> : vector<25x128xf32>
    %131 = tpu.matmul %129, %130, %cst_69 {dimension_numbers = #tpu.dot_dimension_numbers<[1], [0], [0], [1], [0, 0, 1, 1], [], []>} : vector<25x3840xbf16>, vector<3840x128xbf16>, vector<25x128xf32> -> vector<25x128xf32>
    %c0_70 = arith.constant 0 : index
    %c0_71 = arith.constant 0 : index
    %132 = vector.load %arg5[%c0_70, %c0_71] : memref<1x128xf32, #tpu.memory_space<vmem>>, vector<1x128xf32>
    %133 = vector.broadcast %132 : vector<1x128xf32> to vector<25x128xf32>
    %134 = arith.addf %131, %133 : vector<25x128xf32>
    %cst_72 = arith.constant 0.000000e+00 : f32
    %135 = vector.broadcast %cst_72 : f32 to vector<25x128xf32>
    %136 = arith.maximumf %134, %135 : vector<25x128xf32>
    %137 = vector.extract_strided_slice %136 {offsets = [0, 0], sizes = [21, 128], strides = [1, 1]} : vector<25x128xf32> to vector<21x128xf32>
    %138 = vector.extract_strided_slice %136 {offsets = [1, 0], sizes = [21, 128], strides = [1, 1]} : vector<25x128xf32> to vector<21x128xf32>
    %139 = arith.maximumf %137, %138 : vector<21x128xf32>
    %140 = vector.extract_strided_slice %136 {offsets = [2, 0], sizes = [21, 128], strides = [1, 1]} : vector<25x128xf32> to vector<21x128xf32>
    %141 = arith.maximumf %139, %140 : vector<21x128xf32>
    %142 = vector.extract_strided_slice %136 {offsets = [3, 0], sizes = [21, 128], strides = [1, 1]} : vector<25x128xf32> to vector<21x128xf32>
    %143 = arith.maximumf %141, %142 : vector<21x128xf32>
    %144 = vector.extract_strided_slice %136 {offsets = [4, 0], sizes = [21, 128], strides = [1, 1]} : vector<25x128xf32> to vector<21x128xf32>
    %145 = arith.maximumf %143, %144 : vector<21x128xf32>
    %146 = tpu.iota {dimensions = array<i32: 0>} : vector<5x21xi32>
    %147 = tpu.iota {dimensions = array<i32: 1>} : vector<5x21xi32>
    %c5_i32_73 = arith.constant 5 : i32
    %148 = vector.broadcast %c5_i32_73 : i32 to vector<5x21xi32>
    %149 = arith.muli %146, %148 : vector<5x21xi32>
    %150 = arith.cmpi eq, %147, %149 : vector<5x21xi32>
    %151 = arith.extui %150 : vector<5x21xi1> to vector<5x21xi32>
    %152 = arith.sitofp %151 : vector<5x21xi32> to vector<5x21xf32>
    %cst_74 = arith.constant dense<0.000000e+00> : vector<5x128xf32>
    %153 = tpu.matmul %152, %145, %cst_74 {dimension_numbers = #tpu.dot_dimension_numbers<[1], [0], [0], [1], [0, 0, 1, 1], [], []>} : vector<5x21xf32>, vector<21x128xf32>, vector<5x128xf32> -> vector<5x128xf32>
    %cst_75 = arith.constant 0.000000e+00 : f32
    %154 = vector.broadcast %cst_75 : f32 to vector<20x128xf32>
    %c0_76 = arith.constant 0 : index
    %c0_77 = arith.constant 0 : index
    %155 = vector.load %arg14[%c0_76, %c0_77] : memref<20x128xf32, #tpu.memory_space<vmem>>, vector<20x128xf32>
    tpu.vector_store %arg14[%c0_76, %c0_77], %154 {strides = array<i32>} : memref<20x128xf32, #tpu.memory_space<vmem>>, vector<20x128xf32>,
    %c8_78 = arith.constant 8 : index
    %c0_79 = arith.constant 0 : index
    %156 = vector.load %arg14[%c8_78, %c0_79] : memref<20x128xf32, #tpu.memory_space<vmem>>, vector<5x128xf32>
    tpu.vector_store %arg14[%c8_78, %c0_79], %153 {strides = array<i32>} : memref<20x128xf32, #tpu.memory_space<vmem>>, vector<5x128xf32>,
    %c0_80 = arith.constant 0 : index
    %c0_81 = arith.constant 0 : index
    %157 = vector.load %arg14[%c0_80, %c0_81] : memref<20x128xf32, #tpu.memory_space<vmem>>, vector<20x128xf32>
    %158 = vector.extract_strided_slice %157 {offsets = [1, 0], sizes = [5, 128], strides = [1, 1]} : vector<20x128xf32> to vector<5x128xf32>
    %159 = arith.truncf %158 : vector<5x128xf32> to vector<5x128xbf16>
    %c0_82 = arith.constant 0 : index
    %c0_83 = arith.constant 0 : index
    %160 = vector.load %arg15[%c0_82, %c0_83] : memref<5x1920xbf16, #tpu.memory_space<vmem>>, vector<5x128xbf16>
    tpu.vector_store %arg15[%c0_82, %c0_83], %159 {strides = array<i32>} : memref<5x1920xbf16, #tpu.memory_space<vmem>>, vector<5x128xbf16>,
    %161 = vector.extract_strided_slice %157 {offsets = [2, 0], sizes = [5, 128], strides = [1, 1]} : vector<20x128xf32> to vector<5x128xf32>
    %162 = arith.truncf %161 : vector<5x128xf32> to vector<5x128xbf16>
    %c0_84 = arith.constant 0 : index
    %c128_85 = arith.constant 128 : index
    %163 = vector.load %arg15[%c0_84, %c128_85] : memref<5x1920xbf16, #tpu.memory_space<vmem>>, vector<5x128xbf16>
    tpu.vector_store %arg15[%c0_84, %c128_85], %162 {strides = array<i32>} : memref<5x1920xbf16, #tpu.memory_space<vmem>>, vector<5x128xbf16>,
    %164 = vector.extract_strided_slice %157 {offsets = [3, 0], sizes = [5, 128], strides = [1, 1]} : vector<20x128xf32> to vector<5x128xf32>
    %165 = arith.truncf %164 : vector<5x128xf32> to vector<5x128xbf16>
    %c0_86 = arith.constant 0 : index
    %c256_87 = arith.constant 256 : index
    %166 = vector.load %arg15[%c0_86, %c256_87] : memref<5x1920xbf16, #tpu.memory_space<vmem>>, vector<5x128xbf16>
    tpu.vector_store %arg15[%c0_86, %c256_87], %165 {strides = array<i32>} : memref<5x1920xbf16, #tpu.memory_space<vmem>>, vector<5x128xbf16>,
    %167 = vector.extract_strided_slice %157 {offsets = [4, 0], sizes = [5, 128], strides = [1, 1]} : vector<20x128xf32> to vector<5x128xf32>
    %168 = arith.truncf %167 : vector<5x128xf32> to vector<5x128xbf16>
    %c0_88 = arith.constant 0 : index
    %c384_89 = arith.constant 384 : index
    %169 = vector.load %arg15[%c0_88, %c384_89] : memref<5x1920xbf16, #tpu.memory_space<vmem>>, vector<5x128xbf16>
    tpu.vector_store %arg15[%c0_88, %c384_89], %168 {strides = array<i32>} : memref<5x1920xbf16, #tpu.memory_space<vmem>>, vector<5x128xbf16>,
    %170 = vector.extract_strided_slice %157 {offsets = [5, 0], sizes = [5, 128], strides = [1, 1]} : vector<20x128xf32> to vector<5x128xf32>
    %171 = arith.truncf %170 : vector<5x128xf32> to vector<5x128xbf16>
    %c0_90 = arith.constant 0 : index
    %c512_91 = arith.constant 512 : index
    %172 = vector.load %arg15[%c0_90, %c512_91] : memref<5x1920xbf16, #tpu.memory_space<vmem>>, vector<5x128xbf16>
    tpu.vector_store %arg15[%c0_90, %c512_91], %171 {strides = array<i32>} : memref<5x1920xbf16, #tpu.memory_space<vmem>>, vector<5x128xbf16>,
    %173 = vector.extract_strided_slice %157 {offsets = [6, 0], sizes = [5, 128], strides = [1, 1]} : vector<20x128xf32> to vector<5x128xf32>
    %174 = arith.truncf %173 : vector<5x128xf32> to vector<5x128xbf16>
    %c0_92 = arith.constant 0 : index
    %c640_93 = arith.constant 640 : index
    %175 = vector.load %arg15[%c0_92, %c640_93] : memref<5x1920xbf16, #tpu.memory_space<vmem>>, vector<5x128xbf16>
    tpu.vector_store %arg15[%c0_92, %c640_93], %174 {strides = array<i32>} : memref<5x1920xbf16, #tpu.memory_space<vmem>>, vector<5x128xbf16>,
    %176 = vector.extract_strided_slice %157 {offsets = [7, 0], sizes = [5, 128], strides = [1, 1]} : vector<20x128xf32> to vector<5x128xf32>
    %177 = arith.truncf %176 : vector<5x128xf32> to vector<5x128xbf16>
    %c0_94 = arith.constant 0 : index
    %c768_95 = arith.constant 768 : index
    %178 = vector.load %arg15[%c0_94, %c768_95] : memref<5x1920xbf16, #tpu.memory_space<vmem>>, vector<5x128xbf16>
    tpu.vector_store %arg15[%c0_94, %c768_95], %177 {strides = array<i32>} : memref<5x1920xbf16, #tpu.memory_space<vmem>>, vector<5x128xbf16>,
    %179 = vector.extract_strided_slice %157 {offsets = [8, 0], sizes = [5, 128], strides = [1, 1]} : vector<20x128xf32> to vector<5x128xf32>
    %180 = arith.truncf %179 : vector<5x128xf32> to vector<5x128xbf16>
    %c0_96 = arith.constant 0 : index
    %c896_97 = arith.constant 896 : index
    %181 = vector.load %arg15[%c0_96, %c896_97] : memref<5x1920xbf16, #tpu.memory_space<vmem>>, vector<5x128xbf16>
    tpu.vector_store %arg15[%c0_96, %c896_97], %180 {strides = array<i32>} : memref<5x1920xbf16, #tpu.memory_space<vmem>>, vector<5x128xbf16>,
    %182 = vector.extract_strided_slice %157 {offsets = [9, 0], sizes = [5, 128], strides = [1, 1]} : vector<20x128xf32> to vector<5x128xf32>
    %183 = arith.truncf %182 : vector<5x128xf32> to vector<5x128xbf16>
    %c0_98 = arith.constant 0 : index
    %c1024_99 = arith.constant 1024 : index
    %184 = vector.load %arg15[%c0_98, %c1024_99] : memref<5x1920xbf16, #tpu.memory_space<vmem>>, vector<5x128xbf16>
    tpu.vector_store %arg15[%c0_98, %c1024_99], %183 {strides = array<i32>} : memref<5x1920xbf16, #tpu.memory_space<vmem>>, vector<5x128xbf16>,
    %185 = vector.extract_strided_slice %157 {offsets = [10, 0], sizes = [5, 128], strides = [1, 1]} : vector<20x128xf32> to vector<5x128xf32>
    %186 = arith.truncf %185 : vector<5x128xf32> to vector<5x128xbf16>
    %c0_100 = arith.constant 0 : index
    %c1152_101 = arith.constant 1152 : index
    %187 = vector.load %arg15[%c0_100, %c1152_101] : memref<5x1920xbf16, #tpu.memory_space<vmem>>, vector<5x128xbf16>
    tpu.vector_store %arg15[%c0_100, %c1152_101], %186 {strides = array<i32>} : memref<5x1920xbf16, #tpu.memory_space<vmem>>, vector<5x128xbf16>,
    %188 = vector.extract_strided_slice %157 {offsets = [11, 0], sizes = [5, 128], strides = [1, 1]} : vector<20x128xf32> to vector<5x128xf32>
    %189 = arith.truncf %188 : vector<5x128xf32> to vector<5x128xbf16>
    %c0_102 = arith.constant 0 : index
    %c1280_103 = arith.constant 1280 : index
    %190 = vector.load %arg15[%c0_102, %c1280_103] : memref<5x1920xbf16, #tpu.memory_space<vmem>>, vector<5x128xbf16>
    tpu.vector_store %arg15[%c0_102, %c1280_103], %189 {strides = array<i32>} : memref<5x1920xbf16, #tpu.memory_space<vmem>>, vector<5x128xbf16>,
    %191 = vector.extract_strided_slice %157 {offsets = [12, 0], sizes = [5, 128], strides = [1, 1]} : vector<20x128xf32> to vector<5x128xf32>
    %192 = arith.truncf %191 : vector<5x128xf32> to vector<5x128xbf16>
    %c0_104 = arith.constant 0 : index
    %c1408_105 = arith.constant 1408 : index
    %193 = vector.load %arg15[%c0_104, %c1408_105] : memref<5x1920xbf16, #tpu.memory_space<vmem>>, vector<5x128xbf16>
    tpu.vector_store %arg15[%c0_104, %c1408_105], %192 {strides = array<i32>} : memref<5x1920xbf16, #tpu.memory_space<vmem>>, vector<5x128xbf16>,
    %194 = vector.extract_strided_slice %157 {offsets = [13, 0], sizes = [5, 128], strides = [1, 1]} : vector<20x128xf32> to vector<5x128xf32>
    %195 = arith.truncf %194 : vector<5x128xf32> to vector<5x128xbf16>
    %c0_106 = arith.constant 0 : index
    %c1536_107 = arith.constant 1536 : index
    %196 = vector.load %arg15[%c0_106, %c1536_107] : memref<5x1920xbf16, #tpu.memory_space<vmem>>, vector<5x128xbf16>
    tpu.vector_store %arg15[%c0_106, %c1536_107], %195 {strides = array<i32>} : memref<5x1920xbf16, #tpu.memory_space<vmem>>, vector<5x128xbf16>,
    %197 = vector.extract_strided_slice %157 {offsets = [14, 0], sizes = [5, 128], strides = [1, 1]} : vector<20x128xf32> to vector<5x128xf32>
    %198 = arith.truncf %197 : vector<5x128xf32> to vector<5x128xbf16>
    %c0_108 = arith.constant 0 : index
    %c1664_109 = arith.constant 1664 : index
    %199 = vector.load %arg15[%c0_108, %c1664_109] : memref<5x1920xbf16, #tpu.memory_space<vmem>>, vector<5x128xbf16>
    tpu.vector_store %arg15[%c0_108, %c1664_109], %198 {strides = array<i32>} : memref<5x1920xbf16, #tpu.memory_space<vmem>>, vector<5x128xbf16>,
    %200 = vector.extract_strided_slice %157 {offsets = [15, 0], sizes = [5, 128], strides = [1, 1]} : vector<20x128xf32> to vector<5x128xf32>
    %201 = arith.truncf %200 : vector<5x128xf32> to vector<5x128xbf16>
    %c0_110 = arith.constant 0 : index
    %c1792_111 = arith.constant 1792 : index
    %202 = vector.load %arg15[%c0_110, %c1792_111] : memref<5x1920xbf16, #tpu.memory_space<vmem>>, vector<5x128xbf16>
    tpu.vector_store %arg15[%c0_110, %c1792_111], %201 {strides = array<i32>} : memref<5x1920xbf16, #tpu.memory_space<vmem>>, vector<5x128xbf16>,
    %c0_112 = arith.constant 0 : index
    %c0_113 = arith.constant 0 : index
    %203 = vector.load %arg15[%c0_112, %c0_113] : memref<5x1920xbf16, #tpu.memory_space<vmem>>, vector<5x1920xbf16>
    %c0_114 = arith.constant 0 : index
    %c0_115 = arith.constant 0 : index
    %204 = vector.load %arg6[%c0_114, %c0_115] : memref<1920x64xbf16, #tpu.memory_space<vmem>>, vector<1920x64xbf16>
    %cst_116 = arith.constant dense<0.000000e+00> : vector<5x64xf32>
    %205 = tpu.matmul %203, %204, %cst_116 {dimension_numbers = #tpu.dot_dimension_numbers<[1], [0], [0], [1], [0, 0, 1, 1], [], []>} : vector<5x1920xbf16>, vector<1920x64xbf16>, vector<5x64xf32> -> vector<5x64xf32>
    %c0_117 = arith.constant 0 : index
    %c0_118 = arith.constant 0 : index
    %206 = vector.load %arg7[%c0_117, %c0_118] : memref<1x64xf32, #tpu.memory_space<vmem>>, vector<1x64xf32>
    %207 = vector.broadcast %206 : vector<1x64xf32> to vector<5x64xf32>
    %208 = arith.addf %205, %207 : vector<5x64xf32>
    %cst_119 = arith.constant 0.000000e+00 : f32
    %209 = vector.broadcast %cst_119 : f32 to vector<5x64xf32>
    %210 = arith.maximumf %208, %209 : vector<5x64xf32>
    %211 = vector.extract_strided_slice %210 {offsets = [0, 0], sizes = [1, 64], strides = [1, 1]} : vector<5x64xf32> to vector<1x64xf32>
    %212 = vector.extract_strided_slice %210 {offsets = [1, 0], sizes = [1, 64], strides = [1, 1]} : vector<5x64xf32> to vector<1x64xf32>
    %213 = arith.maximumf %211, %212 : vector<1x64xf32>
    %214 = vector.extract_strided_slice %210 {offsets = [2, 0], sizes = [1, 64], strides = [1, 1]} : vector<5x64xf32> to vector<1x64xf32>
    %215 = arith.maximumf %213, %214 : vector<1x64xf32>
    %216 = vector.extract_strided_slice %210 {offsets = [3, 0], sizes = [1, 64], strides = [1, 1]} : vector<5x64xf32> to vector<1x64xf32>
    %217 = arith.maximumf %215, %216 : vector<1x64xf32>
    %218 = vector.extract_strided_slice %210 {offsets = [4, 0], sizes = [1, 64], strides = [1, 1]} : vector<5x64xf32> to vector<1x64xf32>
    %219 = arith.maximumf %217, %218 : vector<1x64xf32>
    %c0_120 = arith.constant 0 : index
    %c0_121 = arith.constant 0 : index
    %c0_122 = arith.constant 0 : index
    %220 = vector.load %arg9[%c0_120, %c0_121, %c0_122] : memref<1x1x64xf32, #tpu.memory_space<vmem>>, vector<1x1x64xf32>
    %221 = vector.shape_cast %220 : vector<1x1x64xf32> to vector<1x64xf32>
    %222 = vector.shape_cast %219 : vector<1x64xf32> to vector<1x1x64xf32>
    tpu.vector_store %arg9[%c0_120, %c0_121, %c0_122], %222 {strides = array<i32>} : memref<1x1x64xf32, #tpu.memory_space<vmem>>, vector<1x1x64xf32>,
    return
  }
  func.func @transform_0(%arg0: i32) -> (i32, i32, i32) {
    %c0_i32 = arith.constant 0 : i32
    %c0_i32_0 = arith.constant 0 : i32
    %c0_i32_1 = arith.constant 0 : i32
    return %arg0, %c0_i32, %c0_i32_0 : i32, i32, i32
  }
  func.func @transform_1(%arg0: i32) -> (i32, i32) {
    %c0_i32 = arith.constant 0 : i32
    %c0_i32_0 = arith.constant 0 : i32
    %c0_i32_1 = arith.constant 0 : i32
    return %c0_i32, %c0_i32_0 : i32, i32
  }
  func.func @transform_2(%arg0: i32) -> (i32, i32) {
    %c0_i32 = arith.constant 0 : i32
    %c0_i32_0 = arith.constant 0 : i32
    %c0_i32_1 = arith.constant 0 : i32
    return %c0_i32, %c0_i32_0 : i32, i32
  }
  func.func @transform_3(%arg0: i32) -> (i32, i32) {
    %c0_i32 = arith.constant 0 : i32
    %c0_i32_0 = arith.constant 0 : i32
    %c0_i32_1 = arith.constant 0 : i32
    return %c0_i32, %c0_i32_0 : i32, i32
  }
  func.func @transform_4(%arg0: i32) -> (i32, i32) {
    %c0_i32 = arith.constant 0 : i32
    %c0_i32_0 = arith.constant 0 : i32
    %c0_i32_1 = arith.constant 0 : i32
    return %c0_i32, %c0_i32_0 : i32, i32
  }
  func.func @transform_5(%arg0: i32) -> (i32, i32) {
    %c0_i32 = arith.constant 0 : i32
    %c0_i32_0 = arith.constant 0 : i32
    %c0_i32_1 = arith.constant 0 : i32
    return %c0_i32, %c0_i32_0 : i32, i32
  }
  func.func @transform_6(%arg0: i32) -> (i32, i32) {
    %c0_i32 = arith.constant 0 : i32
    %c0_i32_0 = arith.constant 0 : i32
    %c0_i32_1 = arith.constant 0 : i32
    return %c0_i32, %c0_i32_0 : i32, i32
  }
  func.func @transform_7(%arg0: i32) -> (i32, i32, i32) {
    %c0_i32 = arith.constant 0 : i32
    %c0_i32_0 = arith.constant 0 : i32
    %c0_i32_1 = arith.constant 0 : i32
    return %arg0, %c0_i32, %c0_i32_0 : i32, i32, i32
  }
  func.func @transform_8(%arg0: i32) -> (i32, i32, i32) {
    %c0_i32 = arith.constant 0 : i32
    %c0_i32_0 = arith.constant 0 : i32
    %c0_i32_1 = arith.constant 0 : i32
    return %arg0, %c0_i32, %c0_i32_0 : i32, i32, i32
  }
}

</mosaic_0001>

<llo_original>
// kernel: pose_encoder_dr.1
$region0: #{pose_encoder_dr.1}
  #allocation0 [shape = 'u32[]', space=smem, size = 0x4, offset = 0x4, fixed_abs, tag = 'smem constant byte address 0x4 - core index']
  #allocation1 [shape = 'u32[144,128]{1,0:T(1,128)}', space=vmem, size = 0x12000, scoped, tag = 'internal scratch']
  #allocation2 [shape = 'f32[140,128]{1,0:T(8,128)}', space=vmem, size = 0x12000, scoped, tag = 'scratch operand']
  #allocation3 [shape = 'bf16[125,1920]{1,0:T(8,128)(2,1)}', space=vmem, size = 0x78000, scoped, tag = 'scratch operand']
  #allocation4 [shape = 'f32[40,256]{1,0:T(8,128)}', space=vmem, size = 0xa000, scoped, tag = 'scratch operand']
  #allocation5 [shape = 'bf16[25,3840]{1,0:T(8,128)(2,1)}', space=vmem, size = 0x3c000, scoped, tag = 'scratch operand']
  #allocation6 [shape = 'f32[20,128]{1,0:T(8,128)}', space=vmem, size = 0x3000, scoped, tag = 'scratch operand']
  #allocation7 [shape = 'bf16[5,1920]{1,0:T(8,128)(2,1)}', space=vmem, size = 0x7800, scoped, tag = 'scratch operand']
  %s0 = inlined_call_operand.vmem [shape: f32[2,125,20], index: 0, kind: input, shape index: {}]
  %s1 = inlined_call_operand.hbm [shape: bf16[1920,256], index: 1, kind: input, shape index: {}]
  %s2 = inlined_call_operand.vmem [shape: f32[1,256], index: 2, kind: input, shape index: {}]
  %s3 = inlined_call_operand.hbm [shape: bf16[3840,128], index: 3, kind: input, shape index: {}]
  %s4 = inlined_call_operand.vmem [shape: f32[1,128], index: 4, kind: input, shape index: {}]
  %s5 = inlined_call_operand.vmem [shape: bf16[1920,64], index: 5, kind: input, shape index: {}]
  %s6 = inlined_call_operand.vmem [shape: f32[1,64], index: 6, kind: input, shape index: {}]
  %s7 = inlined_call_operand.vmem [shape: f32[2,25,160], index: 7, kind: output, shape index: {0}]
  %s8 = inlined_call_operand.hbm [shape: f32[2,1,64], index: 8, kind: output, shape index: {1}]
  %9 = xla_tuple %s7, %s8
  %s10 = sld [smem:[#allocation0]]
  $region77: #{pose_encoder_dr.1} parent=0
    _
  %s12 = ssub.s32 1, %s10
  %s13 = scalar_select 0, %s12, %s10
  $region1: #{pose_encoder_dr.1} parent=0
    #allocation8 [shape = 'u8[983040]{0}', space=vmem, size = 0xf0000, scoped, tag = 'input window, operand 1, single buffered']
    #allocation9 [shape = 's32[2]{0}', space=sflag, size = 0x8, scoped, tag = 'scoped memory for pose_encoder_dr.1']
    #allocation10 [shape = 's32[2]{0}', space=sflag, size = 0x8, scoped, tag = 'scoped memory for pose_encoder_dr.1']
    #allocation11 [shape = 'u8[983040]{0}', space=vmem, size = 0xf0000, scoped, tag = 'input window, operand 3, single buffered']
    #allocation12 [shape = 's32[1]{0}', space=sflag, size = 0x4, scoped, tag = 'scoped memory for pose_encoder_dr.1']
    #allocation13 [shape = 'u8[1024]{0}', space=vmem, size = 0x400, scoped, tag = 'output window, operand 1']
    %14 = vsyncpa [#allocation9], 0
    %15 = vsyncpa [#allocation12], 0
    %16 = vsyncpa [#allocation10], 0
    %s17 = scalar_lea.sflag [#allocation10], 1
    %18 = vsyncpa %s17, 0
    loop: start=0, step=1, limit=4
    $region2: #{pose_encoder_dr.1} parent=1 // loop_pre_header
      _
    $region3: #{pose_encoder_dr.1} parent=1 // loop_header
      %s20 = sphi 0, %s24
      %p21 = scmp.ge.s32.totalorder %s20, 4
      %s30 = sphi 0, %s32
      %s33 = sphi 0, %s30
      %s34 = sphi 0, %s33
      %s50 = sphi 0, %s34
      %s54 = sphi 0, %s54
      %s56 = sphi 0, %s54
      %s57 = sphi 0, %s56
      %s71 = sphi 0, %s57
      %s75 = sphi 0, %s75
      %s77 = sphi 0, %s75
      %s78 = sphi 0, %s77
      %s92 = sphi 0, %s78
      %s96 = sphi 0, %s96
      %s98 = sphi 0, %s96
      %s99 = sphi 0, %s98
      %s113 = sphi 0, %s99
      %s117 = sphi 0, %s117
      %s119 = sphi 0, %s117
      %s120 = sphi 0, %s119
      %s134 = sphi 0, %s120
      %s138 = sphi 0, %s138
      %s140 = sphi 0, %s138
      %s141 = sphi 0, %s140
      %s155 = sphi 0, %s141
      %s159 = sphi 0, %s159
      %s161 = sphi 0, %s159
      %s162 = sphi 0, %s161
      %s176 = sphi 0, %s162
      %s182 = sphi 0, %s184
      %s185 = sphi 0, %s182
      %s186 = sphi 0, %s185
      %s202 = sphi 0, %s186
      %s208 = sphi 0, %s210
      %s211 = sphi 0, %s208
      %s212 = sphi 0, %s211
      %s228 = sphi 0, %s212
    $region4: #{pose_encoder_dr.1} parent=1 // loop_header_branch
      %23 = sbr.rel (%p21) target = $region8
    $region5: #{pose_encoder_dr.1} parent=1 // loop_body
      %s25 = ssub.s32 %s20, 1
      %s26 = ssub.s32 %s20, 2
      %s27 = sadd.s32 %s20, 1
      %s28 = ssub.s32 %s20, %s27
      %p29 = scmp.eq.s32.totalorder %s28, 0
      %s31 = sadd.s32 %s30, 1
      %s32 = scalar_select %p29, %s30, %s31
      %p35 = pneg %p29
      %p36 = scmp.eq.s32.totalorder %s20, 1
      %p37 = por %p35, %p36
      %p38 = scmp.ne.s32.totalorder %s30, %s33
      %p39 = scmp.eq.s32.totalorder %s20, 0
      %p40 = por %p38, %p39
      %p41 = scmp.ne.s32.totalorder %s30, %s33
      %p42 = scmp.eq.s32.totalorder %s25, 1
      %p43 = por %p41, %p42
      %p44 = scmp.ne.s32.totalorder %s33, %s34
      %p45 = scmp.eq.s32.totalorder %s25, 0
      %p46 = por %p44, %p45
      %p47 = scmp.ne.s32.totalorder %s33, %s34
      %p48 = scmp.eq.s32.totalorder %s26, 1
      %p49 = por %p47, %p48
      %p51 = scmp.ne.s32.totalorder %s34, %s50
      %p52 = scmp.eq.s32.totalorder %s26, 0
      %p53 = por %p51, %p52
      %s55 = sadd.s32 %s54, 1
      %p58 = scmp.eq.s32.totalorder %s20, 1
      %p59 = scmp.ne.s32.totalorder %s54, %s56
      %p60 = scmp.eq.s32.totalorder %s20, 0
      %p61 = por %p59, %p60
      %p62 = scmp.ne.s32.totalorder %s54, %s56
      %p63 = scmp.eq.s32.totalorder %s25, 1
      %p64 = por %p62, %p63
      %p65 = scmp.ne.s32.totalorder %s56, %s57
      %p66 = scmp.eq.s32.totalorder %s25, 0
      %p67 = por %p65, %p66
      %p68 = scmp.ne.s32.totalorder %s56, %s57
      %p69 = scmp.eq.s32.totalorder %s26, 1
      %p70 = por %p68, %p69
      %p72 = scmp.ne.s32.totalorder %s57, %s71
      %p73 = scmp.eq.s32.totalorder %s26, 0
      %p74 = por %p72, %p73
      %s76 = sadd.s32 %s75, 1
      %p79 = scmp.eq.s32.totalorder %s20, 1
      %p80 = scmp.ne.s32.totalorder %s75, %s77
      %p81 = scmp.eq.s32.totalorder %s20, 0
      %p82 = por %p80, %p81
      %p83 = scmp.ne.s32.totalorder %s75, %s77
      %p84 = scmp.eq.s32.totalorder %s25, 1
      %p85 = por %p83, %p84
      %p86 = scmp.ne.s32.totalorder %s77, %s78
      %p87 = scmp.eq.s32.totalorder %s25, 0
      %p88 = por %p86, %p87
      %p89 = scmp.ne.s32.totalorder %s77, %s78
      %p90 = scmp.eq.s32.totalorder %s26, 1
      %p91 = por %p89, %p90
      %p93 = scmp.ne.s32.totalorder %s78, %s92
      %p94 = scmp.eq.s32.totalorder %s26, 0
      %p95 = por %p93, %p94
      %s97 = sadd.s32 %s96, 1
      %p100 = scmp.eq.s32.totalorder %s20, 1
      %p101 = scmp.ne.s32.totalorder %s96, %s98
      %p102 = scmp.eq.s32.totalorder %s20, 0
      %p103 = por %p101, %p102
      %p104 = scmp.ne.s32.totalorder %s96, %s98
      %p105 = scmp.eq.s32.totalorder %s25, 1
      %p106 = por %p104, %p105
      %p107 = scmp.ne.s32.totalorder %s98, %s99
      %p108 = scmp.eq.s32.totalorder %s25, 0
      %p109 = por %p107, %p108
      %p110 = scmp.ne.s32.totalorder %s98, %s99
      %p111 = scmp.eq.s32.totalorder %s26, 1
      %p112 = por %p110, %p111
      %p114 = scmp.ne.s32.totalorder %s99, %s113
      %p115 = scmp.eq.s32.totalorder %s26, 0
      %p116 = por %p114, %p115
      %s118 = sadd.s32 %s117, 1
      %p121 = scmp.eq.s32.totalorder %s20, 1
      %p122 = scmp.ne.s32.totalorder %s117, %s119
      %p123 = scmp.eq.s32.totalorder %s20, 0
      %p124 = por %p122, %p123
      %p125 = scmp.ne.s32.totalorder %s117, %s119
      %p126 = scmp.eq.s32.totalorder %s25, 1
      %p127 = por %p125, %p126
      %p128 = scmp.ne.s32.totalorder %s119, %s120
      %p129 = scmp.eq.s32.totalorder %s25, 0
      %p130 = por %p128, %p129
      %p131 = scmp.ne.s32.totalorder %s119, %s120
      %p132 = scmp.eq.s32.totalorder %s26, 1
      %p133 = por %p131, %p132
      %p135 = scmp.ne.s32.totalorder %s120, %s134
      %p136 = scmp.eq.s32.totalorder %s26, 0
      %p137 = por %p135, %p136
      %s139 = sadd.s32 %s138, 1
      %p142 = scmp.eq.s32.totalorder %s20, 1
      %p143 = scmp.ne.s32.totalorder %s138, %s140
      %p144 = scmp.eq.s32.totalorder %s20, 0
      %p145 = por %p143, %p144
      %p146 = scmp.ne.s32.totalorder %s138, %s140
      %p147 = scmp.eq.s32.totalorder %s25, 1
      %p148 = por %p146, %p147
      %p149 = scmp.ne.s32.totalorder %s140, %s141
      %p150 = scmp.eq.s32.totalorder %s25, 0
      %p151 = por %p149, %p150
      %p152 = scmp.ne.s32.totalorder %s140, %s141
      %p153 = scmp.eq.s32.totalorder %s26, 1
      %p154 = por %p152, %p153
      %p156 = scmp.ne.s32.totalorder %s141, %s155
      %p157 = scmp.eq.s32.totalorder %s26, 0
      %p158 = por %p156, %p157
      %s160 = sadd.s32 %s159, 1
      %p163 = scmp.eq.s32.totalorder %s20, 1
      %p164 = scmp.ne.s32.totalorder %s159, %s161
      %p165 = scmp.eq.s32.totalorder %s20, 0
      %p166 = por %p164, %p165
      %p167 = scmp.ne.s32.totalorder %s159, %s161
      %p168 = scmp.eq.s32.totalorder %s25, 1
      %p169 = por %p167, %p168
      %p170 = scmp.ne.s32.totalorder %s161, %s162
      %p171 = scmp.eq.s32.totalorder %s25, 0
      %p172 = por %p170, %p171
      %p173 = scmp.ne.s32.totalorder %s161, %s162
      %p174 = scmp.eq.s32.totalorder %s26, 1
      %p175 = por %p173, %p174
      %p177 = scmp.ne.s32.totalorder %s162, %s176
      %p178 = scmp.eq.s32.totalorder %s26, 0
      %p179 = por %p177, %p178
      %s180 = ssub.s32 %s20, %s27
      %p181 = scmp.eq.s32.totalorder %s180, 0
      %s183 = sadd.s32 %s182, 1
      %s184 = scalar_select %p181, %s182, %s183
      %p187 = pneg %p181
      %p188 = scmp.eq.s32.totalorder %s20, 1
      %p189 = por %p187, %p188
      %p190 = scmp.ne.s32.totalorder %s182, %s185
      %p191 = scmp.eq.s32.totalorder %s20, 0
      %p192 = por %p190, %p191
      %p193 = scmp.ne.s32.totalorder %s182, %s185
      %p194 = scmp.eq.s32.totalorder %s25, 1
      %p195 = por %p193, %p194
      %p196 = scmp.ne.s32.totalorder %s185, %s186
      %p197 = scmp.eq.s32.totalorder %s25, 0
      %p198 = por %p196, %p197
      %p199 = scmp.ne.s32.totalorder %s185, %s186
      %p200 = scmp.eq.s32.totalorder %s26, 1
      %p201 = por %p199, %p200
      %p203 = scmp.ne.s32.totalorder %s186, %s202
      %p204 = scmp.eq.s32.totalorder %s26, 0
      %p205 = por %p203, %p204
      %s206 = ssub.s32 %s20, %s27
      %p207 = scmp.eq.s32.totalorder %s206, 0
      %s209 = sadd.s32 %s208, 1
      %s210 = scalar_select %p207, %s208, %s209
      %p213 = pneg %p207
      %p214 = scmp.eq.s32.totalorder %s20, 1
      %p215 = por %p213, %p214
      %p216 = scmp.ne.s32.totalorder %s208, %s211
      %p217 = scmp.eq.s32.totalorder %s20, 0
      %p218 = por %p216, %p217
      %p219 = scmp.ne.s32.totalorder %s208, %s211
      %p220 = scmp.eq.s32.totalorder %s25, 1
      %p221 = por %p219, %p220
      %p222 = scmp.ne.s32.totalorder %s211, %s212
      %p223 = scmp.eq.s32.totalorder %s25, 0
      %p224 = por %p222, %p223
      %p225 = scmp.ne.s32.totalorder %s211, %s212
      %p226 = scmp.eq.s32.totalorder %s26, 1
      %p227 = por %p225, %p226
      %p229 = scmp.ne.s32.totalorder %s212, %s228
      %p230 = scmp.eq.s32.totalorder %s26, 0
      %p231 = por %p229, %p230
      %p232 = scmp.le.s32.totalorder 1, %s20
      %p233 = scmp.lt.s32.totalorder %s20, 3
      %p234 = pnand %p232, %p233
      %p235 = pneg %p234
      // Predicated region
      $region9: #{pose_encoder_dr.1} parent=5 // pred_check
        _
      $region10: #{pose_encoder_dr.1} parent=5 // pred_check_branch
        %237 = sbr.rel (%p234) target = $region12
      $region11: #{pose_encoder_dr.1} parent=5 // pred_region
        %s238 = ssub.s32 %s20, 1
        // Predicated region
        $region13: #{pose_encoder_dr.1} parent=11 // pred_check
          %p239 = pneg %p67
        $region14: #{pose_encoder_dr.1} parent=11 // pred_check_branch
          %241 = sbr.rel (%p239) target = $region16
        $region15: #{pose_encoder_dr.1} parent=11 // pred_region
          %s243 = ssub.s32 30720, 30720
          %244 = vsyncadd [#allocation9], %s243
          %s245 = sshll.u32 [#allocation8], 4
          %s246 = int_to_ptr.vmem [resolvable:$true] %s245
          %251 = dma.hbm_to_vmem [thread:$0]  %s1, 30720, %s246, [#allocation9], 128, 128, 8
        $region16: #{pose_encoder_dr.1} parent=11 // pred_fallthru
          _
        // Predicated region
        $region17: #{pose_encoder_dr.1} parent=11 // pred_check
          %p252 = pneg %p88
        $region18: #{pose_encoder_dr.1} parent=11 // pred_check_branch
          %254 = sbr.rel (%p252) target = $region20
        $region19: #{pose_encoder_dr.1} parent=11 // pred_region
          _
        $region20: #{pose_encoder_dr.1} parent=11 // pred_fallthru
          _
        // Predicated region
        $region21: #{pose_encoder_dr.1} parent=11 // pred_check
          %p255 = pneg %p109
        $region22: #{pose_encoder_dr.1} parent=11 // pred_check_branch
          %257 = sbr.rel (%p255) target = $region24
        $region23: #{pose_encoder_dr.1} parent=11 // pred_region
          %s259 = ssub.s32 30720, 30720
          %260 = vsyncadd [#allocation12], %s259
          %s261 = sshll.u32 [#allocation11], 4
          %s262 = int_to_ptr.vmem [resolvable:$true] %s261
          %267 = dma.hbm_to_vmem [thread:$0]  %s3, 30720, %s262, [#allocation12], 64, 64, 4
        $region24: #{pose_encoder_dr.1} parent=11 // pred_fallthru
          _
        // Predicated region
        $region25: #{pose_encoder_dr.1} parent=11 // pred_check
          %p268 = pneg %p130
        $region26: #{pose_encoder_dr.1} parent=11 // pred_check_branch
          %270 = sbr.rel (%p268) target = $region28
        $region27: #{pose_encoder_dr.1} parent=11 // pred_region
          _
        $region28: #{pose_encoder_dr.1} parent=11 // pred_fallthru
          _
        // Predicated region
        $region29: #{pose_encoder_dr.1} parent=11 // pred_check
          %p271 = pneg %p151
        $region30: #{pose_encoder_dr.1} parent=11 // pred_check_branch
          %273 = sbr.rel (%p271) target = $region32
        $region31: #{pose_encoder_dr.1} parent=11 // pred_region
          _
        $region32: #{pose_encoder_dr.1} parent=11 // pred_fallthru
          _
        // Predicated region
        $region33: #{pose_encoder_dr.1} parent=11 // pred_check
          %p274 = pneg %p172
        $region34: #{pose_encoder_dr.1} parent=11 // pred_check_branch
          %276 = sbr.rel (%p274) target = $region36
        $region35: #{pose_encoder_dr.1} parent=11 // pred_region
          _
        $region36: #{pose_encoder_dr.1} parent=11 // pred_fallthru
          _
      $region12: #{pose_encoder_dr.1} parent=5 // pred_fallthru
        _
      %p277 = scmp.lt.s32.totalorder %s20, 2
      // Predicated region
      $region37: #{pose_encoder_dr.1} parent=5 // pred_check
        %p278 = pneg %p277
      $region38: #{pose_encoder_dr.1} parent=5 // pred_check_branch
        %280 = sbr.rel (%p278) target = $region40
      $region39: #{pose_encoder_dr.1} parent=5 // pred_region
        // Predicated region
        $region41: #{pose_encoder_dr.1} parent=39 // pred_check
          %p281 = pneg %p40
        $region42: #{pose_encoder_dr.1} parent=39 // pred_check_branch
          %283 = sbr.rel (%p281) target = $region44
        $region43: #{pose_encoder_dr.1} parent=39 // pred_region
          %p284 = scmp.lt.s32.totalorder %s20, 1
          %s285 = scalar_select %p284, %s20, 1
          %s286 = smul.addr %s285, 16
          %s287 = smul.addr %s286, 8
          %s288 = scalar_lea.vmem %s0, %s287
        $region44: #{pose_encoder_dr.1} parent=39 // pred_fallthru
          _
      $region40: #{pose_encoder_dr.1} parent=5 // pred_fallthru
        _
      %p289 = scmp.le.s32.totalorder 1, %s20
      %p290 = scmp.lt.s32.totalorder %s20, 3
      %p291 = pnand %p289, %p290
      %p292 = pneg %p291
      // Predicated region
      $region45: #{pose_encoder_dr.1} parent=5 // pred_check
        _
      $region46: #{pose_encoder_dr.1} parent=5 // pred_check_branch
        %294 = sbr.rel (%p291) target = $region48
      $region47: #{pose_encoder_dr.1} parent=5 // pred_region
        %s295 = ssub.s32 %s20, 1
        // Predicated region
        $region49: #{pose_encoder_dr.1} parent=47 // pred_check
          %p296 = pneg %p67
        $region50: #{pose_encoder_dr.1} parent=47 // pred_check_branch
          %298 = sbr.rel (%p296) target = $region52
        $region51: #{pose_encoder_dr.1} parent=47 // pred_region
          %299 = dma.done [#allocation9], 30720
        $region52: #{pose_encoder_dr.1} parent=47 // pred_fallthru
          _
        // Predicated region
        $region53: #{pose_encoder_dr.1} parent=47 // pred_check
          %p300 = pneg %p109
        $region54: #{pose_encoder_dr.1} parent=47 // pred_check_branch
          %302 = sbr.rel (%p300) target = $region56
        $region55: #{pose_encoder_dr.1} parent=47 // pred_region
          %303 = dma.done [#allocation12], 30720
        $region56: #{pose_encoder_dr.1} parent=47 // pred_fallthru
          _
        %p304 = scmp.lt.s32.totalorder %s25, 1
        %s305 = scalar_select %p304, %s25, 1
        %s306 = smul.addr %s305, 16
        %s307 = smul.addr %s306, 8
        %s308 = scalar_lea.vmem %s0, %s307
        %p309 = pneg %p46
        %p310 = pneg %p43
        %p311 = pneg %p67
        %p312 = pneg %p64
        %p313 = pneg %p88
        %p314 = pneg %p85
        %p315 = pneg %p109
        %p316 = pneg %p106
        %p317 = pneg %p130
        %p318 = pneg %p127
        %p319 = pneg %p151
        %p320 = pneg %p148
        %p321 = pneg %p172
        %p322 = pneg %p169
        %p323 = pneg %p198
        %p324 = pneg %p195
        %p325 = scmp.lt.s32.totalorder %s25, 1
        %s326 = scalar_select %p325, %s25, 1
        %s327 = smul.addr %s326, 8
        %s328 = smul.addr %s327, 8
        %s329 = scalar_lea.vmem %s7, %s328
        %p330 = pneg %p224
        %p331 = pneg %p221
        %s332 = sand.u32 %s211, 1
        %s333 = scalar_lea.sflag [#allocation10], %s332
        %s334 = sand.u32 %s211, 1
        %s335 = scalar_lea.vmem [#allocation13], %s334
        %p336 = scmp.lt.s32.totalorder %s25, 1
        %s337 = scalar_select %p336, %s25, 1
        %s338 = smul.addr %s337, 16
        %s339 = smul.addr %s338, 8
        %s340 = scalar_lea.vmem %s0, %s339
        %p341 = scmp.lt.s32.totalorder %s25, 1
        %s342 = scalar_select %p341, %s25, 1
        %s343 = smul.addr %s342, 8
        %s344 = smul.addr %s343, 8
        %s345 = scalar_lea.vmem %s7, %s344
        %v347 = vld [vmem:[%s340] sm:$0xff]
        %v348 = vld [vmem:[%s340 + $0x8] sm:$0xff]
        %v349 = vld [vmem:[%s340 + $0x10] sm:$0xff]
        %v350 = vld [vmem:[%s340 + $0x18] sm:$0xff]
        %v351 = vld [vmem:[%s340 + $0x20] sm:$0xff]
        %v352 = vld [vmem:[%s340 + $0x28] sm:$0xff]
        %v353 = vld [vmem:[%s340 + $0x30] sm:$0xff]
        %v354 = vld [vmem:[%s340 + $0x38] sm:$0xff]
        %v355 = vld [vmem:[%s340 + $0x40] sm:$0xff]
        %v356 = vld [vmem:[%s340 + $0x48] sm:$0xff]
        %v357 = vld [vmem:[%s340 + $0x50] sm:$0xff]
        %v358 = vld [vmem:[%s340 + $0x58] sm:$0xff]
        %v359 = vld [vmem:[%s340 + $0x60] sm:$0xff]
        %v360 = vld [vmem:[%s340 + $0x68] sm:$0xff]
        %v361 = vld [vmem:[%s340 + $0x70] sm:$0xff]
        %v362 = vld [vmem:[%s340 + $0x78] sm:$0x1f]
        %363 = vst [vmem:[#allocation2] sm:$0xff] 0.0
        %364 = vst [vmem:[#allocation2 + $0x8] sm:$0xff] 0.0
        %365 = vst [vmem:[#allocation2 + $0x10] sm:$0xff] 0.0
        %366 = vst [vmem:[#allocation2 + $0x18] sm:$0xff] 0.0
        %367 = vst [vmem:[#allocation2 + $0x20] sm:$0xff] 0.0
        %368 = vst [vmem:[#allocation2 + $0x28] sm:$0xff] 0.0
        %369 = vst [vmem:[#allocation2 + $0x30] sm:$0xff] 0.0
        %370 = vst [vmem:[#allocation2 + $0x38] sm:$0xff] 0.0
        %371 = vst [vmem:[#allocation2 + $0x40] sm:$0xff] 0.0
        %372 = vst [vmem:[#allocation2 + $0x48] sm:$0xff] 0.0
        %373 = vst [vmem:[#allocation2 + $0x50] sm:$0xff] 0.0
        %374 = vst [vmem:[#allocation2 + $0x58] sm:$0xff] 0.0
        %375 = vst [vmem:[#allocation2 + $0x60] sm:$0xff] 0.0
        %376 = vst [vmem:[#allocation2 + $0x68] sm:$0xff] 0.0
        %377 = vst [vmem:[#allocation2 + $0x70] sm:$0xff] 0.0
        %378 = vst [vmem:[#allocation2 + $0x78] sm:$0xff] 0.0
        %379 = vst [vmem:[#allocation2 + $0x80] sm:$0xff] 0.0
        %380 = vst [vmem:[#allocation2 + $0x88] sm:$0xf] 0.0
        %vm381 = vcmask 162816
        %382 = vst.msk [vmem:[#allocation2 + $0x8] sm:$0xff] %vm381, %v347
        %383 = vst.msk [vmem:[#allocation2 + $0x10] sm:$0xff] %vm381, %v348
        %384 = vst.msk [vmem:[#allocation2 + $0x18] sm:$0xff] %vm381, %v349
        %385 = vst.msk [vmem:[#allocation2 + $0x20] sm:$0xff] %vm381, %v350
        %386 = vst.msk [vmem:[#allocation2 + $0x28] sm:$0xff] %vm381, %v351
        %387 = vst.msk [vmem:[#allocation2 + $0x30] sm:$0xff] %vm381, %v352
        %388 = vst.msk [vmem:[#allocation2 + $0x38] sm:$0xff] %vm381, %v353
        %389 = vst.msk [vmem:[#allocation2 + $0x40] sm:$0xff] %vm381, %v354
        %390 = vst.msk [vmem:[#allocation2 + $0x48] sm:$0xff] %vm381, %v355
        %391 = vst.msk [vmem:[#allocation2 + $0x50] sm:$0xff] %vm381, %v356
        %392 = vst.msk [vmem:[#allocation2 + $0x58] sm:$0xff] %vm381, %v357
        %393 = vst.msk [vmem:[#allocation2 + $0x60] sm:$0xff] %vm381, %v358
        %394 = vst.msk [vmem:[#allocation2 + $0x68] sm:$0xff] %vm381, %v359
        %395 = vst.msk [vmem:[#allocation2 + $0x70] sm:$0xff] %vm381, %v360
        %396 = vst.msk [vmem:[#allocation2 + $0x78] sm:$0xff] %vm381, %v361
        %vm397 = vcmask 159744
        %398 = vst.msk [vmem:[#allocation2 + $0x80] sm:$0x1f] %vm397, %v362
        %v399 = vld [vmem:[#allocation2] sm:$0xff]
        %v400 = vld [vmem:[#allocation2 + $0x8] sm:$0xff]
        %v401 = vld [vmem:[#allocation2 + $0x10] sm:$0xff]
        %v402 = vld [vmem:[#allocation2 + $0x18] sm:$0xff]
        %v403 = vld [vmem:[#allocation2 + $0x20] sm:$0xff]
        %v404 = vld [vmem:[#allocation2 + $0x28] sm:$0xff]
        %v405 = vld [vmem:[#allocation2 + $0x30] sm:$0xff]
        %v406 = vld [vmem:[#allocation2 + $0x38] sm:$0xff]
        %v407 = vld [vmem:[#allocation2 + $0x40] sm:$0xff]
        %v408 = vld [vmem:[#allocation2 + $0x48] sm:$0xff]
        %v409 = vld [vmem:[#allocation2 + $0x50] sm:$0xff]
        %v410 = vld [vmem:[#allocation2 + $0x58] sm:$0xff]
        %v411 = vld [vmem:[#allocation2 + $0x60] sm:$0xff]
        %v412 = vld [vmem:[#allocation2 + $0x68] sm:$0xff]
        %v413 = vld [vmem:[#allocation2 + $0x70] sm:$0xff]
        %v414 = vld [vmem:[#allocation2 + $0x78] sm:$0xff]
        %v415 = vld [vmem:[#allocation2 + $0x80] sm:$0xff]
        %v416 = vld [vmem:[#allocation2 + $0x88] sm:$0xf]
        %v417 = vpack.c.bf16 %v400, %v399
        %v418 = vpack.c.bf16 %v402, %v401
        %v419 = vpack.c.bf16 %v404, %v403
        %v420 = vpack.c.bf16 %v406, %v405
        %v421 = vpack.c.bf16 %v408, %v407
        %v422 = vpack.c.bf16 %v410, %v409
        %v423 = vpack.c.bf16 %v412, %v411
        %v424 = vpack.c.bf16 %v414, %v413
        %v433 = vunpack.c.l.b16 %v417
        %v434 = vunpack.c.h.b16 %v417
        %v435 = vunpack.c.l.b16 %v418
        %v436 = vunpack.c.h.b16 %v418
        %v437 = vunpack.c.l.b16 %v419
        %v438 = vunpack.c.h.b16 %v419
        %v439 = vunpack.c.l.b16 %v420
        %v440 = vunpack.c.h.b16 %v420
        %v441 = vunpack.c.l.b16 %v421
        %v442 = vunpack.c.h.b16 %v421
        %v443 = vunpack.c.l.b16 %v422
        %v444 = vunpack.c.h.b16 %v422
        %v445 = vunpack.c.l.b16 %v423
        %v446 = vunpack.c.h.b16 %v423
        %v447 = vunpack.c.l.b16 %v424
        %v448 = vunpack.c.h.b16 %v424
        %v449 = vpack.c.b16 %v433, %v433
        %v450 = vpack.c.b16 %v434, %v434
        %v451 = vpack.c.b16 %v435, %v435
        %v452 = vpack.c.b16 %v436, %v436
        %v453 = vpack.c.b16 %v437, %v437
        %v454 = vpack.c.b16 %v438, %v438
        %v455 = vpack.c.b16 %v439, %v439
        %v456 = vpack.c.b16 %v440, %v440
        %v457 = vpack.c.b16 %v441, %v441
        %v458 = vpack.c.b16 %v442, %v442
        %v459 = vpack.c.b16 %v443, %v443
        %v460 = vpack.c.b16 %v444, %v444
        %v461 = vpack.c.b16 %v445, %v445
        %v462 = vpack.c.b16 %v446, %v446
        %v463 = vpack.c.b16 %v447, %v447
        %v464 = vpack.c.b16 %v448, %v448
        %vm465 = vsmask.f32 3328
        %vm466 = vsmask.f32 7440
        %vm467 = vmor %vm465, %vm466
        %v469 = vshrl.u32 %v449, 16
        %v471 = vrot.slane %v469, 4
        %v472 = vshll.u32 %v449, 16
        %v474 = vrot.slane %v472, 5
        %v475 = vor.u32 %v471, %v474
        %v476 = vrot.slane %v475, 4
        %v478 = vshll.u32 %v450, 16
        %v480 = vrot.slane %v478, 5
        %v481 = vsel %vm467, %v476, %v480
        %v482 = vshrl.u32 %v450, 16
        %v484 = vrot.slane %v482, 4
        %v485 = vor.u32 %v484, %v480
        %v486 = vrot.slane %v485, 4
        %v488 = vshll.u32 %v451, 16
        %v490 = vrot.slane %v488, 5
        %v491 = vsel %vm467, %v486, %v490
        %v492 = vshrl.u32 %v451, 16
        %v494 = vrot.slane %v492, 4
        %v495 = vor.u32 %v494, %v490
        %v496 = vrot.slane %v495, 4
        %v498 = vshll.u32 %v452, 16
        %v500 = vrot.slane %v498, 5
        %v501 = vsel %vm467, %v496, %v500
        %v502 = vshrl.u32 %v452, 16
        %v504 = vrot.slane %v502, 4
        %v505 = vor.u32 %v504, %v500
        %v506 = vrot.slane %v505, 4
        %v508 = vshll.u32 %v453, 16
        %v510 = vrot.slane %v508, 5
        %v511 = vsel %vm467, %v506, %v510
        %v512 = vshrl.u32 %v453, 16
        %v514 = vrot.slane %v512, 4
        %v515 = vor.u32 %v514, %v510
        %v516 = vrot.slane %v515, 4
        %v518 = vshll.u32 %v454, 16
        %v520 = vrot.slane %v518, 5
        %v521 = vsel %vm467, %v516, %v520
        %v522 = vshrl.u32 %v454, 16
        %v524 = vrot.slane %v522, 4
        %v525 = vor.u32 %v524, %v520
        %v526 = vrot.slane %v525, 4
        %v528 = vshll.u32 %v455, 16
        %v530 = vrot.slane %v528, 5
        %v531 = vsel %vm467, %v526, %v530
        %v532 = vshrl.u32 %v455, 16
        %v534 = vrot.slane %v532, 4
        %v535 = vor.u32 %v534, %v530
        %v536 = vrot.slane %v535, 4
        %v538 = vshll.u32 %v456, 16
        %v540 = vrot.slane %v538, 5
        %v541 = vsel %vm467, %v536, %v540
        %v542 = vshrl.u32 %v456, 16
        %v544 = vrot.slane %v542, 4
        %v545 = vor.u32 %v544, %v540
        %v546 = vrot.slane %v545, 4
        %v548 = vshll.u32 %v457, 16
        %v550 = vrot.slane %v548, 5
        %v551 = vsel %vm467, %v546, %v550
        %v552 = vshrl.u32 %v457, 16
        %v554 = vrot.slane %v552, 4
        %v555 = vor.u32 %v554, %v550
        %v556 = vrot.slane %v555, 4
        %v558 = vshll.u32 %v458, 16
        %v560 = vrot.slane %v558, 5
        %v561 = vsel %vm467, %v556, %v560
        %v562 = vshrl.u32 %v458, 16
        %v564 = vrot.slane %v562, 4
        %v565 = vor.u32 %v564, %v560
        %v566 = vrot.slane %v565, 4
        %v568 = vshll.u32 %v459, 16
        %v570 = vrot.slane %v568, 5
        %v571 = vsel %vm467, %v566, %v570
        %v572 = vshrl.u32 %v459, 16
        %v574 = vrot.slane %v572, 4
        %v575 = vor.u32 %v574, %v570
        %v576 = vrot.slane %v575, 4
        %v578 = vshll.u32 %v460, 16
        %v580 = vrot.slane %v578, 5
        %v581 = vsel %vm467, %v576, %v580
        %v582 = vshrl.u32 %v460, 16
        %v584 = vrot.slane %v582, 4
        %v585 = vor.u32 %v584, %v580
        %v586 = vrot.slane %v585, 4
        %v588 = vshll.u32 %v461, 16
        %v590 = vrot.slane %v588, 5
        %v591 = vsel %vm467, %v586, %v590
        %v592 = vshrl.u32 %v461, 16
        %v594 = vrot.slane %v592, 4
        %v595 = vor.u32 %v594, %v590
        %v596 = vrot.slane %v595, 4
        %v598 = vshll.u32 %v462, 16
        %v600 = vrot.slane %v598, 5
        %v601 = vsel %vm467, %v596, %v600
        %v602 = vshrl.u32 %v462, 16
        %v604 = vrot.slane %v602, 4
        %v605 = vor.u32 %v604, %v600
        %v606 = vrot.slane %v605, 4
        %v608 = vshll.u32 %v463, 16
        %v610 = vrot.slane %v608, 5
        %v611 = vsel %vm467, %v606, %v610
        %v612 = vshrl.u32 %v463, 16
        %v614 = vrot.slane %v612, 4
        %v615 = vor.u32 %v614, %v610
        %v616 = vrot.slane %v615, 4
        %v618 = vshll.u32 %v464, 16
        %v620 = vrot.slane %v618, 5
        %v621 = vsel %vm467, %v616, %v620
        %v622 = vshrl.u32 %v464, 16
        %v624 = vrot.slane %v622, 4
        %v625 = vor.u32 %v624, %v620
        %v626 = vrot.slane %v625, 4
        %643 = vst [vmem:[#allocation3] sm:$0xf] %v481
        %644 = vst [vmem:[#allocation3 + $0x3c] sm:$0xf] %v491
        %645 = vst [vmem:[#allocation3 + $0x78] sm:$0xf] %v501
        %646 = vst [vmem:[#allocation3 + $0xb4] sm:$0xf] %v511
        %647 = vst [vmem:[#allocation3 + $0xf0] sm:$0xf] %v521
        %648 = vst [vmem:[#allocation3 + $0x12c] sm:$0xf] %v531
        %649 = vst [vmem:[#allocation3 + $0x168] sm:$0xf] %v541
        %650 = vst [vmem:[#allocation3 + $0x1a4] sm:$0xf] %v551
        %651 = vst [vmem:[#allocation3 + $0x1e0] sm:$0xf] %v561
        %652 = vst [vmem:[#allocation3 + $0x21c] sm:$0xf] %v571
        %653 = vst [vmem:[#allocation3 + $0x258] sm:$0xf] %v581
        %654 = vst [vmem:[#allocation3 + $0x294] sm:$0xf] %v591
        %655 = vst [vmem:[#allocation3 + $0x2d0] sm:$0xf] %v601
        %656 = vst [vmem:[#allocation3 + $0x30c] sm:$0xf] %v611
        %657 = vst [vmem:[#allocation3 + $0x348] sm:$0xf] %v621
        %vm658 = vcmask 1042432
        %vm659 = vsmask.f32 2304
        %vm660 = vmand %vm658, %vm659
        %v661 = vld [vmem:[#allocation3 + $0x384] sm:$0x7]
        %v662 = vsel %vm660, %v626, %v661
        %663 = vst [vmem:[#allocation3 + $0x384] sm:$0x7] %v662
        %vm664 = vcmask 1046532
        %vm665 = vmor %vm658, %vm664
        %v666 = vrot.slane %v449, 5
        %v667 = vrot.slane %v666, 4
        %v668 = vrot.slane %v450, 5
        %v669 = vsel %vm665, %v667, %v668
        %v670 = vrot.slane %v668, 4
        %v671 = vrot.slane %v451, 5
        %v672 = vsel %vm665, %v670, %v671
        %v673 = vrot.slane %v671, 4
        %v674 = vrot.slane %v452, 5
        %v675 = vsel %vm665, %v673, %v674
        %v676 = vrot.slane %v674, 4
        %v677 = vrot.slane %v453, 5
        %v678 = vsel %vm665, %v676, %v677
        %v679 = vrot.slane %v677, 4
        %v680 = vrot.slane %v454, 5
        %v681 = vsel %vm665, %v679, %v680
        %v682 = vrot.slane %v680, 4
        %v683 = vrot.slane %v455, 5
        %v684 = vsel %vm665, %v682, %v683
        %v685 = vrot.slane %v683, 4
        %v686 = vrot.slane %v456, 5
        %v687 = vsel %vm665, %v685, %v686
        %v688 = vrot.slane %v686, 4
        %v689 = vrot.slane %v457, 5
        %v690 = vsel %vm665, %v688, %v689
        %v691 = vrot.slane %v689, 4
        %v692 = vrot.slane %v458, 5
        %v693 = vsel %vm665, %v691, %v692
        %v694 = vrot.slane %v692, 4
        %v695 = vrot.slane %v459, 5
        %v696 = vsel %vm665, %v694, %v695
        %v697 = vrot.slane %v695, 4
        %v698 = vrot.slane %v460, 5
        %v699 = vsel %vm665, %v697, %v698
        %v700 = vrot.slane %v698, 4
        %v701 = vrot.slane %v461, 5
        %v702 = vsel %vm665, %v700, %v701
        %v703 = vrot.slane %v701, 4
        %v704 = vrot.slane %v462, 5
        %v705 = vsel %vm665, %v703, %v704
        %v706 = vrot.slane %v704, 4
        %v707 = vrot.slane %v463, 5
        %v708 = vsel %vm665, %v706, %v707
        %v709 = vrot.slane %v707, 4
        %v710 = vrot.slane %v464, 5
        %v711 = vsel %vm665, %v709, %v710
        %v712 = vrot.slane %v710, 4
        %729 = vst [vmem:[#allocation3 + $0x4] sm:$0xf] %v669
        %730 = vst [vmem:[#allocation3 + $0x40] sm:$0xf] %v672
        %731 = vst [vmem:[#allocation3 + $0x7c] sm:$0xf] %v675
        %732 = vst [vmem:[#allocation3 + $0xb8] sm:$0xf] %v678
        %733 = vst [vmem:[#allocation3 + $0xf4] sm:$0xf] %v681
        %734 = vst [vmem:[#allocation3 + $0x130] sm:$0xf] %v684
        %735 = vst [vmem:[#allocation3 + $0x16c] sm:$0xf] %v687
        %736 = vst [vmem:[#allocation3 + $0x1a8] sm:$0xf] %v690
        %737 = vst [vmem:[#allocation3 + $0x1e4] sm:$0xf] %v693
        %738 = vst [vmem:[#allocation3 + $0x220] sm:$0xf] %v696
        %739 = vst [vmem:[#allocation3 + $0x25c] sm:$0xf] %v699
        %740 = vst [vmem:[#allocation3 + $0x298] sm:$0xf] %v702
        %741 = vst [vmem:[#allocation3 + $0x2d4] sm:$0xf] %v705
        %742 = vst [vmem:[#allocation3 + $0x310] sm:$0xf] %v708
        %743 = vst [vmem:[#allocation3 + $0x34c] sm:$0xf] %v711
        %v744 = vld [vmem:[#allocation3 + $0x388] sm:$0x7]
        %v745 = vsel %vm660, %v712, %v744
        %746 = vst [vmem:[#allocation3 + $0x388] sm:$0x7] %v745
        %vm747 = vsmask.f32 6416
        %vm748 = vmor %vm659, %vm747
        %v749 = vrot.slane %v469, 5
        %v750 = vrot.slane %v472, 6
        %v751 = vor.u32 %v749, %v750
        %v752 = vrot.slane %v751, 4
        %v753 = vrot.slane %v482, 5
        %v754 = vrot.slane %v478, 6
        %v755 = vor.u32 %v753, %v754
        %v756 = vsel %vm748, %v752, %v755
        %v757 = vrot.slane %v755, 4
        %v758 = vrot.slane %v492, 5
        %v759 = vrot.slane %v488, 6
        %v760 = vor.u32 %v758, %v759
        %v761 = vsel %vm748, %v757, %v760
        %v762 = vrot.slane %v760, 4
        %v763 = vrot.slane %v502, 5
        %v764 = vrot.slane %v498, 6
        %v765 = vor.u32 %v763, %v764
        %v766 = vsel %vm748, %v762, %v765
        %v767 = vrot.slane %v765, 4
        %v768 = vrot.slane %v512, 5
        %v769 = vrot.slane %v508, 6
        %v770 = vor.u32 %v768, %v769
        %v771 = vsel %vm748, %v767, %v770
        %v772 = vrot.slane %v770, 4
        %v773 = vrot.slane %v522, 5
        %v774 = vrot.slane %v518, 6
        %v775 = vor.u32 %v773, %v774
        %v776 = vsel %vm748, %v772, %v775
        %v777 = vrot.slane %v775, 4
        %v778 = vrot.slane %v532, 5
        %v779 = vrot.slane %v528, 6
        %v780 = vor.u32 %v778, %v779
        %v781 = vsel %vm748, %v777, %v780
        %v782 = vrot.slane %v780, 4
        %v783 = vrot.slane %v542, 5
        %v784 = vrot.slane %v538, 6
        %v785 = vor.u32 %v783, %v784
        %v786 = vsel %vm748, %v782, %v785
        %v787 = vrot.slane %v785, 4
        %v788 = vrot.slane %v552, 5
        %v789 = vrot.slane %v548, 6
        %v790 = vor.u32 %v788, %v789
        %v791 = vsel %vm748, %v787, %v790
        %v792 = vrot.slane %v790, 4
        %v793 = vrot.slane %v562, 5
        %v794 = vrot.slane %v558, 6
        %v795 = vor.u32 %v793, %v794
        %v796 = vsel %vm748, %v792, %v795
        %v797 = vrot.slane %v795, 4
        %v798 = vrot.slane %v572, 5
        %v799 = vrot.slane %v568, 6
        %v800 = vor.u32 %v798, %v799
        %v801 = vsel %vm748, %v797, %v800
        %v802 = vrot.slane %v800, 4
        %v803 = vrot.slane %v582, 5
        %v804 = vrot.slane %v578, 6
        %v805 = vor.u32 %v803, %v804
        %v806 = vsel %vm748, %v802, %v805
        %v807 = vrot.slane %v805, 4
        %v808 = vrot.slane %v592, 5
        %v809 = vrot.slane %v588, 6
        %v810 = vor.u32 %v808, %v809
        %v811 = vsel %vm748, %v807, %v810
        %v812 = vrot.slane %v810, 4
        %v813 = vrot.slane %v602, 5
        %v814 = vrot.slane %v598, 6
        %v815 = vor.u32 %v813, %v814
        %v816 = vsel %vm748, %v812, %v815
        %v817 = vrot.slane %v815, 4
        %v818 = vrot.slane %v612, 5
        %v819 = vrot.slane %v608, 6
        %v820 = vor.u32 %v818, %v819
        %v821 = vsel %vm748, %v817, %v820
        %v822 = vrot.slane %v820, 4
        %v823 = vrot.slane %v622, 5
        %v824 = vrot.slane %v618, 6
        %v825 = vor.u32 %v823, %v824
        %v826 = vsel %vm748, %v822, %v825
        %v827 = vrot.slane %v825, 4
        %844 = vst [vmem:[#allocation3 + $0x8] sm:$0xf] %v756
        %845 = vst [vmem:[#allocation3 + $0x44] sm:$0xf] %v761
        %846 = vst [vmem:[#allocation3 + $0x80] sm:$0xf] %v766
        %847 = vst [vmem:[#allocation3 + $0xbc] sm:$0xf] %v771
        %848 = vst [vmem:[#allocation3 + $0xf8] sm:$0xf] %v776
        %849 = vst [vmem:[#allocation3 + $0x134] sm:$0xf] %v781
        %850 = vst [vmem:[#allocation3 + $0x170] sm:$0xf] %v786
        %851 = vst [vmem:[#allocation3 + $0x1ac] sm:$0xf] %v791
        %852 = vst [vmem:[#allocation3 + $0x1e8] sm:$0xf] %v796
        %853 = vst [vmem:[#allocation3 + $0x224] sm:$0xf] %v801
        %854 = vst [vmem:[#allocation3 + $0x260] sm:$0xf] %v806
        %855 = vst [vmem:[#allocation3 + $0x29c] sm:$0xf] %v811
        %856 = vst [vmem:[#allocation3 + $0x2d8] sm:$0xf] %v816
        %857 = vst [vmem:[#allocation3 + $0x314] sm:$0xf] %v821
        %858 = vst [vmem:[#allocation3 + $0x350] sm:$0xf] %v826
        %v859 = vld [vmem:[#allocation3 + $0x38c] sm:$0x7]
        %v860 = vsel %vm660, %v827, %v859
        %861 = vst [vmem:[#allocation3 + $0x38c] sm:$0x7] %v860
        %v862 = vpack.c.bf16 %v415, %v415
        %v864 = vunpack.c.l.b16 %v862
        %v865 = vpack.c.b16 %v864, %v864
        %vm866 = vcmask 1041408
        %vm867 = vcmask 1045508
        %vm868 = vmor %vm866, %vm867
        %v869 = vrot.slane %v449, 6
        %v870 = vrot.slane %v869, 4
        %v871 = vrot.slane %v450, 6
        %v872 = vsel %vm868, %v870, %v871
        %v873 = vrot.slane %v871, 4
        %v874 = vrot.slane %v451, 6
        %v875 = vsel %vm868, %v873, %v874
        %v876 = vrot.slane %v874, 4
        %v877 = vrot.slane %v452, 6
        %v878 = vsel %vm868, %v876, %v877
        %v879 = vrot.slane %v877, 4
        %v880 = vrot.slane %v453, 6
        %v881 = vsel %vm868, %v879, %v880
        %v882 = vrot.slane %v880, 4
        %v883 = vrot.slane %v454, 6
        %v884 = vsel %vm868, %v882, %v883
        %v885 = vrot.slane %v883, 4
        %v886 = vrot.slane %v455, 6
        %v887 = vsel %vm868, %v885, %v886
        %v888 = vrot.slane %v886, 4
        %v889 = vrot.slane %v456, 6
        %v890 = vsel %vm868, %v888, %v889
        %v891 = vrot.slane %v889, 4
        %v892 = vrot.slane %v457, 6
        %v893 = vsel %vm868, %v891, %v892
        %v894 = vrot.slane %v892, 4
        %v895 = vrot.slane %v458, 6
        %v896 = vsel %vm868, %v894, %v895
        %v897 = vrot.slane %v895, 4
        %v898 = vrot.slane %v459, 6
        %v899 = vsel %vm868, %v897, %v898
        %v900 = vrot.slane %v898, 4
        %v901 = vrot.slane %v460, 6
        %v902 = vsel %vm868, %v900, %v901
        %v903 = vrot.slane %v901, 4
        %v904 = vrot.slane %v461, 6
        %v905 = vsel %vm868, %v903, %v904
        %v906 = vrot.slane %v904, 4
        %v907 = vrot.slane %v462, 6
        %v908 = vsel %vm868, %v906, %v907
        %v909 = vrot.slane %v907, 4
        %v910 = vrot.slane %v463, 6
        %v911 = vsel %vm868, %v909, %v910
        %v912 = vrot.slane %v910, 4
        %v913 = vrot.slane %v464, 6
        %v914 = vsel %vm868, %v912, %v913
        %v915 = vrot.slane %v913, 4
        %v916 = vrot.slane %v865, 6
        %v917 = vsel %vm868, %v915, %v916
        %934 = vst [vmem:[#allocation3 + $0xc] sm:$0xf] %v872
        %935 = vst [vmem:[#allocation3 + $0x48] sm:$0xf] %v875
        %936 = vst [vmem:[#allocation3 + $0x84] sm:$0xf] %v878
        %937 = vst [vmem:[#allocation3 + $0xc0] sm:$0xf] %v881
        %938 = vst [vmem:[#allocation3 + $0xfc] sm:$0xf] %v884
        %939 = vst [vmem:[#allocation3 + $0x138] sm:$0xf] %v887
        %940 = vst [vmem:[#allocation3 + $0x174] sm:$0xf] %v890
        %941 = vst [vmem:[#allocation3 + $0x1b0] sm:$0xf] %v893
        %942 = vst [vmem:[#allocation3 + $0x1ec] sm:$0xf] %v896
        %943 = vst [vmem:[#allocation3 + $0x228] sm:$0xf] %v899
        %944 = vst [vmem:[#allocation3 + $0x264] sm:$0xf] %v902
        %945 = vst [vmem:[#allocation3 + $0x2a0] sm:$0xf] %v905
        %946 = vst [vmem:[#allocation3 + $0x2dc] sm:$0xf] %v908
        %947 = vst [vmem:[#allocation3 + $0x318] sm:$0xf] %v911
        %948 = vst [vmem:[#allocation3 + $0x354] sm:$0xf] %v914
        %v949 = vld [vmem:[#allocation3 + $0x390] sm:$0x7]
        %v950 = vsel %vm660, %v917, %v949
        %951 = vst [vmem:[#allocation3 + $0x390] sm:$0x7] %v950
        %vm952 = vsmask.f32 1280
        %vm953 = vsmask.f32 5392
        %vm954 = vmor %vm952, %vm953
        %v955 = vrot.slane %v469, 6
        %v956 = vrot.slane %v472, 7
        %v957 = vor.u32 %v955, %v956
        %v958 = vrot.slane %v957, 4
        %v959 = vrot.slane %v482, 6
        %v960 = vrot.slane %v478, 7
        %v961 = vor.u32 %v959, %v960
        %v962 = vsel %vm954, %v958, %v961
        %v963 = vrot.slane %v961, 4
        %v964 = vrot.slane %v492, 6
        %v965 = vrot.slane %v488, 7
        %v966 = vor.u32 %v964, %v965
        %v967 = vsel %vm954, %v963, %v966
        %v968 = vrot.slane %v966, 4
        %v969 = vrot.slane %v502, 6
        %v970 = vrot.slane %v498, 7
        %v971 = vor.u32 %v969, %v970
        %v972 = vsel %vm954, %v968, %v971
        %v973 = vrot.slane %v971, 4
        %v974 = vrot.slane %v512, 6
        %v975 = vrot.slane %v508, 7
        %v976 = vor.u32 %v974, %v975
        %v977 = vsel %vm954, %v973, %v976
        %v978 = vrot.slane %v976, 4
        %v979 = vrot.slane %v522, 6
        %v980 = vrot.slane %v518, 7
        %v981 = vor.u32 %v979, %v980
        %v982 = vsel %vm954, %v978, %v981
        %v983 = vrot.slane %v981, 4
        %v984 = vrot.slane %v532, 6
        %v985 = vrot.slane %v528, 7
        %v986 = vor.u32 %v984, %v985
        %v987 = vsel %vm954, %v983, %v986
        %v988 = vrot.slane %v986, 4
        %v989 = vrot.slane %v542, 6
        %v990 = vrot.slane %v538, 7
        %v991 = vor.u32 %v989, %v990
        %v992 = vsel %vm954, %v988, %v991
        %v993 = vrot.slane %v991, 4
        %v994 = vrot.slane %v552, 6
        %v995 = vrot.slane %v548, 7
        %v996 = vor.u32 %v994, %v995
        %v997 = vsel %vm954, %v993, %v996
        %v998 = vrot.slane %v996, 4
        %v999 = vrot.slane %v562, 6
        %v1000 = vrot.slane %v558, 7
        %v1001 = vor.u32 %v999, %v1000
        %v1002 = vsel %vm954, %v998, %v1001
        %v1003 = vrot.slane %v1001, 4
        %v1004 = vrot.slane %v572, 6
        %v1005 = vrot.slane %v568, 7
        %v1006 = vor.u32 %v1004, %v1005
        %v1007 = vsel %vm954, %v1003, %v1006
        %v1008 = vrot.slane %v1006, 4
        %v1009 = vrot.slane %v582, 6
        %v1010 = vrot.slane %v578, 7
        %v1011 = vor.u32 %v1009, %v1010
        %v1012 = vsel %vm954, %v1008, %v1011
        %v1013 = vrot.slane %v1011, 4
        %v1014 = vrot.slane %v592, 6
        %v1015 = vrot.slane %v588, 7
        %v1016 = vor.u32 %v1014, %v1015
        %v1017 = vsel %vm954, %v1013, %v1016
        %v1018 = vrot.slane %v1016, 4
        %v1019 = vrot.slane %v602, 6
        %v1020 = vrot.slane %v598, 7
        %v1021 = vor.u32 %v1019, %v1020
        %v1022 = vsel %vm954, %v1018, %v1021
        %v1023 = vrot.slane %v1021, 4
        %v1024 = vrot.slane %v612, 6
        %v1025 = vrot.slane %v608, 7
        %v1026 = vor.u32 %v1024, %v1025
        %v1027 = vsel %vm954, %v1023, %v1026
        %v1028 = vrot.slane %v1026, 4
        %v1029 = vrot.slane %v622, 6
        %v1030 = vrot.slane %v618, 7
        %v1031 = vor.u32 %v1029, %v1030
        %v1032 = vsel %vm954, %v1028, %v1031
        %v1033 = vrot.slane %v1031, 4
        %v1035 = vshrl.u32 %v865, 16
        %v1037 = vrot.slane %v1035, 6
        %v1038 = vshll.u32 %v865, 16
        %v1040 = vrot.slane %v1038, 7
        %v1041 = vor.u32 %v1037, %v1040
        %v1042 = vsel %vm954, %v1033, %v1041
        %1059 = vst [vmem:[#allocation3 + $0x10] sm:$0xf] %v962
        %1060 = vst [vmem:[#allocation3 + $0x4c] sm:$0xf] %v967
        %1061 = vst [vmem:[#allocation3 + $0x88] sm:$0xf] %v972
        %1062 = vst [vmem:[#allocation3 + $0xc4] sm:$0xf] %v977
        %1063 = vst [vmem:[#allocation3 + $0x100] sm:$0xf] %v982
        %1064 = vst [vmem:[#allocation3 + $0x13c] sm:$0xf] %v987
        %1065 = vst [vmem:[#allocation3 + $0x178] sm:$0xf] %v992
        %1066 = vst [vmem:[#allocation3 + $0x1b4] sm:$0xf] %v997
        %1067 = vst [vmem:[#allocation3 + $0x1f0] sm:$0xf] %v1002
        %1068 = vst [vmem:[#allocation3 + $0x22c] sm:$0xf] %v1007
        %1069 = vst [vmem:[#allocation3 + $0x268] sm:$0xf] %v1012
        %1070 = vst [vmem:[#allocation3 + $0x2a4] sm:$0xf] %v1017
        %1071 = vst [vmem:[#allocation3 + $0x2e0] sm:$0xf] %v1022
        %1072 = vst [vmem:[#allocation3 + $0x31c] sm:$0xf] %v1027
        %1073 = vst [vmem:[#allocation3 + $0x358] sm:$0xf] %v1032
        %v1074 = vld [vmem:[#allocation3 + $0x394] sm:$0x7]
        %v1075 = vsel %vm660, %v1042, %v1074
        %1076 = vst [vmem:[#allocation3 + $0x394] sm:$0x7] %v1075
        %vm1077 = vcmask 1040384
        %vm1078 = vcmask 1044484
        %vm1079 = vmor %vm1077, %vm1078
        %v1080 = vrot.slane %v449, 7
        %v1081 = vrot.slane %v1080, 4
        %v1082 = vrot.slane %v450, 7
        %v1083 = vsel %vm1079, %v1081, %v1082
        %v1084 = vrot.slane %v1082, 4
        %v1085 = vrot.slane %v451, 7
        %v1086 = vsel %vm1079, %v1084, %v1085
        %v1087 = vrot.slane %v1085, 4
        %v1088 = vrot.slane %v452, 7
        %v1089 = vsel %vm1079, %v1087, %v1088
        %v1090 = vrot.slane %v1088, 4
        %v1091 = vrot.slane %v453, 7
        %v1092 = vsel %vm1079, %v1090, %v1091
        %v1093 = vrot.slane %v1091, 4
        %v1094 = vrot.slane %v454, 7
        %v1095 = vsel %vm1079, %v1093, %v1094
        %v1096 = vrot.slane %v1094, 4
        %v1097 = vrot.slane %v455, 7
        %v1098 = vsel %vm1079, %v1096, %v1097
        %v1099 = vrot.slane %v1097, 4
        %v1100 = vrot.slane %v456, 7
        %v1101 = vsel %vm1079, %v1099, %v1100
        %v1102 = vrot.slane %v1100, 4
        %v1103 = vrot.slane %v457, 7
        %v1104 = vsel %vm1079, %v1102, %v1103
        %v1105 = vrot.slane %v1103, 4
        %v1106 = vrot.slane %v458, 7
        %v1107 = vsel %vm1079, %v1105, %v1106
        %v1108 = vrot.slane %v1106, 4
        %v1109 = vrot.slane %v459, 7
        %v1110 = vsel %vm1079, %v1108, %v1109
        %v1111 = vrot.slane %v1109, 4
        %v1112 = vrot.slane %v460, 7
        %v1113 = vsel %vm1079, %v1111, %v1112
        %v1114 = vrot.slane %v1112, 4
        %v1115 = vrot.slane %v461, 7
        %v1116 = vsel %vm1079, %v1114, %v1115
        %v1117 = vrot.slane %v1115, 4
        %v1118 = vrot.slane %v462, 7
        %v1119 = vsel %vm1079, %v1117, %v1118
        %v1120 = vrot.slane %v1118, 4
        %v1121 = vrot.slane %v463, 7
        %v1122 = vsel %vm1079, %v1120, %v1121
        %v1123 = vrot.slane %v1121, 4
        %v1124 = vrot.slane %v464, 7
        %v1125 = vsel %vm1079, %v1123, %v1124
        %v1126 = vrot.slane %v1124, 4
        %v1127 = vrot.slane %v865, 7
        %v1128 = vsel %vm1079, %v1126, %v1127
        %1145 = vst [vmem:[#allocation3 + $0x14] sm:$0xf] %v1083
        %1146 = vst [vmem:[#allocation3 + $0x50] sm:$0xf] %v1086
        %1147 = vst [vmem:[#allocation3 + $0x8c] sm:$0xf] %v1089
        %1148 = vst [vmem:[#allocation3 + $0xc8] sm:$0xf] %v1092
        %1149 = vst [vmem:[#allocation3 + $0x104] sm:$0xf] %v1095
        %1150 = vst [vmem:[#allocation3 + $0x140] sm:$0xf] %v1098
        %1151 = vst [vmem:[#allocation3 + $0x17c] sm:$0xf] %v1101
        %1152 = vst [vmem:[#allocation3 + $0x1b8] sm:$0xf] %v1104
        %1153 = vst [vmem:[#allocation3 + $0x1f4] sm:$0xf] %v1107
        %1154 = vst [vmem:[#allocation3 + $0x230] sm:$0xf] %v1110
        %1155 = vst [vmem:[#allocation3 + $0x26c] sm:$0xf] %v1113
        %1156 = vst [vmem:[#allocation3 + $0x2a8] sm:$0xf] %v1116
        %1157 = vst [vmem:[#allocation3 + $0x2e4] sm:$0xf] %v1119
        %1158 = vst [vmem:[#allocation3 + $0x320] sm:$0xf] %v1122
        %1159 = vst [vmem:[#allocation3 + $0x35c] sm:$0xf] %v1125
        %v1160 = vld [vmem:[#allocation3 + $0x398] sm:$0x7]
        %v1161 = vsel %vm660, %v1128, %v1160
        %1162 = vst [vmem:[#allocation3 + $0x398] sm:$0x7] %v1161
        %vm1163 = vsmask.f32 256
        %vm1164 = vsmask.f32 4368
        %vm1165 = vmor %vm1163, %vm1164
        %v1166 = vrot.slane %v469, 7
        %v1167 = vrot.slane %v1166, 4
        %v1168 = vrot.slane %v482, 7
        %v1169 = vor.u32 %v1168, %v478
        %v1170 = vsel %vm1165, %v1167, %v1169
        %v1171 = vrot.slane %v1168, 4
        %v1172 = vrot.slane %v492, 7
        %v1173 = vor.u32 %v1172, %v488
        %v1174 = vsel %vm1165, %v1171, %v1173
        %v1175 = vrot.slane %v1172, 4
        %v1176 = vrot.slane %v502, 7
        %v1177 = vor.u32 %v1176, %v498
        %v1178 = vsel %vm1165, %v1175, %v1177
        %v1179 = vrot.slane %v1176, 4
        %v1180 = vrot.slane %v512, 7
        %v1181 = vor.u32 %v1180, %v508
        %v1182 = vsel %vm1165, %v1179, %v1181
        %v1183 = vrot.slane %v1180, 4
        %v1184 = vrot.slane %v522, 7
        %v1185 = vor.u32 %v1184, %v518
        %v1186 = vsel %vm1165, %v1183, %v1185
        %v1187 = vrot.slane %v1184, 4
        %v1188 = vrot.slane %v532, 7
        %v1189 = vor.u32 %v1188, %v528
        %v1190 = vsel %vm1165, %v1187, %v1189
        %v1191 = vrot.slane %v1188, 4
        %v1192 = vrot.slane %v542, 7
        %v1193 = vor.u32 %v1192, %v538
        %v1194 = vsel %vm1165, %v1191, %v1193
        %v1195 = vrot.slane %v1192, 4
        %v1196 = vrot.slane %v552, 7
        %v1197 = vor.u32 %v1196, %v548
        %v1198 = vsel %vm1165, %v1195, %v1197
        %v1199 = vrot.slane %v1196, 4
        %v1200 = vrot.slane %v562, 7
        %v1201 = vor.u32 %v1200, %v558
        %v1202 = vsel %vm1165, %v1199, %v1201
        %v1203 = vrot.slane %v1200, 4
        %v1204 = vrot.slane %v572, 7
        %v1205 = vor.u32 %v1204, %v568
        %v1206 = vsel %vm1165, %v1203, %v1205
        %v1207 = vrot.slane %v1204, 4
        %v1208 = vrot.slane %v582, 7
        %v1209 = vor.u32 %v1208, %v578
        %v1210 = vsel %vm1165, %v1207, %v1209
        %v1211 = vrot.slane %v1208, 4
        %v1212 = vrot.slane %v592, 7
        %v1213 = vor.u32 %v1212, %v588
        %v1214 = vsel %vm1165, %v1211, %v1213
        %v1215 = vrot.slane %v1212, 4
        %v1216 = vrot.slane %v602, 7
        %v1217 = vor.u32 %v1216, %v598
        %v1218 = vsel %vm1165, %v1215, %v1217
        %v1219 = vrot.slane %v1216, 4
        %v1220 = vrot.slane %v612, 7
        %v1221 = vor.u32 %v1220, %v608
        %v1222 = vsel %vm1165, %v1219, %v1221
        %v1223 = vrot.slane %v1220, 4
        %v1224 = vrot.slane %v622, 7
        %v1225 = vor.u32 %v1224, %v618
        %v1226 = vsel %vm1165, %v1223, %v1225
        %v1227 = vrot.slane %v1224, 4
        %v1228 = vrot.slane %v1035, 7
        %v1229 = vor.u32 %v1228, %v1038
        %v1230 = vsel %vm1165, %v1227, %v1229
        %1247 = vst [vmem:[#allocation3 + $0x18] sm:$0xf] %v1170
        %1248 = vst [vmem:[#allocation3 + $0x54] sm:$0xf] %v1174
        %1249 = vst [vmem:[#allocation3 + $0x90] sm:$0xf] %v1178
        %1250 = vst [vmem:[#allocation3 + $0xcc] sm:$0xf] %v1182
        %1251 = vst [vmem:[#allocation3 + $0x108] sm:$0xf] %v1186
        %1252 = vst [vmem:[#allocation3 + $0x144] sm:$0xf] %v1190
        %1253 = vst [vmem:[#allocation3 + $0x180] sm:$0xf] %v1194
        %1254 = vst [vmem:[#allocation3 + $0x1bc] sm:$0xf] %v1198
        %1255 = vst [vmem:[#allocation3 + $0x1f8] sm:$0xf] %v1202
        %1256 = vst [vmem:[#allocation3 + $0x234] sm:$0xf] %v1206
        %1257 = vst [vmem:[#allocation3 + $0x270] sm:$0xf] %v1210
        %1258 = vst [vmem:[#allocation3 + $0x2ac] sm:$0xf] %v1214
        %1259 = vst [vmem:[#allocation3 + $0x2e8] sm:$0xf] %v1218
        %1260 = vst [vmem:[#allocation3 + $0x324] sm:$0xf] %v1222
        %1261 = vst [vmem:[#allocation3 + $0x360] sm:$0xf] %v1226
        %v1262 = vld [vmem:[#allocation3 + $0x39c] sm:$0x7]
        %v1263 = vsel %vm660, %v1230, %v1262
        %1264 = vst [vmem:[#allocation3 + $0x39c] sm:$0x7] %v1263
        %v1265 = vpack.c.bf16 %v401, %v400
        %v1266 = vpack.c.bf16 %v403, %v402
        %v1267 = vpack.c.bf16 %v405, %v404
        %v1268 = vpack.c.bf16 %v407, %v406
        %v1269 = vpack.c.bf16 %v409, %v408
        %v1270 = vpack.c.bf16 %v411, %v410
        %v1271 = vpack.c.bf16 %v413, %v412
        %v1272 = vpack.c.bf16 %v415, %v414
        %v1281 = vunpack.c.l.b16 %v1265
        %v1282 = vunpack.c.h.b16 %v1265
        %v1283 = vunpack.c.l.b16 %v1266
        %v1284 = vunpack.c.h.b16 %v1266
        %v1285 = vunpack.c.l.b16 %v1267
        %v1286 = vunpack.c.h.b16 %v1267
        %v1287 = vunpack.c.l.b16 %v1268
        %v1288 = vunpack.c.h.b16 %v1268
        %v1289 = vunpack.c.l.b16 %v1269
        %v1290 = vunpack.c.h.b16 %v1269
        %v1291 = vunpack.c.l.b16 %v1270
        %v1292 = vunpack.c.h.b16 %v1270
        %v1293 = vunpack.c.l.b16 %v1271
        %v1294 = vunpack.c.h.b16 %v1271
        %v1295 = vunpack.c.l.b16 %v1272
        %v1296 = vunpack.c.h.b16 %v1272
        %v1297 = vpack.c.b16 %v1281, %v1281
        %v1298 = vpack.c.b16 %v1282, %v1282
        %v1299 = vpack.c.b16 %v1283, %v1283
        %v1300 = vpack.c.b16 %v1284, %v1284
        %v1301 = vpack.c.b16 %v1285, %v1285
        %v1302 = vpack.c.b16 %v1286, %v1286
        %v1303 = vpack.c.b16 %v1287, %v1287
        %v1304 = vpack.c.b16 %v1288, %v1288
        %v1305 = vpack.c.b16 %v1289, %v1289
        %v1306 = vpack.c.b16 %v1290, %v1290
        %v1307 = vpack.c.b16 %v1291, %v1291
        %v1308 = vpack.c.b16 %v1292, %v1292
        %v1309 = vpack.c.b16 %v1293, %v1293
        %v1310 = vpack.c.b16 %v1294, %v1294
        %v1311 = vpack.c.b16 %v1295, %v1295
        %v1312 = vpack.c.b16 %v1296, %v1296
        %1329 = vst [vmem:[#allocation3 + $0x1c] sm:$0xf] %v1297
        %1330 = vst [vmem:[#allocation3 + $0x58] sm:$0xf] %v1298
        %1331 = vst [vmem:[#allocation3 + $0x94] sm:$0xf] %v1299
        %1332 = vst [vmem:[#allocation3 + $0xd0] sm:$0xf] %v1300
        %1333 = vst [vmem:[#allocation3 + $0x10c] sm:$0xf] %v1301
        %1334 = vst [vmem:[#allocation3 + $0x148] sm:$0xf] %v1302
        %1335 = vst [vmem:[#allocation3 + $0x184] sm:$0xf] %v1303
        %1336 = vst [vmem:[#allocation3 + $0x1c0] sm:$0xf] %v1304
        %1337 = vst [vmem:[#allocation3 + $0x1fc] sm:$0xf] %v1305
        %1338 = vst [vmem:[#allocation3 + $0x238] sm:$0xf] %v1306
        %1339 = vst [vmem:[#allocation3 + $0x274] sm:$0xf] %v1307
        %1340 = vst [vmem:[#allocation3 + $0x2b0] sm:$0xf] %v1308
        %1341 = vst [vmem:[#allocation3 + $0x2ec] sm:$0xf] %v1309
        %1342 = vst [vmem:[#allocation3 + $0x328] sm:$0xf] %v1310
        %1343 = vst [vmem:[#allocation3 + $0x364] sm:$0xf] %v1311
        %v1344 = vld [vmem:[#allocation3 + $0x3a0] sm:$0x7]
        %v1345 = vsel %vm660, %v1312, %v1344
        %1346 = vst [vmem:[#allocation3 + $0x3a0] sm:$0x7] %v1345
        %v1348 = vshrl.u32 %v1297, 16
        %v1350 = vrot.slane %v1348, 4
        %v1351 = vshll.u32 %v1297, 16
        %v1353 = vrot.slane %v1351, 5
        %v1354 = vor.u32 %v1350, %v1353
        %v1355 = vrot.slane %v1354, 4
        %v1357 = vshll.u32 %v1298, 16
        %v1359 = vrot.slane %v1357, 5
        %v1360 = vsel %vm467, %v1355, %v1359
        %v1361 = vshrl.u32 %v1298, 16
        %v1363 = vrot.slane %v1361, 4
        %v1364 = vor.u32 %v1363, %v1359
        %v1365 = vrot.slane %v1364, 4
        %v1367 = vshll.u32 %v1299, 16
        %v1369 = vrot.slane %v1367, 5
        %v1370 = vsel %vm467, %v1365, %v1369
        %v1371 = vshrl.u32 %v1299, 16
        %v1373 = vrot.slane %v1371, 4
        %v1374 = vor.u32 %v1373, %v1369
        %v1375 = vrot.slane %v1374, 4
        %v1377 = vshll.u32 %v1300, 16
        %v1379 = vrot.slane %v1377, 5
        %v1380 = vsel %vm467, %v1375, %v1379
        %v1381 = vshrl.u32 %v1300, 16
        %v1383 = vrot.slane %v1381, 4
        %v1384 = vor.u32 %v1383, %v1379
        %v1385 = vrot.slane %v1384, 4
        %v1387 = vshll.u32 %v1301, 16
        %v1389 = vrot.slane %v1387, 5
        %v1390 = vsel %vm467, %v1385, %v1389
        %v1391 = vshrl.u32 %v1301, 16
        %v1393 = vrot.slane %v1391, 4
        %v1394 = vor.u32 %v1393, %v1389
        %v1395 = vrot.slane %v1394, 4
        %v1397 = vshll.u32 %v1302, 16
        %v1399 = vrot.slane %v1397, 5
        %v1400 = vsel %vm467, %v1395, %v1399
        %v1401 = vshrl.u32 %v1302, 16
        %v1403 = vrot.slane %v1401, 4
        %v1404 = vor.u32 %v1403, %v1399
        %v1405 = vrot.slane %v1404, 4
        %v1407 = vshll.u32 %v1303, 16
        %v1409 = vrot.slane %v1407, 5
        %v1410 = vsel %vm467, %v1405, %v1409
        %v1411 = vshrl.u32 %v1303, 16
        %v1413 = vrot.slane %v1411, 4
        %v1414 = vor.u32 %v1413, %v1409
        %v1415 = vrot.slane %v1414, 4
        %v1417 = vshll.u32 %v1304, 16
        %v1419 = vrot.slane %v1417, 5
        %v1420 = vsel %vm467, %v1415, %v1419
        %v1421 = vshrl.u32 %v1304, 16
        %v1423 = vrot.slane %v1421, 4
        %v1424 = vor.u32 %v1423, %v1419
        %v1425 = vrot.slane %v1424, 4
        %v1427 = vshll.u32 %v1305, 16
        %v1429 = vrot.slane %v1427, 5
        %v1430 = vsel %vm467, %v1425, %v1429
        %v1431 = vshrl.u32 %v1305, 16
        %v1433 = vrot.slane %v1431, 4
        %v1434 = vor.u32 %v1433, %v1429
        %v1435 = vrot.slane %v1434, 4
        %v1437 = vshll.u32 %v1306, 16
        %v1439 = vrot.slane %v1437, 5
        %v1440 = vsel %vm467, %v1435, %v1439
        %v1441 = vshrl.u32 %v1306, 16
        %v1443 = vrot.slane %v1441, 4
        %v1444 = vor.u32 %v1443, %v1439
        %v1445 = vrot.slane %v1444, 4
        %v1447 = vshll.u32 %v1307, 16
        %v1449 = vrot.slane %v1447, 5
        %v1450 = vsel %vm467, %v1445, %v1449
        %v1451 = vshrl.u32 %v1307, 16
        %v1453 = vrot.slane %v1451, 4
        %v1454 = vor.u32 %v1453, %v1449
        %v1455 = vrot.slane %v1454, 4
        %v1457 = vshll.u32 %v1308, 16
        %v1459 = vrot.slane %v1457, 5
        %v1460 = vsel %vm467, %v1455, %v1459
        %v1461 = vshrl.u32 %v1308, 16
        %v1463 = vrot.slane %v1461, 4
        %v1464 = vor.u32 %v1463, %v1459
        %v1465 = vrot.slane %v1464, 4
        %v1467 = vshll.u32 %v1309, 16
        %v1469 = vrot.slane %v1467, 5
        %v1470 = vsel %vm467, %v1465, %v1469
        %v1471 = vshrl.u32 %v1309, 16
        %v1473 = vrot.slane %v1471, 4
        %v1474 = vor.u32 %v1473, %v1469
        %v1475 = vrot.slane %v1474, 4
        %v1477 = vshll.u32 %v1310, 16
        %v1479 = vrot.slane %v1477, 5
        %v1480 = vsel %vm467, %v1475, %v1479
        %v1481 = vshrl.u32 %v1310, 16
        %v1483 = vrot.slane %v1481, 4
        %v1484 = vor.u32 %v1483, %v1479
        %v1485 = vrot.slane %v1484, 4
        %v1487 = vshll.u32 %v1311, 16
        %v1489 = vrot.slane %v1487, 5
        %v1490 = vsel %vm467, %v1485, %v1489
        %v1491 = vshrl.u32 %v1311, 16
        %v1493 = vrot.slane %v1491, 4
        %v1494 = vor.u32 %v1493, %v1489
        %v1495 = vrot.slane %v1494, 4
        %v1497 = vshll.u32 %v1312, 16
        %v1499 = vrot.slane %v1497, 5
        %v1500 = vsel %vm467, %v1495, %v1499
        %v1501 = vshrl.u32 %v1312, 16
        %v1503 = vrot.slane %v1501, 4
        %v1504 = vor.u32 %v1503, %v1499
        %v1505 = vrot.slane %v1504, 4
        %1522 = vst [vmem:[#allocation3 + $0x20] sm:$0xf] %v1360
        %1523 = vst [vmem:[#allocation3 + $0x5c] sm:$0xf] %v1370
        %1524 = vst [vmem:[#allocation3 + $0x98] sm:$0xf] %v1380
        %1525 = vst [vmem:[#allocation3 + $0xd4] sm:$0xf] %v1390
        %1526 = vst [vmem:[#allocation3 + $0x110] sm:$0xf] %v1400
        %1527 = vst [vmem:[#allocation3 + $0x14c] sm:$0xf] %v1410
        %1528 = vst [vmem:[#allocation3 + $0x188] sm:$0xf] %v1420
        %1529 = vst [vmem:[#allocation3 + $0x1c4] sm:$0xf] %v1430
        %1530 = vst [vmem:[#allocation3 + $0x200] sm:$0xf] %v1440
        %1531 = vst [vmem:[#allocation3 + $0x23c] sm:$0xf] %v1450
        %1532 = vst [vmem:[#allocation3 + $0x278] sm:$0xf] %v1460
        %1533 = vst [vmem:[#allocation3 + $0x2b4] sm:$0xf] %v1470
        %1534 = vst [vmem:[#allocation3 + $0x2f0] sm:$0xf] %v1480
        %1535 = vst [vmem:[#allocation3 + $0x32c] sm:$0xf] %v1490
        %1536 = vst [vmem:[#allocation3 + $0x368] sm:$0xf] %v1500
        %v1537 = vld [vmem:[#allocation3 + $0x3a4] sm:$0x7]
        %v1538 = vsel %vm660, %v1505, %v1537
        %1539 = vst [vmem:[#allocation3 + $0x3a4] sm:$0x7] %v1538
        %v1540 = vrot.slane %v1297, 5
        %v1541 = vrot.slane %v1540, 4
        %v1542 = vrot.slane %v1298, 5
        %v1543 = vsel %vm665, %v1541, %v1542
        %v1544 = vrot.slane %v1542, 4
        %v1545 = vrot.slane %v1299, 5
        %v1546 = vsel %vm665, %v1544, %v1545
        %v1547 = vrot.slane %v1545, 4
        %v1548 = vrot.slane %v1300, 5
        %v1549 = vsel %vm665, %v1547, %v1548
        %v1550 = vrot.slane %v1548, 4
        %v1551 = vrot.slane %v1301, 5
        %v1552 = vsel %vm665, %v1550, %v1551
        %v1553 = vrot.slane %v1551, 4
        %v1554 = vrot.slane %v1302, 5
        %v1555 = vsel %vm665, %v1553, %v1554
        %v1556 = vrot.slane %v1554, 4
        %v1557 = vrot.slane %v1303, 5
        %v1558 = vsel %vm665, %v1556, %v1557
        %v1559 = vrot.slane %v1557, 4
        %v1560 = vrot.slane %v1304, 5
        %v1561 = vsel %vm665, %v1559, %v1560
        %v1562 = vrot.slane %v1560, 4
        %v1563 = vrot.slane %v1305, 5
        %v1564 = vsel %vm665, %v1562, %v1563
        %v1565 = vrot.slane %v1563, 4
        %v1566 = vrot.slane %v1306, 5
        %v1567 = vsel %vm665, %v1565, %v1566
        %v1568 = vrot.slane %v1566, 4
        %v1569 = vrot.slane %v1307, 5
        %v1570 = vsel %vm665, %v1568, %v1569
        %v1571 = vrot.slane %v1569, 4
        %v1572 = vrot.slane %v1308, 5
        %v1573 = vsel %vm665, %v1571, %v1572
        %v1574 = vrot.slane %v1572, 4
        %v1575 = vrot.slane %v1309, 5
        %v1576 = vsel %vm665, %v1574, %v1575
        %v1577 = vrot.slane %v1575, 4
        %v1578 = vrot.slane %v1310, 5
        %v1579 = vsel %vm665, %v1577, %v1578
        %v1580 = vrot.slane %v1578, 4
        %v1581 = vrot.slane %v1311, 5
        %v1582 = vsel %vm665, %v1580, %v1581
        %v1583 = vrot.slane %v1581, 4
        %v1584 = vrot.slane %v1312, 5
        %v1585 = vsel %vm665, %v1583, %v1584
        %v1586 = vrot.slane %v1584, 4
        %1603 = vst [vmem:[#allocation3 + $0x24] sm:$0xf] %v1543
        %1604 = vst [vmem:[#allocation3 + $0x60] sm:$0xf] %v1546
        %1605 = vst [vmem:[#allocation3 + $0x9c] sm:$0xf] %v1549
        %1606 = vst [vmem:[#allocation3 + $0xd8] sm:$0xf] %v1552
        %1607 = vst [vmem:[#allocation3 + $0x114] sm:$0xf] %v1555
        %1608 = vst [vmem:[#allocation3 + $0x150] sm:$0xf] %v1558
        %1609 = vst [vmem:[#allocation3 + $0x18c] sm:$0xf] %v1561
        %1610 = vst [vmem:[#allocation3 + $0x1c8] sm:$0xf] %v1564
        %1611 = vst [vmem:[#allocation3 + $0x204] sm:$0xf] %v1567
        %1612 = vst [vmem:[#allocation3 + $0x240] sm:$0xf] %v1570
        %1613 = vst [vmem:[#allocation3 + $0x27c] sm:$0xf] %v1573
        %1614 = vst [vmem:[#allocation3 + $0x2b8] sm:$0xf] %v1576
        %1615 = vst [vmem:[#allocation3 + $0x2f4] sm:$0xf] %v1579
        %1616 = vst [vmem:[#allocation3 + $0x330] sm:$0xf] %v1582
        %1617 = vst [vmem:[#allocation3 + $0x36c] sm:$0xf] %v1585
        %v1618 = vld [vmem:[#allocation3 + $0x3a8] sm:$0x7]
        %v1619 = vsel %vm660, %v1586, %v1618
        %1620 = vst [vmem:[#allocation3 + $0x3a8] sm:$0x7] %v1619
        %v1621 = vrot.slane %v1348, 5
        %v1622 = vrot.slane %v1351, 6
        %v1623 = vor.u32 %v1621, %v1622
        %v1624 = vrot.slane %v1623, 4
        %v1625 = vrot.slane %v1361, 5
        %v1626 = vrot.slane %v1357, 6
        %v1627 = vor.u32 %v1625, %v1626
        %v1628 = vsel %vm748, %v1624, %v1627
        %v1629 = vrot.slane %v1627, 4
        %v1630 = vrot.slane %v1371, 5
        %v1631 = vrot.slane %v1367, 6
        %v1632 = vor.u32 %v1630, %v1631
        %v1633 = vsel %vm748, %v1629, %v1632
        %v1634 = vrot.slane %v1632, 4
        %v1635 = vrot.slane %v1381, 5
        %v1636 = vrot.slane %v1377, 6
        %v1637 = vor.u32 %v1635, %v1636
        %v1638 = vsel %vm748, %v1634, %v1637
        %v1639 = vrot.slane %v1637, 4
        %v1640 = vrot.slane %v1391, 5
        %v1641 = vrot.slane %v1387, 6
        %v1642 = vor.u32 %v1640, %v1641
        %v1643 = vsel %vm748, %v1639, %v1642
        %v1644 = vrot.slane %v1642, 4
        %v1645 = vrot.slane %v1401, 5
        %v1646 = vrot.slane %v1397, 6
        %v1647 = vor.u32 %v1645, %v1646
        %v1648 = vsel %vm748, %v1644, %v1647
        %v1649 = vrot.slane %v1647, 4
        %v1650 = vrot.slane %v1411, 5
        %v1651 = vrot.slane %v1407, 6
        %v1652 = vor.u32 %v1650, %v1651
        %v1653 = vsel %vm748, %v1649, %v1652
        %v1654 = vrot.slane %v1652, 4
        %v1655 = vrot.slane %v1421, 5
        %v1656 = vrot.slane %v1417, 6
        %v1657 = vor.u32 %v1655, %v1656
        %v1658 = vsel %vm748, %v1654, %v1657
        %v1659 = vrot.slane %v1657, 4
        %v1660 = vrot.slane %v1431, 5
        %v1661 = vrot.slane %v1427, 6
        %v1662 = vor.u32 %v1660, %v1661
        %v1663 = vsel %vm748, %v1659, %v1662
        %v1664 = vrot.slane %v1662, 4
        %v1665 = vrot.slane %v1441, 5
        %v1666 = vrot.slane %v1437, 6
        %v1667 = vor.u32 %v1665, %v1666
        %v1668 = vsel %vm748, %v1664, %v1667
        %v1669 = vrot.slane %v1667, 4
        %v1670 = vrot.slane %v1451, 5
        %v1671 = vrot.slane %v1447, 6
        %v1672 = vor.u32 %v1670, %v1671
        %v1673 = vsel %vm748, %v1669, %v1672
        %v1674 = vrot.slane %v1672, 4
        %v1675 = vrot.slane %v1461, 5
        %v1676 = vrot.slane %v1457, 6
        %v1677 = vor.u32 %v1675, %v1676
        %v1678 = vsel %vm748, %v1674, %v1677
        %v1679 = vrot.slane %v1677, 4
        %v1680 = vrot.slane %v1471, 5
        %v1681 = vrot.slane %v1467, 6
        %v1682 = vor.u32 %v1680, %v1681
        %v1683 = vsel %vm748, %v1679, %v1682
        %v1684 = vrot.slane %v1682, 4
        %v1685 = vrot.slane %v1481, 5
        %v1686 = vrot.slane %v1477, 6
        %v1687 = vor.u32 %v1685, %v1686
        %v1688 = vsel %vm748, %v1684, %v1687
        %v1689 = vrot.slane %v1687, 4
        %v1690 = vrot.slane %v1491, 5
        %v1691 = vrot.slane %v1487, 6
        %v1692 = vor.u32 %v1690, %v1691
        %v1693 = vsel %vm748, %v1689, %v1692
        %v1694 = vrot.slane %v1692, 4
        %v1695 = vrot.slane %v1501, 5
        %v1696 = vrot.slane %v1497, 6
        %v1697 = vor.u32 %v1695, %v1696
        %v1698 = vsel %vm748, %v1694, %v1697
        %v1699 = vrot.slane %v1697, 4
        %1716 = vst [vmem:[#allocation3 + $0x28] sm:$0xf] %v1628
        %1717 = vst [vmem:[#allocation3 + $0x64] sm:$0xf] %v1633
        %1718 = vst [vmem:[#allocation3 + $0xa0] sm:$0xf] %v1638
        %1719 = vst [vmem:[#allocation3 + $0xdc] sm:$0xf] %v1643
        %1720 = vst [vmem:[#allocation3 + $0x118] sm:$0xf] %v1648
        %1721 = vst [vmem:[#allocation3 + $0x154] sm:$0xf] %v1653
        %1722 = vst [vmem:[#allocation3 + $0x190] sm:$0xf] %v1658
        %1723 = vst [vmem:[#allocation3 + $0x1cc] sm:$0xf] %v1663
        %1724 = vst [vmem:[#allocation3 + $0x208] sm:$0xf] %v1668
        %1725 = vst [vmem:[#allocation3 + $0x244] sm:$0xf] %v1673
        %1726 = vst [vmem:[#allocation3 + $0x280] sm:$0xf] %v1678
        %1727 = vst [vmem:[#allocation3 + $0x2bc] sm:$0xf] %v1683
        %1728 = vst [vmem:[#allocation3 + $0x2f8] sm:$0xf] %v1688
        %1729 = vst [vmem:[#allocation3 + $0x334] sm:$0xf] %v1693
        %1730 = vst [vmem:[#allocation3 + $0x370] sm:$0xf] %v1698
        %v1731 = vld [vmem:[#allocation3 + $0x3ac] sm:$0x7]
        %v1732 = vsel %vm660, %v1699, %v1731
        %1733 = vst [vmem:[#allocation3 + $0x3ac] sm:$0x7] %v1732
        %v1734 = vpack.c.bf16 %v416, %v416
        %v1736 = vunpack.c.l.b16 %v1734
        %v1737 = vpack.c.b16 %v1736, %v1736
        %v1738 = vrot.slane %v1297, 6
        %v1739 = vrot.slane %v1738, 4
        %v1740 = vrot.slane %v1298, 6
        %v1741 = vsel %vm868, %v1739, %v1740
        %v1742 = vrot.slane %v1740, 4
        %v1743 = vrot.slane %v1299, 6
        %v1744 = vsel %vm868, %v1742, %v1743
        %v1745 = vrot.slane %v1743, 4
        %v1746 = vrot.slane %v1300, 6
        %v1747 = vsel %vm868, %v1745, %v1746
        %v1748 = vrot.slane %v1746, 4
        %v1749 = vrot.slane %v1301, 6
        %v1750 = vsel %vm868, %v1748, %v1749
        %v1751 = vrot.slane %v1749, 4
        %v1752 = vrot.slane %v1302, 6
        %v1753 = vsel %vm868, %v1751, %v1752
        %v1754 = vrot.slane %v1752, 4
        %v1755 = vrot.slane %v1303, 6
        %v1756 = vsel %vm868, %v1754, %v1755
        %v1757 = vrot.slane %v1755, 4
        %v1758 = vrot.slane %v1304, 6
        %v1759 = vsel %vm868, %v1757, %v1758
        %v1760 = vrot.slane %v1758, 4
        %v1761 = vrot.slane %v1305, 6
        %v1762 = vsel %vm868, %v1760, %v1761
        %v1763 = vrot.slane %v1761, 4
        %v1764 = vrot.slane %v1306, 6
        %v1765 = vsel %vm868, %v1763, %v1764
        %v1766 = vrot.slane %v1764, 4
        %v1767 = vrot.slane %v1307, 6
        %v1768 = vsel %vm868, %v1766, %v1767
        %v1769 = vrot.slane %v1767, 4
        %v1770 = vrot.slane %v1308, 6
        %v1771 = vsel %vm868, %v1769, %v1770
        %v1772 = vrot.slane %v1770, 4
        %v1773 = vrot.slane %v1309, 6
        %v1774 = vsel %vm868, %v1772, %v1773
        %v1775 = vrot.slane %v1773, 4
        %v1776 = vrot.slane %v1310, 6
        %v1777 = vsel %vm868, %v1775, %v1776
        %v1778 = vrot.slane %v1776, 4
        %v1779 = vrot.slane %v1311, 6
        %v1780 = vsel %vm868, %v1778, %v1779
        %v1781 = vrot.slane %v1779, 4
        %v1782 = vrot.slane %v1312, 6
        %v1783 = vsel %vm868, %v1781, %v1782
        %v1784 = vrot.slane %v1782, 4
        %v1785 = vrot.slane %v1737, 6
        %v1786 = vsel %vm868, %v1784, %v1785
        %1803 = vst [vmem:[#allocation3 + $0x2c] sm:$0xf] %v1741
        %1804 = vst [vmem:[#allocation3 + $0x68] sm:$0xf] %v1744
        %1805 = vst [vmem:[#allocation3 + $0xa4] sm:$0xf] %v1747
        %1806 = vst [vmem:[#allocation3 + $0xe0] sm:$0xf] %v1750
        %1807 = vst [vmem:[#allocation3 + $0x11c] sm:$0xf] %v1753
        %1808 = vst [vmem:[#allocation3 + $0x158] sm:$0xf] %v1756
        %1809 = vst [vmem:[#allocation3 + $0x194] sm:$0xf] %v1759
        %1810 = vst [vmem:[#allocation3 + $0x1d0] sm:$0xf] %v1762
        %1811 = vst [vmem:[#allocation3 + $0x20c] sm:$0xf] %v1765
        %1812 = vst [vmem:[#allocation3 + $0x248] sm:$0xf] %v1768
        %1813 = vst [vmem:[#allocation3 + $0x284] sm:$0xf] %v1771
        %1814 = vst [vmem:[#allocation3 + $0x2c0] sm:$0xf] %v1774
        %1815 = vst [vmem:[#allocation3 + $0x2fc] sm:$0xf] %v1777
        %1816 = vst [vmem:[#allocation3 + $0x338] sm:$0xf] %v1780
        %1817 = vst [vmem:[#allocation3 + $0x374] sm:$0xf] %v1783
        %v1818 = vld [vmem:[#allocation3 + $0x3b0] sm:$0x7]
        %v1819 = vsel %vm660, %v1786, %v1818
        %1820 = vst [vmem:[#allocation3 + $0x3b0] sm:$0x7] %v1819
        %v1821 = vrot.slane %v1348, 6
        %v1822 = vrot.slane %v1351, 7
        %v1823 = vor.u32 %v1821, %v1822
        %v1824 = vrot.slane %v1823, 4
        %v1825 = vrot.slane %v1361, 6
        %v1826 = vrot.slane %v1357, 7
        %v1827 = vor.u32 %v1825, %v1826
        %v1828 = vsel %vm954, %v1824, %v1827
        %v1829 = vrot.slane %v1827, 4
        %v1830 = vrot.slane %v1371, 6
        %v1831 = vrot.slane %v1367, 7
        %v1832 = vor.u32 %v1830, %v1831
        %v1833 = vsel %vm954, %v1829, %v1832
        %v1834 = vrot.slane %v1832, 4
        %v1835 = vrot.slane %v1381, 6
        %v1836 = vrot.slane %v1377, 7
        %v1837 = vor.u32 %v1835, %v1836
        %v1838 = vsel %vm954, %v1834, %v1837
        %v1839 = vrot.slane %v1837, 4
        %v1840 = vrot.slane %v1391, 6
        %v1841 = vrot.slane %v1387, 7
        %v1842 = vor.u32 %v1840, %v1841
        %v1843 = vsel %vm954, %v1839, %v1842
        %v1844 = vrot.slane %v1842, 4
        %v1845 = vrot.slane %v1401, 6
        %v1846 = vrot.slane %v1397, 7
        %v1847 = vor.u32 %v1845, %v1846
        %v1848 = vsel %vm954, %v1844, %v1847
        %v1849 = vrot.slane %v1847, 4
        %v1850 = vrot.slane %v1411, 6
        %v1851 = vrot.slane %v1407, 7
        %v1852 = vor.u32 %v1850, %v1851
        %v1853 = vsel %vm954, %v1849, %v1852
        %v1854 = vrot.slane %v1852, 4
        %v1855 = vrot.slane %v1421, 6
        %v1856 = vrot.slane %v1417, 7
        %v1857 = vor.u32 %v1855, %v1856
        %v1858 = vsel %vm954, %v1854, %v1857
        %v1859 = vrot.slane %v1857, 4
        %v1860 = vrot.slane %v1431, 6
        %v1861 = vrot.slane %v1427, 7
        %v1862 = vor.u32 %v1860, %v1861
        %v1863 = vsel %vm954, %v1859, %v1862
        %v1864 = vrot.slane %v1862, 4
        %v1865 = vrot.slane %v1441, 6
        %v1866 = vrot.slane %v1437, 7
        %v1867 = vor.u32 %v1865, %v1866
        %v1868 = vsel %vm954, %v1864, %v1867
        %v1869 = vrot.slane %v1867, 4
        %v1870 = vrot.slane %v1451, 6
        %v1871 = vrot.slane %v1447, 7
        %v1872 = vor.u32 %v1870, %v1871
        %v1873 = vsel %vm954, %v1869, %v1872
        %v1874 = vrot.slane %v1872, 4
        %v1875 = vrot.slane %v1461, 6
        %v1876 = vrot.slane %v1457, 7
        %v1877 = vor.u32 %v1875, %v1876
        %v1878 = vsel %vm954, %v1874, %v1877
        %v1879 = vrot.slane %v1877, 4
        %v1880 = vrot.slane %v1471, 6
        %v1881 = vrot.slane %v1467, 7
        %v1882 = vor.u32 %v1880, %v1881
        %v1883 = vsel %vm954, %v1879, %v1882
        %v1884 = vrot.slane %v1882, 4
        %v1885 = vrot.slane %v1481, 6
        %v1886 = vrot.slane %v1477, 7
        %v1887 = vor.u32 %v1885, %v1886
        %v1888 = vsel %vm954, %v1884, %v1887
        %v1889 = vrot.slane %v1887, 4
        %v1890 = vrot.slane %v1491, 6
        %v1891 = vrot.slane %v1487, 7
        %v1892 = vor.u32 %v1890, %v1891
        %v1893 = vsel %vm954, %v1889, %v1892
        %v1894 = vrot.slane %v1892, 4
        %v1895 = vrot.slane %v1501, 6
        %v1896 = vrot.slane %v1497, 7
        %v1897 = vor.u32 %v1895, %v1896
        %v1898 = vsel %vm954, %v1894, %v1897
        %v1899 = vrot.slane %v1897, 4
        %v1901 = vshrl.u32 %v1737, 16
        %v1903 = vrot.slane %v1901, 6
        %v1904 = vshll.u32 %v1737, 16
        %v1906 = vrot.slane %v1904, 7
        %v1907 = vor.u32 %v1903, %v1906
        %v1908 = vsel %vm954, %v1899, %v1907
        %1925 = vst [vmem:[#allocation3 + $0x30] sm:$0xf] %v1828
        %1926 = vst [vmem:[#allocation3 + $0x6c] sm:$0xf] %v1833
        %1927 = vst [vmem:[#allocation3 + $0xa8] sm:$0xf] %v1838
        %1928 = vst [vmem:[#allocation3 + $0xe4] sm:$0xf] %v1843
        %1929 = vst [vmem:[#allocation3 + $0x120] sm:$0xf] %v1848
        %1930 = vst [vmem:[#allocation3 + $0x15c] sm:$0xf] %v1853
        %1931 = vst [vmem:[#allocation3 + $0x198] sm:$0xf] %v1858
        %1932 = vst [vmem:[#allocation3 + $0x1d4] sm:$0xf] %v1863
        %1933 = vst [vmem:[#allocation3 + $0x210] sm:$0xf] %v1868
        %1934 = vst [vmem:[#allocation3 + $0x24c] sm:$0xf] %v1873
        %1935 = vst [vmem:[#allocation3 + $0x288] sm:$0xf] %v1878
        %1936 = vst [vmem:[#allocation3 + $0x2c4] sm:$0xf] %v1883
        %1937 = vst [vmem:[#allocation3 + $0x300] sm:$0xf] %v1888
        %1938 = vst [vmem:[#allocation3 + $0x33c] sm:$0xf] %v1893
        %1939 = vst [vmem:[#allocation3 + $0x378] sm:$0xf] %v1898
        %v1940 = vld [vmem:[#allocation3 + $0x3b4] sm:$0x7]
        %v1941 = vsel %vm660, %v1908, %v1940
        %1942 = vst [vmem:[#allocation3 + $0x3b4] sm:$0x7] %v1941
        %v1943 = vrot.slane %v1297, 7
        %v1944 = vrot.slane %v1943, 4
        %v1945 = vrot.slane %v1298, 7
        %v1946 = vsel %vm1079, %v1944, %v1945
        %v1947 = vrot.slane %v1945, 4
        %v1948 = vrot.slane %v1299, 7
        %v1949 = vsel %vm1079, %v1947, %v1948
        %v1950 = vrot.slane %v1948, 4
        %v1951 = vrot.slane %v1300, 7
        %v1952 = vsel %vm1079, %v1950, %v1951
        %v1953 = vrot.slane %v1951, 4
        %v1954 = vrot.slane %v1301, 7
        %v1955 = vsel %vm1079, %v1953, %v1954
        %v1956 = vrot.slane %v1954, 4
        %v1957 = vrot.slane %v1302, 7
        %v1958 = vsel %vm1079, %v1956, %v1957
        %v1959 = vrot.slane %v1957, 4
        %v1960 = vrot.slane %v1303, 7
        %v1961 = vsel %vm1079, %v1959, %v1960
        %v1962 = vrot.slane %v1960, 4
        %v1963 = vrot.slane %v1304, 7
        %v1964 = vsel %vm1079, %v1962, %v1963
        %v1965 = vrot.slane %v1963, 4
        %v1966 = vrot.slane %v1305, 7
        %v1967 = vsel %vm1079, %v1965, %v1966
        %v1968 = vrot.slane %v1966, 4
        %v1969 = vrot.slane %v1306, 7
        %v1970 = vsel %vm1079, %v1968, %v1969
        %v1971 = vrot.slane %v1969, 4
        %v1972 = vrot.slane %v1307, 7
        %v1973 = vsel %vm1079, %v1971, %v1972
        %v1974 = vrot.slane %v1972, 4
        %v1975 = vrot.slane %v1308, 7
        %v1976 = vsel %vm1079, %v1974, %v1975
        %v1977 = vrot.slane %v1975, 4
        %v1978 = vrot.slane %v1309, 7
        %v1979 = vsel %vm1079, %v1977, %v1978
        %v1980 = vrot.slane %v1978, 4
        %v1981 = vrot.slane %v1310, 7
        %v1982 = vsel %vm1079, %v1980, %v1981
        %v1983 = vrot.slane %v1981, 4
        %v1984 = vrot.slane %v1311, 7
        %v1985 = vsel %vm1079, %v1983, %v1984
        %v1986 = vrot.slane %v1984, 4
        %v1987 = vrot.slane %v1312, 7
        %v1988 = vsel %vm1079, %v1986, %v1987
        %v1989 = vrot.slane %v1987, 4
        %v1990 = vrot.slane %v1737, 7
        %v1991 = vsel %vm1079, %v1989, %v1990
        %2008 = vst [vmem:[#allocation3 + $0x34] sm:$0xf] %v1946
        %2009 = vst [vmem:[#allocation3 + $0x70] sm:$0xf] %v1949
        %2010 = vst [vmem:[#allocation3 + $0xac] sm:$0xf] %v1952
        %2011 = vst [vmem:[#allocation3 + $0xe8] sm:$0xf] %v1955
        %2012 = vst [vmem:[#allocation3 + $0x124] sm:$0xf] %v1958
        %2013 = vst [vmem:[#allocation3 + $0x160] sm:$0xf] %v1961
        %2014 = vst [vmem:[#allocation3 + $0x19c] sm:$0xf] %v1964
        %2015 = vst [vmem:[#allocation3 + $0x1d8] sm:$0xf] %v1967
        %2016 = vst [vmem:[#allocation3 + $0x214] sm:$0xf] %v1970
        %2017 = vst [vmem:[#allocation3 + $0x250] sm:$0xf] %v1973
        %2018 = vst [vmem:[#allocation3 + $0x28c] sm:$0xf] %v1976
        %2019 = vst [vmem:[#allocation3 + $0x2c8] sm:$0xf] %v1979
        %2020 = vst [vmem:[#allocation3 + $0x304] sm:$0xf] %v1982
        %2021 = vst [vmem:[#allocation3 + $0x340] sm:$0xf] %v1985
        %2022 = vst [vmem:[#allocation3 + $0x37c] sm:$0xf] %v1988
        %v2023 = vld [vmem:[#allocation3 + $0x3b8] sm:$0x7]
        %v2024 = vsel %vm660, %v1991, %v2023
        %2025 = vst [vmem:[#allocation3 + $0x3b8] sm:$0x7] %v2024
        %v2026 = vrot.slane %v1348, 7
        %v2027 = vrot.slane %v2026, 4
        %v2028 = vrot.slane %v1361, 7
        %v2029 = vor.u32 %v2028, %v1357
        %v2030 = vsel %vm1165, %v2027, %v2029
        %v2031 = vrot.slane %v2028, 4
        %v2032 = vrot.slane %v1371, 7
        %v2033 = vor.u32 %v2032, %v1367
        %v2034 = vsel %vm1165, %v2031, %v2033
        %v2035 = vrot.slane %v2032, 4
        %v2036 = vrot.slane %v1381, 7
        %v2037 = vor.u32 %v2036, %v1377
        %v2038 = vsel %vm1165, %v2035, %v2037
        %v2039 = vrot.slane %v2036, 4
        %v2040 = vrot.slane %v1391, 7
        %v2041 = vor.u32 %v2040, %v1387
        %v2042 = vsel %vm1165, %v2039, %v2041
        %v2043 = vrot.slane %v2040, 4
        %v2044 = vrot.slane %v1401, 7
        %v2045 = vor.u32 %v2044, %v1397
        %v2046 = vsel %vm1165, %v2043, %v2045
        %v2047 = vrot.slane %v2044, 4
        %v2048 = vrot.slane %v1411, 7
        %v2049 = vor.u32 %v2048, %v1407
        %v2050 = vsel %vm1165, %v2047, %v2049
        %v2051 = vrot.slane %v2048, 4
        %v2052 = vrot.slane %v1421, 7
        %v2053 = vor.u32 %v2052, %v1417
        %v2054 = vsel %vm1165, %v2051, %v2053
        %v2055 = vrot.slane %v2052, 4
        %v2056 = vrot.slane %v1431, 7
        %v2057 = vor.u32 %v2056, %v1427
        %v2058 = vsel %vm1165, %v2055, %v2057
        %v2059 = vrot.slane %v2056, 4
        %v2060 = vrot.slane %v1441, 7
        %v2061 = vor.u32 %v2060, %v1437
        %v2062 = vsel %vm1165, %v2059, %v2061
        %v2063 = vrot.slane %v2060, 4
        %v2064 = vrot.slane %v1451, 7
        %v2065 = vor.u32 %v2064, %v1447
        %v2066 = vsel %vm1165, %v2063, %v2065
        %v2067 = vrot.slane %v2064, 4
        %v2068 = vrot.slane %v1461, 7
        %v2069 = vor.u32 %v2068, %v1457
        %v2070 = vsel %vm1165, %v2067, %v2069
        %v2071 = vrot.slane %v2068, 4
        %v2072 = vrot.slane %v1471, 7
        %v2073 = vor.u32 %v2072, %v1467
        %v2074 = vsel %vm1165, %v2071, %v2073
        %v2075 = vrot.slane %v2072, 4
        %v2076 = vrot.slane %v1481, 7
        %v2077 = vor.u32 %v2076, %v1477
        %v2078 = vsel %vm1165, %v2075, %v2077
        %v2079 = vrot.slane %v2076, 4
        %v2080 = vrot.slane %v1491, 7
        %v2081 = vor.u32 %v2080, %v1487
        %v2082 = vsel %vm1165, %v2079, %v2081
        %v2083 = vrot.slane %v2080, 4
        %v2084 = vrot.slane %v1501, 7
        %v2085 = vor.u32 %v2084, %v1497
        %v2086 = vsel %vm1165, %v2083, %v2085
        %v2087 = vrot.slane %v2084, 4
        %v2088 = vrot.slane %v1901, 7
        %v2089 = vor.u32 %v2088, %v1904
        %v2090 = vsel %vm1165, %v2087, %v2089
        %2107 = vst [vmem:[#allocation3 + $0x38] sm:$0xf] %v2030
        %2108 = vst [vmem:[#allocation3 + $0x74] sm:$0xf] %v2034
        %2109 = vst [vmem:[#allocation3 + $0xb0] sm:$0xf] %v2038
        %2110 = vst [vmem:[#allocation3 + $0xec] sm:$0xf] %v2042
        %2111 = vst [vmem:[#allocation3 + $0x128] sm:$0xf] %v2046
        %2112 = vst [vmem:[#allocation3 + $0x164] sm:$0xf] %v2050
        %2113 = vst [vmem:[#allocation3 + $0x1a0] sm:$0xf] %v2054
        %2114 = vst [vmem:[#allocation3 + $0x1dc] sm:$0xf] %v2058
        %2115 = vst [vmem:[#allocation3 + $0x218] sm:$0xf] %v2062
        %2116 = vst [vmem:[#allocation3 + $0x254] sm:$0xf] %v2066
        %2117 = vst [vmem:[#allocation3 + $0x290] sm:$0xf] %v2070
        %2118 = vst [vmem:[#allocation3 + $0x2cc] sm:$0xf] %v2074
        %2119 = vst [vmem:[#allocation3 + $0x308] sm:$0xf] %v2078
        %2120 = vst [vmem:[#allocation3 + $0x344] sm:$0xf] %v2082
        %2121 = vst [vmem:[#allocation3 + $0x380] sm:$0xf] %v2086
        %v2122 = vld [vmem:[#allocation3 + $0x3bc] sm:$0x7]
        %v2123 = vsel %vm660, %v2090, %v2122
        %2124 = vst [vmem:[#allocation3 + $0x3bc] sm:$0x7] %v2123
        %v2125 = vld [vmem:[#allocation3] sm:$0xff]
        %v2126 = vld [vmem:[#allocation3 + $0x8] sm:$0xff]
        %v2127 = vld [vmem:[#allocation3 + $0x10] sm:$0xff]
        %v2128 = vld [vmem:[#allocation3 + $0x18] sm:$0xff]
        %v2129 = vld [vmem:[#allocation3 + $0x20] sm:$0xff]
        %v2130 = vld [vmem:[#allocation3 + $0x28] sm:$0xff]
        %v2131 = vld [vmem:[#allocation3 + $0x30] sm:$0xff]
        %v2132 = vld [vmem:[#allocation3 + $0x38] sm:$0xf]
        %v2133 = vld [vmem:[#allocation3 + $0x3c] sm:$0xff]
        %v2134 = vld [vmem:[#allocation3 + $0x44] sm:$0xff]
        %v2135 = vld [vmem:[#allocation3 + $0x4c] sm:$0xff]
        %v2136 = vld [vmem:[#allocation3 + $0x54] sm:$0xff]
        %v2137 = vld [vmem:[#allocation3 + $0x5c] sm:$0xff]
        %v2138 = vld [vmem:[#allocation3 + $0x64] sm:$0xff]
        %v2139 = vld [vmem:[#allocation3 + $0x6c] sm:$0xff]
        %v2140 = vld [vmem:[#allocation3 + $0x74] sm:$0xf]
        %v2141 = vld [vmem:[#allocation3 + $0x78] sm:$0xff]
        %v2142 = vld [vmem:[#allocation3 + $0x80] sm:$0xff]
        %v2143 = vld [vmem:[#allocation3 + $0x88] sm:$0xff]
        %v2144 = vld [vmem:[#allocation3 + $0x90] sm:$0xff]
        %v2145 = vld [vmem:[#allocation3 + $0x98] sm:$0xff]
        %v2146 = vld [vmem:[#allocation3 + $0xa0] sm:$0xff]
        %v2147 = vld [vmem:[#allocation3 + $0xa8] sm:$0xff]
        %v2148 = vld [vmem:[#allocation3 + $0xb0] sm:$0xf]
        %v2149 = vld [vmem:[#allocation3 + $0xb4] sm:$0xff]
        %v2150 = vld [vmem:[#allocation3 + $0xbc] sm:$0xff]
        %v2151 = vld [vmem:[#allocation3 + $0xc4] sm:$0xff]
        %v2152 = vld [vmem:[#allocation3 + $0xcc] sm:$0xff]
        %v2153 = vld [vmem:[#allocation3 + $0xd4] sm:$0xff]
        %v2154 = vld [vmem:[#allocation3 + $0xdc] sm:$0xff]
        %v2155 = vld [vmem:[#allocation3 + $0xe4] sm:$0xff]
        %v2156 = vld [vmem:[#allocation3 + $0xec] sm:$0xf]
        %v2157 = vld [vmem:[#allocation3 + $0xf0] sm:$0xff]
        %v2158 = vld [vmem:[#allocation3 + $0xf8] sm:$0xff]
        %v2159 = vld [vmem:[#allocation3 + $0x100] sm:$0xff]
        %v2160 = vld [vmem:[#allocation3 + $0x108] sm:$0xff]
        %v2161 = vld [vmem:[#allocation3 + $0x110] sm:$0xff]
        %v2162 = vld [vmem:[#allocation3 + $0x118] sm:$0xff]
        %v2163 = vld [vmem:[#allocation3 + $0x120] sm:$0xff]
        %v2164 = vld [vmem:[#allocation3 + $0x128] sm:$0xf]
        %v2165 = vld [vmem:[#allocation3 + $0x12c] sm:$0xff]
        %v2166 = vld [vmem:[#allocation3 + $0x134] sm:$0xff]
        %v2167 = vld [vmem:[#allocation3 + $0x13c] sm:$0xff]
        %v2168 = vld [vmem:[#allocation3 + $0x144] sm:$0xff]
        %v2169 = vld [vmem:[#allocation3 + $0x14c] sm:$0xff]
        %v2170 = vld [vmem:[#allocation3 + $0x154] sm:$0xff]
        %v2171 = vld [vmem:[#allocation3 + $0x15c] sm:$0xff]
        %v2172 = vld [vmem:[#allocation3 + $0x164] sm:$0xf]
        %v2173 = vld [vmem:[#allocation3 + $0x168] sm:$0xff]
        %v2174 = vld [vmem:[#allocation3 + $0x170] sm:$0xff]
        %v2175 = vld [vmem:[#allocation3 + $0x178] sm:$0xff]
        %v2176 = vld [vmem:[#allocation3 + $0x180] sm:$0xff]
        %v2177 = vld [vmem:[#allocation3 + $0x188] sm:$0xff]
        %v2178 = vld [vmem:[#allocation3 + $0x190] sm:$0xff]
        %v2179 = vld [vmem:[#allocation3 + $0x198] sm:$0xff]
        %v2180 = vld [vmem:[#allocation3 + $0x1a0] sm:$0xf]
        %v2181 = vld [vmem:[#allocation3 + $0x1a4] sm:$0xff]
        %v2182 = vld [vmem:[#allocation3 + $0x1ac] sm:$0xff]
        %v2183 = vld [vmem:[#allocation3 + $0x1b4] sm:$0xff]
        %v2184 = vld [vmem:[#allocation3 + $0x1bc] sm:$0xff]
        %v2185 = vld [vmem:[#allocation3 + $0x1c4] sm:$0xff]
        %v2186 = vld [vmem:[#allocation3 + $0x1cc] sm:$0xff]
        %v2187 = vld [vmem:[#allocation3 + $0x1d4] sm:$0xff]
        %v2188 = vld [vmem:[#allocation3 + $0x1dc] sm:$0xf]
        %v2189 = vld [vmem:[#allocation3 + $0x1e0] sm:$0xff]
        %v2190 = vld [vmem:[#allocation3 + $0x1e8] sm:$0xff]
        %v2191 = vld [vmem:[#allocation3 + $0x1f0] sm:$0xff]
        %v2192 = vld [vmem:[#allocation3 + $0x1f8] sm:$0xff]
        %v2193 = vld [vmem:[#allocation3 + $0x200] sm:$0xff]
        %v2194 = vld [vmem:[#allocation3 + $0x208] sm:$0xff]
        %v2195 = vld [vmem:[#allocation3 + $0x210] sm:$0xff]
        %v2196 = vld [vmem:[#allocation3 + $0x218] sm:$0xf]
        %v2197 = vld [vmem:[#allocation3 + $0x21c] sm:$0xff]
        %v2198 = vld [vmem:[#allocation3 + $0x224] sm:$0xff]
        %v2199 = vld [vmem:[#allocation3 + $0x22c] sm:$0xff]
        %v2200 = vld [vmem:[#allocation3 + $0x234] sm:$0xff]
        %v2201 = vld [vmem:[#allocation3 + $0x23c] sm:$0xff]
        %v2202 = vld [vmem:[#allocation3 + $0x244] sm:$0xff]
        %v2203 = vld [vmem:[#allocation3 + $0x24c] sm:$0xff]
        %v2204 = vld [vmem:[#allocation3 + $0x254] sm:$0xf]
        %v2205 = vld [vmem:[#allocation3 + $0x258] sm:$0xff]
        %v2206 = vld [vmem:[#allocation3 + $0x260] sm:$0xff]
        %v2207 = vld [vmem:[#allocation3 + $0x268] sm:$0xff]
        %v2208 = vld [vmem:[#allocation3 + $0x270] sm:$0xff]
        %v2209 = vld [vmem:[#allocation3 + $0x278] sm:$0xff]
        %v2210 = vld [vmem:[#allocation3 + $0x280] sm:$0xff]
        %v2211 = vld [vmem:[#allocation3 + $0x288] sm:$0xff]
        %v2212 = vld [vmem:[#allocation3 + $0x290] sm:$0xf]
        %v2213 = vld [vmem:[#allocation3 + $0x294] sm:$0xff]
        %v2214 = vld [vmem:[#allocation3 + $0x29c] sm:$0xff]
        %v2215 = vld [vmem:[#allocation3 + $0x2a4] sm:$0xff]
        %v2216 = vld [vmem:[#allocation3 + $0x2ac] sm:$0xff]
        %v2217 = vld [vmem:[#allocation3 + $0x2b4] sm:$0xff]
        %v2218 = vld [vmem:[#allocation3 + $0x2bc] sm:$0xff]
        %v2219 = vld [vmem:[#allocation3 + $0x2c4] sm:$0xff]
        %v2220 = vld [vmem:[#allocation3 + $0x2cc] sm:$0xf]
        %v2221 = vld [vmem:[#allocation3 + $0x2d0] sm:$0xff]
        %v2222 = vld [vmem:[#allocation3 + $0x2d8] sm:$0xff]
        %v2223 = vld [vmem:[#allocation3 + $0x2e0] sm:$0xff]
        %v2224 = vld [vmem:[#allocation3 + $0x2e8] sm:$0xff]
        %v2225 = vld [vmem:[#allocation3 + $0x2f0] sm:$0xff]
        %v2226 = vld [vmem:[#allocation3 + $0x2f8] sm:$0xff]
        %v2227 = vld [vmem:[#allocation3 + $0x300] sm:$0xff]
        %v2228 = vld [vmem:[#allocation3 + $0x308] sm:$0xf]
        %v2229 = vld [vmem:[#allocation3 + $0x30c] sm:$0xff]
        %v2230 = vld [vmem:[#allocation3 + $0x314] sm:$0xff]
        %v2231 = vld [vmem:[#allocation3 + $0x31c] sm:$0xff]
        %v2232 = vld [vmem:[#allocation3 + $0x324] sm:$0xff]
        %v2233 = vld [vmem:[#allocation3 + $0x32c] sm:$0xff]
        %v2234 = vld [vmem:[#allocation3 + $0x334] sm:$0xff]
        %v2235 = vld [vmem:[#allocation3 + $0x33c] sm:$0xff]
        %v2236 = vld [vmem:[#allocation3 + $0x344] sm:$0xf]
        %v2237 = vld [vmem:[#allocation3 + $0x348] sm:$0xff]
        %v2238 = vld [vmem:[#allocation3 + $0x350] sm:$0xff]
        %v2239 = vld [vmem:[#allocation3 + $0x358] sm:$0xff]
        %v2240 = vld [vmem:[#allocation3 + $0x360] sm:$0xff]
        %v2241 = vld [vmem:[#allocation3 + $0x368] sm:$0xff]
        %v2242 = vld [vmem:[#allocation3 + $0x370] sm:$0xff]
        %v2243 = vld [vmem:[#allocation3 + $0x378] sm:$0xff]
        %v2244 = vld [vmem:[#allocation3 + $0x380] sm:$0xf]
        %v2245 = vld [vmem:[#allocation3 + $0x384] sm:$0x77]
        %v2246 = vld [vmem:[#allocation3 + $0x38c] sm:$0x77]
        %v2247 = vld [vmem:[#allocation3 + $0x394] sm:$0x77]
        %v2248 = vld [vmem:[#allocation3 + $0x39c] sm:$0x77]
        %v2249 = vld [vmem:[#allocation3 + $0x3a4] sm:$0x77]
        %v2250 = vld [vmem:[#allocation3 + $0x3ac] sm:$0x77]
        %v2251 = vld [vmem:[#allocation3 + $0x3b4] sm:$0x77]
        %v2252 = vld [vmem:[#allocation3 + $0x3bc] sm:$0x7]
        %v2253 = vld [vmem:[#allocation8] sm:$0xff]
        %v2254 = vld [vmem:[#allocation8 + $0x8] sm:$0xff]
        %v2255 = vld [vmem:[#allocation8 + $0x10] sm:$0xff]
        %v2256 = vld [vmem:[#allocation8 + $0x18] sm:$0xff]
        %v2257 = vld [vmem:[#allocation8 + $0x20] sm:$0xff]
        %v2258 = vld [vmem:[#allocation8 + $0x28] sm:$0xff]
        %v2259 = vld [vmem:[#allocation8 + $0x30] sm:$0xff]
        %v2260 = vld [vmem:[#allocation8 + $0x38] sm:$0xff]
        %v2261 = vld [vmem:[#allocation8 + $0x40] sm:$0xff]
        %v2262 = vld [vmem:[#allocation8 + $0x48] sm:$0xff]
        %v2263 = vld [vmem:[#allocation8 + $0x50] sm:$0xff]
        %v2264 = vld [vmem:[#allocation8 + $0x58] sm:$0xff]
        %v2265 = vld [vmem:[#allocation8 + $0x60] sm:$0xff]
        %v2266 = vld [vmem:[#allocation8 + $0x68] sm:$0xff]
        %v2267 = vld [vmem:[#allocation8 + $0x70] sm:$0xff]
        %v2268 = vld [vmem:[#allocation8 + $0x78] sm:$0xff]
        %v2269 = vld [vmem:[#allocation8 + $0x80] sm:$0xff]
        %v2270 = vld [vmem:[#allocation8 + $0x88] sm:$0xff]
        %v2271 = vld [vmem:[#allocation8 + $0x90] sm:$0xff]
        %v2272 = vld [vmem:[#allocation8 + $0x98] sm:$0xff]
        %v2273 = vld [vmem:[#allocation8 + $0xa0] sm:$0xff]
        %v2274 = vld [vmem:[#allocation8 + $0xa8] sm:$0xff]
        %v2275 = vld [vmem:[#allocation8 + $0xb0] sm:$0xff]
        %v2276 = vld [vmem:[#allocation8 + $0xb8] sm:$0xff]
        %v2277 = vld [vmem:[#allocation8 + $0xc0] sm:$0xff]
        %v2278 = vld [vmem:[#allocation8 + $0xc8] sm:$0xff]
        %v2279 = vld [vmem:[#allocation8 + $0xd0] sm:$0xff]
        %v2280 = vld [vmem:[#allocation8 + $0xd8] sm:$0xff]
        %v2281 = vld [vmem:[#allocation8 + $0xe0] sm:$0xff]
        %v2282 = vld [vmem:[#allocation8 + $0xe8] sm:$0xff]
        %v2283 = vld [vmem:[#allocation8 + $0xf0] sm:$0xff]
        %v2284 = vld [vmem:[#allocation8 + $0xf8] sm:$0xff]
        %v2285 = vld [vmem:[#allocation8 + $0x100] sm:$0xff]
        %v2286 = vld [vmem:[#allocation8 + $0x108] sm:$0xff]
        %v2287 = vld [vmem:[#allocation8 + $0x110] sm:$0xff]
        %v2288 = vld [vmem:[#allocation8 + $0x118] sm:$0xff]
        %v2289 = vld [vmem:[#allocation8 + $0x120] sm:$0xff]
        %v2290 = vld [vmem:[#allocation8 + $0x128] sm:$0xff]
        %v2291 = vld [vmem:[#allocation8 + $0x130] sm:$0xff]
        %v2292 = vld [vmem:[#allocation8 + $0x138] sm:$0xff]
        %v2293 = vld [vmem:[#allocation8 + $0x140] sm:$0xff]
        %v2294 = vld [vmem:[#allocation8 + $0x148] sm:$0xff]
        %v2295 = vld [vmem:[#allocation8 + $0x150] sm:$0xff]
        %v2296 = vld [vmem:[#allocation8 + $0x158] sm:$0xff]
        %v2297 = vld [vmem:[#allocation8 + $0x160] sm:$0xff]
        %v2298 = vld [vmem:[#allocation8 + $0x168] sm:$0xff]
        %v2299 = vld [vmem:[#allocation8 + $0x170] sm:$0xff]
        %v2300 = vld [vmem:[#allocation8 + $0x178] sm:$0xff]
        %v2301 = vld [vmem:[#allocation8 + $0x180] sm:$0xff]
        %v2302 = vld [vmem:[#allocation8 + $0x188] sm:$0xff]
        %v2303 = vld [vmem:[#allocation8 + $0x190] sm:$0xff]
        %v2304 = vld [vmem:[#allocation8 + $0x198] sm:$0xff]
        %v2305 = vld [vmem:[#allocation8 + $0x1a0] sm:$0xff]
        %v2306 = vld [vmem:[#allocation8 + $0x1a8] sm:$0xff]
        %v2307 = vld [vmem:[#allocation8 + $0x1b0] sm:$0xff]
        %v2308 = vld [vmem:[#allocation8 + $0x1b8] sm:$0xff]
        %v2309 = vld [vmem:[#allocation8 + $0x1c0] sm:$0xff]
        %v2310 = vld [vmem:[#allocation8 + $0x1c8] sm:$0xff]
        %v2311 = vld [vmem:[#allocation8 + $0x1d0] sm:$0xff]
        %v2312 = vld [vmem:[#allocation8 + $0x1d8] sm:$0xff]
        %v2313 = vld [vmem:[#allocation8 + $0x1e0] sm:$0xff]
        %v2314 = vld [vmem:[#allocation8 + $0x1e8] sm:$0xff]
        %v2315 = vld [vmem:[#allocation8 + $0x1f0] sm:$0xff]
        %v2316 = vld [vmem:[#allocation8 + $0x1f8] sm:$0xff]
        %v2317 = vld [vmem:[#allocation8 + $0x200] sm:$0xff]
        %v2318 = vld [vmem:[#allocation8 + $0x208] sm:$0xff]
        %v2319 = vld [vmem:[#allocation8 + $0x210] sm:$0xff]
        %v2320 = vld [vmem:[#allocation8 + $0x218] sm:$0xff]
        %v2321 = vld [vmem:[#allocation8 + $0x220] sm:$0xff]
        %v2322 = vld [vmem:[#allocation8 + $0x228] sm:$0xff]
        %v2323 = vld [vmem:[#allocation8 + $0x230] sm:$0xff]
        %v2324 = vld [vmem:[#allocation8 + $0x238] sm:$0xff]
        %v2325 = vld [vmem:[#allocation8 + $0x240] sm:$0xff]
        %v2326 = vld [vmem:[#allocation8 + $0x248] sm:$0xff]
        %v2327 = vld [vmem:[#allocation8 + $0x250] sm:$0xff]
        %v2328 = vld [vmem:[#allocation8 + $0x258] sm:$0xff]
        %v2329 = vld [vmem:[#allocation8 + $0x260] sm:$0xff]
        %v2330 = vld [vmem:[#allocation8 + $0x268] sm:$0xff]
        %v2331 = vld [vmem:[#allocation8 + $0x270] sm:$0xff]
        %v2332 = vld [vmem:[#allocation8 + $0x278] sm:$0xff]
        %v2333 = vld [vmem:[#allocation8 + $0x280] sm:$0xff]
        %v2334 = vld [vmem:[#allocation8 + $0x288] sm:$0xff]
        %v2335 = vld [vmem:[#allocation8 + $0x290] sm:$0xff]
        %v2336 = vld [vmem:[#allocation8 + $0x298] sm:$0xff]
        %v2337 = vld [vmem:[#allocation8 + $0x2a0] sm:$0xff]
        %v2338 = vld [vmem:[#allocation8 + $0x2a8] sm:$0xff]
        %v2339 = vld [vmem:[#allocation8 + $0x2b0] sm:$0xff]
        %v2340 = vld [vmem:[#allocation8 + $0x2b8] sm:$0xff]
        %v2341 = vld [vmem:[#allocation8 + $0x2c0] sm:$0xff]
        %v2342 = vld [vmem:[#allocation8 + $0x2c8] sm:$0xff]
        %v2343 = vld [vmem:[#allocation8 + $0x2d0] sm:$0xff]
        %v2344 = vld [vmem:[#allocation8 + $0x2d8] sm:$0xff]
        %v2345 = vld [vmem:[#allocation8 + $0x2e0] sm:$0xff]
        %v2346 = vld [vmem:[#allocation8 + $0x2e8] sm:$0xff]
        %v2347 = vld [vmem:[#allocation8 + $0x2f0] sm:$0xff]
        %v2348 = vld [vmem:[#allocation8 + $0x2f8] sm:$0xff]
        %v2349 = vld [vmem:[#allocation8 + $0x300] sm:$0xff]
        %v2350 = vld [vmem:[#allocation8 + $0x308] sm:$0xff]
        %v2351 = vld [vmem:[#allocation8 + $0x310] sm:$0xff]
        %v2352 = vld [vmem:[#allocation8 + $0x318] sm:$0xff]
        %v2353 = vld [vmem:[#allocation8 + $0x320] sm:$0xff]
        %v2354 = vld [vmem:[#allocation8 + $0x328] sm:$0xff]
        %v2355 = vld [vmem:[#allocation8 + $0x330] sm:$0xff]
        %v2356 = vld [vmem:[#allocation8 + $0x338] sm:$0xff]
        %v2357 = vld [vmem:[#allocation8 + $0x340] sm:$0xff]
        %v2358 = vld [vmem:[#allocation8 + $0x348] sm:$0xff]
        %v2359 = vld [vmem:[#allocation8 + $0x350] sm:$0xff]
        %v2360 = vld [vmem:[#allocation8 + $0x358] sm:$0xff]
        %v2361 = vld [vmem:[#allocation8 + $0x360] sm:$0xff]
        %v2362 = vld [vmem:[#allocation8 + $0x368] sm:$0xff]
        %v2363 = vld [vmem:[#allocation8 + $0x370] sm:$0xff]
        %v2364 = vld [vmem:[#allocation8 + $0x378] sm:$0xff]
        %v2365 = vld [vmem:[#allocation8 + $0x380] sm:$0xff]
        %v2366 = vld [vmem:[#allocation8 + $0x388] sm:$0xff]
        %v2367 = vld [vmem:[#allocation8 + $0x390] sm:$0xff]
        %v2368 = vld [vmem:[#allocation8 + $0x398] sm:$0xff]
        %v2369 = vld [vmem:[#allocation8 + $0x3a0] sm:$0xff]
        %v2370 = vld [vmem:[#allocation8 + $0x3a8] sm:$0xff]
        %v2371 = vld [vmem:[#allocation8 + $0x3b0] sm:$0xff]
        %v2372 = vld [vmem:[#allocation8 + $0x3b8] sm:$0xff]
        %v2373 = vld [vmem:[#allocation8 + $0x3c0] sm:$0xff]
        %v2374 = vld [vmem:[#allocation8 + $0x3c8] sm:$0xff]
        %v2375 = vld [vmem:[#allocation8 + $0x3d0] sm:$0xff]
        %v2376 = vld [vmem:[#allocation8 + $0x3d8] sm:$0xff]
        %v2377 = vld [vmem:[#allocation8 + $0x3e0] sm:$0xff]
        %v2378 = vld [vmem:[#allocation8 + $0x3e8] sm:$0xff]
        %v2379 = vld [vmem:[#allocation8 + $0x3f0] sm:$0xff]
        %v2380 = vld [vmem:[#allocation8 + $0x3f8] sm:$0xff]
        %v2381 = vld [vmem:[#allocation8 + $0x400] sm:$0xff]
        %v2382 = vld [vmem:[#allocation8 + $0x408] sm:$0xff]
        %v2383 = vld [vmem:[#allocation8 + $0x410] sm:$0xff]
        %v2384 = vld [vmem:[#allocation8 + $0x418] sm:$0xff]
        %v2385 = vld [vmem:[#allocation8 + $0x420] sm:$0xff]
        %v2386 = vld [vmem:[#allocation8 + $0x428] sm:$0xff]
        %v2387 = vld [vmem:[#allocation8 + $0x430] sm:$0xff]
        %v2388 = vld [vmem:[#allocation8 + $0x438] sm:$0xff]
        %v2389 = vld [vmem:[#allocation8 + $0x440] sm:$0xff]
        %v2390 = vld [vmem:[#allocation8 + $0x448] sm:$0xff]
        %v2391 = vld [vmem:[#allocation8 + $0x450] sm:$0xff]
        %v2392 = vld [vmem:[#allocation8 + $0x458] sm:$0xff]
        %v2393 = vld [vmem:[#allocation8 + $0x460] sm:$0xff]
        %v2394 = vld [vmem:[#allocation8 + $0x468] sm:$0xff]
        %v2395 = vld [vmem:[#allocation8 + $0x470] sm:$0xff]
        %v2396 = vld [vmem:[#allocation8 + $0x478] sm:$0xff]
        %v2397 = vld [vmem:[#allocation8 + $0x480] sm:$0xff]
        %v2398 = vld [vmem:[#allocation8 + $0x488] sm:$0xff]
        %v2399 = vld [vmem:[#allocation8 + $0x490] sm:$0xff]
        %v2400 = vld [vmem:[#allocation8 + $0x498] sm:$0xff]
        %v2401 = vld [vmem:[#allocation8 + $0x4a0] sm:$0xff]
        %v2402 = vld [vmem:[#allocation8 + $0x4a8] sm:$0xff]
        %v2403 = vld [vmem:[#allocation8 + $0x4b0] sm:$0xff]
        %v2404 = vld [vmem:[#allocation8 + $0x4b8] sm:$0xff]
        %v2405 = vld [vmem:[#allocation8 + $0x4c0] sm:$0xff]
        %v2406 = vld [vmem:[#allocation8 + $0x4c8] sm:$0xff]
        %v2407 = vld [vmem:[#allocation8 + $0x4d0] sm:$0xff]
        %v2408 = vld [vmem:[#allocation8 + $0x4d8] sm:$0xff]
        %v2409 = vld [vmem:[#allocation8 + $0x4e0] sm:$0xff]
        %v2410 = vld [vmem:[#allocation8 + $0x4e8] sm:$0xff]
        %v2411 = vld [vmem:[#allocation8 + $0x4f0] sm:$0xff]
        %v2412 = vld [vmem:[#allocation8 + $0x4f8] sm:$0xff]
        %v2413 = vld [vmem:[#allocation8 + $0x500] sm:$0xff]
        %v2414 = vld [vmem:[#allocation8 + $0x508] sm:$0xff]
        %v2415 = vld [vmem:[#allocation8 + $0x510] sm:$0xff]
        %v2416 = vld [vmem:[#allocation8 + $0x518] sm:$0xff]
        %v2417 = vld [vmem:[#allocation8 + $0x520] sm:$0xff]
        %v2418 = vld [vmem:[#allocation8 + $0x528] sm:$0xff]
        %v2419 = vld [vmem:[#allocation8 + $0x530] sm:$0xff]
        %v2420 = vld [vmem:[#allocation8 + $0x538] sm:$0xff]
        %v2421 = vld [vmem:[#allocation8 + $0x540] sm:$0xff]
        %v2422 = vld [vmem:[#allocation8 + $0x548] sm:$0xff]
        %v2423 = vld [vmem:[#allocation8 + $0x550] sm:$0xff]
        %v2424 = vld [vmem:[#allocation8 + $0x558] sm:$0xff]
        %v2425 = vld [vmem:[#allocation8 + $0x560] sm:$0xff]
        %v2426 = vld [vmem:[#allocation8 + $0x568] sm:$0xff]
        %v2427 = vld [vmem:[#allocation8 + $0x570] sm:$0xff]
        %v2428 = vld [vmem:[#allocation8 + $0x578] sm:$0xff]
        %v2429 = vld [vmem:[#allocation8 + $0x580] sm:$0xff]
        %v2430 = vld [vmem:[#allocation8 + $0x588] sm:$0xff]
        %v2431 = vld [vmem:[#allocation8 + $0x590] sm:$0xff]
        %v2432 = vld [vmem:[#allocation8 + $0x598] sm:$0xff]
        %v2433 = vld [vmem:[#allocation8 + $0x5a0] sm:$0xff]
        %v2434 = vld [vmem:[#allocation8 + $0x5a8] sm:$0xff]
        %v2435 = vld [vmem:[#allocation8 + $0x5b0] sm:$0xff]
        %v2436 = vld [vmem:[#allocation8 + $0x5b8] sm:$0xff]
        %v2437 = vld [vmem:[#allocation8 + $0x5c0] sm:$0xff]
        %v2438 = vld [vmem:[#allocation8 + $0x5c8] sm:$0xff]
        %v2439 = vld [vmem:[#allocation8 + $0x5d0] sm:$0xff]
        %v2440 = vld [vmem:[#allocation8 + $0x5d8] sm:$0xff]
        %v2441 = vld [vmem:[#allocation8 + $0x5e0] sm:$0xff]
        %v2442 = vld [vmem:[#allocation8 + $0x5e8] sm:$0xff]
        %v2443 = vld [vmem:[#allocation8 + $0x5f0] sm:$0xff]
        %v2444 = vld [vmem:[#allocation8 + $0x5f8] sm:$0xff]
        %v2445 = vld [vmem:[#allocation8 + $0x600] sm:$0xff]
        %v2446 = vld [vmem:[#allocation8 + $0x608] sm:$0xff]
        %v2447 = vld [vmem:[#allocation8 + $0x610] sm:$0xff]
        %v2448 = vld [vmem:[#allocation8 + $0x618] sm:$0xff]
        %v2449 = vld [vmem:[#allocation8 + $0x620] sm:$0xff]
        %v2450 = vld [vmem:[#allocation8 + $0x628] sm:$0xff]
        %v2451 = vld [vmem:[#allocation8 + $0x630] sm:$0xff]
        %v2452 = vld [vmem:[#allocation8 + $0x638] sm:$0xff]
        %v2453 = vld [vmem:[#allocation8 + $0x640] sm:$0xff]
        %v2454 = vld [vmem:[#allocation8 + $0x648] sm:$0xff]
        %v2455 = vld [vmem:[#allocation8 + $0x650] sm:$0xff]
        %v2456 = vld [vmem:[#allocation8 + $0x658] sm:$0xff]
        %v2457 = vld [vmem:[#allocation8 + $0x660] sm:$0xff]
        %v2458 = vld [vmem:[#allocation8 + $0x668] sm:$0xff]
        %v2459 = vld [vmem:[#allocation8 + $0x670] sm:$0xff]
        %v2460 = vld [vmem:[#allocation8 + $0x678] sm:$0xff]
        %v2461 = vld [vmem:[#allocation8 + $0x680] sm:$0xff]
        %v2462 = vld [vmem:[#allocation8 + $0x688] sm:$0xff]
        %v2463 = vld [vmem:[#allocation8 + $0x690] sm:$0xff]
        %v2464 = vld [vmem:[#allocation8 + $0x698] sm:$0xff]
        %v2465 = vld [vmem:[#allocation8 + $0x6a0] sm:$0xff]
        %v2466 = vld [vmem:[#allocation8 + $0x6a8] sm:$0xff]
        %v2467 = vld [vmem:[#allocation8 + $0x6b0] sm:$0xff]
        %v2468 = vld [vmem:[#allocation8 + $0x6b8] sm:$0xff]
        %v2469 = vld [vmem:[#allocation8 + $0x6c0] sm:$0xff]
        %v2470 = vld [vmem:[#allocation8 + $0x6c8] sm:$0xff]
        %v2471 = vld [vmem:[#allocation8 + $0x6d0] sm:$0xff]
        %v2472 = vld [vmem:[#allocation8 + $0x6d8] sm:$0xff]
        %v2473 = vld [vmem:[#allocation8 + $0x6e0] sm:$0xff]
        %v2474 = vld [vmem:[#allocation8 + $0x6e8] sm:$0xff]
        %v2475 = vld [vmem:[#allocation8 + $0x6f0] sm:$0xff]
        %v2476 = vld [vmem:[#allocation8 + $0x6f8] sm:$0xff]
        %v2477 = vld [vmem:[#allocation8 + $0x700] sm:$0xff]
        %v2478 = vld [vmem:[#allocation8 + $0x708] sm:$0xff]
        %v2479 = vld [vmem:[#allocation8 + $0x710] sm:$0xff]
        %v2480 = vld [vmem:[#allocation8 + $0x718] sm:$0xff]
        %v2481 = vld [vmem:[#allocation8 + $0x720] sm:$0xff]
        %v2482 = vld [vmem:[#allocation8 + $0x728] sm:$0xff]
        %v2483 = vld [vmem:[#allocation8 + $0x730] sm:$0xff]
        %v2484 = vld [vmem:[#allocation8 + $0x738] sm:$0xff]
        %v2485 = vld [vmem:[#allocation8 + $0x740] sm:$0xff]
        %v2486 = vld [vmem:[#allocation8 + $0x748] sm:$0xff]
        %v2487 = vld [vmem:[#allocation8 + $0x750] sm:$0xff]
        %v2488 = vld [vmem:[#allocation8 + $0x758] sm:$0xff]
        %v2489 = vld [vmem:[#allocation8 + $0x760] sm:$0xff]
        %v2490 = vld [vmem:[#allocation8 + $0x768] sm:$0xff]
        %v2491 = vld [vmem:[#allocation8 + $0x770] sm:$0xff]
        %v2492 = vld [vmem:[#allocation8 + $0x778] sm:$0xff]
        %v2493 = vld [vmem:[%s2] sm:$0x3]
        %v2495 = vlaneseq
        %v2496 = vshrl.u32 %v2495, 7
        %v2497 = vsub.s32 0, %v2496
        %v2498 = vrot.slane %v2493, %v2497
        %v2499 = vlaneseq
        %v2500 = vshrl.u32 %v2499, 7
        %v2501 = vsub.s32 1, %v2500
        %v2502 = vrot.slane %v2493, %v2501
        %v2633 = vunpack.c.l.b16 %v2125
        %v2634 = vunpack.c.h.b16 %v2125
        %v2635 = vunpack.c.l.b16 %v2126
        %v2636 = vunpack.c.h.b16 %v2126
        %v2637 = vunpack.c.l.b16 %v2127
        %v2638 = vunpack.c.h.b16 %v2127
        %v2639 = vunpack.c.l.b16 %v2128
        %v2640 = vunpack.c.h.b16 %v2128
        %v2641 = vunpack.c.l.b16 %v2129
        %v2642 = vunpack.c.h.b16 %v2129
        %v2643 = vunpack.c.l.b16 %v2130
        %v2644 = vunpack.c.h.b16 %v2130
        %v2645 = vunpack.c.l.b16 %v2131
        %v2646 = vunpack.c.h.b16 %v2131
        %v2647 = vunpack.c.l.b16 %v2132
        %v2648 = vunpack.c.l.b16 %v2133
        %v2649 = vunpack.c.h.b16 %v2133
        %v2650 = vunpack.c.l.b16 %v2134
        %v2651 = vunpack.c.h.b16 %v2134
        %v2652 = vunpack.c.l.b16 %v2135
        %v2653 = vunpack.c.h.b16 %v2135
        %v2654 = vunpack.c.l.b16 %v2136
        %v2655 = vunpack.c.h.b16 %v2136
        %v2656 = vunpack.c.l.b16 %v2137
        %v2657 = vunpack.c.h.b16 %v2137
        %v2658 = vunpack.c.l.b16 %v2138
        %v2659 = vunpack.c.h.b16 %v2138
        %v2660 = vunpack.c.l.b16 %v2139
        %v2661 = vunpack.c.h.b16 %v2139
        %v2662 = vunpack.c.l.b16 %v2140
        %v2663 = vunpack.c.l.b16 %v2141
        %v2664 = vunpack.c.h.b16 %v2141
        %v2665 = vunpack.c.l.b16 %v2142
        %v2666 = vunpack.c.h.b16 %v2142
        %v2667 = vunpack.c.l.b16 %v2143
        %v2668 = vunpack.c.h.b16 %v2143
        %v2669 = vunpack.c.l.b16 %v2144
        %v2670 = vunpack.c.h.b16 %v2144
        %v2671 = vunpack.c.l.b16 %v2145
        %v2672 = vunpack.c.h.b16 %v2145
        %v2673 = vunpack.c.l.b16 %v2146
        %v2674 = vunpack.c.h.b16 %v2146
        %v2675 = vunpack.c.l.b16 %v2147
        %v2676 = vunpack.c.h.b16 %v2147
        %v2677 = vunpack.c.l.b16 %v2148
        %v2678 = vunpack.c.l.b16 %v2149
        %v2679 = vunpack.c.h.b16 %v2149
        %v2680 = vunpack.c.l.b16 %v2150
        %v2681 = vunpack.c.h.b16 %v2150
        %v2682 = vunpack.c.l.b16 %v2151
        %v2683 = vunpack.c.h.b16 %v2151
        %v2684 = vunpack.c.l.b16 %v2152
        %v2685 = vunpack.c.h.b16 %v2152
        %v2686 = vunpack.c.l.b16 %v2153
        %v2687 = vunpack.c.h.b16 %v2153
        %v2688 = vunpack.c.l.b16 %v2154
        %v2689 = vunpack.c.h.b16 %v2154
        %v2690 = vunpack.c.l.b16 %v2155
        %v2691 = vunpack.c.h.b16 %v2155
        %v2692 = vunpack.c.l.b16 %v2156
        %v2693 = vunpack.c.l.b16 %v2157
        %v2694 = vunpack.c.h.b16 %v2157
        %v2695 = vunpack.c.l.b16 %v2158
        %v2696 = vunpack.c.h.b16 %v2158
        %v2697 = vunpack.c.l.b16 %v2159
        %v2698 = vunpack.c.h.b16 %v2159
        %v2699 = vunpack.c.l.b16 %v2160
        %v2700 = vunpack.c.h.b16 %v2160
        %v2701 = vunpack.c.l.b16 %v2161
        %v2702 = vunpack.c.h.b16 %v2161
        %v2703 = vunpack.c.l.b16 %v2162
        %v2704 = vunpack.c.h.b16 %v2162
        %v2705 = vunpack.c.l.b16 %v2163
        %v2706 = vunpack.c.h.b16 %v2163
        %v2707 = vunpack.c.l.b16 %v2164
        %v2708 = vunpack.c.l.b16 %v2165
        %v2709 = vunpack.c.h.b16 %v2165
        %v2710 = vunpack.c.l.b16 %v2166
        %v2711 = vunpack.c.h.b16 %v2166
        %v2712 = vunpack.c.l.b16 %v2167
        %v2713 = vunpack.c.h.b16 %v2167
        %v2714 = vunpack.c.l.b16 %v2168
        %v2715 = vunpack.c.h.b16 %v2168
        %v2716 = vunpack.c.l.b16 %v2169
        %v2717 = vunpack.c.h.b16 %v2169
        %v2718 = vunpack.c.l.b16 %v2170
        %v2719 = vunpack.c.h.b16 %v2170
        %v2720 = vunpack.c.l.b16 %v2171
        %v2721 = vunpack.c.h.b16 %v2171
        %v2722 = vunpack.c.l.b16 %v2172
        %v2723 = vunpack.c.l.b16 %v2173
        %v2724 = vunpack.c.h.b16 %v2173
        %v2725 = vunpack.c.l.b16 %v2174
        %v2726 = vunpack.c.h.b16 %v2174
        %v2727 = vunpack.c.l.b16 %v2175
        %v2728 = vunpack.c.h.b16 %v2175
        %v2729 = vunpack.c.l.b16 %v2176
        %v2730 = vunpack.c.h.b16 %v2176
        %v2731 = vunpack.c.l.b16 %v2177
        %v2732 = vunpack.c.h.b16 %v2177
        %v2733 = vunpack.c.l.b16 %v2178
        %v2734 = vunpack.c.h.b16 %v2178
        %v2735 = vunpack.c.l.b16 %v2179
        %v2736 = vunpack.c.h.b16 %v2179
        %v2737 = vunpack.c.l.b16 %v2180
        %v2738 = vunpack.c.l.b16 %v2181
        %v2739 = vunpack.c.h.b16 %v2181
        %v2740 = vunpack.c.l.b16 %v2182
        %v2741 = vunpack.c.h.b16 %v2182
        %v2742 = vunpack.c.l.b16 %v2183
        %v2743 = vunpack.c.h.b16 %v2183
        %v2744 = vunpack.c.l.b16 %v2184
        %v2745 = vunpack.c.h.b16 %v2184
        %v2746 = vunpack.c.l.b16 %v2185
        %v2747 = vunpack.c.h.b16 %v2185
        %v2748 = vunpack.c.l.b16 %v2186
        %v2749 = vunpack.c.h.b16 %v2186
        %v2750 = vunpack.c.l.b16 %v2187
        %v2751 = vunpack.c.h.b16 %v2187
        %v2752 = vunpack.c.l.b16 %v2188
        %v2753 = vunpack.c.l.b16 %v2189
        %v2754 = vunpack.c.h.b16 %v2189
        %v2755 = vunpack.c.l.b16 %v2190
        %v2756 = vunpack.c.h.b16 %v2190
        %v2757 = vunpack.c.l.b16 %v2191
        %v2758 = vunpack.c.h.b16 %v2191
        %v2759 = vunpack.c.l.b16 %v2192
        %v2760 = vunpack.c.h.b16 %v2192
        %v2761 = vunpack.c.l.b16 %v2193
        %v2762 = vunpack.c.h.b16 %v2193
        %v2763 = vunpack.c.l.b16 %v2194
        %v2764 = vunpack.c.h.b16 %v2194
        %v2765 = vunpack.c.l.b16 %v2195
        %v2766 = vunpack.c.h.b16 %v2195
        %v2767 = vunpack.c.l.b16 %v2196
        %v2768 = vunpack.c.l.b16 %v2197
        %v2769 = vunpack.c.h.b16 %v2197
        %v2770 = vunpack.c.l.b16 %v2198
        %v2771 = vunpack.c.h.b16 %v2198
        %v2772 = vunpack.c.l.b16 %v2199
        %v2773 = vunpack.c.h.b16 %v2199
        %v2774 = vunpack.c.l.b16 %v2200
        %v2775 = vunpack.c.h.b16 %v2200
        %v2776 = vunpack.c.l.b16 %v2201
        %v2777 = vunpack.c.h.b16 %v2201
        %v2778 = vunpack.c.l.b16 %v2202
        %v2779 = vunpack.c.h.b16 %v2202
        %v2780 = vunpack.c.l.b16 %v2203
        %v2781 = vunpack.c.h.b16 %v2203
        %v2782 = vunpack.c.l.b16 %v2204
        %v2783 = vunpack.c.l.b16 %v2205
        %v2784 = vunpack.c.h.b16 %v2205
        %v2785 = vunpack.c.l.b16 %v2206
        %v2786 = vunpack.c.h.b16 %v2206
        %v2787 = vunpack.c.l.b16 %v2207
        %v2788 = vunpack.c.h.b16 %v2207
        %v2789 = vunpack.c.l.b16 %v2208
        %v2790 = vunpack.c.h.b16 %v2208
        %v2791 = vunpack.c.l.b16 %v2209
        %v2792 = vunpack.c.h.b16 %v2209
        %v2793 = vunpack.c.l.b16 %v2210
        %v2794 = vunpack.c.h.b16 %v2210
        %v2795 = vunpack.c.l.b16 %v2211
        %v2796 = vunpack.c.h.b16 %v2211
        %v2797 = vunpack.c.l.b16 %v2212
        %v2798 = vunpack.c.l.b16 %v2213
        %v2799 = vunpack.c.h.b16 %v2213
        %v2800 = vunpack.c.l.b16 %v2214
        %v2801 = vunpack.c.h.b16 %v2214
        %v2802 = vunpack.c.l.b16 %v2215
        %v2803 = vunpack.c.h.b16 %v2215
        %v2804 = vunpack.c.l.b16 %v2216
        %v2805 = vunpack.c.h.b16 %v2216
        %v2806 = vunpack.c.l.b16 %v2217
        %v2807 = vunpack.c.h.b16 %v2217
        %v2808 = vunpack.c.l.b16 %v2218
        %v2809 = vunpack.c.h.b16 %v2218
        %v2810 = vunpack.c.l.b16 %v2219
        %v2811 = vunpack.c.h.b16 %v2219
        %v2812 = vunpack.c.l.b16 %v2220
        %v2813 = vunpack.c.l.b16 %v2221
        %v2814 = vunpack.c.h.b16 %v2221
        %v2815 = vunpack.c.l.b16 %v2222
        %v2816 = vunpack.c.h.b16 %v2222
        %v2817 = vunpack.c.l.b16 %v2223
        %v2818 = vunpack.c.h.b16 %v2223
        %v2819 = vunpack.c.l.b16 %v2224
        %v2820 = vunpack.c.h.b16 %v2224
        %v2821 = vunpack.c.l.b16 %v2225
        %v2822 = vunpack.c.h.b16 %v2225
        %v2823 = vunpack.c.l.b16 %v2226
        %v2824 = vunpack.c.h.b16 %v2226
        %v2825 = vunpack.c.l.b16 %v2227
        %v2826 = vunpack.c.h.b16 %v2227
        %v2827 = vunpack.c.l.b16 %v2228
        %v2828 = vunpack.c.l.b16 %v2229
        %v2829 = vunpack.c.h.b16 %v2229
        %v2830 = vunpack.c.l.b16 %v2230
        %v2831 = vunpack.c.h.b16 %v2230
        %v2832 = vunpack.c.l.b16 %v2231
        %v2833 = vunpack.c.h.b16 %v2231
        %v2834 = vunpack.c.l.b16 %v2232
        %v2835 = vunpack.c.h.b16 %v2232
        %v2836 = vunpack.c.l.b16 %v2233
        %v2837 = vunpack.c.h.b16 %v2233
        %v2838 = vunpack.c.l.b16 %v2234
        %v2839 = vunpack.c.h.b16 %v2234
        %v2840 = vunpack.c.l.b16 %v2235
        %v2841 = vunpack.c.h.b16 %v2235
        %v2842 = vunpack.c.l.b16 %v2236
        %v2843 = vunpack.c.l.b16 %v2237
        %v2844 = vunpack.c.h.b16 %v2237
        %v2845 = vunpack.c.l.b16 %v2238
        %v2846 = vunpack.c.h.b16 %v2238
        %v2847 = vunpack.c.l.b16 %v2239
        %v2848 = vunpack.c.h.b16 %v2239
        %v2849 = vunpack.c.l.b16 %v2240
        %v2850 = vunpack.c.h.b16 %v2240
        %v2851 = vunpack.c.l.b16 %v2241
        %v2852 = vunpack.c.h.b16 %v2241
        %v2853 = vunpack.c.l.b16 %v2242
        %v2854 = vunpack.c.h.b16 %v2242
        %v2855 = vunpack.c.l.b16 %v2243
        %v2856 = vunpack.c.h.b16 %v2243
        %v2857 = vunpack.c.l.b16 %v2244
        %v2858 = vunpack.c.l.b16 %v2245
        %v2859 = vunpack.c.h.b16 %v2245
        %v2860 = vunpack.c.l.b16 %v2246
        %v2861 = vunpack.c.h.b16 %v2246
        %v2862 = vunpack.c.l.b16 %v2247
        %v2863 = vunpack.c.h.b16 %v2247
        %v2864 = vunpack.c.l.b16 %v2248
        %v2865 = vunpack.c.h.b16 %v2248
        %v2866 = vunpack.c.l.b16 %v2249
        %v2867 = vunpack.c.h.b16 %v2249
        %v2868 = vunpack.c.l.b16 %v2250
        %v2869 = vunpack.c.h.b16 %v2250
        %v2870 = vunpack.c.l.b16 %v2251
        %v2871 = vunpack.c.h.b16 %v2251
        %v2872 = vunpack.c.l.b16 %v2252
        %v2873 = vpack.c.b16 %v2648, %v2633
        %v2874 = vpack.c.b16 %v2649, %v2634
        %v2875 = vpack.c.b16 %v2650, %v2635
        %v2876 = vpack.c.b16 %v2651, %v2636
        %v2877 = vpack.c.b16 %v2652, %v2637
        %v2878 = vpack.c.b16 %v2653, %v2638
        %v2879 = vpack.c.b16 %v2654, %v2639
        %v2880 = vpack.c.b16 %v2655, %v2640
        %v2881 = vpack.c.b16 %v2656, %v2641
        %v2882 = vpack.c.b16 %v2657, %v2642
        %v2883 = vpack.c.b16 %v2658, %v2643
        %v2884 = vpack.c.b16 %v2659, %v2644
        %v2885 = vpack.c.b16 %v2660, %v2645
        %v2886 = vpack.c.b16 %v2661, %v2646
        %v2887 = vpack.c.b16 %v2662, %v2647
        %v2888 = vpack.c.b16 %v2678, %v2663
        %v2889 = vpack.c.b16 %v2679, %v2664
        %v2890 = vpack.c.b16 %v2680, %v2665
        %v2891 = vpack.c.b16 %v2681, %v2666
        %v2892 = vpack.c.b16 %v2682, %v2667
        %v2893 = vpack.c.b16 %v2683, %v2668
        %v2894 = vpack.c.b16 %v2684, %v2669
        %v2895 = vpack.c.b16 %v2685, %v2670
        %v2896 = vpack.c.b16 %v2686, %v2671
        %v2897 = vpack.c.b16 %v2687, %v2672
        %v2898 = vpack.c.b16 %v2688, %v2673
        %v2899 = vpack.c.b16 %v2689, %v2674
        %v2900 = vpack.c.b16 %v2690, %v2675
        %v2901 = vpack.c.b16 %v2691, %v2676
        %v2902 = vpack.c.b16 %v2692, %v2677
        %v2903 = vpack.c.b16 %v2708, %v2693
        %v2904 = vpack.c.b16 %v2709, %v2694
        %v2905 = vpack.c.b16 %v2710, %v2695
        %v2906 = vpack.c.b16 %v2711, %v2696
        %v2907 = vpack.c.b16 %v2712, %v2697
        %v2908 = vpack.c.b16 %v2713, %v2698
        %v2909 = vpack.c.b16 %v2714, %v2699
        %v2910 = vpack.c.b16 %v2715, %v2700
        %v2911 = vpack.c.b16 %v2716, %v2701
        %v2912 = vpack.c.b16 %v2717, %v2702
        %v2913 = vpack.c.b16 %v2718, %v2703
        %v2914 = vpack.c.b16 %v2719, %v2704
        %v2915 = vpack.c.b16 %v2720, %v2705
        %v2916 = vpack.c.b16 %v2721, %v2706
        %v2917 = vpack.c.b16 %v2722, %v2707
        %v2918 = vpack.c.b16 %v2738, %v2723
        %v2919 = vpack.c.b16 %v2739, %v2724
        %v2920 = vpack.c.b16 %v2740, %v2725
        %v2921 = vpack.c.b16 %v2741, %v2726
        %v2922 = vpack.c.b16 %v2742, %v2727
        %v2923 = vpack.c.b16 %v2743, %v2728
        %v2924 = vpack.c.b16 %v2744, %v2729
        %v2925 = vpack.c.b16 %v2745, %v2730
        %v2926 = vpack.c.b16 %v2746, %v2731
        %v2927 = vpack.c.b16 %v2747, %v2732
        %v2928 = vpack.c.b16 %v2748, %v2733
        %v2929 = vpack.c.b16 %v2749, %v2734
        %v2930 = vpack.c.b16 %v2750, %v2735
        %v2931 = vpack.c.b16 %v2751, %v2736
        %v2932 = vpack.c.b16 %v2752, %v2737
        %v2933 = vpack.c.b16 %v2768, %v2753
        %v2934 = vpack.c.b16 %v2769, %v2754
        %v2935 = vpack.c.b16 %v2770, %v2755
        %v2936 = vpack.c.b16 %v2771, %v2756
        %v2937 = vpack.c.b16 %v2772, %v2757
        %v2938 = vpack.c.b16 %v2773, %v2758
        %v2939 = vpack.c.b16 %v2774, %v2759
        %v2940 = vpack.c.b16 %v2775, %v2760
        %v2941 = vpack.c.b16 %v2776, %v2761
        %v2942 = vpack.c.b16 %v2777, %v2762
        %v2943 = vpack.c.b16 %v2778, %v2763
        %v2944 = vpack.c.b16 %v2779, %v2764
        %v2945 = vpack.c.b16 %v2780, %v2765
        %v2946 = vpack.c.b16 %v2781, %v2766
        %v2947 = vpack.c.b16 %v2782, %v2767
        %v2948 = vpack.c.b16 %v2798, %v2783
        %v2949 = vpack.c.b16 %v2799, %v2784
        %v2950 = vpack.c.b16 %v2800, %v2785
        %v2951 = vpack.c.b16 %v2801, %v2786
        %v2952 = vpack.c.b16 %v2802, %v2787
        %v2953 = vpack.c.b16 %v2803, %v2788
        %v2954 = vpack.c.b16 %v2804, %v2789
        %v2955 = vpack.c.b16 %v2805, %v2790
        %v2956 = vpack.c.b16 %v2806, %v2791
        %v2957 = vpack.c.b16 %v2807, %v2792
        %v2958 = vpack.c.b16 %v2808, %v2793
        %v2959 = vpack.c.b16 %v2809, %v2794
        %v2960 = vpack.c.b16 %v2810, %v2795
        %v2961 = vpack.c.b16 %v2811, %v2796
        %v2962 = vpack.c.b16 %v2812, %v2797
        %v2963 = vpack.c.b16 %v2828, %v2813
        %v2964 = vpack.c.b16 %v2829, %v2814
        %v2965 = vpack.c.b16 %v2830, %v2815
        %v2966 = vpack.c.b16 %v2831, %v2816
        %v2967 = vpack.c.b16 %v2832, %v2817
        %v2968 = vpack.c.b16 %v2833, %v2818
        %v2969 = vpack.c.b16 %v2834, %v2819
        %v2970 = vpack.c.b16 %v2835, %v2820
        %v2971 = vpack.c.b16 %v2836, %v2821
        %v2972 = vpack.c.b16 %v2837, %v2822
        %v2973 = vpack.c.b16 %v2838, %v2823
        %v2974 = vpack.c.b16 %v2839, %v2824
        %v2975 = vpack.c.b16 %v2840, %v2825
        %v2976 = vpack.c.b16 %v2841, %v2826
        %v2977 = vpack.c.b16 %v2842, %v2827
        %v2978 = vpack.c.b16 %v2858, %v2843
        %v2979 = vpack.c.b16 %v2859, %v2844
        %v2980 = vpack.c.b16 %v2860, %v2845
        %v2981 = vpack.c.b16 %v2861, %v2846
        %v2982 = vpack.c.b16 %v2862, %v2847
        %v2983 = vpack.c.b16 %v2863, %v2848
        %v2984 = vpack.c.b16 %v2864, %v2849
        %v2985 = vpack.c.b16 %v2865, %v2850
        %v2986 = vpack.c.b16 %v2866, %v2851
        %v2987 = vpack.c.b16 %v2867, %v2852
        %v2988 = vpack.c.b16 %v2868, %v2853
        %v2989 = vpack.c.b16 %v2869, %v2854
        %v2990 = vpack.c.b16 %v2870, %v2855
        %v2991 = vpack.c.b16 %v2871, %v2856
        %v2992 = vpack.c.b16 %v2872, %v2857
        %v3353 = vunpack.c.l.b16 %v2253
        %v3354 = vunpack.c.h.b16 %v2253
        %v3355 = vunpack.c.l.b16 %v2254
        %v3356 = vunpack.c.h.b16 %v2254
        %v3357 = vunpack.c.l.b16 %v2255
        %v3358 = vunpack.c.h.b16 %v2255
        %v3359 = vunpack.c.l.b16 %v2256
        %v3360 = vunpack.c.h.b16 %v2256
        %v3361 = vunpack.c.l.b16 %v2257
        %v3362 = vunpack.c.h.b16 %v2257
        %v3363 = vunpack.c.l.b16 %v2258
        %v3364 = vunpack.c.h.b16 %v2258
        %v3365 = vunpack.c.l.b16 %v2259
        %v3366 = vunpack.c.h.b16 %v2259
        %v3367 = vunpack.c.l.b16 %v2260
        %v3368 = vunpack.c.h.b16 %v2260
        %v3369 = vunpack.c.l.b16 %v2261
        %v3370 = vunpack.c.h.b16 %v2261
        %v3371 = vunpack.c.l.b16 %v2262
        %v3372 = vunpack.c.h.b16 %v2262
        %v3373 = vunpack.c.l.b16 %v2263
        %v3374 = vunpack.c.h.b16 %v2263
        %v3375 = vunpack.c.l.b16 %v2264
        %v3376 = vunpack.c.h.b16 %v2264
        %v3377 = vunpack.c.l.b16 %v2265
        %v3378 = vunpack.c.h.b16 %v2265
        %v3379 = vunpack.c.l.b16 %v2266
        %v3380 = vunpack.c.h.b16 %v2266
        %v3381 = vunpack.c.l.b16 %v2267
        %v3382 = vunpack.c.h.b16 %v2267
        %v3383 = vunpack.c.l.b16 %v2268
        %v3384 = vunpack.c.h.b16 %v2268
        %v3385 = vunpack.c.l.b16 %v2269
        %v3386 = vunpack.c.h.b16 %v2269
        %v3387 = vunpack.c.l.b16 %v2270
        %v3388 = vunpack.c.h.b16 %v2270
        %v3389 = vunpack.c.l.b16 %v2271
        %v3390 = vunpack.c.h.b16 %v2271
        %v3391 = vunpack.c.l.b16 %v2272
        %v3392 = vunpack.c.h.b16 %v2272
        %v3393 = vunpack.c.l.b16 %v2273
        %v3394 = vunpack.c.h.b16 %v2273
        %v3395 = vunpack.c.l.b16 %v2274
        %v3396 = vunpack.c.h.b16 %v2274
        %v3397 = vunpack.c.l.b16 %v2275
        %v3398 = vunpack.c.h.b16 %v2275
        %v3399 = vunpack.c.l.b16 %v2276
        %v3400 = vunpack.c.h.b16 %v2276
        %v3401 = vunpack.c.l.b16 %v2277
        %v3402 = vunpack.c.h.b16 %v2277
        %v3403 = vunpack.c.l.b16 %v2278
        %v3404 = vunpack.c.h.b16 %v2278
        %v3405 = vunpack.c.l.b16 %v2279
        %v3406 = vunpack.c.h.b16 %v2279
        %v3407 = vunpack.c.l.b16 %v2280
        %v3408 = vunpack.c.h.b16 %v2280
        %v3409 = vunpack.c.l.b16 %v2281
        %v3410 = vunpack.c.h.b16 %v2281
        %v3411 = vunpack.c.l.b16 %v2282
        %v3412 = vunpack.c.h.b16 %v2282
        %v3413 = vunpack.c.l.b16 %v2283
        %v3414 = vunpack.c.h.b16 %v2283
        %v3415 = vunpack.c.l.b16 %v2284
        %v3416 = vunpack.c.h.b16 %v2284
        %v3417 = vunpack.c.l.b16 %v2285
        %v3418 = vunpack.c.h.b16 %v2285
        %v3419 = vunpack.c.l.b16 %v2286
        %v3420 = vunpack.c.h.b16 %v2286
        %v3421 = vunpack.c.l.b16 %v2287
        %v3422 = vunpack.c.h.b16 %v2287
        %v3423 = vunpack.c.l.b16 %v2288
        %v3424 = vunpack.c.h.b16 %v2288
        %v3425 = vunpack.c.l.b16 %v2289
        %v3426 = vunpack.c.h.b16 %v2289
        %v3427 = vunpack.c.l.b16 %v2290
        %v3428 = vunpack.c.h.b16 %v2290
        %v3429 = vunpack.c.l.b16 %v2291
        %v3430 = vunpack.c.h.b16 %v2291
        %v3431 = vunpack.c.l.b16 %v2292
        %v3432 = vunpack.c.h.b16 %v2292
        %v3433 = vunpack.c.l.b16 %v2293
        %v3434 = vunpack.c.h.b16 %v2293
        %v3435 = vunpack.c.l.b16 %v2294
        %v3436 = vunpack.c.h.b16 %v2294
        %v3437 = vunpack.c.l.b16 %v2295
        %v3438 = vunpack.c.h.b16 %v2295
        %v3439 = vunpack.c.l.b16 %v2296
        %v3440 = vunpack.c.h.b16 %v2296
        %v3441 = vunpack.c.l.b16 %v2297
        %v3442 = vunpack.c.h.b16 %v2297
        %v3443 = vunpack.c.l.b16 %v2298
        %v3444 = vunpack.c.h.b16 %v2298
        %v3445 = vunpack.c.l.b16 %v2299
        %v3446 = vunpack.c.h.b16 %v2299
        %v3447 = vunpack.c.l.b16 %v2300
        %v3448 = vunpack.c.h.b16 %v2300
        %v3449 = vunpack.c.l.b16 %v2301
        %v3450 = vunpack.c.h.b16 %v2301
        %v3451 = vunpack.c.l.b16 %v2302
        %v3452 = vunpack.c.h.b16 %v2302
        %v3453 = vunpack.c.l.b16 %v2303
        %v3454 = vunpack.c.h.b16 %v2303
        %v3455 = vunpack.c.l.b16 %v2304
        %v3456 = vunpack.c.h.b16 %v2304
        %v3457 = vunpack.c.l.b16 %v2305
        %v3458 = vunpack.c.h.b16 %v2305
        %v3459 = vunpack.c.l.b16 %v2306
        %v3460 = vunpack.c.h.b16 %v2306
        %v3461 = vunpack.c.l.b16 %v2307
        %v3462 = vunpack.c.h.b16 %v2307
        %v3463 = vunpack.c.l.b16 %v2308
        %v3464 = vunpack.c.h.b16 %v2308
        %v3465 = vunpack.c.l.b16 %v2309
        %v3466 = vunpack.c.h.b16 %v2309
        %v3467 = vunpack.c.l.b16 %v2310
        %v3468 = vunpack.c.h.b16 %v2310
        %v3469 = vunpack.c.l.b16 %v2311
        %v3470 = vunpack.c.h.b16 %v2311
        %v3471 = vunpack.c.l.b16 %v2312
        %v3472 = vunpack.c.h.b16 %v2312
        %v3473 = vunpack.c.l.b16 %v2313
        %v3474 = vunpack.c.h.b16 %v2313
        %v3475 = vunpack.c.l.b16 %v2314
        %v3476 = vunpack.c.h.b16 %v2314
        %v3477 = vunpack.c.l.b16 %v2315
        %v3478 = vunpack.c.h.b16 %v2315
        %v3479 = vunpack.c.l.b16 %v2316
        %v3480 = vunpack.c.h.b16 %v2316
        %v3481 = vunpack.c.l.b16 %v2317
        %v3482 = vunpack.c.h.b16 %v2317
        %v3483 = vunpack.c.l.b16 %v2318
        %v3484 = vunpack.c.h.b16 %v2318
        %v3485 = vunpack.c.l.b16 %v2319
        %v3486 = vunpack.c.h.b16 %v2319
        %v3487 = vunpack.c.l.b16 %v2320
        %v3488 = vunpack.c.h.b16 %v2320
        %v3489 = vunpack.c.l.b16 %v2321
        %v3490 = vunpack.c.h.b16 %v2321
        %v3491 = vunpack.c.l.b16 %v2322
        %v3492 = vunpack.c.h.b16 %v2322
        %v3493 = vunpack.c.l.b16 %v2323
        %v3494 = vunpack.c.h.b16 %v2323
        %v3495 = vunpack.c.l.b16 %v2324
        %v3496 = vunpack.c.h.b16 %v2324
        %v3497 = vunpack.c.l.b16 %v2325
        %v3498 = vunpack.c.h.b16 %v2325
        %v3499 = vunpack.c.l.b16 %v2326
        %v3500 = vunpack.c.h.b16 %v2326
        %v3501 = vunpack.c.l.b16 %v2327
        %v3502 = vunpack.c.h.b16 %v2327
        %v3503 = vunpack.c.l.b16 %v2328
        %v3504 = vunpack.c.h.b16 %v2328
        %v3505 = vunpack.c.l.b16 %v2329
        %v3506 = vunpack.c.h.b16 %v2329
        %v3507 = vunpack.c.l.b16 %v2330
        %v3508 = vunpack.c.h.b16 %v2330
        %v3509 = vunpack.c.l.b16 %v2331
        %v3510 = vunpack.c.h.b16 %v2331
        %v3511 = vunpack.c.l.b16 %v2332
        %v3512 = vunpack.c.h.b16 %v2332
        %v3513 = vunpack.c.l.b16 %v2333
        %v3514 = vunpack.c.h.b16 %v2333
        %v3515 = vunpack.c.l.b16 %v2334
        %v3516 = vunpack.c.h.b16 %v2334
        %v3517 = vunpack.c.l.b16 %v2335
        %v3518 = vunpack.c.h.b16 %v2335
        %v3519 = vunpack.c.l.b16 %v2336
        %v3520 = vunpack.c.h.b16 %v2336
        %v3521 = vunpack.c.l.b16 %v2337
        %v3522 = vunpack.c.h.b16 %v2337
        %v3523 = vunpack.c.l.b16 %v2338
        %v3524 = vunpack.c.h.b16 %v2338
        %v3525 = vunpack.c.l.b16 %v2339
        %v3526 = vunpack.c.h.b16 %v2339
        %v3527 = vunpack.c.l.b16 %v2340
        %v3528 = vunpack.c.h.b16 %v2340
        %v3529 = vunpack.c.l.b16 %v2341
        %v3530 = vunpack.c.h.b16 %v2341
        %v3531 = vunpack.c.l.b16 %v2342
        %v3532 = vunpack.c.h.b16 %v2342
        %v3533 = vunpack.c.l.b16 %v2343
        %v3534 = vunpack.c.h.b16 %v2343
        %v3535 = vunpack.c.l.b16 %v2344
        %v3536 = vunpack.c.h.b16 %v2344
        %v3537 = vunpack.c.l.b16 %v2345
        %v3538 = vunpack.c.h.b16 %v2345
        %v3539 = vunpack.c.l.b16 %v2346
        %v3540 = vunpack.c.h.b16 %v2346
        %v3541 = vunpack.c.l.b16 %v2347
        %v3542 = vunpack.c.h.b16 %v2347
        %v3543 = vunpack.c.l.b16 %v2348
        %v3544 = vunpack.c.h.b16 %v2348
        %v3545 = vunpack.c.l.b16 %v2349
        %v3546 = vunpack.c.h.b16 %v2349
        %v3547 = vunpack.c.l.b16 %v2350
        %v3548 = vunpack.c.h.b16 %v2350
        %v3549 = vunpack.c.l.b16 %v2351
        %v3550 = vunpack.c.h.b16 %v2351
        %v3551 = vunpack.c.l.b16 %v2352
        %v3552 = vunpack.c.h.b16 %v2352
        %v3553 = vunpack.c.l.b16 %v2353
        %v3554 = vunpack.c.h.b16 %v2353
        %v3555 = vunpack.c.l.b16 %v2354
        %v3556 = vunpack.c.h.b16 %v2354
        %v3557 = vunpack.c.l.b16 %v2355
        %v3558 = vunpack.c.h.b16 %v2355
        %v3559 = vunpack.c.l.b16 %v2356
        %v3560 = vunpack.c.h.b16 %v2356
        %v3561 = vunpack.c.l.b16 %v2357
        %v3562 = vunpack.c.h.b16 %v2357
        %v3563 = vunpack.c.l.b16 %v2358
        %v3564 = vunpack.c.h.b16 %v2358
        %v3565 = vunpack.c.l.b16 %v2359
        %v3566 = vunpack.c.h.b16 %v2359
        %v3567 = vunpack.c.l.b16 %v2360
        %v3568 = vunpack.c.h.b16 %v2360
        %v3569 = vunpack.c.l.b16 %v2361
        %v3570 = vunpack.c.h.b16 %v2361
        %v3571 = vunpack.c.l.b16 %v2362
        %v3572 = vunpack.c.h.b16 %v2362
        %v3573 = vunpack.c.l.b16 %v2363
        %v3574 = vunpack.c.h.b16 %v2363
        %v3575 = vunpack.c.l.b16 %v2364
        %v3576 = vunpack.c.h.b16 %v2364
        %v3577 = vunpack.c.l.b16 %v2365
        %v3578 = vunpack.c.h.b16 %v2365
        %v3579 = vunpack.c.l.b16 %v2366
        %v3580 = vunpack.c.h.b16 %v2366
        %v3581 = vunpack.c.l.b16 %v2367
        %v3582 = vunpack.c.h.b16 %v2367
        %v3583 = vunpack.c.l.b16 %v2368
        %v3584 = vunpack.c.h.b16 %v2368
        %v3585 = vunpack.c.l.b16 %v2369
        %v3586 = vunpack.c.h.b16 %v2369
        %v3587 = vunpack.c.l.b16 %v2370
        %v3588 = vunpack.c.h.b16 %v2370
        %v3589 = vunpack.c.l.b16 %v2371
        %v3590 = vunpack.c.h.b16 %v2371
        %v3591 = vunpack.c.l.b16 %v2372
        %v3592 = vunpack.c.h.b16 %v2372
        %v3593 = vunpack.c.l.b16 %v2373
        %v3594 = vunpack.c.h.b16 %v2373
        %v3595 = vunpack.c.l.b16 %v2374
        %v3596 = vunpack.c.h.b16 %v2374
        %v3597 = vunpack.c.l.b16 %v2375
        %v3598 = vunpack.c.h.b16 %v2375
        %v3599 = vunpack.c.l.b16 %v2376
        %v3600 = vunpack.c.h.b16 %v2376
        %v3601 = vunpack.c.l.b16 %v2377
        %v3602 = vunpack.c.h.b16 %v2377
        %v3603 = vunpack.c.l.b16 %v2378
        %v3604 = vunpack.c.h.b16 %v2378
        %v3605 = vunpack.c.l.b16 %v2379
        %v3606 = vunpack.c.h.b16 %v2379
        %v3607 = vunpack.c.l.b16 %v2380
        %v3608 = vunpack.c.h.b16 %v2380
        %v3609 = vunpack.c.l.b16 %v2381
        %v3610 = vunpack.c.h.b16 %v2381
        %v3611 = vunpack.c.l.b16 %v2382
        %v3612 = vunpack.c.h.b16 %v2382
        %v3613 = vunpack.c.l.b16 %v2383
        %v3614 = vunpack.c.h.b16 %v2383
        %v3615 = vunpack.c.l.b16 %v2384
        %v3616 = vunpack.c.h.b16 %v2384
        %v3617 = vunpack.c.l.b16 %v2385
        %v3618 = vunpack.c.h.b16 %v2385
        %v3619 = vunpack.c.l.b16 %v2386
        %v3620 = vunpack.c.h.b16 %v2386
        %v3621 = vunpack.c.l.b16 %v2387
        %v3622 = vunpack.c.h.b16 %v2387
        %v3623 = vunpack.c.l.b16 %v2388
        %v3624 = vunpack.c.h.b16 %v2388
        %v3625 = vunpack.c.l.b16 %v2389
        %v3626 = vunpack.c.h.b16 %v2389
        %v3627 = vunpack.c.l.b16 %v2390
        %v3628 = vunpack.c.h.b16 %v2390
        %v3629 = vunpack.c.l.b16 %v2391
        %v3630 = vunpack.c.h.b16 %v2391
        %v3631 = vunpack.c.l.b16 %v2392
        %v3632 = vunpack.c.h.b16 %v2392
        %v3633 = vunpack.c.l.b16 %v2393
        %v3634 = vunpack.c.h.b16 %v2393
        %v3635 = vunpack.c.l.b16 %v2394
        %v3636 = vunpack.c.h.b16 %v2394
        %v3637 = vunpack.c.l.b16 %v2395
        %v3638 = vunpack.c.h.b16 %v2395
        %v3639 = vunpack.c.l.b16 %v2396
        %v3640 = vunpack.c.h.b16 %v2396
        %v3641 = vunpack.c.l.b16 %v2397
        %v3642 = vunpack.c.h.b16 %v2397
        %v3643 = vunpack.c.l.b16 %v2398
        %v3644 = vunpack.c.h.b16 %v2398
        %v3645 = vunpack.c.l.b16 %v2399
        %v3646 = vunpack.c.h.b16 %v2399
        %v3647 = vunpack.c.l.b16 %v2400
        %v3648 = vunpack.c.h.b16 %v2400
        %v3649 = vunpack.c.l.b16 %v2401
        %v3650 = vunpack.c.h.b16 %v2401
        %v3651 = vunpack.c.l.b16 %v2402
        %v3652 = vunpack.c.h.b16 %v2402
        %v3653 = vunpack.c.l.b16 %v2403
        %v3654 = vunpack.c.h.b16 %v2403
        %v3655 = vunpack.c.l.b16 %v2404
        %v3656 = vunpack.c.h.b16 %v2404
        %v3657 = vunpack.c.l.b16 %v2405
        %v3658 = vunpack.c.h.b16 %v2405
        %v3659 = vunpack.c.l.b16 %v2406
        %v3660 = vunpack.c.h.b16 %v2406
        %v3661 = vunpack.c.l.b16 %v2407
        %v3662 = vunpack.c.h.b16 %v2407
        %v3663 = vunpack.c.l.b16 %v2408
        %v3664 = vunpack.c.h.b16 %v2408
        %v3665 = vunpack.c.l.b16 %v2409
        %v3666 = vunpack.c.h.b16 %v2409
        %v3667 = vunpack.c.l.b16 %v2410
        %v3668 = vunpack.c.h.b16 %v2410
        %v3669 = vunpack.c.l.b16 %v2411
        %v3670 = vunpack.c.h.b16 %v2411
        %v3671 = vunpack.c.l.b16 %v2412
        %v3672 = vunpack.c.h.b16 %v2412
        %v3673 = vunpack.c.l.b16 %v2413
        %v3674 = vunpack.c.h.b16 %v2413
        %v3675 = vunpack.c.l.b16 %v2414
        %v3676 = vunpack.c.h.b16 %v2414
        %v3677 = vunpack.c.l.b16 %v2415
        %v3678 = vunpack.c.h.b16 %v2415
        %v3679 = vunpack.c.l.b16 %v2416
        %v3680 = vunpack.c.h.b16 %v2416
        %v3681 = vunpack.c.l.b16 %v2417
        %v3682 = vunpack.c.h.b16 %v2417
        %v3683 = vunpack.c.l.b16 %v2418
        %v3684 = vunpack.c.h.b16 %v2418
        %v3685 = vunpack.c.l.b16 %v2419
        %v3686 = vunpack.c.h.b16 %v2419
        %v3687 = vunpack.c.l.b16 %v2420
        %v3688 = vunpack.c.h.b16 %v2420
        %v3689 = vunpack.c.l.b16 %v2421
        %v3690 = vunpack.c.h.b16 %v2421
        %v3691 = vunpack.c.l.b16 %v2422
        %v3692 = vunpack.c.h.b16 %v2422
        %v3693 = vunpack.c.l.b16 %v2423
        %v3694 = vunpack.c.h.b16 %v2423
        %v3695 = vunpack.c.l.b16 %v2424
        %v3696 = vunpack.c.h.b16 %v2424
        %v3697 = vunpack.c.l.b16 %v2425
        %v3698 = vunpack.c.h.b16 %v2425
        %v3699 = vunpack.c.l.b16 %v2426
        %v3700 = vunpack.c.h.b16 %v2426
        %v3701 = vunpack.c.l.b16 %v2427
        %v3702 = vunpack.c.h.b16 %v2427
        %v3703 = vunpack.c.l.b16 %v2428
        %v3704 = vunpack.c.h.b16 %v2428
        %v3705 = vunpack.c.l.b16 %v2429
        %v3706 = vunpack.c.h.b16 %v2429
        %v3707 = vunpack.c.l.b16 %v2430
        %v3708 = vunpack.c.h.b16 %v2430
        %v3709 = vunpack.c.l.b16 %v2431
        %v3710 = vunpack.c.h.b16 %v2431
        %v3711 = vunpack.c.l.b16 %v2432
        %v3712 = vunpack.c.h.b16 %v2432
        %v3713 = vunpack.c.l.b16 %v2433
        %v3714 = vunpack.c.h.b16 %v2433
        %v3715 = vunpack.c.l.b16 %v2434
        %v3716 = vunpack.c.h.b16 %v2434
        %v3717 = vunpack.c.l.b16 %v2435
        %v3718 = vunpack.c.h.b16 %v2435
        %v3719 = vunpack.c.l.b16 %v2436
        %v3720 = vunpack.c.h.b16 %v2436
        %v3721 = vunpack.c.l.b16 %v2437
        %v3722 = vunpack.c.h.b16 %v2437
        %v3723 = vunpack.c.l.b16 %v2438
        %v3724 = vunpack.c.h.b16 %v2438
        %v3725 = vunpack.c.l.b16 %v2439
        %v3726 = vunpack.c.h.b16 %v2439
        %v3727 = vunpack.c.l.b16 %v2440
        %v3728 = vunpack.c.h.b16 %v2440
        %v3729 = vunpack.c.l.b16 %v2441
        %v3730 = vunpack.c.h.b16 %v2441
        %v3731 = vunpack.c.l.b16 %v2442
        %v3732 = vunpack.c.h.b16 %v2442
        %v3733 = vunpack.c.l.b16 %v2443
        %v3734 = vunpack.c.h.b16 %v2443
        %v3735 = vunpack.c.l.b16 %v2444
        %v3736 = vunpack.c.h.b16 %v2444
        %v3737 = vunpack.c.l.b16 %v2445
        %v3738 = vunpack.c.h.b16 %v2445
        %v3739 = vunpack.c.l.b16 %v2446
        %v3740 = vunpack.c.h.b16 %v2446
        %v3741 = vunpack.c.l.b16 %v2447
        %v3742 = vunpack.c.h.b16 %v2447
        %v3743 = vunpack.c.l.b16 %v2448
        %v3744 = vunpack.c.h.b16 %v2448
        %v3745 = vunpack.c.l.b16 %v2449
        %v3746 = vunpack.c.h.b16 %v2449
        %v3747 = vunpack.c.l.b16 %v2450
        %v3748 = vunpack.c.h.b16 %v2450
        %v3749 = vunpack.c.l.b16 %v2451
        %v3750 = vunpack.c.h.b16 %v2451
        %v3751 = vunpack.c.l.b16 %v2452
        %v3752 = vunpack.c.h.b16 %v2452
        %v3753 = vunpack.c.l.b16 %v2453
        %v3754 = vunpack.c.h.b16 %v2453
        %v3755 = vunpack.c.l.b16 %v2454
        %v3756 = vunpack.c.h.b16 %v2454
        %v3757 = vunpack.c.l.b16 %v2455
        %v3758 = vunpack.c.h.b16 %v2455
        %v3759 = vunpack.c.l.b16 %v2456
        %v3760 = vunpack.c.h.b16 %v2456
        %v3761 = vunpack.c.l.b16 %v2457
        %v3762 = vunpack.c.h.b16 %v2457
        %v3763 = vunpack.c.l.b16 %v2458
        %v3764 = vunpack.c.h.b16 %v2458
        %v3765 = vunpack.c.l.b16 %v2459
        %v3766 = vunpack.c.h.b16 %v2459
        %v3767 = vunpack.c.l.b16 %v2460
        %v3768 = vunpack.c.h.b16 %v2460
        %v3769 = vunpack.c.l.b16 %v2461
        %v3770 = vunpack.c.h.b16 %v2461
        %v3771 = vunpack.c.l.b16 %v2462
        %v3772 = vunpack.c.h.b16 %v2462
        %v3773 = vunpack.c.l.b16 %v2463
        %v3774 = vunpack.c.h.b16 %v2463
        %v3775 = vunpack.c.l.b16 %v2464
        %v3776 = vunpack.c.h.b16 %v2464
        %v3777 = vunpack.c.l.b16 %v2465
        %v3778 = vunpack.c.h.b16 %v2465
        %v3779 = vunpack.c.l.b16 %v2466
        %v3780 = vunpack.c.h.b16 %v2466
        %v3781 = vunpack.c.l.b16 %v2467
        %v3782 = vunpack.c.h.b16 %v2467
        %v3783 = vunpack.c.l.b16 %v2468
        %v3784 = vunpack.c.h.b16 %v2468
        %v3785 = vunpack.c.l.b16 %v2469
        %v3786 = vunpack.c.h.b16 %v2469
        %v3787 = vunpack.c.l.b16 %v2470
        %v3788 = vunpack.c.h.b16 %v2470
        %v3789 = vunpack.c.l.b16 %v2471
        %v3790 = vunpack.c.h.b16 %v2471
        %v3791 = vunpack.c.l.b16 %v2472
        %v3792 = vunpack.c.h.b16 %v2472
        %v3793 = vunpack.c.l.b16 %v2473
        %v3794 = vunpack.c.h.b16 %v2473
        %v3795 = vunpack.c.l.b16 %v2474
        %v3796 = vunpack.c.h.b16 %v2474
        %v3797 = vunpack.c.l.b16 %v2475
        %v3798 = vunpack.c.h.b16 %v2475
        %v3799 = vunpack.c.l.b16 %v2476
        %v3800 = vunpack.c.h.b16 %v2476
        %v3801 = vunpack.c.l.b16 %v2477
        %v3802 = vunpack.c.h.b16 %v2477
        %v3803 = vunpack.c.l.b16 %v2478
        %v3804 = vunpack.c.h.b16 %v2478
        %v3805 = vunpack.c.l.b16 %v2479
        %v3806 = vunpack.c.h.b16 %v2479
        %v3807 = vunpack.c.l.b16 %v2480
        %v3808 = vunpack.c.h.b16 %v2480
        %v3809 = vunpack.c.l.b16 %v2481
        %v3810 = vunpack.c.h.b16 %v2481
        %v3811 = vunpack.c.l.b16 %v2482
        %v3812 = vunpack.c.h.b16 %v2482
        %v3813 = vunpack.c.l.b16 %v2483
        %v3814 = vunpack.c.h.b16 %v2483
        %v3815 = vunpack.c.l.b16 %v2484
        %v3816 = vunpack.c.h.b16 %v2484
        %v3817 = vunpack.c.l.b16 %v2485
        %v3818 = vunpack.c.h.b16 %v2485
        %v3819 = vunpack.c.l.b16 %v2486
        %v3820 = vunpack.c.h.b16 %v2486
        %v3821 = vunpack.c.l.b16 %v2487
        %v3822 = vunpack.c.h.b16 %v2487
        %v3823 = vunpack.c.l.b16 %v2488
        %v3824 = vunpack.c.h.b16 %v2488
        %v3825 = vunpack.c.l.b16 %v2489
        %v3826 = vunpack.c.h.b16 %v2489
        %v3827 = vunpack.c.l.b16 %v2490
        %v3828 = vunpack.c.h.b16 %v2490
        %v3829 = vunpack.c.l.b16 %v2491
        %v3830 = vunpack.c.h.b16 %v2491
        %v3831 = vunpack.c.l.b16 %v2492
        %v3832 = vunpack.c.h.b16 %v2492
        %v3833 = vpack.c.b16 %v3355, %v3353
        %v3834 = vpack.c.b16 %v3356, %v3354
        %v3835 = vpack.c.b16 %v3359, %v3357
        %v3836 = vpack.c.b16 %v3360, %v3358
        %v3837 = vpack.c.b16 %v3363, %v3361
        %v3838 = vpack.c.b16 %v3364, %v3362
        %v3839 = vpack.c.b16 %v3367, %v3365
        %v3840 = vpack.c.b16 %v3368, %v3366
        %v3841 = vpack.c.b16 %v3371, %v3369
        %v3842 = vpack.c.b16 %v3372, %v3370
        %v3843 = vpack.c.b16 %v3375, %v3373
        %v3844 = vpack.c.b16 %v3376, %v3374
        %v3845 = vpack.c.b16 %v3379, %v3377
        %v3846 = vpack.c.b16 %v3380, %v3378
        %v3847 = vpack.c.b16 %v3383, %v3381
        %v3848 = vpack.c.b16 %v3384, %v3382
        %v3849 = vpack.c.b16 %v3387, %v3385
        %v3850 = vpack.c.b16 %v3388, %v3386
        %v3851 = vpack.c.b16 %v3391, %v3389
        %v3852 = vpack.c.b16 %v3392, %v3390
        %v3853 = vpack.c.b16 %v3395, %v3393
        %v3854 = vpack.c.b16 %v3396, %v3394
        %v3855 = vpack.c.b16 %v3399, %v3397
        %v3856 = vpack.c.b16 %v3400, %v3398
        %v3857 = vpack.c.b16 %v3403, %v3401
        %v3858 = vpack.c.b16 %v3404, %v3402
        %v3859 = vpack.c.b16 %v3407, %v3405
        %v3860 = vpack.c.b16 %v3408, %v3406
        %v3861 = vpack.c.b16 %v3411, %v3409
        %v3862 = vpack.c.b16 %v3412, %v3410
        %v3863 = vpack.c.b16 %v3415, %v3413
        %v3864 = vpack.c.b16 %v3416, %v3414
        %v3865 = vpack.c.b16 %v3419, %v3417
        %v3866 = vpack.c.b16 %v3420, %v3418
        %v3867 = vpack.c.b16 %v3423, %v3421
        %v3868 = vpack.c.b16 %v3424, %v3422
        %v3869 = vpack.c.b16 %v3427, %v3425
        %v3870 = vpack.c.b16 %v3428, %v3426
        %v3871 = vpack.c.b16 %v3431, %v3429
        %v3872 = vpack.c.b16 %v3432, %v3430
        %v3873 = vpack.c.b16 %v3435, %v3433
        %v3874 = vpack.c.b16 %v3436, %v3434
        %v3875 = vpack.c.b16 %v3439, %v3437
        %v3876 = vpack.c.b16 %v3440, %v3438
        %v3877 = vpack.c.b16 %v3443, %v3441
        %v3878 = vpack.c.b16 %v3444, %v3442
        %v3879 = vpack.c.b16 %v3447, %v3445
        %v3880 = vpack.c.b16 %v3448, %v3446
        %v3881 = vpack.c.b16 %v3451, %v3449
        %v3882 = vpack.c.b16 %v3452, %v3450
        %v3883 = vpack.c.b16 %v3455, %v3453
        %v3884 = vpack.c.b16 %v3456, %v3454
        %v3885 = vpack.c.b16 %v3459, %v3457
        %v3886 = vpack.c.b16 %v3460, %v3458
        %v3887 = vpack.c.b16 %v3463, %v3461
        %v3888 = vpack.c.b16 %v3464, %v3462
        %v3889 = vpack.c.b16 %v3467, %v3465
        %v3890 = vpack.c.b16 %v3468, %v3466
        %v3891 = vpack.c.b16 %v3471, %v3469
        %v3892 = vpack.c.b16 %v3472, %v3470
        %v3893 = vpack.c.b16 %v3475, %v3473
        %v3894 = vpack.c.b16 %v3476, %v3474
        %v3895 = vpack.c.b16 %v3479, %v3477
        %v3896 = vpack.c.b16 %v3480, %v3478
        %v3897 = vpack.c.b16 %v3483, %v3481
        %v3898 = vpack.c.b16 %v3484, %v3482
        %v3899 = vpack.c.b16 %v3487, %v3485
        %v3900 = vpack.c.b16 %v3488, %v3486
        %v3901 = vpack.c.b16 %v3491, %v3489
        %v3902 = vpack.c.b16 %v3492, %v3490
        %v3903 = vpack.c.b16 %v3495, %v3493
        %v3904 = vpack.c.b16 %v3496, %v3494
        %v3905 = vpack.c.b16 %v3499, %v3497
        %v3906 = vpack.c.b16 %v3500, %v3498
        %v3907 = vpack.c.b16 %v3503, %v3501
        %v3908 = vpack.c.b16 %v3504, %v3502
        %v3909 = vpack.c.b16 %v3507, %v3505
        %v3910 = vpack.c.b16 %v3508, %v3506
        %v3911 = vpack.c.b16 %v3511, %v3509
        %v3912 = vpack.c.b16 %v3512, %v3510
        %v3913 = vpack.c.b16 %v3515, %v3513
        %v3914 = vpack.c.b16 %v3516, %v3514
        %v3915 = vpack.c.b16 %v3519, %v3517
        %v3916 = vpack.c.b16 %v3520, %v3518
        %v3917 = vpack.c.b16 %v3523, %v3521
        %v3918 = vpack.c.b16 %v3524, %v3522
        %v3919 = vpack.c.b16 %v3527, %v3525
        %v3920 = vpack.c.b16 %v3528, %v3526
        %v3921 = vpack.c.b16 %v3531, %v3529
        %v3922 = vpack.c.b16 %v3532, %v3530
        %v3923 = vpack.c.b16 %v3535, %v3533
        %v3924 = vpack.c.b16 %v3536, %v3534
        %v3925 = vpack.c.b16 %v3539, %v3537
        %v3926 = vpack.c.b16 %v3540, %v3538
        %v3927 = vpack.c.b16 %v3543, %v3541
        %v3928 = vpack.c.b16 %v3544, %v3542
        %v3929 = vpack.c.b16 %v3547, %v3545
        %v3930 = vpack.c.b16 %v3548, %v3546
        %v3931 = vpack.c.b16 %v3551, %v3549
        %v3932 = vpack.c.b16 %v3552, %v3550
        %v3933 = vpack.c.b16 %v3555, %v3553
        %v3934 = vpack.c.b16 %v3556, %v3554
        %v3935 = vpack.c.b16 %v3559, %v3557
        %v3936 = vpack.c.b16 %v3560, %v3558
        %v3937 = vpack.c.b16 %v3563, %v3561
        %v3938 = vpack.c.b16 %v3564, %v3562
        %v3939 = vpack.c.b16 %v3567, %v3565
        %v3940 = vpack.c.b16 %v3568, %v3566
        %v3941 = vpack.c.b16 %v3571, %v3569
        %v3942 = vpack.c.b16 %v3572, %v3570
        %v3943 = vpack.c.b16 %v3575, %v3573
        %v3944 = vpack.c.b16 %v3576, %v3574
        %v3945 = vpack.c.b16 %v3579, %v3577
        %v3946 = vpack.c.b16 %v3580, %v3578
        %v3947 = vpack.c.b16 %v3583, %v3581
        %v3948 = vpack.c.b16 %v3584, %v3582
        %v3949 = vpack.c.b16 %v3587, %v3585
        %v3950 = vpack.c.b16 %v3588, %v3586
        %v3951 = vpack.c.b16 %v3591, %v3589
        %v3952 = vpack.c.b16 %v3592, %v3590
        %v3953 = vpack.c.b16 %v3595, %v3593
        %v3954 = vpack.c.b16 %v3596, %v3594
        %v3955 = vpack.c.b16 %v3599, %v3597
        %v3956 = vpack.c.b16 %v3600, %v3598
        %v3957 = vpack.c.b16 %v3603, %v3601
        %v3958 = vpack.c.b16 %v3604, %v3602
        %v3959 = vpack.c.b16 %v3607, %v3605
        %v3960 = vpack.c.b16 %v3608, %v3606
        %v3961 = vpack.c.b16 %v3611, %v3609
        %v3962 = vpack.c.b16 %v3612, %v3610
        %v3963 = vpack.c.b16 %v3615, %v3613
        %v3964 = vpack.c.b16 %v3616, %v3614
        %v3965 = vpack.c.b16 %v3619, %v3617
        %v3966 = vpack.c.b16 %v3620, %v3618
        %v3967 = vpack.c.b16 %v3623, %v3621
        %v3968 = vpack.c.b16 %v3624, %v3622
        %v3969 = vpack.c.b16 %v3627, %v3625
        %v3970 = vpack.c.b16 %v3628, %v3626
        %v3971 = vpack.c.b16 %v3631, %v3629
        %v3972 = vpack.c.b16 %v3632, %v3630
        %v3973 = vpack.c.b16 %v3635, %v3633
        %v3974 = vpack.c.b16 %v3636, %v3634
        %v3975 = vpack.c.b16 %v3639, %v3637
        %v3976 = vpack.c.b16 %v3640, %v3638
        %v3977 = vpack.c.b16 %v3643, %v3641
        %v3978 = vpack.c.b16 %v3644, %v3642
        %v3979 = vpack.c.b16 %v3647, %v3645
        %v3980 = vpack.c.b16 %v3648, %v3646
        %v3981 = vpack.c.b16 %v3651, %v3649
        %v3982 = vpack.c.b16 %v3652, %v3650
        %v3983 = vpack.c.b16 %v3655, %v3653
        %v3984 = vpack.c.b16 %v3656, %v3654
        %v3985 = vpack.c.b16 %v3659, %v3657
        %v3986 = vpack.c.b16 %v3660, %v3658
        %v3987 = vpack.c.b16 %v3663, %v3661
        %v3988 = vpack.c.b16 %v3664, %v3662
        %v3989 = vpack.c.b16 %v3667, %v3665
        %v3990 = vpack.c.b16 %v3668, %v3666
        %v3991 = vpack.c.b16 %v3671, %v3669
        %v3992 = vpack.c.b16 %v3672, %v3670
        %v3993 = vpack.c.b16 %v3675, %v3673
        %v3994 = vpack.c.b16 %v3676, %v3674
        %v3995 = vpack.c.b16 %v3679, %v3677
        %v3996 = vpack.c.b16 %v3680, %v3678
        %v3997 = vpack.c.b16 %v3683, %v3681
        %v3998 = vpack.c.b16 %v3684, %v3682
        %v3999 = vpack.c.b16 %v3687, %v3685
        %v4000 = vpack.c.b16 %v3688, %v3686
        %v4001 = vpack.c.b16 %v3691, %v3689
        %v4002 = vpack.c.b16 %v3692, %v3690
        %v4003 = vpack.c.b16 %v3695, %v3693
        %v4004 = vpack.c.b16 %v3696, %v3694
        %v4005 = vpack.c.b16 %v3699, %v3697
        %v4006 = vpack.c.b16 %v3700, %v3698
        %v4007 = vpack.c.b16 %v3703, %v3701
        %v4008 = vpack.c.b16 %v3704, %v3702
        %v4009 = vpack.c.b16 %v3707, %v3705
        %v4010 = vpack.c.b16 %v3708, %v3706
        %v4011 = vpack.c.b16 %v3711, %v3709
        %v4012 = vpack.c.b16 %v3712, %v3710
        %v4013 = vpack.c.b16 %v3715, %v3713
        %v4014 = vpack.c.b16 %v3716, %v3714
        %v4015 = vpack.c.b16 %v3719, %v3717
        %v4016 = vpack.c.b16 %v3720, %v3718
        %v4017 = vpack.c.b16 %v3723, %v3721
        %v4018 = vpack.c.b16 %v3724, %v3722
        %v4019 = vpack.c.b16 %v3727, %v3725
        %v4020 = vpack.c.b16 %v3728, %v3726
        %v4021 = vpack.c.b16 %v3731, %v3729
        %v4022 = vpack.c.b16 %v3732, %v3730
        %v4023 = vpack.c.b16 %v3735, %v3733
        %v4024 = vpack.c.b16 %v3736, %v3734
        %v4025 = vpack.c.b16 %v3739, %v3737
        %v4026 = vpack.c.b16 %v3740, %v3738
        %v4027 = vpack.c.b16 %v3743, %v3741
        %v4028 = vpack.c.b16 %v3744, %v3742
        %v4029 = vpack.c.b16 %v3747, %v3745
        %v4030 = vpack.c.b16 %v3748, %v3746
        %v4031 = vpack.c.b16 %v3751, %v3749
        %v4032 = vpack.c.b16 %v3752, %v3750
        %v4033 = vpack.c.b16 %v3755, %v3753
        %v4034 = vpack.c.b16 %v3756, %v3754
        %v4035 = vpack.c.b16 %v3759, %v3757
        %v4036 = vpack.c.b16 %v3760, %v3758
        %v4037 = vpack.c.b16 %v3763, %v3761
        %v4038 = vpack.c.b16 %v3764, %v3762
        %v4039 = vpack.c.b16 %v3767, %v3765
        %v4040 = vpack.c.b16 %v3768, %v3766
        %v4041 = vpack.c.b16 %v3771, %v3769
        %v4042 = vpack.c.b16 %v3772, %v3770
        %v4043 = vpack.c.b16 %v3775, %v3773
        %v4044 = vpack.c.b16 %v3776, %v3774
        %v4045 = vpack.c.b16 %v3779, %v3777
        %v4046 = vpack.c.b16 %v3780, %v3778
        %v4047 = vpack.c.b16 %v3783, %v3781
        %v4048 = vpack.c.b16 %v3784, %v3782
        %v4049 = vpack.c.b16 %v3787, %v3785
        %v4050 = vpack.c.b16 %v3788, %v3786
        %v4051 = vpack.c.b16 %v3791, %v3789
        %v4052 = vpack.c.b16 %v3792, %v3790
        %v4053 = vpack.c.b16 %v3795, %v3793
        %v4054 = vpack.c.b16 %v3796, %v3794
        %v4055 = vpack.c.b16 %v3799, %v3797
        %v4056 = vpack.c.b16 %v3800, %v3798
        %v4057 = vpack.c.b16 %v3803, %v3801
        %v4058 = vpack.c.b16 %v3804, %v3802
        %v4059 = vpack.c.b16 %v3807, %v3805
        %v4060 = vpack.c.b16 %v3808, %v3806
        %v4061 = vpack.c.b16 %v3811, %v3809
        %v4062 = vpack.c.b16 %v3812, %v3810
        %v4063 = vpack.c.b16 %v3815, %v3813
        %v4064 = vpack.c.b16 %v3816, %v3814
        %v4065 = vpack.c.b16 %v3819, %v3817
        %v4066 = vpack.c.b16 %v3820, %v3818
        %v4067 = vpack.c.b16 %v3823, %v3821
        %v4068 = vpack.c.b16 %v3824, %v3822
        %v4069 = vpack.c.b16 %v3827, %v3825
        %v4070 = vpack.c.b16 %v3828, %v3826
        %v4071 = vpack.c.b16 %v3831, %v3829
        %v4072 = vpack.c.b16 %v3832, %v3830
        %4313 = vmatprep.subr.bf16.mxu0 %v3834
        %4314 = vmatpush1.bf16.msra.mxu0 %v3833
        %4315 = vmatprep.subr.bf16.mxu0 %v3836
        %4316 = vmatpush1.bf16.msra.mxu0 %v3835
        %4317 = vmatprep.subr.bf16.mxu0 %v3838
        %4318 = vmatpush1.bf16.msra.mxu0 %v3837
        %4319 = vmatprep.subr.bf16.mxu0 %v3840
        %4320 = vmatpush1.bf16.msra.mxu0 %v3839
        %4321 = vmatprep.subr.bf16.mxu0 %v3842
        %4322 = vmatpush1.bf16.msra.mxu0 %v3841
        %4323 = vmatprep.subr.bf16.mxu0 %v3844
        %4324 = vmatpush1.bf16.msra.mxu0 %v3843
        %4325 = vmatprep.subr.bf16.mxu0 %v3846
        %4326 = vmatpush1.bf16.msra.mxu0 %v3845
        %4327 = vmatprep.subr.bf16.mxu0 %v3848
        %4328 = vmatpush1.bf16.msra.mxu0 %v3847
        %4329 = vmatprep.subr.bf16.mxu0 %v3850
        %4330 = vmatpush1.bf16.msra.mxu0 %v3849
        %4331 = vmatprep.subr.bf16.mxu0 %v3852
        %4332 = vmatpush1.bf16.msra.mxu0 %v3851
        %4333 = vmatprep.subr.bf16.mxu0 %v3854
        %4334 = vmatpush1.bf16.msra.mxu0 %v3853
        %4335 = vmatprep.subr.bf16.mxu0 %v3856
        %4336 = vmatpush1.bf16.msra.mxu0 %v3855
        %4337 = vmatprep.subr.bf16.mxu0 %v3858
        %4338 = vmatpush1.bf16.msra.mxu0 %v3857
        %4339 = vmatprep.subr.bf16.mxu0 %v3860
        %4340 = vmatpush1.bf16.msra.mxu0 %v3859
        %4341 = vmatprep.subr.bf16.mxu0 %v3862
        %4342 = vmatpush1.bf16.msra.mxu0 %v3861
        %4343 = vmatprep.subr.bf16.mxu0 %v3864
        %4344 = vmatpush1.bf16.msra.mxu0 %v3863
        %4345 = vmatprep.mubr.bf16.mxu0 %v2874
        %4346 = vmatmul.mubr.bf16.gmra.mrb[0].mxu0 %v2873
        %v4347 = vpop.f32.mrb[0].mxu0
        %v4348 = vadd.f32 %v2498, %v4347
        %v4349 = vpop.f32.mrb[0].mxu0
        %v4350 = vadd.f32 %v2502, %v4349
        %v4351 = vpop.f32.mrb[0].mxu0
        %v4352 = vadd.f32 %v2498, %v4351
        %v4353 = vpop.f32.mrb[0].mxu0
        %v4354 = vadd.f32 %v2502, %v4353
        %4355 = vmatprep.mubr.bf16.mxu0 %v2889
        %4356 = vmatmul.mubr.bf16.gmra.mrb[0].mxu0 %v2888
        %v4357 = vpop.f32.mrb[0].mxu0
        %v4358 = vadd.f32 %v2498, %v4357
        %v4359 = vpop.f32.mrb[0].mxu0
        %v4360 = vadd.f32 %v2502, %v4359
        %v4361 = vpop.f32.mrb[0].mxu0
        %v4362 = vadd.f32 %v2498, %v4361
        %v4363 = vpop.f32.mrb[0].mxu0
        %v4364 = vadd.f32 %v2502, %v4363
        %4365 = vmatprep.mubr.bf16.mxu0 %v2904
        %4366 = vmatmul.mubr.bf16.gmra.mrb[0].mxu0 %v2903
        %v4367 = vpop.f32.mrb[0].mxu0
        %v4368 = vadd.f32 %v2498, %v4367
        %v4369 = vpop.f32.mrb[0].mxu0
        %v4370 = vadd.f32 %v2502, %v4369
        %v4371 = vpop.f32.mrb[0].mxu0
        %v4372 = vadd.f32 %v2498, %v4371
        %v4373 = vpop.f32.mrb[0].mxu0
        %v4374 = vadd.f32 %v2502, %v4373
        %4375 = vmatprep.mubr.bf16.mxu0 %v2919
        %4376 = vmatmul.mubr.bf16.gmra.mrb[0].mxu0 %v2918
        %v4377 = vpop.f32.mrb[0].mxu0
        %v4378 = vadd.f32 %v2498, %v4377
        %v4379 = vpop.f32.mrb[0].mxu0
        %v4380 = vadd.f32 %v2502, %v4379
        %v4381 = vpop.f32.mrb[0].mxu0
        %v4382 = vadd.f32 %v2498, %v4381
        %v4383 = vpop.f32.mrb[0].mxu0
        %v4384 = vadd.f32 %v2502, %v4383
        %4385 = vmatprep.mubr.bf16.mxu0 %v2934
        %4386 = vmatmul.mubr.bf16.gmra.mrb[0].mxu0 %v2933
        %v4387 = vpop.f32.mrb[0].mxu0
        %v4388 = vadd.f32 %v2498, %v4387
        %v4389 = vpop.f32.mrb[0].mxu0
        %v4390 = vadd.f32 %v2502, %v4389
        %v4391 = vpop.f32.mrb[0].mxu0
        %v4392 = vadd.f32 %v2498, %v4391
        %v4393 = vpop.f32.mrb[0].mxu0
        %v4394 = vadd.f32 %v2502, %v4393
        %4395 = vmatprep.mubr.bf16.mxu0 %v2949
        %4396 = vmatmul.mubr.bf16.gmra.mrb[0].mxu0 %v2948
        %v4397 = vpop.f32.mrb[0].mxu0
        %v4398 = vadd.f32 %v2498, %v4397
        %v4399 = vpop.f32.mrb[0].mxu0
        %v4400 = vadd.f32 %v2502, %v4399
        %v4401 = vpop.f32.mrb[0].mxu0
        %v4402 = vadd.f32 %v2498, %v4401
        %v4403 = vpop.f32.mrb[0].mxu0
        %v4404 = vadd.f32 %v2502, %v4403
        %4405 = vmatprep.mubr.bf16.mxu0 %v2964
        %4406 = vmatmul.mubr.bf16.gmra.mrb[0].mxu0 %v2963
        %v4407 = vpop.f32.mrb[0].mxu0
        %v4408 = vadd.f32 %v2498, %v4407
        %v4409 = vpop.f32.mrb[0].mxu0
        %v4410 = vadd.f32 %v2502, %v4409
        %v4411 = vpop.f32.mrb[0].mxu0
        %v4412 = vadd.f32 %v2498, %v4411
        %v4413 = vpop.f32.mrb[0].mxu0
        %v4414 = vadd.f32 %v2502, %v4413
        %4415 = vmatprep.mubr.bf16.mxu0 %v2979
        %4416 = vmatmul.mubr.bf16.gmra.mrb[0].mxu0 %v2978
        %v4417 = vpop.f32.mrb[0].mxu0
        %v4418 = vadd.f32 %v2498, %v4417
        %v4419 = vpop.f32.mrb[0].mxu0
        %v4420 = vadd.f32 %v2502, %v4419
        %v4421 = vpop.f32.mrb[0].mxu0
        %v4422 = vadd.f32 %v2498, %v4421
        %v4423 = vpop.f32.mrb[0].mxu0
        %v4424 = vadd.f32 %v2502, %v4423
        %4425 = vdwg.mxu0
        %4426 = vmatprep.subr.bf16.mxu0 %v3866
        %4427 = vmatpush1.bf16.msra.mxu0 %v3865
        %4428 = vmatprep.subr.bf16.mxu0 %v3868
        %4429 = vmatpush1.bf16.msra.mxu0 %v3867
        %4430 = vmatprep.subr.bf16.mxu0 %v3870
        %4431 = vmatpush1.bf16.msra.mxu0 %v3869
        %4432 = vmatprep.subr.bf16.mxu0 %v3872
        %4433 = vmatpush1.bf16.msra.mxu0 %v3871
        %4434 = vmatprep.subr.bf16.mxu0 %v3874
        %4435 = vmatpush1.bf16.msra.mxu0 %v3873
        %4436 = vmatprep.subr.bf16.mxu0 %v3876
        %4437 = vmatpush1.bf16.msra.mxu0 %v3875
        %4438 = vmatprep.subr.bf16.mxu0 %v3878
        %4439 = vmatpush1.bf16.msra.mxu0 %v3877
        %4440 = vmatprep.subr.bf16.mxu0 %v3880
        %4441 = vmatpush1.bf16.msra.mxu0 %v3879
        %4442 = vmatprep.subr.bf16.mxu0 %v3882
        %4443 = vmatpush1.bf16.msra.mxu0 %v3881
        %4444 = vmatprep.subr.bf16.mxu0 %v3884
        %4445 = vmatpush1.bf16.msra.mxu0 %v3883
        %4446 = vmatprep.subr.bf16.mxu0 %v3886
        %4447 = vmatpush1.bf16.msra.mxu0 %v3885
        %4448 = vmatprep.subr.bf16.mxu0 %v3888
        %4449 = vmatpush1.bf16.msra.mxu0 %v3887
        %4450 = vmatprep.subr.bf16.mxu0 %v3890
        %4451 = vmatpush1.bf16.msra.mxu0 %v3889
        %4452 = vmatprep.subr.bf16.mxu0 %v3892
        %4453 = vmatpush1.bf16.msra.mxu0 %v3891
        %4454 = vmatprep.subr.bf16.mxu0 %v3894
        %4455 = vmatpush1.bf16.msra.mxu0 %v3893
        %4456 = vmatprep.subr.bf16.mxu0 %v3896
        %4457 = vmatpush1.bf16.msra.mxu0 %v3895
        %4458 = vmatprep.mubr.bf16.mxu0 %v2876
        %4459 = vmatmul.mubr.bf16.gmra.mrb[0].mxu0 %v2875
        %v4460 = vpop.f32.mrb[0].mxu0
        %v4461 = vadd.f32 %v4348, %v4460
        %v4462 = vpop.f32.mrb[0].mxu0
        %v4463 = vadd.f32 %v4350, %v4462
        %v4464 = vpop.f32.mrb[0].mxu0
        %v4465 = vadd.f32 %v4352, %v4464
        %v4466 = vpop.f32.mrb[0].mxu0
        %v4467 = vadd.f32 %v4354, %v4466
        %4468 = vmatprep.mubr.bf16.mxu0 %v2891
        %4469 = vmatmul.mubr.bf16.gmra.mrb[0].mxu0 %v2890
        %v4470 = vpop.f32.mrb[0].mxu0
        %v4471 = vadd.f32 %v4358, %v4470
        %v4472 = vpop.f32.mrb[0].mxu0
        %v4473 = vadd.f32 %v4360, %v4472
        %v4474 = vpop.f32.mrb[0].mxu0
        %v4475 = vadd.f32 %v4362, %v4474
        %v4476 = vpop.f32.mrb[0].mxu0
        %v4477 = vadd.f32 %v4364, %v4476
        %4478 = vmatprep.mubr.bf16.mxu0 %v2906
        %4479 = vmatmul.mubr.bf16.gmra.mrb[0].mxu0 %v2905
        %v4480 = vpop.f32.mrb[0].mxu0
        %v4481 = vadd.f32 %v4368, %v4480
        %v4482 = vpop.f32.mrb[0].mxu0
        %v4483 = vadd.f32 %v4370, %v4482
        %v4484 = vpop.f32.mrb[0].mxu0
        %v4485 = vadd.f32 %v4372, %v4484
        %v4486 = vpop.f32.mrb[0].mxu0
        %v4487 = vadd.f32 %v4374, %v4486
        %4488 = vmatprep.mubr.bf16.mxu0 %v2921
        %4489 = vmatmul.mubr.bf16.gmra.mrb[0].mxu0 %v2920
        %v4490 = vpop.f32.mrb[0].mxu0
        %v4491 = vadd.f32 %v4378, %v4490
        %v4492 = vpop.f32.mrb[0].mxu0
        %v4493 = vadd.f32 %v4380, %v4492
        %v4494 = vpop.f32.mrb[0].mxu0
        %v4495 = vadd.f32 %v4382, %v4494
        %v4496 = vpop.f32.mrb[0].mxu0
        %v4497 = vadd.f32 %v4384, %v4496
        %4498 = vmatprep.mubr.bf16.mxu0 %v2936
        %4499 = vmatmul.mubr.bf16.gmra.mrb[0].mxu0 %v2935
        %v4500 = vpop.f32.mrb[0].mxu0
        %v4501 = vadd.f32 %v4388, %v4500
        %v4502 = vpop.f32.mrb[0].mxu0
        %v4503 = vadd.f32 %v4390, %v4502
        %v4504 = vpop.f32.mrb[0].mxu0
        %v4505 = vadd.f32 %v4392, %v4504
        %v4506 = vpop.f32.mrb[0].mxu0
        %v4507 = vadd.f32 %v4394, %v4506
        %4508 = vmatprep.mubr.bf16.mxu0 %v2951
        %4509 = vmatmul.mubr.bf16.gmra.mrb[0].mxu0 %v2950
        %v4510 = vpop.f32.mrb[0].mxu0
        %v4511 = vadd.f32 %v4398, %v4510
        %v4512 = vpop.f32.mrb[0].mxu0
        %v4513 = vadd.f32 %v4400, %v4512
        %v4514 = vpop.f32.mrb[0].mxu0
        %v4515 = vadd.f32 %v4402, %v4514
        %v4516 = vpop.f32.mrb[0].mxu0
        %v4517 = vadd.f32 %v4404, %v4516
        %4518 = vmatprep.mubr.bf16.mxu0 %v2966
        %4519 = vmatmul.mubr.bf16.gmra.mrb[0].mxu0 %v2965
        %v4520 = vpop.f32.mrb[0].mxu0
        %v4521 = vadd.f32 %v4408, %v4520
        %v4522 = vpop.f32.mrb[0].mxu0
        %v4523 = vadd.f32 %v4410, %v4522
        %v4524 = vpop.f32.mrb[0].mxu0
        %v4525 = vadd.f32 %v4412, %v4524
        %v4526 = vpop.f32.mrb[0].mxu0
        %v4527 = vadd.f32 %v4414, %v4526
        %4528 = vmatprep.mubr.bf16.mxu0 %v2981
        %4529 = vmatmul.mubr.bf16.gmra.mrb[0].mxu0 %v2980
        %v4530 = vpop.f32.mrb[0].mxu0
        %v4531 = vadd.f32 %v4418, %v4530
        %v4532 = vpop.f32.mrb[0].mxu0
        %v4533 = vadd.f32 %v4420, %v4532
        %v4534 = vpop.f32.mrb[0].mxu0
        %v4535 = vadd.f32 %v4422, %v4534
        %v4536 = vpop.f32.mrb[0].mxu0
        %v4537 = vadd.f32 %v4424, %v4536
        %4538 = vdwg.mxu0
        %4539 = vmatprep.subr.bf16.mxu0 %v3898
        %4540 = vmatpush1.bf16.msra.mxu0 %v3897
        %4541 = vmatprep.subr.bf16.mxu0 %v3900
        %4542 = vmatpush1.bf16.msra.mxu0 %v3899
        %4543 = vmatprep.subr.bf16.mxu0 %v3902
        %4544 = vmatpush1.bf16.msra.mxu0 %v3901
        %4545 = vmatprep.subr.bf16.mxu0 %v3904
        %4546 = vmatpush1.bf16.msra.mxu0 %v3903
        %4547 = vmatprep.subr.bf16.mxu0 %v3906
        %4548 = vmatpush1.bf16.msra.mxu0 %v3905
        %4549 = vmatprep.subr.bf16.mxu0 %v3908
        %4550 = vmatpush1.bf16.msra.mxu0 %v3907
        %4551 = vmatprep.subr.bf16.mxu0 %v3910
        %4552 = vmatpush1.bf16.msra.mxu0 %v3909
        %4553 = vmatprep.subr.bf16.mxu0 %v3912
        %4554 = vmatpush1.bf16.msra.mxu0 %v3911
        %4555 = vmatprep.subr.bf16.mxu0 %v3914
        %4556 = vmatpush1.bf16.msra.mxu0 %v3913
        %4557 = vmatprep.subr.bf16.mxu0 %v3916
        %4558 = vmatpush1.bf16.msra.mxu0 %v3915
        %4559 = vmatprep.subr.bf16.mxu0 %v3918
        %4560 = vmatpush1.bf16.msra.mxu0 %v3917
        %4561 = vmatprep.subr.bf16.mxu0 %v3920
        %4562 = vmatpush1.bf16.msra.mxu0 %v3919
        %4563 = vmatprep.subr.bf16.mxu0 %v3922
        %4564 = vmatpush1.bf16.msra.mxu0 %v3921
        %4565 = vmatprep.subr.bf16.mxu0 %v3924
        %4566 = vmatpush1.bf16.msra.mxu0 %v3923
        %4567 = vmatprep.subr.bf16.mxu0 %v3926
        %4568 = vmatpush1.bf16.msra.mxu0 %v3925
        %4569 = vmatprep.subr.bf16.mxu0 %v3928
        %4570 = vmatpush1.bf16.msra.mxu0 %v3927
        %4571 = vmatprep.mubr.bf16.mxu0 %v2878
        %4572 = vmatmul.mubr.bf16.gmra.mrb[0].mxu0 %v2877
        %v4573 = vpop.f32.mrb[0].mxu0
        %v4574 = vadd.f32 %v4461, %v4573
        %v4575 = vpop.f32.mrb[0].mxu0
        %v4576 = vadd.f32 %v4463, %v4575
        %v4577 = vpop.f32.mrb[0].mxu0
        %v4578 = vadd.f32 %v4465, %v4577
        %v4579 = vpop.f32.mrb[0].mxu0
        %v4580 = vadd.f32 %v4467, %v4579
        %4581 = vmatprep.mubr.bf16.mxu0 %v2893
        %4582 = vmatmul.mubr.bf16.gmra.mrb[0].mxu0 %v2892
        %v4583 = vpop.f32.mrb[0].mxu0
        %v4584 = vadd.f32 %v4471, %v4583
        %v4585 = vpop.f32.mrb[0].mxu0
        %v4586 = vadd.f32 %v4473, %v4585
        %v4587 = vpop.f32.mrb[0].mxu0
        %v4588 = vadd.f32 %v4475, %v4587
        %v4589 = vpop.f32.mrb[0].mxu0
        %v4590 = vadd.f32 %v4477, %v4589
        %4591 = vmatprep.mubr.bf16.mxu0 %v2908
        %4592 = vmatmul.mubr.bf16.gmra.mrb[0].mxu0 %v2907
        %v4593 = vpop.f32.mrb[0].mxu0
        %v4594 = vadd.f32 %v4481, %v4593
        %v4595 = vpop.f32.mrb[0].mxu0
        %v4596 = vadd.f32 %v4483, %v4595
        %v4597 = vpop.f32.mrb[0].mxu0
        %v4598 = vadd.f32 %v4485, %v4597
        %v4599 = vpop.f32.mrb[0].mxu0
        %v4600 = vadd.f32 %v4487, %v4599
        %4601 = vmatprep.mubr.bf16.mxu0 %v2923
        %4602 = vmatmul.mubr.bf16.gmra.mrb[0].mxu0 %v2922
        %v4603 = vpop.f32.mrb[0].mxu0
        %v4604 = vadd.f32 %v4491, %v4603
        %v4605 = vpop.f32.mrb[0].mxu0
        %v4606 = vadd.f32 %v4493, %v4605
        %v4607 = vpop.f32.mrb[0].mxu0
        %v4608 = vadd.f32 %v4495, %v4607
        %v4609 = vpop.f32.mrb[0].mxu0
        %v4610 = vadd.f32 %v4497, %v4609
        %4611 = vmatprep.mubr.bf16.mxu0 %v2938
        %4612 = vmatmul.mubr.bf16.gmra.mrb[0].mxu0 %v2937
        %v4613 = vpop.f32.mrb[0].mxu0
        %v4614 = vadd.f32 %v4501, %v4613
        %v4615 = vpop.f32.mrb[0].mxu0
        %v4616 = vadd.f32 %v4503, %v4615
        %v4617 = vpop.f32.mrb[0].mxu0
        %v4618 = vadd.f32 %v4505, %v4617
        %v4619 = vpop.f32.mrb[0].mxu0
        %v4620 = vadd.f32 %v4507, %v4619
        %4621 = vmatprep.mubr.bf16.mxu0 %v2953
        %4622 = vmatmul.mubr.bf16.gmra.mrb[0].mxu0 %v2952
        %v4623 = vpop.f32.mrb[0].mxu0
        %v4624 = vadd.f32 %v4511, %v4623
        %v4625 = vpop.f32.mrb[0].mxu0
        %v4626 = vadd.f32 %v4513, %v4625
        %v4627 = vpop.f32.mrb[0].mxu0
        %v4628 = vadd.f32 %v4515, %v4627
        %v4629 = vpop.f32.mrb[0].mxu0
        %v4630 = vadd.f32 %v4517, %v4629
        %4631 = vmatprep.mubr.bf16.mxu0 %v2968
        %4632 = vmatmul.mubr.bf16.gmra.mrb[0].mxu0 %v2967
        %v4633 = vpop.f32.mrb[0].mxu0
        %v4634 = vadd.f32 %v4521, %v4633
        %v4635 = vpop.f32.mrb[0].mxu0
        %v4636 = vadd.f32 %v4523, %v4635
        %v4637 = vpop.f32.mrb[0].mxu0
        %v4638 = vadd.f32 %v4525, %v4637
        %v4639 = vpop.f32.mrb[0].mxu0
        %v4640 = vadd.f32 %v4527, %v4639
        %4641 = vmatprep.mubr.bf16.mxu0 %v2983
        %4642 = vmatmul.mubr.bf16.gmra.mrb[0].mxu0 %v2982
        %v4643 = vpop.f32.mrb[0].mxu0
        %v4644 = vadd.f32 %v4531, %v4643
        %v4645 = vpop.f32.mrb[0].mxu0
        %v4646 = vadd.f32 %v4533, %v4645
        %v4647 = vpop.f32.mrb[0].mxu0
        %v4648 = vadd.f32 %v4535, %v4647
        %v4649 = vpop.f32.mrb[0].mxu0
        %v4650 = vadd.f32 %v4537, %v4649
        %4651 = vdwg.mxu0
        %4652 = vmatprep.subr.bf16.mxu0 %v3930
        %4653 = vmatpush1.bf16.msra.mxu0 %v3929
        %4654 = vmatprep.subr.bf16.mxu0 %v3932
        %4655 = vmatpush1.bf16.msra.mxu0 %v3931
        %4656 = vmatprep.subr.bf16.mxu0 %v3934
        %4657 = vmatpush1.bf16.msra.mxu0 %v3933
        %4658 = vmatprep.subr.bf16.mxu0 %v3936
        %4659 = vmatpush1.bf16.msra.mxu0 %v3935
        %4660 = vmatprep.subr.bf16.mxu0 %v3938
        %4661 = vmatpush1.bf16.msra.mxu0 %v3937
        %4662 = vmatprep.subr.bf16.mxu0 %v3940
        %4663 = vmatpush1.bf16.msra.mxu0 %v3939
        %4664 = vmatprep.subr.bf16.mxu0 %v3942
        %4665 = vmatpush1.bf16.msra.mxu0 %v3941
        %4666 = vmatprep.subr.bf16.mxu0 %v3944
        %4667 = vmatpush1.bf16.msra.mxu0 %v3943
        %4668 = vmatprep.subr.bf16.mxu0 %v3946
        %4669 = vmatpush1.bf16.msra.mxu0 %v3945
        %4670 = vmatprep.subr.bf16.mxu0 %v3948
        %4671 = vmatpush1.bf16.msra.mxu0 %v3947
        %4672 = vmatprep.subr.bf16.mxu0 %v3950
        %4673 = vmatpush1.bf16.msra.mxu0 %v3949
        %4674 = vmatprep.subr.bf16.mxu0 %v3952
        %4675 = vmatpush1.bf16.msra.mxu0 %v3951
        %4676 = vmatprep.subr.bf16.mxu0 %v3954
        %4677 = vmatpush1.bf16.msra.mxu0 %v3953
        %4678 = vmatprep.subr.bf16.mxu0 %v3956
        %4679 = vmatpush1.bf16.msra.mxu0 %v3955
        %4680 = vmatprep.subr.bf16.mxu0 %v3958
        %4681 = vmatpush1.bf16.msra.mxu0 %v3957
        %4682 = vmatprep.subr.bf16.mxu0 %v3960
        %4683 = vmatpush1.bf16.msra.mxu0 %v3959
        %4684 = vmatprep.mubr.bf16.mxu0 %v2880
        %4685 = vmatmul.mubr.bf16.gmra.mrb[0].mxu0 %v2879
        %v4686 = vpop.f32.mrb[0].mxu0
        %v4687 = vadd.f32 %v4574, %v4686
        %v4688 = vpop.f32.mrb[0].mxu0
        %v4689 = vadd.f32 %v4576, %v4688
        %v4690 = vpop.f32.mrb[0].mxu0
        %v4691 = vadd.f32 %v4578, %v4690
        %v4692 = vpop.f32.mrb[0].mxu0
        %v4693 = vadd.f32 %v4580, %v4692
        %4694 = vmatprep.mubr.bf16.mxu0 %v2895
        %4695 = vmatmul.mubr.bf16.gmra.mrb[0].mxu0 %v2894
        %v4696 = vpop.f32.mrb[0].mxu0
        %v4697 = vadd.f32 %v4584, %v4696
        %v4698 = vpop.f32.mrb[0].mxu0
        %v4699 = vadd.f32 %v4586, %v4698
        %v4700 = vpop.f32.mrb[0].mxu0
        %v4701 = vadd.f32 %v4588, %v4700
        %v4702 = vpop.f32.mrb[0].mxu0
        %v4703 = vadd.f32 %v4590, %v4702
        %4704 = vmatprep.mubr.bf16.mxu0 %v2910
        %4705 = vmatmul.mubr.bf16.gmra.mrb[0].mxu0 %v2909
        %v4706 = vpop.f32.mrb[0].mxu0
        %v4707 = vadd.f32 %v4594, %v4706
        %v4708 = vpop.f32.mrb[0].mxu0
        %v4709 = vadd.f32 %v4596, %v4708
        %v4710 = vpop.f32.mrb[0].mxu0
        %v4711 = vadd.f32 %v4598, %v4710
        %v4712 = vpop.f32.mrb[0].mxu0
        %v4713 = vadd.f32 %v4600, %v4712
        %4714 = vmatprep.mubr.bf16.mxu0 %v2925
        %4715 = vmatmul.mubr.bf16.gmra.mrb[0].mxu0 %v2924
        %v4716 = vpop.f32.mrb[0].mxu0
        %v4717 = vadd.f32 %v4604, %v4716
        %v4718 = vpop.f32.mrb[0].mxu0
        %v4719 = vadd.f32 %v4606, %v4718
        %v4720 = vpop.f32.mrb[0].mxu0
        %v4721 = vadd.f32 %v4608, %v4720
        %v4722 = vpop.f32.mrb[0].mxu0
        %v4723 = vadd.f32 %v4610, %v4722
        %4724 = vmatprep.mubr.bf16.mxu0 %v2940
        %4725 = vmatmul.mubr.bf16.gmra.mrb[0].mxu0 %v2939
        %v4726 = vpop.f32.mrb[0].mxu0
        %v4727 = vadd.f32 %v4614, %v4726
        %v4728 = vpop.f32.mrb[0].mxu0
        %v4729 = vadd.f32 %v4616, %v4728
        %v4730 = vpop.f32.mrb[0].mxu0
        %v4731 = vadd.f32 %v4618, %v4730
        %v4732 = vpop.f32.mrb[0].mxu0
        %v4733 = vadd.f32 %v4620, %v4732
        %4734 = vmatprep.mubr.bf16.mxu0 %v2955
        %4735 = vmatmul.mubr.bf16.gmra.mrb[0].mxu0 %v2954
        %v4736 = vpop.f32.mrb[0].mxu0
        %v4737 = vadd.f32 %v4624, %v4736
        %v4738 = vpop.f32.mrb[0].mxu0
        %v4739 = vadd.f32 %v4626, %v4738
        %v4740 = vpop.f32.mrb[0].mxu0
        %v4741 = vadd.f32 %v4628, %v4740
        %v4742 = vpop.f32.mrb[0].mxu0
        %v4743 = vadd.f32 %v4630, %v4742
        %4744 = vmatprep.mubr.bf16.mxu0 %v2970
        %4745 = vmatmul.mubr.bf16.gmra.mrb[0].mxu0 %v2969
        %v4746 = vpop.f32.mrb[0].mxu0
        %v4747 = vadd.f32 %v4634, %v4746
        %v4748 = vpop.f32.mrb[0].mxu0
        %v4749 = vadd.f32 %v4636, %v4748
        %v4750 = vpop.f32.mrb[0].mxu0
        %v4751 = vadd.f32 %v4638, %v4750
        %v4752 = vpop.f32.mrb[0].mxu0
        %v4753 = vadd.f32 %v4640, %v4752
        %4754 = vmatprep.mubr.bf16.mxu0 %v2985
        %4755 = vmatmul.mubr.bf16.gmra.mrb[0].mxu0 %v2984
        %v4756 = vpop.f32.mrb[0].mxu0
        %v4757 = vadd.f32 %v4644, %v4756
        %v4758 = vpop.f32.mrb[0].mxu0
        %v4759 = vadd.f32 %v4646, %v4758
        %v4760 = vpop.f32.mrb[0].mxu0
        %v4761 = vadd.f32 %v4648, %v4760
        %v4762 = vpop.f32.mrb[0].mxu0
        %v4763 = vadd.f32 %v4650, %v4762
        %4764 = vdwg.mxu0
        %4765 = vmatprep.subr.bf16.mxu0 %v3962
        %4766 = vmatpush1.bf16.msra.mxu0 %v3961
        %4767 = vmatprep.subr.bf16.mxu0 %v3964
        %4768 = vmatpush1.bf16.msra.mxu0 %v3963
        %4769 = vmatprep.subr.bf16.mxu0 %v3966
        %4770 = vmatpush1.bf16.msra.mxu0 %v3965
        %4771 = vmatprep.subr.bf16.mxu0 %v3968
        %4772 = vmatpush1.bf16.msra.mxu0 %v3967
        %4773 = vmatprep.subr.bf16.mxu0 %v3970
        %4774 = vmatpush1.bf16.msra.mxu0 %v3969
        %4775 = vmatprep.subr.bf16.mxu0 %v3972
        %4776 = vmatpush1.bf16.msra.mxu0 %v3971
        %4777 = vmatprep.subr.bf16.mxu0 %v3974
        %4778 = vmatpush1.bf16.msra.mxu0 %v3973
        %4779 = vmatprep.subr.bf16.mxu0 %v3976
        %4780 = vmatpush1.bf16.msra.mxu0 %v3975
        %4781 = vmatprep.subr.bf16.mxu0 %v3978
        %4782 = vmatpush1.bf16.msra.mxu0 %v3977
        %4783 = vmatprep.subr.bf16.mxu0 %v3980
        %4784 = vmatpush1.bf16.msra.mxu0 %v3979
        %4785 = vmatprep.subr.bf16.mxu0 %v3982
        %4786 = vmatpush1.bf16.msra.mxu0 %v3981
        %4787 = vmatprep.subr.bf16.mxu0 %v3984
        %4788 = vmatpush1.bf16.msra.mxu0 %v3983
        %4789 = vmatprep.subr.bf16.mxu0 %v3986
        %4790 = vmatpush1.bf16.msra.mxu0 %v3985
        %4791 = vmatprep.subr.bf16.mxu0 %v3988
        %4792 = vmatpush1.bf16.msra.mxu0 %v3987
        %4793 = vmatprep.subr.bf16.mxu0 %v3990
        %4794 = vmatpush1.bf16.msra.mxu0 %v3989
        %4795 = vmatprep.subr.bf16.mxu0 %v3992
        %4796 = vmatpush1.bf16.msra.mxu0 %v3991
        %4797 = vmatprep.mubr.bf16.mxu0 %v2882
        %4798 = vmatmul.mubr.bf16.gmra.mrb[0].mxu0 %v2881
        %v4799 = vpop.f32.mrb[0].mxu0
        %v4800 = vadd.f32 %v4687, %v4799
        %v4801 = vpop.f32.mrb[0].mxu0
        %v4802 = vadd.f32 %v4689, %v4801
        %v4803 = vpop.f32.mrb[0].mxu0
        %v4804 = vadd.f32 %v4691, %v4803
        %v4805 = vpop.f32.mrb[0].mxu0
        %v4806 = vadd.f32 %v4693, %v4805
        %4807 = vmatprep.mubr.bf16.mxu0 %v2897
        %4808 = vmatmul.mubr.bf16.gmra.mrb[0].mxu0 %v2896
        %v4809 = vpop.f32.mrb[0].mxu0
        %v4810 = vadd.f32 %v4697, %v4809
        %v4811 = vpop.f32.mrb[0].mxu0
        %v4812 = vadd.f32 %v4699, %v4811
        %v4813 = vpop.f32.mrb[0].mxu0
        %v4814 = vadd.f32 %v4701, %v4813
        %v4815 = vpop.f32.mrb[0].mxu0
        %v4816 = vadd.f32 %v4703, %v4815
        %4817 = vmatprep.mubr.bf16.mxu0 %v2912
        %4818 = vmatmul.mubr.bf16.gmra.mrb[0].mxu0 %v2911
        %v4819 = vpop.f32.mrb[0].mxu0
        %v4820 = vadd.f32 %v4707, %v4819
        %v4821 = vpop.f32.mrb[0].mxu0
        %v4822 = vadd.f32 %v4709, %v4821
        %v4823 = vpop.f32.mrb[0].mxu0
        %v4824 = vadd.f32 %v4711, %v4823
        %v4825 = vpop.f32.mrb[0].mxu0
        %v4826 = vadd.f32 %v4713, %v4825
        %4827 = vmatprep.mubr.bf16.mxu0 %v2927
        %4828 = vmatmul.mubr.bf16.gmra.mrb[0].mxu0 %v2926
        %v4829 = vpop.f32.mrb[0].mxu0
        %v4830 = vadd.f32 %v4717, %v4829
        %v4831 = vpop.f32.mrb[0].mxu0
        %v4832 = vadd.f32 %v4719, %v4831
        %v4833 = vpop.f32.mrb[0].mxu0
        %v4834 = vadd.f32 %v4721, %v4833
        %v4835 = vpop.f32.mrb[0].mxu0
        %v4836 = vadd.f32 %v4723, %v4835
        %4837 = vmatprep.mubr.bf16.mxu0 %v2942
        %4838 = vmatmul.mubr.bf16.gmra.mrb[0].mxu0 %v2941
        %v4839 = vpop.f32.mrb[0].mxu0
        %v4840 = vadd.f32 %v4727, %v4839
        %v4841 = vpop.f32.mrb[0].mxu0
        %v4842 = vadd.f32 %v4729, %v4841
        %v4843 = vpop.f32.mrb[0].mxu0
        %v4844 = vadd.f32 %v4731, %v4843
        %v4845 = vpop.f32.mrb[0].mxu0
        %v4846 = vadd.f32 %v4733, %v4845
        %4847 = vmatprep.mubr.bf16.mxu0 %v2957
        %4848 = vmatmul.mubr.bf16.gmra.mrb[0].mxu0 %v2956
        %v4849 = vpop.f32.mrb[0].mxu0
        %v4850 = vadd.f32 %v4737, %v4849
        %v4851 = vpop.f32.mrb[0].mxu0
        %v4852 = vadd.f32 %v4739, %v4851
        %v4853 = vpop.f32.mrb[0].mxu0
        %v4854 = vadd.f32 %v4741, %v4853
        %v4855 = vpop.f32.mrb[0].mxu0
        %v4856 = vadd.f32 %v4743, %v4855
        %4857 = vmatprep.mubr.bf16.mxu0 %v2972
        %4858 = vmatmul.mubr.bf16.gmra.mrb[0].mxu0 %v2971
        %v4859 = vpop.f32.mrb[0].mxu0
        %v4860 = vadd.f32 %v4747, %v4859
        %v4861 = vpop.f32.mrb[0].mxu0
        %v4862 = vadd.f32 %v4749, %v4861
        %v4863 = vpop.f32.mrb[0].mxu0
        %v4864 = vadd.f32 %v4751, %v4863
        %v4865 = vpop.f32.mrb[0].mxu0
        %v4866 = vadd.f32 %v4753, %v4865
        %4867 = vmatprep.mubr.bf16.mxu0 %v2987
        %4868 = vmatmul.mubr.bf16.gmra.mrb[0].mxu0 %v2986
        %v4869 = vpop.f32.mrb[0].mxu0
        %v4870 = vadd.f32 %v4757, %v4869
        %v4871 = vpop.f32.mrb[0].mxu0
        %v4872 = vadd.f32 %v4759, %v4871
        %v4873 = vpop.f32.mrb[0].mxu0
        %v4874 = vadd.f32 %v4761, %v4873
        %v4875 = vpop.f32.mrb[0].mxu0
        %v4876 = vadd.f32 %v4763, %v4875
        %4877 = vdwg.mxu0
        %4878 = vmatprep.subr.bf16.mxu0 %v3994
        %4879 = vmatpush1.bf16.msra.mxu0 %v3993
        %4880 = vmatprep.subr.bf16.mxu0 %v3996
        %4881 = vmatpush1.bf16.msra.mxu0 %v3995
        %4882 = vmatprep.subr.bf16.mxu0 %v3998
        %4883 = vmatpush1.bf16.msra.mxu0 %v3997
        %4884 = vmatprep.subr.bf16.mxu0 %v4000
        %4885 = vmatpush1.bf16.msra.mxu0 %v3999
        %4886 = vmatprep.subr.bf16.mxu0 %v4002
        %4887 = vmatpush1.bf16.msra.mxu0 %v4001
        %4888 = vmatprep.subr.bf16.mxu0 %v4004
        %4889 = vmatpush1.bf16.msra.mxu0 %v4003
        %4890 = vmatprep.subr.bf16.mxu0 %v4006
        %4891 = vmatpush1.bf16.msra.mxu0 %v4005
        %4892 = vmatprep.subr.bf16.mxu0 %v4008
        %4893 = vmatpush1.bf16.msra.mxu0 %v4007
        %4894 = vmatprep.subr.bf16.mxu0 %v4010
        %4895 = vmatpush1.bf16.msra.mxu0 %v4009
        %4896 = vmatprep.subr.bf16.mxu0 %v4012
        %4897 = vmatpush1.bf16.msra.mxu0 %v4011
        %4898 = vmatprep.subr.bf16.mxu0 %v4014
        %4899 = vmatpush1.bf16.msra.mxu0 %v4013
        %4900 = vmatprep.subr.bf16.mxu0 %v4016
        %4901 = vmatpush1.bf16.msra.mxu0 %v4015
        %4902 = vmatprep.subr.bf16.mxu0 %v4018
        %4903 = vmatpush1.bf16.msra.mxu0 %v4017
        %4904 = vmatprep.subr.bf16.mxu0 %v4020
        %4905 = vmatpush1.bf16.msra.mxu0 %v4019
        %4906 = vmatprep.subr.bf16.mxu0 %v4022
        %4907 = vmatpush1.bf16.msra.mxu0 %v4021
        %4908 = vmatprep.subr.bf16.mxu0 %v4024
        %4909 = vmatpush1.bf16.msra.mxu0 %v4023
        %4910 = vmatprep.mubr.bf16.mxu0 %v2884
        %4911 = vmatmul.mubr.bf16.gmra.mrb[0].mxu0 %v2883
        %v4912 = vpop.f32.mrb[0].mxu0
        %v4913 = vadd.f32 %v4800, %v4912
        %v4914 = vpop.f32.mrb[0].mxu0
        %v4915 = vadd.f32 %v4802, %v4914
        %v4916 = vpop.f32.mrb[0].mxu0
        %v4917 = vadd.f32 %v4804, %v4916
        %v4918 = vpop.f32.mrb[0].mxu0
        %v4919 = vadd.f32 %v4806, %v4918
        %4920 = vmatprep.mubr.bf16.mxu0 %v2899
        %4921 = vmatmul.mubr.bf16.gmra.mrb[0].mxu0 %v2898
        %v4922 = vpop.f32.mrb[0].mxu0
        %v4923 = vadd.f32 %v4810, %v4922
        %v4924 = vpop.f32.mrb[0].mxu0
        %v4925 = vadd.f32 %v4812, %v4924
        %v4926 = vpop.f32.mrb[0].mxu0
        %v4927 = vadd.f32 %v4814, %v4926
        %v4928 = vpop.f32.mrb[0].mxu0
        %v4929 = vadd.f32 %v4816, %v4928
        %4930 = vmatprep.mubr.bf16.mxu0 %v2914
        %4931 = vmatmul.mubr.bf16.gmra.mrb[0].mxu0 %v2913
        %v4932 = vpop.f32.mrb[0].mxu0
        %v4933 = vadd.f32 %v4820, %v4932
        %v4934 = vpop.f32.mrb[0].mxu0
        %v4935 = vadd.f32 %v4822, %v4934
        %v4936 = vpop.f32.mrb[0].mxu0
        %v4937 = vadd.f32 %v4824, %v4936
        %v4938 = vpop.f32.mrb[0].mxu0
        %v4939 = vadd.f32 %v4826, %v4938
        %4940 = vmatprep.mubr.bf16.mxu0 %v2929
        %4941 = vmatmul.mubr.bf16.gmra.mrb[0].mxu0 %v2928
        %v4942 = vpop.f32.mrb[0].mxu0
        %v4943 = vadd.f32 %v4830, %v4942
        %v4944 = vpop.f32.mrb[0].mxu0
        %v4945 = vadd.f32 %v4832, %v4944
        %v4946 = vpop.f32.mrb[0].mxu0
        %v4947 = vadd.f32 %v4834, %v4946
        %v4948 = vpop.f32.mrb[0].mxu0
        %v4949 = vadd.f32 %v4836, %v4948
        %4950 = vmatprep.mubr.bf16.mxu0 %v2944
        %4951 = vmatmul.mubr.bf16.gmra.mrb[0].mxu0 %v2943
        %v4952 = vpop.f32.mrb[0].mxu0
        %v4953 = vadd.f32 %v4840, %v4952
        %v4954 = vpop.f32.mrb[0].mxu0
        %v4955 = vadd.f32 %v4842, %v4954
        %v4956 = vpop.f32.mrb[0].mxu0
        %v4957 = vadd.f32 %v4844, %v4956
        %v4958 = vpop.f32.mrb[0].mxu0
        %v4959 = vadd.f32 %v4846, %v4958
        %4960 = vmatprep.mubr.bf16.mxu0 %v2959
        %4961 = vmatmul.mubr.bf16.gmra.mrb[0].mxu0 %v2958
        %v4962 = vpop.f32.mrb[0].mxu0
        %v4963 = vadd.f32 %v4850, %v4962
        %v4964 = vpop.f32.mrb[0].mxu0
        %v4965 = vadd.f32 %v4852, %v4964
        %v4966 = vpop.f32.mrb[0].mxu0
        %v4967 = vadd.f32 %v4854, %v4966
        %v4968 = vpop.f32.mrb[0].mxu0
        %v4969 = vadd.f32 %v4856, %v4968
        %4970 = vmatprep.mubr.bf16.mxu0 %v2974
        %4971 = vmatmul.mubr.bf16.gmra.mrb[0].mxu0 %v2973
        %v4972 = vpop.f32.mrb[0].mxu0
        %v4973 = vadd.f32 %v4860, %v4972
        %v4974 = vpop.f32.mrb[0].mxu0
        %v4975 = vadd.f32 %v4862, %v4974
        %v4976 = vpop.f32.mrb[0].mxu0
        %v4977 = vadd.f32 %v4864, %v4976
        %v4978 = vpop.f32.mrb[0].mxu0
        %v4979 = vadd.f32 %v4866, %v4978
        %4980 = vmatprep.mubr.bf16.mxu0 %v2989
        %4981 = vmatmul.mubr.bf16.gmra.mrb[0].mxu0 %v2988
        %v4982 = vpop.f32.mrb[0].mxu0
        %v4983 = vadd.f32 %v4870, %v4982
        %v4984 = vpop.f32.mrb[0].mxu0
        %v4985 = vadd.f32 %v4872, %v4984
        %v4986 = vpop.f32.mrb[0].mxu0
        %v4987 = vadd.f32 %v4874, %v4986
        %v4988 = vpop.f32.mrb[0].mxu0
        %v4989 = vadd.f32 %v4876, %v4988
        %4990 = vdwg.mxu0
        %4991 = vmatprep.subr.bf16.mxu0 %v4026
        %4992 = vmatpush1.bf16.msra.mxu0 %v4025
        %4993 = vmatprep.subr.bf16.mxu0 %v4028
        %4994 = vmatpush1.bf16.msra.mxu0 %v4027
        %4995 = vmatprep.subr.bf16.mxu0 %v4030
        %4996 = vmatpush1.bf16.msra.mxu0 %v4029
        %4997 = vmatprep.subr.bf16.mxu0 %v4032
        %4998 = vmatpush1.bf16.msra.mxu0 %v4031
        %4999 = vmatprep.subr.bf16.mxu0 %v4034
        %5000 = vmatpush1.bf16.msra.mxu0 %v4033
        %5001 = vmatprep.subr.bf16.mxu0 %v4036
        %5002 = vmatpush1.bf16.msra.mxu0 %v4035
        %5003 = vmatprep.subr.bf16.mxu0 %v4038
        %5004 = vmatpush1.bf16.msra.mxu0 %v4037
        %5005 = vmatprep.subr.bf16.mxu0 %v4040
        %5006 = vmatpush1.bf16.msra.mxu0 %v4039
        %5007 = vmatprep.subr.bf16.mxu0 %v4042
        %5008 = vmatpush1.bf16.msra.mxu0 %v4041
        %5009 = vmatprep.subr.bf16.mxu0 %v4044
        %5010 = vmatpush1.bf16.msra.mxu0 %v4043
        %5011 = vmatprep.subr.bf16.mxu0 %v4046
        %5012 = vmatpush1.bf16.msra.mxu0 %v4045
        %5013 = vmatprep.subr.bf16.mxu0 %v4048
        %5014 = vmatpush1.bf16.msra.mxu0 %v4047
        %5015 = vmatprep.subr.bf16.mxu0 %v4050
        %5016 = vmatpush1.bf16.msra.mxu0 %v4049
        %5017 = vmatprep.subr.bf16.mxu0 %v4052
        %5018 = vmatpush1.bf16.msra.mxu0 %v4051
        %5019 = vmatprep.subr.bf16.mxu0 %v4054
        %5020 = vmatpush1.bf16.msra.mxu0 %v4053
        %5021 = vmatprep.subr.bf16.mxu0 %v4056
        %5022 = vmatpush1.bf16.msra.mxu0 %v4055
        %5023 = vmatprep.mubr.bf16.mxu0 %v2886
        %5024 = vmatmul.mubr.bf16.gmra.mrb[0].mxu0 %v2885
        %v5025 = vpop.f32.mrb[0].mxu0
        %v5026 = vadd.f32 %v4913, %v5025
        %v5027 = vpop.f32.mrb[0].mxu0
        %v5028 = vadd.f32 %v4915, %v5027
        %v5029 = vpop.f32.mrb[0].mxu0
        %v5030 = vadd.f32 %v4917, %v5029
        %v5031 = vpop.f32.mrb[0].mxu0
        %v5032 = vadd.f32 %v4919, %v5031
        %5033 = vmatprep.mubr.bf16.mxu0 %v2901
        %5034 = vmatmul.mubr.bf16.gmra.mrb[0].mxu0 %v2900
        %v5035 = vpop.f32.mrb[0].mxu0
        %v5036 = vadd.f32 %v4923, %v5035
        %v5037 = vpop.f32.mrb[0].mxu0
        %v5038 = vadd.f32 %v4925, %v5037
        %v5039 = vpop.f32.mrb[0].mxu0
        %v5040 = vadd.f32 %v4927, %v5039
        %v5041 = vpop.f32.mrb[0].mxu0
        %v5042 = vadd.f32 %v4929, %v5041
        %5043 = vmatprep.mubr.bf16.mxu0 %v2916
        %5044 = vmatmul.mubr.bf16.gmra.mrb[0].mxu0 %v2915
        %v5045 = vpop.f32.mrb[0].mxu0
        %v5046 = vadd.f32 %v4933, %v5045
        %v5047 = vpop.f32.mrb[0].mxu0
        %v5048 = vadd.f32 %v4935, %v5047
        %v5049 = vpop.f32.mrb[0].mxu0
        %v5050 = vadd.f32 %v4937, %v5049
        %v5051 = vpop.f32.mrb[0].mxu0
        %v5052 = vadd.f32 %v4939, %v5051
        %5053 = vmatprep.mubr.bf16.mxu0 %v2931
        %5054 = vmatmul.mubr.bf16.gmra.mrb[0].mxu0 %v2930
        %v5055 = vpop.f32.mrb[0].mxu0
        %v5056 = vadd.f32 %v4943, %v5055
        %v5057 = vpop.f32.mrb[0].mxu0
        %v5058 = vadd.f32 %v4945, %v5057
        %v5059 = vpop.f32.mrb[0].mxu0
        %v5060 = vadd.f32 %v4947, %v5059
        %v5061 = vpop.f32.mrb[0].mxu0
        %v5062 = vadd.f32 %v4949, %v5061
        %5063 = vmatprep.mubr.bf16.mxu0 %v2946
        %5064 = vmatmul.mubr.bf16.gmra.mrb[0].mxu0 %v2945
        %v5065 = vpop.f32.mrb[0].mxu0
        %v5066 = vadd.f32 %v4953, %v5065
        %v5067 = vpop.f32.mrb[0].mxu0
        %v5068 = vadd.f32 %v4955, %v5067
        %v5069 = vpop.f32.mrb[0].mxu0
        %v5070 = vadd.f32 %v4957, %v5069
        %v5071 = vpop.f32.mrb[0].mxu0
        %v5072 = vadd.f32 %v4959, %v5071
        %5073 = vmatprep.mubr.bf16.mxu0 %v2961
        %5074 = vmatmul.mubr.bf16.gmra.mrb[0].mxu0 %v2960
        %v5075 = vpop.f32.mrb[0].mxu0
        %v5076 = vadd.f32 %v4963, %v5075
        %v5077 = vpop.f32.mrb[0].mxu0
        %v5078 = vadd.f32 %v4965, %v5077
        %v5079 = vpop.f32.mrb[0].mxu0
        %v5080 = vadd.f32 %v4967, %v5079
        %v5081 = vpop.f32.mrb[0].mxu0
        %v5082 = vadd.f32 %v4969, %v5081
        %5083 = vmatprep.mubr.bf16.mxu0 %v2976
        %5084 = vmatmul.mubr.bf16.gmra.mrb[0].mxu0 %v2975
        %v5085 = vpop.f32.mrb[0].mxu0
        %v5086 = vadd.f32 %v4973, %v5085
        %v5087 = vpop.f32.mrb[0].mxu0
        %v5088 = vadd.f32 %v4975, %v5087
        %v5089 = vpop.f32.mrb[0].mxu0
        %v5090 = vadd.f32 %v4977, %v5089
        %v5091 = vpop.f32.mrb[0].mxu0
        %v5092 = vadd.f32 %v4979, %v5091
        %5093 = vmatprep.mubr.bf16.mxu0 %v2991
        %5094 = vmatmul.mubr.bf16.gmra.mrb[0].mxu0 %v2990
        %v5095 = vpop.f32.mrb[0].mxu0
        %v5096 = vadd.f32 %v4983, %v5095
        %v5097 = vpop.f32.mrb[0].mxu0
        %v5098 = vadd.f32 %v4985, %v5097
        %v5099 = vpop.f32.mrb[0].mxu0
        %v5100 = vadd.f32 %v4987, %v5099
        %v5101 = vpop.f32.mrb[0].mxu0
        %v5102 = vadd.f32 %v4989, %v5101
        %5103 = vdwg.mxu0
        %5104 = vmatprep.subr.bf16.mxu0 %v4058
        %5105 = vmatpush1.bf16.msra.mxu0 %v4057
        %5106 = vmatprep.subr.bf16.mxu0 %v4060
        %5107 = vmatpush1.bf16.msra.mxu0 %v4059
        %5108 = vmatprep.subr.bf16.mxu0 %v4062
        %5109 = vmatpush1.bf16.msra.mxu0 %v4061
        %5110 = vmatprep.subr.bf16.mxu0 %v4064
        %5111 = vmatpush1.bf16.msra.mxu0 %v4063
        %5112 = vmatprep.subr.bf16.mxu0 %v4066
        %5113 = vmatpush1.bf16.msra.mxu0 %v4065
        %5114 = vmatprep.subr.bf16.mxu0 %v4068
        %5115 = vmatpush1.bf16.msra.mxu0 %v4067
        %5116 = vmatprep.subr.bf16.mxu0 %v4070
        %5117 = vmatpush1.bf16.msra.mxu0 %v4069
        %5118 = vmatprep.subr.bf16.mxu0 %v4072
        %5119 = vmatpush1.bf16.msra.mxu0 %v4071
        %5120 = vmatprep.subr.bf16.mxu0 0
        %5121 = vmatpush1.bf16.msra.mxu0 0
        %5122 = vmatprep.subr.bf16.mxu0 0
        %5123 = vmatpush1.bf16.msra.mxu0 0
        %5124 = vmatprep.subr.bf16.mxu0 0
        %5125 = vmatpush1.bf16.msra.mxu0 0
        %5126 = vmatprep.subr.bf16.mxu0 0
        %5127 = vmatpush1.bf16.msra.mxu0 0
        %5128 = vmatprep.subr.bf16.mxu0 0
        %5129 = vmatpush1.bf16.msra.mxu0 0
        %5130 = vmatprep.subr.bf16.mxu0 0
        %5131 = vmatpush1.bf16.msra.mxu0 0
        %5132 = vmatprep.subr.bf16.mxu0 0
        %5133 = vmatpush1.bf16.msra.mxu0 0
        %5134 = vmatprep.subr.bf16.mxu0 0
        %5135 = vmatpush1.bf16.msra.mxu0 0
        %5136 = vmatprep.mubr.bf16.mxu0 0
        %5137 = vmatmul.mubr.bf16.gmra.mrb[0].mxu0 %v2887
        %v5138 = vpop.f32.mrb[0].mxu0
        %v5139 = vadd.f32 %v5026, %v5138
        %v5140 = vpop.f32.mrb[0].mxu0
        %v5141 = vadd.f32 %v5028, %v5140
        %v5142 = vpop.f32.mrb[0].mxu0
        %v5143 = vadd.f32 %v5030, %v5142
        %v5144 = vpop.f32.mrb[0].mxu0
        %v5145 = vadd.f32 %v5032, %v5144
        %5146 = vmatprep.mubr.bf16.mxu0 0
        %5147 = vmatmul.mubr.bf16.gmra.mrb[0].mxu0 %v2902
        %v5148 = vpop.f32.mrb[0].mxu0
        %v5149 = vadd.f32 %v5036, %v5148
        %v5150 = vpop.f32.mrb[0].mxu0
        %v5151 = vadd.f32 %v5038, %v5150
        %v5152 = vpop.f32.mrb[0].mxu0
        %v5153 = vadd.f32 %v5040, %v5152
        %v5154 = vpop.f32.mrb[0].mxu0
        %v5155 = vadd.f32 %v5042, %v5154
        %5156 = vmatprep.mubr.bf16.mxu0 0
        %5157 = vmatmul.mubr.bf16.gmra.mrb[0].mxu0 %v2917
        %v5158 = vpop.f32.mrb[0].mxu0
        %v5159 = vadd.f32 %v5046, %v5158
        %v5160 = vpop.f32.mrb[0].mxu0
        %v5161 = vadd.f32 %v5048, %v5160
        %v5162 = vpop.f32.mrb[0].mxu0
        %v5163 = vadd.f32 %v5050, %v5162
        %v5164 = vpop.f32.mrb[0].mxu0
        %v5165 = vadd.f32 %v5052, %v5164
        %5166 = vmatprep.mubr.bf16.mxu0 0
        %5167 = vmatmul.mubr.bf16.gmra.mrb[0].mxu0 %v2932
        %v5168 = vpop.f32.mrb[0].mxu0
        %v5169 = vadd.f32 %v5056, %v5168
        %v5170 = vpop.f32.mrb[0].mxu0
        %v5171 = vadd.f32 %v5058, %v5170
        %v5172 = vpop.f32.mrb[0].mxu0
        %v5173 = vadd.f32 %v5060, %v5172
        %v5174 = vpop.f32.mrb[0].mxu0
        %v5175 = vadd.f32 %v5062, %v5174
        %5176 = vmatprep.mubr.bf16.mxu0 0
        %5177 = vmatmul.mubr.bf16.gmra.mrb[0].mxu0 %v2947
        %v5178 = vpop.f32.mrb[0].mxu0
        %v5179 = vadd.f32 %v5066, %v5178
        %v5180 = vpop.f32.mrb[0].mxu0
        %v5181 = vadd.f32 %v5068, %v5180
        %v5182 = vpop.f32.mrb[0].mxu0
        %v5183 = vadd.f32 %v5070, %v5182
        %v5184 = vpop.f32.mrb[0].mxu0
        %v5185 = vadd.f32 %v5072, %v5184
        %5186 = vmatprep.mubr.bf16.mxu0 0
        %5187 = vmatmul.mubr.bf16.gmra.mrb[0].mxu0 %v2962
        %v5188 = vpop.f32.mrb[0].mxu0
        %v5189 = vadd.f32 %v5076, %v5188
        %v5190 = vpop.f32.mrb[0].mxu0
        %v5191 = vadd.f32 %v5078, %v5190
        %v5192 = vpop.f32.mrb[0].mxu0
        %v5193 = vadd.f32 %v5080, %v5192
        %v5194 = vpop.f32.mrb[0].mxu0
        %v5195 = vadd.f32 %v5082, %v5194
        %5196 = vmatprep.mubr.bf16.mxu0 0
        %5197 = vmatmul.mubr.bf16.gmra.mrb[0].mxu0 %v2977
        %v5198 = vpop.f32.mrb[0].mxu0
        %v5199 = vadd.f32 %v5086, %v5198
        %v5200 = vpop.f32.mrb[0].mxu0
        %v5201 = vadd.f32 %v5088, %v5200
        %v5202 = vpop.f32.mrb[0].mxu0
        %v5203 = vadd.f32 %v5090, %v5202
        %v5204 = vpop.f32.mrb[0].mxu0
        %v5205 = vadd.f32 %v5092, %v5204
        %5206 = vmatprep.mubr.bf16.mxu0 0
        %5207 = vmatmul.mubr.bf16.gmra.mrb[0].mxu0 %v2992
        %v5208 = vpop.f32.mrb[0].mxu0
        %v5209 = vadd.f32 %v5096, %v5208
        %v5210 = vpop.f32.mrb[0].mxu0
        %v5211 = vadd.f32 %v5098, %v5210
        %v5212 = vpop.f32.mrb[0].mxu0
        %v5213 = vadd.f32 %v5100, %v5212
        %v5214 = vpop.f32.mrb[0].mxu0
        %v5215 = vadd.f32 %v5102, %v5214
        %5216 = vdwg.mxu0
        %v5217 = vmax.f32 %v5139, 0.0
        %v5218 = vmax.f32 %v5141, 0.0
        %v5219 = vmax.f32 %v5143, 0.0
        %v5220 = vmax.f32 %v5145, 0.0
        %v5221 = vmax.f32 %v5149, 0.0
        %v5222 = vmax.f32 %v5151, 0.0
        %v5223 = vmax.f32 %v5153, 0.0
        %v5224 = vmax.f32 %v5155, 0.0
        %v5225 = vmax.f32 %v5159, 0.0
        %v5226 = vmax.f32 %v5161, 0.0
        %v5227 = vmax.f32 %v5163, 0.0
        %v5228 = vmax.f32 %v5165, 0.0
        %v5229 = vmax.f32 %v5169, 0.0
        %v5230 = vmax.f32 %v5171, 0.0
        %v5231 = vmax.f32 %v5173, 0.0
        %v5232 = vmax.f32 %v5175, 0.0
        %v5233 = vmax.f32 %v5179, 0.0
        %v5234 = vmax.f32 %v5181, 0.0
        %v5235 = vmax.f32 %v5183, 0.0
        %v5236 = vmax.f32 %v5185, 0.0
        %v5237 = vmax.f32 %v5189, 0.0
        %v5238 = vmax.f32 %v5191, 0.0
        %v5239 = vmax.f32 %v5193, 0.0
        %v5240 = vmax.f32 %v5195, 0.0
        %v5241 = vmax.f32 %v5199, 0.0
        %v5242 = vmax.f32 %v5201, 0.0
        %v5243 = vmax.f32 %v5203, 0.0
        %v5244 = vmax.f32 %v5205, 0.0
        %v5245 = vmax.f32 %v5209, 0.0
        %v5246 = vmax.f32 %v5211, 0.0
        %v5247 = vmax.f32 %v5213, 0.0
        %v5248 = vmax.f32 %v5215, 0.0
        %vm5281 = vcmask 1046528
        %v5282 = vrot.slane %v5217, 1
        %v5283 = vrot.slane %v5219, 1
        %v5284 = vsel %vm5281, %v5282, %v5283
        %v5285 = vrot.slane %v5218, 1
        %v5286 = vrot.slane %v5220, 1
        %v5287 = vsel %vm5281, %v5285, %v5286
        %v5288 = vrot.slane %v5221, 1
        %v5289 = vsel %vm5281, %v5283, %v5288
        %v5290 = vrot.slane %v5222, 1
        %v5291 = vsel %vm5281, %v5286, %v5290
        %v5292 = vrot.slane %v5223, 1
        %v5293 = vsel %vm5281, %v5288, %v5292
        %v5294 = vrot.slane %v5224, 1
        %v5295 = vsel %vm5281, %v5290, %v5294
        %v5296 = vrot.slane %v5225, 1
        %v5297 = vsel %vm5281, %v5292, %v5296
        %v5298 = vrot.slane %v5226, 1
        %v5299 = vsel %vm5281, %v5294, %v5298
        %v5300 = vrot.slane %v5227, 1
        %v5301 = vsel %vm5281, %v5296, %v5300
        %v5302 = vrot.slane %v5228, 1
        %v5303 = vsel %vm5281, %v5298, %v5302
        %v5304 = vrot.slane %v5229, 1
        %v5305 = vsel %vm5281, %v5300, %v5304
        %v5306 = vrot.slane %v5230, 1
        %v5307 = vsel %vm5281, %v5302, %v5306
        %v5308 = vrot.slane %v5231, 1
        %v5309 = vsel %vm5281, %v5304, %v5308
        %v5310 = vrot.slane %v5232, 1
        %v5311 = vsel %vm5281, %v5306, %v5310
        %v5312 = vrot.slane %v5233, 1
        %v5313 = vsel %vm5281, %v5308, %v5312
        %v5314 = vrot.slane %v5234, 1
        %v5315 = vsel %vm5281, %v5310, %v5314
        %v5316 = vrot.slane %v5235, 1
        %v5317 = vsel %vm5281, %v5312, %v5316
        %v5318 = vrot.slane %v5236, 1
        %v5319 = vsel %vm5281, %v5314, %v5318
        %v5320 = vrot.slane %v5237, 1
        %v5321 = vsel %vm5281, %v5316, %v5320
        %v5322 = vrot.slane %v5238, 1
        %v5323 = vsel %vm5281, %v5318, %v5322
        %v5324 = vrot.slane %v5239, 1
        %v5325 = vsel %vm5281, %v5320, %v5324
        %v5326 = vrot.slane %v5240, 1
        %v5327 = vsel %vm5281, %v5322, %v5326
        %v5328 = vrot.slane %v5241, 1
        %v5329 = vsel %vm5281, %v5324, %v5328
        %v5330 = vrot.slane %v5242, 1
        %v5331 = vsel %vm5281, %v5326, %v5330
        %v5332 = vrot.slane %v5243, 1
        %v5333 = vsel %vm5281, %v5328, %v5332
        %v5334 = vrot.slane %v5244, 1
        %v5335 = vsel %vm5281, %v5330, %v5334
        %v5336 = vrot.slane %v5245, 1
        %v5337 = vsel %vm5281, %v5332, %v5336
        %v5338 = vrot.slane %v5246, 1
        %v5339 = vsel %vm5281, %v5334, %v5338
        %v5340 = vrot.slane %v5247, 1
        %v5341 = vsel %vm5281, %v5336, %v5340
        %v5342 = vrot.slane %v5248, 1
        %v5343 = vsel %vm5281, %v5338, %v5342
        %v5376 = vmax.f32 %v5217, %v5284
        %v5377 = vmax.f32 %v5218, %v5287
        %v5378 = vmax.f32 %v5219, %v5289
        %v5379 = vmax.f32 %v5220, %v5291
        %v5380 = vmax.f32 %v5221, %v5293
        %v5381 = vmax.f32 %v5222, %v5295
        %v5382 = vmax.f32 %v5223, %v5297
        %v5383 = vmax.f32 %v5224, %v5299
        %v5384 = vmax.f32 %v5225, %v5301
        %v5385 = vmax.f32 %v5226, %v5303
        %v5386 = vmax.f32 %v5227, %v5305
        %v5387 = vmax.f32 %v5228, %v5307
        %v5388 = vmax.f32 %v5229, %v5309
        %v5389 = vmax.f32 %v5230, %v5311
        %v5390 = vmax.f32 %v5231, %v5313
        %v5391 = vmax.f32 %v5232, %v5315
        %v5392 = vmax.f32 %v5233, %v5317
        %v5393 = vmax.f32 %v5234, %v5319
        %v5394 = vmax.f32 %v5235, %v5321
        %v5395 = vmax.f32 %v5236, %v5323
        %v5396 = vmax.f32 %v5237, %v5325
        %v5397 = vmax.f32 %v5238, %v5327
        %v5398 = vmax.f32 %v5239, %v5329
        %v5399 = vmax.f32 %v5240, %v5331
        %v5400 = vmax.f32 %v5241, %v5333
        %v5401 = vmax.f32 %v5242, %v5335
        %v5402 = vmax.f32 %v5243, %v5337
        %v5403 = vmax.f32 %v5244, %v5339
        %v5404 = vmax.f32 %v5245, %v5341
        %v5405 = vmax.f32 %v5246, %v5343
        %v5406 = vmax.f32 %v5247, %v5340
        %v5407 = vmax.f32 %v5248, %v5342
        %vm5408 = vcmask 1045504
        %v5409 = vrot.slane %v5217, 2
        %v5410 = vrot.slane %v5219, 2
        %v5411 = vsel %vm5408, %v5409, %v5410
        %v5412 = vrot.slane %v5218, 2
        %v5413 = vrot.slane %v5220, 2
        %v5414 = vsel %vm5408, %v5412, %v5413
        %v5415 = vrot.slane %v5221, 2
        %v5416 = vsel %vm5408, %v5410, %v5415
        %v5417 = vrot.slane %v5222, 2
        %v5418 = vsel %vm5408, %v5413, %v5417
        %v5419 = vrot.slane %v5223, 2
        %v5420 = vsel %vm5408, %v5415, %v5419
        %v5421 = vrot.slane %v5224, 2
        %v5422 = vsel %vm5408, %v5417, %v5421
        %v5423 = vrot.slane %v5225, 2
        %v5424 = vsel %vm5408, %v5419, %v5423
        %v5425 = vrot.slane %v5226, 2
        %v5426 = vsel %vm5408, %v5421, %v5425
        %v5427 = vrot.slane %v5227, 2
        %v5428 = vsel %vm5408, %v5423, %v5427
        %v5429 = vrot.slane %v5228, 2
        %v5430 = vsel %vm5408, %v5425, %v5429
        %v5431 = vrot.slane %v5229, 2
        %v5432 = vsel %vm5408, %v5427, %v5431
        %v5433 = vrot.slane %v5230, 2
        %v5434 = vsel %vm5408, %v5429, %v5433
        %v5435 = vrot.slane %v5231, 2
        %v5436 = vsel %vm5408, %v5431, %v5435
        %v5437 = vrot.slane %v5232, 2
        %v5438 = vsel %vm5408, %v5433, %v5437
        %v5439 = vrot.slane %v5233, 2
        %v5440 = vsel %vm5408, %v5435, %v5439
        %v5441 = vrot.slane %v5234, 2
        %v5442 = vsel %vm5408, %v5437, %v5441
        %v5443 = vrot.slane %v5235, 2
        %v5444 = vsel %vm5408, %v5439, %v5443
        %v5445 = vrot.slane %v5236, 2
        %v5446 = vsel %vm5408, %v5441, %v5445
        %v5447 = vrot.slane %v5237, 2
        %v5448 = vsel %vm5408, %v5443, %v5447
        %v5449 = vrot.slane %v5238, 2
        %v5450 = vsel %vm5408, %v5445, %v5449
        %v5451 = vrot.slane %v5239, 2
        %v5452 = vsel %vm5408, %v5447, %v5451
        %v5453 = vrot.slane %v5240, 2
        %v5454 = vsel %vm5408, %v5449, %v5453
        %v5455 = vrot.slane %v5241, 2
        %v5456 = vsel %vm5408, %v5451, %v5455
        %v5457 = vrot.slane %v5242, 2
        %v5458 = vsel %vm5408, %v5453, %v5457
        %v5459 = vrot.slane %v5243, 2
        %v5460 = vsel %vm5408, %v5455, %v5459
        %v5461 = vrot.slane %v5244, 2
        %v5462 = vsel %vm5408, %v5457, %v5461
        %v5463 = vrot.slane %v5245, 2
        %v5464 = vsel %vm5408, %v5459, %v5463
        %v5465 = vrot.slane %v5246, 2
        %v5466 = vsel %vm5408, %v5461, %v5465
        %v5467 = vrot.slane %v5247, 2
        %v5468 = vsel %vm5408, %v5463, %v5467
        %v5469 = vrot.slane %v5248, 2
        %v5470 = vsel %vm5408, %v5465, %v5469
        %v5503 = vmax.f32 %v5376, %v5411
        %v5504 = vmax.f32 %v5377, %v5414
        %v5505 = vmax.f32 %v5378, %v5416
        %v5506 = vmax.f32 %v5379, %v5418
        %v5507 = vmax.f32 %v5380, %v5420
        %v5508 = vmax.f32 %v5381, %v5422
        %v5509 = vmax.f32 %v5382, %v5424
        %v5510 = vmax.f32 %v5383, %v5426
        %v5511 = vmax.f32 %v5384, %v5428
        %v5512 = vmax.f32 %v5385, %v5430
        %v5513 = vmax.f32 %v5386, %v5432
        %v5514 = vmax.f32 %v5387, %v5434
        %v5515 = vmax.f32 %v5388, %v5436
        %v5516 = vmax.f32 %v5389, %v5438
        %v5517 = vmax.f32 %v5390, %v5440
        %v5518 = vmax.f32 %v5391, %v5442
        %v5519 = vmax.f32 %v5392, %v5444
        %v5520 = vmax.f32 %v5393, %v5446
        %v5521 = vmax.f32 %v5394, %v5448
        %v5522 = vmax.f32 %v5395, %v5450
        %v5523 = vmax.f32 %v5396, %v5452
        %v5524 = vmax.f32 %v5397, %v5454
        %v5525 = vmax.f32 %v5398, %v5456
        %v5526 = vmax.f32 %v5399, %v5458
        %v5527 = vmax.f32 %v5400, %v5460
        %v5528 = vmax.f32 %v5401, %v5462
        %v5529 = vmax.f32 %v5402, %v5464
        %v5530 = vmax.f32 %v5403, %v5466
        %v5531 = vmax.f32 %v5404, %v5468
        %v5532 = vmax.f32 %v5405, %v5470
        %v5533 = vmax.f32 %v5406, %v5467
        %v5534 = vmax.f32 %v5407, %v5469
        %vm5535 = vcmask 1044480
        %v5536 = vrot.slane %v5217, 3
        %v5537 = vrot.slane %v5219, 3
        %v5538 = vsel %vm5535, %v5536, %v5537
        %v5539 = vrot.slane %v5218, 3
        %v5540 = vrot.slane %v5220, 3
        %v5541 = vsel %vm5535, %v5539, %v5540
        %v5542 = vrot.slane %v5221, 3
        %v5543 = vsel %vm5535, %v5537, %v5542
        %v5544 = vrot.slane %v5222, 3
        %v5545 = vsel %vm5535, %v5540, %v5544
        %v5546 = vrot.slane %v5223, 3
        %v5547 = vsel %vm5535, %v5542, %v5546
        %v5548 = vrot.slane %v5224, 3
        %v5549 = vsel %vm5535, %v5544, %v5548
        %v5550 = vrot.slane %v5225, 3
        %v5551 = vsel %vm5535, %v5546, %v5550
        %v5552 = vrot.slane %v5226, 3
        %v5553 = vsel %vm5535, %v5548, %v5552
        %v5554 = vrot.slane %v5227, 3
        %v5555 = vsel %vm5535, %v5550, %v5554
        %v5556 = vrot.slane %v5228, 3
        %v5557 = vsel %vm5535, %v5552, %v5556
        %v5558 = vrot.slane %v5229, 3
        %v5559 = vsel %vm5535, %v5554, %v5558
        %v5560 = vrot.slane %v5230, 3
        %v5561 = vsel %vm5535, %v5556, %v5560
        %v5562 = vrot.slane %v5231, 3
        %v5563 = vsel %vm5535, %v5558, %v5562
        %v5564 = vrot.slane %v5232, 3
        %v5565 = vsel %vm5535, %v5560, %v5564
        %v5566 = vrot.slane %v5233, 3
        %v5567 = vsel %vm5535, %v5562, %v5566
        %v5568 = vrot.slane %v5234, 3
        %v5569 = vsel %vm5535, %v5564, %v5568
        %v5570 = vrot.slane %v5235, 3
        %v5571 = vsel %vm5535, %v5566, %v5570
        %v5572 = vrot.slane %v5236, 3
        %v5573 = vsel %vm5535, %v5568, %v5572
        %v5574 = vrot.slane %v5237, 3
        %v5575 = vsel %vm5535, %v5570, %v5574
        %v5576 = vrot.slane %v5238, 3
        %v5577 = vsel %vm5535, %v5572, %v5576
        %v5578 = vrot.slane %v5239, 3
        %v5579 = vsel %vm5535, %v5574, %v5578
        %v5580 = vrot.slane %v5240, 3
        %v5581 = vsel %vm5535, %v5576, %v5580
        %v5582 = vrot.slane %v5241, 3
        %v5583 = vsel %vm5535, %v5578, %v5582
        %v5584 = vrot.slane %v5242, 3
        %v5585 = vsel %vm5535, %v5580, %v5584
        %v5586 = vrot.slane %v5243, 3
        %v5587 = vsel %vm5535, %v5582, %v5586
        %v5588 = vrot.slane %v5244, 3
        %v5589 = vsel %vm5535, %v5584, %v5588
        %v5590 = vrot.slane %v5245, 3
        %v5591 = vsel %vm5535, %v5586, %v5590
        %v5592 = vrot.slane %v5246, 3
        %v5593 = vsel %vm5535, %v5588, %v5592
        %v5594 = vrot.slane %v5247, 3
        %v5595 = vsel %vm5535, %v5590, %v5594
        %v5596 = vrot.slane %v5248, 3
        %v5597 = vsel %vm5535, %v5592, %v5596
        %v5630 = vmax.f32 %v5503, %v5538
        %v5631 = vmax.f32 %v5504, %v5541
        %v5632 = vmax.f32 %v5505, %v5543
        %v5633 = vmax.f32 %v5506, %v5545
        %v5634 = vmax.f32 %v5507, %v5547
        %v5635 = vmax.f32 %v5508, %v5549
        %v5636 = vmax.f32 %v5509, %v5551
        %v5637 = vmax.f32 %v5510, %v5553
        %v5638 = vmax.f32 %v5511, %v5555
        %v5639 = vmax.f32 %v5512, %v5557
        %v5640 = vmax.f32 %v5513, %v5559
        %v5641 = vmax.f32 %v5514, %v5561
        %v5642 = vmax.f32 %v5515, %v5563
        %v5643 = vmax.f32 %v5516, %v5565
        %v5644 = vmax.f32 %v5517, %v5567
        %v5645 = vmax.f32 %v5518, %v5569
        %v5646 = vmax.f32 %v5519, %v5571
        %v5647 = vmax.f32 %v5520, %v5573
        %v5648 = vmax.f32 %v5521, %v5575
        %v5649 = vmax.f32 %v5522, %v5577
        %v5650 = vmax.f32 %v5523, %v5579
        %v5651 = vmax.f32 %v5524, %v5581
        %v5652 = vmax.f32 %v5525, %v5583
        %v5653 = vmax.f32 %v5526, %v5585
        %v5654 = vmax.f32 %v5527, %v5587
        %v5655 = vmax.f32 %v5528, %v5589
        %v5656 = vmax.f32 %v5529, %v5591
        %v5657 = vmax.f32 %v5530, %v5593
        %v5658 = vmax.f32 %v5531, %v5595
        %v5659 = vmax.f32 %v5532, %v5597
        %v5660 = vmax.f32 %v5533, %v5594
        %v5661 = vmax.f32 %v5534, %v5596
        %vm5662 = vcmask 1043456
        %v5663 = vrot.slane %v5217, 4
        %v5664 = vrot.slane %v5219, 4
        %v5665 = vsel %vm5662, %v5663, %v5664
        %v5666 = vrot.slane %v5218, 4
        %v5667 = vrot.slane %v5220, 4
        %v5668 = vsel %vm5662, %v5666, %v5667
        %v5669 = vrot.slane %v5221, 4
        %v5670 = vsel %vm5662, %v5664, %v5669
        %v5671 = vrot.slane %v5222, 4
        %v5672 = vsel %vm5662, %v5667, %v5671
        %v5673 = vrot.slane %v5223, 4
        %v5674 = vsel %vm5662, %v5669, %v5673
        %v5675 = vrot.slane %v5224, 4
        %v5676 = vsel %vm5662, %v5671, %v5675
        %v5677 = vrot.slane %v5225, 4
        %v5678 = vsel %vm5662, %v5673, %v5677
        %v5679 = vrot.slane %v5226, 4
        %v5680 = vsel %vm5662, %v5675, %v5679
        %v5681 = vrot.slane %v5227, 4
        %v5682 = vsel %vm5662, %v5677, %v5681
        %v5683 = vrot.slane %v5228, 4
        %v5684 = vsel %vm5662, %v5679, %v5683
        %v5685 = vrot.slane %v5229, 4
        %v5686 = vsel %vm5662, %v5681, %v5685
        %v5687 = vrot.slane %v5230, 4
        %v5688 = vsel %vm5662, %v5683, %v5687
        %v5689 = vrot.slane %v5231, 4
        %v5690 = vsel %vm5662, %v5685, %v5689
        %v5691 = vrot.slane %v5232, 4
        %v5692 = vsel %vm5662, %v5687, %v5691
        %v5693 = vrot.slane %v5233, 4
        %v5694 = vsel %vm5662, %v5689, %v5693
        %v5695 = vrot.slane %v5234, 4
        %v5696 = vsel %vm5662, %v5691, %v5695
        %v5697 = vrot.slane %v5235, 4
        %v5698 = vsel %vm5662, %v5693, %v5697
        %v5699 = vrot.slane %v5236, 4
        %v5700 = vsel %vm5662, %v5695, %v5699
        %v5701 = vrot.slane %v5237, 4
        %v5702 = vsel %vm5662, %v5697, %v5701
        %v5703 = vrot.slane %v5238, 4
        %v5704 = vsel %vm5662, %v5699, %v5703
        %v5705 = vrot.slane %v5239, 4
        %v5706 = vsel %vm5662, %v5701, %v5705
        %v5707 = vrot.slane %v5240, 4
        %v5708 = vsel %vm5662, %v5703, %v5707
        %v5709 = vrot.slane %v5241, 4
        %v5710 = vsel %vm5662, %v5705, %v5709
        %v5711 = vrot.slane %v5242, 4
        %v5712 = vsel %vm5662, %v5707, %v5711
        %v5713 = vrot.slane %v5243, 4
        %v5714 = vsel %vm5662, %v5709, %v5713
        %v5715 = vrot.slane %v5244, 4
        %v5716 = vsel %vm5662, %v5711, %v5715
        %v5717 = vrot.slane %v5245, 4
        %v5718 = vsel %vm5662, %v5713, %v5717
        %v5719 = vrot.slane %v5246, 4
        %v5720 = vsel %vm5662, %v5715, %v5719
        %v5721 = vrot.slane %v5247, 4
        %v5722 = vsel %vm5662, %v5717, %v5721
        %v5723 = vrot.slane %v5248, 4
        %v5724 = vsel %vm5662, %v5719, %v5723
        %v5757 = vmax.f32 %v5630, %v5665
        %v5758 = vmax.f32 %v5631, %v5668
        %v5759 = vmax.f32 %v5632, %v5670
        %v5760 = vmax.f32 %v5633, %v5672
        %v5761 = vmax.f32 %v5634, %v5674
        %v5762 = vmax.f32 %v5635, %v5676
        %v5763 = vmax.f32 %v5636, %v5678
        %v5764 = vmax.f32 %v5637, %v5680
        %v5765 = vmax.f32 %v5638, %v5682
        %v5766 = vmax.f32 %v5639, %v5684
        %v5767 = vmax.f32 %v5640, %v5686
        %v5768 = vmax.f32 %v5641, %v5688
        %v5769 = vmax.f32 %v5642, %v5690
        %v5770 = vmax.f32 %v5643, %v5692
        %v5771 = vmax.f32 %v5644, %v5694
        %v5772 = vmax.f32 %v5645, %v5696
        %v5773 = vmax.f32 %v5646, %v5698
        %v5774 = vmax.f32 %v5647, %v5700
        %v5775 = vmax.f32 %v5648, %v5702
        %v5776 = vmax.f32 %v5649, %v5704
        %v5777 = vmax.f32 %v5650, %v5706
        %v5778 = vmax.f32 %v5651, %v5708
        %v5779 = vmax.f32 %v5652, %v5710
        %v5780 = vmax.f32 %v5653, %v5712
        %v5781 = vmax.f32 %v5654, %v5714
        %v5782 = vmax.f32 %v5655, %v5716
        %v5783 = vmax.f32 %v5656, %v5718
        %v5784 = vmax.f32 %v5657, %v5720
        %v5785 = vmax.f32 %v5658, %v5722
        %v5786 = vmax.f32 %v5659, %v5724
        %v5787 = vmax.f32 %v5660, %v5721
        %v5788 = vmax.f32 %v5661, %v5723
        %v5789 = vlaneseq
        %v5790 = vshrl.u32 %v5789, 7
        %v5791 = vadd.s32 %v5790, 8
        %v5792 = vadd.s32 %v5790, 16
        %v5793 = vadd.s32 %v5790, 24
        %v5794 = vlaneseq
        %v5795 = vand.u32 %v5794, 127
        %v5796 = vmul.u32 %v5790, 5
        %v5797 = vmul.u32 %v5791, 5
        %v5798 = vmul.u32 %v5792, 5
        %v5799 = vmul.u32 %v5793, 5
        %vm5800 = vcmp.eq.s32.totalorder %v5795, %v5796
        %vm5801 = vcmp.eq.s32.totalorder %v5795, %v5797
        %vm5802 = vcmp.eq.s32.totalorder %v5795, %v5798
        %vm5803 = vcmp.eq.s32.totalorder %v5795, %v5799
        %v5804 = vsel %vm5800, 1, 0
        %v5805 = vsel %vm5801, 1, 0
        %v5806 = vsel %vm5802, 1, 0
        %v5807 = vsel %vm5803, 1, 0
        %v5808 = vcvt.s32.f32 %v5804
        %v5809 = vcvt.s32.f32 %v5805
        %v5810 = vcvt.s32.f32 %v5806
        %v5811 = vcvt.s32.f32 %v5807
        %vm5812 = vcmask 990208
        %v5814 = vsel %vm5812, %v5808, 0
        %v5817 = vsel %vm5812, %v5809, 0
        %v5820 = vsel %vm5812, %v5810, 0
        %v5823 = vsel %vm5812, %v5811, 0
        %vm5825 = vcmask 1040384
        %v5827 = vsel %vm5825, %v5787, 0
        %v5830 = vsel %vm5825, %v5788, 0
        %5832 = vmatprep.subr.mxu0 %v5758
        %5833 = vmatpush1.msra.mxu0 %v5757
        %5834 = vmatprep.subr.mxu0 %v5760
        %5835 = vmatpush1.msra.mxu0 %v5759
        %5836 = vmatprep.subr.mxu0 %v5762
        %5837 = vmatpush1.msra.mxu0 %v5761
        %5838 = vmatprep.subr.mxu0 %v5764
        %5839 = vmatpush1.msra.mxu0 %v5763
        %5840 = vmatprep.subr.mxu0 %v5766
        %5841 = vmatpush1.msra.mxu0 %v5765
        %5842 = vmatprep.subr.mxu0 %v5768
        %5843 = vmatpush1.msra.mxu0 %v5767
        %5844 = vmatprep.subr.mxu0 %v5770
        %5845 = vmatpush1.msra.mxu0 %v5769
        %5846 = vmatprep.subr.mxu0 %v5772
        %5847 = vmatpush1.msra.mxu0 %v5771
        %5848 = vmatprep.subr.mxu0 %v5774
        %5849 = vmatpush1.msra.mxu0 %v5773
        %5850 = vmatprep.subr.mxu0 %v5776
        %5851 = vmatpush1.msra.mxu0 %v5775
        %5852 = vmatprep.subr.mxu0 %v5778
        %5853 = vmatpush1.msra.mxu0 %v5777
        %5854 = vmatprep.subr.mxu0 %v5780
        %5855 = vmatpush1.msra.mxu0 %v5779
        %5856 = vmatprep.subr.mxu0 %v5782
        %5857 = vmatpush1.msra.mxu0 %v5781
        %5858 = vmatprep.subr.mxu0 %v5784
        %5859 = vmatpush1.msra.mxu0 %v5783
        %5860 = vmatprep.subr.mxu0 %v5786
        %5861 = vmatpush1.msra.mxu0 %v5785
        %5862 = vmatprep.subr.mxu0 %v5830
        %5863 = vmatpush1.msra.mxu0 %v5827
        %5864 = vmatprep.subr.mxu0 0.0
        %5865 = vmatpush1.msra.mxu0 0.0
        %5866 = vmatprep.subr.mxu0 0.0
        %5867 = vmatpush1.msra.mxu0 0.0
        %5868 = vmatprep.subr.mxu0 0.0
        %5869 = vmatpush1.msra.mxu0 0.0
        %5870 = vmatprep.subr.mxu0 0.0
        %5871 = vmatpush1.msra.mxu0 0.0
        %5872 = vmatprep.subr.mxu0 0.0
        %5873 = vmatpush1.msra.mxu0 0.0
        %5874 = vmatprep.subr.mxu0 0.0
        %5875 = vmatpush1.msra.mxu0 0.0
        %5876 = vmatprep.subr.mxu0 0.0
        %5877 = vmatpush1.msra.mxu0 0.0
        %5878 = vmatprep.subr.mxu0 0.0
        %5879 = vmatpush1.msra.mxu0 0.0
        %5880 = vmatprep.subr.mxu0 0.0
        %5881 = vmatpush1.msra.mxu0 0.0
        %5882 = vmatprep.subr.mxu0 0.0
        %5883 = vmatpush1.msra.mxu0 0.0
        %5884 = vmatprep.subr.mxu0 0.0
        %5885 = vmatpush1.msra.mxu0 0.0
        %5886 = vmatprep.subr.mxu0 0.0
        %5887 = vmatpush1.msra.mxu0 0.0
        %5888 = vmatprep.subr.mxu0 0.0
        %5889 = vmatpush1.msra.mxu0 0.0
        %5890 = vmatprep.subr.mxu0 0.0
        %5891 = vmatpush1.msra.mxu0 0.0
        %5892 = vmatprep.subr.mxu0 0.0
        %5893 = vmatpush1.msra.mxu0 0.0
        %5894 = vmatprep.subr.mxu0 0.0
        %5895 = vmatpush1.msra.mxu0 0.0
        %5896 = vmatprep.mubr.f32.mxu0 0.0
        %5897 = vmatmul.mubr.f32.gmra.mrb[0].mxu0 %v5814
        %v5898 = vpop.f32.mrb[0].mxu0
        %v5899 = vadd.f32 0.0, %v5898
        %v5900 = vpop.f32.mrb[0].mxu0
        %v5901 = vadd.f32 0.0, %v5900
        %5902 = vmatprep.mubr.f32.mxu0 0.0
        %5903 = vmatmul.mubr.f32.gmra.mrb[0].mxu0 %v5817
        %v5904 = vpop.f32.mrb[0].mxu0
        %v5905 = vadd.f32 0.0, %v5904
        %v5906 = vpop.f32.mrb[0].mxu0
        %v5907 = vadd.f32 0.0, %v5906
        %5908 = vmatprep.mubr.f32.mxu0 0.0
        %5909 = vmatmul.mubr.f32.gmra.mrb[0].mxu0 %v5820
        %v5910 = vpop.f32.mrb[0].mxu0
        %v5911 = vadd.f32 0.0, %v5910
        %v5912 = vpop.f32.mrb[0].mxu0
        %v5913 = vadd.f32 0.0, %v5912
        %5914 = vmatprep.mubr.f32.mxu0 0.0
        %5915 = vmatmul.mubr.f32.gmra.mrb[0].mxu0 %v5823
        %v5916 = vpop.f32.mrb[0].mxu0
        %v5917 = vadd.f32 0.0, %v5916
        %v5918 = vpop.f32.mrb[0].mxu0
        %v5919 = vadd.f32 0.0, %v5918
        %5920 = vdwg.mxu0
        %5921 = vst [vmem:[%s345] sm:$0xff] %v5899
        %vm5922 = vcmask 261120
        %5923 = vst.msk [vmem:[%s345 + $0x8] sm:$0xff] %vm5922, %v5901
        %5924 = vst [vmem:[%s345 + $0x10] sm:$0xff] %v5905
        %5925 = vst.msk [vmem:[%s345 + $0x18] sm:$0xff] %vm5922, %v5907
        %5926 = vst [vmem:[%s345 + $0x20] sm:$0xff] %v5911
        %5927 = vst.msk [vmem:[%s345 + $0x28] sm:$0xff] %vm5922, %v5913
        %5928 = vst [vmem:[%s345 + $0x30] sm:$0x1] %v5917
        %vm5929 = vcmask 253952
        %5930 = vst.msk [vmem:[%s345 + $0x38] sm:$0x1] %vm5929, %v5919
        %5931 = vst [vmem:[#allocation4] sm:$0xff] 0.0
        %5932 = vst [vmem:[#allocation4 + $0x8] sm:$0xff] 0.0
        %5933 = vst [vmem:[#allocation4 + $0x10] sm:$0xff] 0.0
        %5934 = vst [vmem:[#allocation4 + $0x18] sm:$0xff] 0.0
        %5935 = vst [vmem:[#allocation4 + $0x20] sm:$0xff] 0.0
        %5936 = vst [vmem:[#allocation4 + $0x28] sm:$0xff] 0.0
        %5937 = vst [vmem:[#allocation4 + $0x30] sm:$0xff] 0.0
        %5938 = vst [vmem:[#allocation4 + $0x38] sm:$0xff] 0.0
        %5939 = vst [vmem:[#allocation4 + $0x40] sm:$0xff] 0.0
        %5940 = vst [vmem:[#allocation4 + $0x48] sm:$0xff] 0.0
        %5941 = vst [vmem:[#allocation4 + $0x10] sm:$0xff] %v5899
        %5942 = vst [vmem:[#allocation4 + $0x18] sm:$0xff] %v5901
        %5943 = vst [vmem:[#allocation4 + $0x20] sm:$0xff] %v5905
        %5944 = vst [vmem:[#allocation4 + $0x28] sm:$0xff] %v5907
        %5945 = vst [vmem:[#allocation4 + $0x30] sm:$0xff] %v5911
        %5946 = vst [vmem:[#allocation4 + $0x38] sm:$0xff] %v5913
        %5947 = vst [vmem:[#allocation4 + $0x40] sm:$0x1] %v5917
        %5948 = vst [vmem:[#allocation4 + $0x48] sm:$0x1] %v5919
        %v5949 = vld [vmem:[#allocation4] sm:$0xff]
        %v5950 = vld [vmem:[#allocation4 + $0x8] sm:$0xff]
        %v5951 = vld [vmem:[#allocation4 + $0x10] sm:$0xff]
        %v5952 = vld [vmem:[#allocation4 + $0x18] sm:$0xff]
        %v5953 = vld [vmem:[#allocation4 + $0x20] sm:$0xff]
        %v5954 = vld [vmem:[#allocation4 + $0x28] sm:$0xff]
        %v5955 = vld [vmem:[#allocation4 + $0x30] sm:$0xff]
        %v5956 = vld [vmem:[#allocation4 + $0x38] sm:$0xff]
        %v5957 = vld [vmem:[#allocation4 + $0x40] sm:$0xff]
        %v5958 = vld [vmem:[#allocation4 + $0x48] sm:$0xff]
        %v5959 = vpack.c.bf16 %v5951, %v5949
        %v5960 = vpack.c.bf16 %v5952, %v5950
        %v5961 = vpack.c.bf16 %v5955, %v5953
        %v5962 = vpack.c.bf16 %v5956, %v5954
        %v5967 = vunpack.c.l.b16 %v5959
        %v5968 = vunpack.c.l.b16 %v5960
        %v5969 = vunpack.c.h.b16 %v5959
        %v5970 = vunpack.c.h.b16 %v5960
        %v5971 = vunpack.c.l.b16 %v5961
        %v5972 = vunpack.c.l.b16 %v5962
        %v5973 = vunpack.c.h.b16 %v5961
        %v5974 = vunpack.c.h.b16 %v5962
        %v5975 = vpack.c.b16 %v5968, %v5967
        %v5976 = vpack.c.b16 %v5970, %v5969
        %v5977 = vpack.c.b16 %v5972, %v5971
        %v5978 = vpack.c.b16 %v5974, %v5973
        %v5980 = vshrl.u32 %v5975, 16
        %v5982 = vrot.slane %v5980, 4
        %v5983 = vshll.u32 %v5975, 16
        %v5985 = vrot.slane %v5983, 5
        %v5986 = vor.u32 %v5982, %v5985
        %v5987 = vrot.slane %v5986, 4
        %v5989 = vshll.u32 %v5976, 16
        %v5991 = vrot.slane %v5989, 5
        %v5992 = vsel %vm467, %v5987, %v5991
        %v5993 = vshrl.u32 %v5976, 16
        %v5995 = vrot.slane %v5993, 4
        %v5996 = vor.u32 %v5995, %v5991
        %v5997 = vrot.slane %v5996, 4
        %v5999 = vshll.u32 %v5977, 16
        %v6001 = vrot.slane %v5999, 5
        %v6002 = vsel %vm467, %v5997, %v6001
        %v6003 = vshrl.u32 %v5977, 16
        %v6005 = vrot.slane %v6003, 4
        %v6006 = vor.u32 %v6005, %v6001
        %v6007 = vrot.slane %v6006, 4
        %v6009 = vshll.u32 %v5978, 16
        %v6011 = vrot.slane %v6009, 5
        %v6012 = vsel %vm467, %v6007, %v6011
        %v6013 = vshrl.u32 %v5978, 16
        %v6015 = vrot.slane %v6013, 4
        %v6016 = vrot.slane %v6015, 4
        %6021 = vst [vmem:[#allocation5] sm:$0xff] %v5992
        %6022 = vst [vmem:[#allocation5 + $0x78] sm:$0xff] %v6002
        %6023 = vst [vmem:[#allocation5 + $0xf0] sm:$0xff] %v6012
        %vm6024 = vmand %vm1077, %vm1163
        %vm6025 = vsmask.f32 4352
        %vm6026 = vmand %vm1078, %vm6025
        %vm6027 = vmor %vm6026, %vm6024
        %v6028 = vld [vmem:[#allocation5 + $0x168] sm:$0x11]
        %v6029 = vsel %vm6027, %v6016, %v6028
        %6030 = vst [vmem:[#allocation5 + $0x168] sm:$0x11] %v6029
        %v6031 = vrot.slane %v5975, 5
        %v6032 = vrot.slane %v6031, 4
        %v6033 = vrot.slane %v5976, 5
        %v6034 = vsel %vm665, %v6032, %v6033
        %v6035 = vrot.slane %v6033, 4
        %v6036 = vrot.slane %v5977, 5
        %v6037 = vsel %vm665, %v6035, %v6036
        %v6038 = vrot.slane %v6036, 4
        %v6039 = vrot.slane %v5978, 5
        %v6040 = vsel %vm665, %v6038, %v6039
        %v6041 = vrot.slane %v6039, 4
        %6046 = vst [vmem:[#allocation5 + $0x8] sm:$0xff] %v6034
        %6047 = vst [vmem:[#allocation5 + $0x80] sm:$0xff] %v6037
        %6048 = vst [vmem:[#allocation5 + $0xf8] sm:$0xff] %v6040
        %v6049 = vld [vmem:[#allocation5 + $0x170] sm:$0x11]
        %v6050 = vsel %vm6027, %v6041, %v6049
        %6051 = vst [vmem:[#allocation5 + $0x170] sm:$0x11] %v6050
        %v6052 = vrot.slane %v5980, 5
        %v6053 = vrot.slane %v5983, 6
        %v6054 = vor.u32 %v6052, %v6053
        %v6055 = vrot.slane %v6054, 4
        %v6056 = vrot.slane %v5993, 5
        %v6057 = vrot.slane %v5989, 6
        %v6058 = vor.u32 %v6056, %v6057
        %v6059 = vsel %vm748, %v6055, %v6058
        %v6060 = vrot.slane %v6058, 4
        %v6061 = vrot.slane %v6003, 5
        %v6062 = vrot.slane %v5999, 6
        %v6063 = vor.u32 %v6061, %v6062
        %v6064 = vsel %vm748, %v6060, %v6063
        %v6065 = vrot.slane %v6063, 4
        %v6066 = vrot.slane %v6013, 5
        %v6067 = vrot.slane %v6009, 6
        %v6068 = vor.u32 %v6066, %v6067
        %v6069 = vsel %vm748, %v6065, %v6068
        %v6070 = vrot.slane %v6066, 4
        %6075 = vst [vmem:[#allocation5 + $0x10] sm:$0xff] %v6059
        %6076 = vst [vmem:[#allocation5 + $0x88] sm:$0xff] %v6064
        %6077 = vst [vmem:[#allocation5 + $0x100] sm:$0xff] %v6069
        %v6078 = vld [vmem:[#allocation5 + $0x178] sm:$0x11]
        %v6079 = vsel %vm6027, %v6070, %v6078
        %6080 = vst [vmem:[#allocation5 + $0x178] sm:$0x11] %v6079
        %v6081 = vrot.slane %v5975, 6
        %v6082 = vrot.slane %v6081, 4
        %v6083 = vrot.slane %v5976, 6
        %v6084 = vsel %vm868, %v6082, %v6083
        %v6085 = vrot.slane %v6083, 4
        %v6086 = vrot.slane %v5977, 6
        %v6087 = vsel %vm868, %v6085, %v6086
        %v6088 = vrot.slane %v6086, 4
        %v6089 = vrot.slane %v5978, 6
        %v6090 = vsel %vm868, %v6088, %v6089
        %v6091 = vrot.slane %v6089, 4
        %6096 = vst [vmem:[#allocation5 + $0x18] sm:$0xff] %v6084
        %6097 = vst [vmem:[#allocation5 + $0x90] sm:$0xff] %v6087
        %6098 = vst [vmem:[#allocation5 + $0x108] sm:$0xff] %v6090
        %v6099 = vld [vmem:[#allocation5 + $0x180] sm:$0x11]
        %v6100 = vsel %vm6027, %v6091, %v6099
        %6101 = vst [vmem:[#allocation5 + $0x180] sm:$0x11] %v6100
        %v6102 = vrot.slane %v5980, 6
        %v6103 = vrot.slane %v5983, 7
        %v6104 = vor.u32 %v6102, %v6103
        %v6105 = vrot.slane %v6104, 4
        %v6106 = vrot.slane %v5993, 6
        %v6107 = vrot.slane %v5989, 7
        %v6108 = vor.u32 %v6106, %v6107
        %v6109 = vsel %vm954, %v6105, %v6108
        %v6110 = vrot.slane %v6108, 4
        %v6111 = vrot.slane %v6003, 6
        %v6112 = vrot.slane %v5999, 7
        %v6113 = vor.u32 %v6111, %v6112
        %v6114 = vsel %vm954, %v6110, %v6113
        %v6115 = vrot.slane %v6113, 4
        %v6116 = vrot.slane %v6013, 6
        %v6117 = vrot.slane %v6009, 7
        %v6118 = vor.u32 %v6116, %v6117
        %v6119 = vsel %vm954, %v6115, %v6118
        %v6120 = vrot.slane %v6116, 4
        %6125 = vst [vmem:[#allocation5 + $0x20] sm:$0xff] %v6109
        %6126 = vst [vmem:[#allocation5 + $0x98] sm:$0xff] %v6114
        %6127 = vst [vmem:[#allocation5 + $0x110] sm:$0xff] %v6119
        %v6128 = vld [vmem:[#allocation5 + $0x188] sm:$0x11]
        %v6129 = vsel %vm6027, %v6120, %v6128
        %6130 = vst [vmem:[#allocation5 + $0x188] sm:$0x11] %v6129
        %v6131 = vrot.slane %v5975, 7
        %v6132 = vrot.slane %v6131, 4
        %v6133 = vrot.slane %v5976, 7
        %v6134 = vsel %vm1079, %v6132, %v6133
        %v6135 = vrot.slane %v6133, 4
        %v6136 = vrot.slane %v5977, 7
        %v6137 = vsel %vm1079, %v6135, %v6136
        %v6138 = vrot.slane %v6136, 4
        %v6139 = vrot.slane %v5978, 7
        %v6140 = vsel %vm1079, %v6138, %v6139
        %v6141 = vrot.slane %v6139, 4
        %6146 = vst [vmem:[#allocation5 + $0x28] sm:$0xff] %v6134
        %6147 = vst [vmem:[#allocation5 + $0xa0] sm:$0xff] %v6137
        %6148 = vst [vmem:[#allocation5 + $0x118] sm:$0xff] %v6140
        %v6149 = vld [vmem:[#allocation5 + $0x190] sm:$0x11]
        %v6150 = vsel %vm6027, %v6141, %v6149
        %6151 = vst [vmem:[#allocation5 + $0x190] sm:$0x11] %v6150
        %v6152 = vrot.slane %v5980, 7
        %v6153 = vrot.slane %v6152, 4
        %v6154 = vrot.slane %v5993, 7
        %v6155 = vor.u32 %v6154, %v5989
        %v6156 = vsel %vm1165, %v6153, %v6155
        %v6157 = vrot.slane %v6154, 4
        %v6158 = vrot.slane %v6003, 7
        %v6159 = vor.u32 %v6158, %v5999
        %v6160 = vsel %vm1165, %v6157, %v6159
        %v6161 = vrot.slane %v6158, 4
        %v6162 = vrot.slane %v6013, 7
        %v6163 = vor.u32 %v6162, %v6009
        %v6164 = vsel %vm1165, %v6161, %v6163
        %v6165 = vrot.slane %v6162, 4
        %6170 = vst [vmem:[#allocation5 + $0x30] sm:$0xff] %v6156
        %6171 = vst [vmem:[#allocation5 + $0xa8] sm:$0xff] %v6160
        %6172 = vst [vmem:[#allocation5 + $0x120] sm:$0xff] %v6164
        %v6173 = vld [vmem:[#allocation5 + $0x198] sm:$0x11]
        %v6174 = vsel %vm6027, %v6165, %v6173
        %6175 = vst [vmem:[#allocation5 + $0x198] sm:$0x11] %v6174
        %v6176 = vpack.c.bf16 %v5953, %v5951
        %v6177 = vpack.c.bf16 %v5954, %v5952
        %v6178 = vpack.c.bf16 %v5957, %v5955
        %v6179 = vpack.c.bf16 %v5958, %v5956
        %v6184 = vunpack.c.l.b16 %v6176
        %v6185 = vunpack.c.l.b16 %v6177
        %v6186 = vunpack.c.h.b16 %v6176
        %v6187 = vunpack.c.h.b16 %v6177
        %v6188 = vunpack.c.l.b16 %v6178
        %v6189 = vunpack.c.l.b16 %v6179
        %v6190 = vunpack.c.h.b16 %v6178
        %v6191 = vunpack.c.h.b16 %v6179
        %v6192 = vpack.c.b16 %v6185, %v6184
        %v6193 = vpack.c.b16 %v6187, %v6186
        %v6194 = vpack.c.b16 %v6189, %v6188
        %v6195 = vpack.c.b16 %v6191, %v6190
        %6200 = vst [vmem:[#allocation5 + $0x38] sm:$0xff] %v6192
        %6201 = vst [vmem:[#allocation5 + $0xb0] sm:$0xff] %v6193
        %6202 = vst [vmem:[#allocation5 + $0x128] sm:$0xff] %v6194
        %v6203 = vld [vmem:[#allocation5 + $0x1a0] sm:$0x11]
        %v6204 = vsel %vm6027, %v6195, %v6203
        %6205 = vst [vmem:[#allocation5 + $0x1a0] sm:$0x11] %v6204
        %v6207 = vshrl.u32 %v6192, 16
        %v6209 = vrot.slane %v6207, 4
        %v6210 = vshll.u32 %v6192, 16
        %v6212 = vrot.slane %v6210, 5
        %v6213 = vor.u32 %v6209, %v6212
        %v6214 = vrot.slane %v6213, 4
        %v6216 = vshll.u32 %v6193, 16
        %v6218 = vrot.slane %v6216, 5
        %v6219 = vsel %vm467, %v6214, %v6218
        %v6220 = vshrl.u32 %v6193, 16
        %v6222 = vrot.slane %v6220, 4
        %v6223 = vor.u32 %v6222, %v6218
        %v6224 = vrot.slane %v6223, 4
        %v6226 = vshll.u32 %v6194, 16
        %v6228 = vrot.slane %v6226, 5
        %v6229 = vsel %vm467, %v6224, %v6228
        %v6230 = vshrl.u32 %v6194, 16
        %v6232 = vrot.slane %v6230, 4
        %v6233 = vor.u32 %v6232, %v6228
        %v6234 = vrot.slane %v6233, 4
        %v6236 = vshll.u32 %v6195, 16
        %v6238 = vrot.slane %v6236, 5
        %v6239 = vsel %vm467, %v6234, %v6238
        %v6240 = vshrl.u32 %v6195, 16
        %v6242 = vrot.slane %v6240, 4
        %v6243 = vrot.slane %v6242, 4
        %6248 = vst [vmem:[#allocation5 + $0x40] sm:$0xff] %v6219
        %6249 = vst [vmem:[#allocation5 + $0xb8] sm:$0xff] %v6229
        %6250 = vst [vmem:[#allocation5 + $0x130] sm:$0xff] %v6239
        %v6251 = vld [vmem:[#allocation5 + $0x1a8] sm:$0x11]
        %v6252 = vsel %vm6027, %v6243, %v6251
        %6253 = vst [vmem:[#allocation5 + $0x1a8] sm:$0x11] %v6252
        %v6254 = vrot.slane %v6192, 5
        %v6255 = vrot.slane %v6254, 4
        %v6256 = vrot.slane %v6193, 5
        %v6257 = vsel %vm665, %v6255, %v6256
        %v6258 = vrot.slane %v6256, 4
        %v6259 = vrot.slane %v6194, 5
        %v6260 = vsel %vm665, %v6258, %v6259
        %v6261 = vrot.slane %v6259, 4
        %v6262 = vrot.slane %v6195, 5
        %v6263 = vsel %vm665, %v6261, %v6262
        %v6264 = vrot.slane %v6262, 4
        %6269 = vst [vmem:[#allocation5 + $0x48] sm:$0xff] %v6257
        %6270 = vst [vmem:[#allocation5 + $0xc0] sm:$0xff] %v6260
        %6271 = vst [vmem:[#allocation5 + $0x138] sm:$0xff] %v6263
        %v6272 = vld [vmem:[#allocation5 + $0x1b0] sm:$0x11]
        %v6273 = vsel %vm6027, %v6264, %v6272
        %6274 = vst [vmem:[#allocation5 + $0x1b0] sm:$0x11] %v6273
        %v6275 = vrot.slane %v6207, 5
        %v6276 = vrot.slane %v6210, 6
        %v6277 = vor.u32 %v6275, %v6276
        %v6278 = vrot.slane %v6277, 4
        %v6279 = vrot.slane %v6220, 5
        %v6280 = vrot.slane %v6216, 6
        %v6281 = vor.u32 %v6279, %v6280
        %v6282 = vsel %vm748, %v6278, %v6281
        %v6283 = vrot.slane %v6281, 4
        %v6284 = vrot.slane %v6230, 5
        %v6285 = vrot.slane %v6226, 6
        %v6286 = vor.u32 %v6284, %v6285
        %v6287 = vsel %vm748, %v6283, %v6286
        %v6288 = vrot.slane %v6286, 4
        %v6289 = vrot.slane %v6240, 5
        %v6290 = vrot.slane %v6236, 6
        %v6291 = vor.u32 %v6289, %v6290
        %v6292 = vsel %vm748, %v6288, %v6291
        %v6293 = vrot.slane %v6289, 4
        %6298 = vst [vmem:[#allocation5 + $0x50] sm:$0xff] %v6282
        %6299 = vst [vmem:[#allocation5 + $0xc8] sm:$0xff] %v6287
        %6300 = vst [vmem:[#allocation5 + $0x140] sm:$0xff] %v6292
        %v6301 = vld [vmem:[#allocation5 + $0x1b8] sm:$0x11]
        %v6302 = vsel %vm6027, %v6293, %v6301
        %6303 = vst [vmem:[#allocation5 + $0x1b8] sm:$0x11] %v6302
        %v6304 = vrot.slane %v6192, 6
        %v6305 = vrot.slane %v6304, 4
        %v6306 = vrot.slane %v6193, 6
        %v6307 = vsel %vm868, %v6305, %v6306
        %v6308 = vrot.slane %v6306, 4
        %v6309 = vrot.slane %v6194, 6
        %v6310 = vsel %vm868, %v6308, %v6309
        %v6311 = vrot.slane %v6309, 4
        %v6312 = vrot.slane %v6195, 6
        %v6313 = vsel %vm868, %v6311, %v6312
        %v6314 = vrot.slane %v6312, 4
        %6319 = vst [vmem:[#allocation5 + $0x58] sm:$0xff] %v6307
        %6320 = vst [vmem:[#allocation5 + $0xd0] sm:$0xff] %v6310
        %6321 = vst [vmem:[#allocation5 + $0x148] sm:$0xff] %v6313
        %v6322 = vld [vmem:[#allocation5 + $0x1c0] sm:$0x11]
        %v6323 = vsel %vm6027, %v6314, %v6322
        %6324 = vst [vmem:[#allocation5 + $0x1c0] sm:$0x11] %v6323
        %v6325 = vrot.slane %v6207, 6
        %v6326 = vrot.slane %v6210, 7
        %v6327 = vor.u32 %v6325, %v6326
        %v6328 = vrot.slane %v6327, 4
        %v6329 = vrot.slane %v6220, 6
        %v6330 = vrot.slane %v6216, 7
        %v6331 = vor.u32 %v6329, %v6330
        %v6332 = vsel %vm954, %v6328, %v6331
        %v6333 = vrot.slane %v6331, 4
        %v6334 = vrot.slane %v6230, 6
        %v6335 = vrot.slane %v6226, 7
        %v6336 = vor.u32 %v6334, %v6335
        %v6337 = vsel %vm954, %v6333, %v6336
        %v6338 = vrot.slane %v6336, 4
        %v6339 = vrot.slane %v6240, 6
        %v6340 = vrot.slane %v6236, 7
        %v6341 = vor.u32 %v6339, %v6340
        %v6342 = vsel %vm954, %v6338, %v6341
        %v6343 = vrot.slane %v6339, 4
        %6348 = vst [vmem:[#allocation5 + $0x60] sm:$0xff] %v6332
        %6349 = vst [vmem:[#allocation5 + $0xd8] sm:$0xff] %v6337
        %6350 = vst [vmem:[#allocation5 + $0x150] sm:$0xff] %v6342
        %v6351 = vld [vmem:[#allocation5 + $0x1c8] sm:$0x11]
        %v6352 = vsel %vm6027, %v6343, %v6351
        %6353 = vst [vmem:[#allocation5 + $0x1c8] sm:$0x11] %v6352
        %v6354 = vrot.slane %v6192, 7
        %v6355 = vrot.slane %v6354, 4
        %v6356 = vrot.slane %v6193, 7
        %v6357 = vsel %vm1079, %v6355, %v6356
        %v6358 = vrot.slane %v6356, 4
        %v6359 = vrot.slane %v6194, 7
        %v6360 = vsel %vm1079, %v6358, %v6359
        %v6361 = vrot.slane %v6359, 4
        %v6362 = vrot.slane %v6195, 7
        %v6363 = vsel %vm1079, %v6361, %v6362
        %v6364 = vrot.slane %v6362, 4
        %6369 = vst [vmem:[#allocation5 + $0x68] sm:$0xff] %v6357
        %6370 = vst [vmem:[#allocation5 + $0xe0] sm:$0xff] %v6360
        %6371 = vst [vmem:[#allocation5 + $0x158] sm:$0xff] %v6363
        %v6372 = vld [vmem:[#allocation5 + $0x1d0] sm:$0x11]
        %v6373 = vsel %vm6027, %v6364, %v6372
        %6374 = vst [vmem:[#allocation5 + $0x1d0] sm:$0x11] %v6373
        %v6375 = vrot.slane %v6207, 7
        %v6376 = vrot.slane %v6375, 4
        %v6377 = vrot.slane %v6220, 7
        %v6378 = vor.u32 %v6377, %v6216
        %v6379 = vsel %vm1165, %v6376, %v6378
        %v6380 = vrot.slane %v6377, 4
        %v6381 = vrot.slane %v6230, 7
        %v6382 = vor.u32 %v6381, %v6226
        %v6383 = vsel %vm1165, %v6380, %v6382
        %v6384 = vrot.slane %v6381, 4
        %v6385 = vrot.slane %v6240, 7
        %v6386 = vor.u32 %v6385, %v6236
        %v6387 = vsel %vm1165, %v6384, %v6386
        %v6388 = vrot.slane %v6385, 4
        %6393 = vst [vmem:[#allocation5 + $0x70] sm:$0xff] %v6379
        %6394 = vst [vmem:[#allocation5 + $0xe8] sm:$0xff] %v6383
        %6395 = vst [vmem:[#allocation5 + $0x160] sm:$0xff] %v6387
        %v6396 = vld [vmem:[#allocation5 + $0x1d8] sm:$0x11]
        %v6397 = vsel %vm6027, %v6388, %v6396
        %6398 = vst [vmem:[#allocation5 + $0x1d8] sm:$0x11] %v6397
        %v6399 = vld [vmem:[#allocation5] sm:$0xff]
        %v6400 = vld [vmem:[#allocation5 + $0x8] sm:$0xff]
        %v6401 = vld [vmem:[#allocation5 + $0x10] sm:$0xff]
        %v6402 = vld [vmem:[#allocation5 + $0x18] sm:$0xff]
        %v6403 = vld [vmem:[#allocation5 + $0x20] sm:$0xff]
        %v6404 = vld [vmem:[#allocation5 + $0x28] sm:$0xff]
        %v6405 = vld [vmem:[#allocation5 + $0x30] sm:$0xff]
        %v6406 = vld [vmem:[#allocation5 + $0x38] sm:$0xff]
        %v6407 = vld [vmem:[#allocation5 + $0x40] sm:$0xff]
        %v6408 = vld [vmem:[#allocation5 + $0x48] sm:$0xff]
        %v6409 = vld [vmem:[#allocation5 + $0x50] sm:$0xff]
        %v6410 = vld [vmem:[#allocation5 + $0x58] sm:$0xff]
        %v6411 = vld [vmem:[#allocation5 + $0x60] sm:$0xff]
        %v6412 = vld [vmem:[#allocation5 + $0x68] sm:$0xff]
        %v6413 = vld [vmem:[#allocation5 + $0x70] sm:$0xff]
        %v6414 = vld [vmem:[#allocation5 + $0x78] sm:$0xff]
        %v6415 = vld [vmem:[#allocation5 + $0x80] sm:$0xff]
        %v6416 = vld [vmem:[#allocation5 + $0x88] sm:$0xff]
        %v6417 = vld [vmem:[#allocation5 + $0x90] sm:$0xff]
        %v6418 = vld [vmem:[#allocation5 + $0x98] sm:$0xff]
        %v6419 = vld [vmem:[#allocation5 + $0xa0] sm:$0xff]
        %v6420 = vld [vmem:[#allocation5 + $0xa8] sm:$0xff]
        %v6421 = vld [vmem:[#allocation5 + $0xb0] sm:$0xff]
        %v6422 = vld [vmem:[#allocation5 + $0xb8] sm:$0xff]
        %v6423 = vld [vmem:[#allocation5 + $0xc0] sm:$0xff]
        %v6424 = vld [vmem:[#allocation5 + $0xc8] sm:$0xff]
        %v6425 = vld [vmem:[#allocation5 + $0xd0] sm:$0xff]
        %v6426 = vld [vmem:[#allocation5 + $0xd8] sm:$0xff]
        %v6427 = vld [vmem:[#allocation5 + $0xe0] sm:$0xff]
        %v6428 = vld [vmem:[#allocation5 + $0xe8] sm:$0xff]
        %v6429 = vld [vmem:[#allocation5 + $0xf0] sm:$0xff]
        %v6430 = vld [vmem:[#allocation5 + $0xf8] sm:$0xff]
        %v6431 = vld [vmem:[#allocation5 + $0x100] sm:$0xff]
        %v6432 = vld [vmem:[#allocation5 + $0x108] sm:$0xff]
        %v6433 = vld [vmem:[#allocation5 + $0x110] sm:$0xff]
        %v6434 = vld [vmem:[#allocation5 + $0x118] sm:$0xff]
        %v6435 = vld [vmem:[#allocation5 + $0x120] sm:$0xff]
        %v6436 = vld [vmem:[#allocation5 + $0x128] sm:$0xff]
        %v6437 = vld [vmem:[#allocation5 + $0x130] sm:$0xff]
        %v6438 = vld [vmem:[#allocation5 + $0x138] sm:$0xff]
        %v6439 = vld [vmem:[#allocation5 + $0x140] sm:$0xff]
        %v6440 = vld [vmem:[#allocation5 + $0x148] sm:$0xff]
        %v6441 = vld [vmem:[#allocation5 + $0x150] sm:$0xff]
        %v6442 = vld [vmem:[#allocation5 + $0x158] sm:$0xff]
        %v6443 = vld [vmem:[#allocation5 + $0x160] sm:$0xff]
        %v6444 = vld [vmem:[#allocation5 + $0x168] sm:$0x11]
        %v6445 = vld [vmem:[#allocation5 + $0x170] sm:$0x11]
        %v6446 = vld [vmem:[#allocation5 + $0x178] sm:$0x11]
        %v6447 = vld [vmem:[#allocation5 + $0x180] sm:$0x11]
        %v6448 = vld [vmem:[#allocation5 + $0x188] sm:$0x11]
        %v6449 = vld [vmem:[#allocation5 + $0x190] sm:$0x11]
        %v6450 = vld [vmem:[#allocation5 + $0x198] sm:$0x11]
        %v6451 = vld [vmem:[#allocation5 + $0x1a0] sm:$0x11]
        %v6452 = vld [vmem:[#allocation5 + $0x1a8] sm:$0x11]
        %v6453 = vld [vmem:[#allocation5 + $0x1b0] sm:$0x11]
        %v6454 = vld [vmem:[#allocation5 + $0x1b8] sm:$0x11]
        %v6455 = vld [vmem:[#allocation5 + $0x1c0] sm:$0x11]
        %v6456 = vld [vmem:[#allocation5 + $0x1c8] sm:$0x11]
        %v6457 = vld [vmem:[#allocation5 + $0x1d0] sm:$0x11]
        %v6458 = vld [vmem:[#allocation5 + $0x1d8] sm:$0x11]
        %v6459 = vld [vmem:[#allocation11] sm:$0xf]
        %v6460 = vld [vmem:[#allocation11 + $0x4] sm:$0xf]
        %v6461 = vld [vmem:[#allocation11 + $0x8] sm:$0xf]
        %v6462 = vld [vmem:[#allocation11 + $0xc] sm:$0xf]
        %v6463 = vld [vmem:[#allocation11 + $0x10] sm:$0xf]
        %v6464 = vld [vmem:[#allocation11 + $0x14] sm:$0xf]
        %v6465 = vld [vmem:[#allocation11 + $0x18] sm:$0xf]
        %v6466 = vld [vmem:[#allocation11 + $0x1c] sm:$0xf]
        %v6467 = vld [vmem:[#allocation11 + $0x20] sm:$0xf]
        %v6468 = vld [vmem:[#allocation11 + $0x24] sm:$0xf]
        %v6469 = vld [vmem:[#allocation11 + $0x28] sm:$0xf]
        %v6470 = vld [vmem:[#allocation11 + $0x2c] sm:$0xf]
        %v6471 = vld [vmem:[#allocation11 + $0x30] sm:$0xf]
        %v6472 = vld [vmem:[#allocation11 + $0x34] sm:$0xf]
        %v6473 = vld [vmem:[#allocation11 + $0x38] sm:$0xf]
        %v6474 = vld [vmem:[#allocation11 + $0x3c] sm:$0xf]
        %v6475 = vld [vmem:[#allocation11 + $0x40] sm:$0xf]
        %v6476 = vld [vmem:[#allocation11 + $0x44] sm:$0xf]
        %v6477 = vld [vmem:[#allocation11 + $0x48] sm:$0xf]
        %v6478 = vld [vmem:[#allocation11 + $0x4c] sm:$0xf]
        %v6479 = vld [vmem:[#allocation11 + $0x50] sm:$0xf]
        %v6480 = vld [vmem:[#allocation11 + $0x54] sm:$0xf]
        %v6481 = vld [vmem:[#allocation11 + $0x58] sm:$0xf]
        %v6482 = vld [vmem:[#allocation11 + $0x5c] sm:$0xf]
        %v6483 = vld [vmem:[#allocation11 + $0x60] sm:$0xf]
        %v6484 = vld [vmem:[#allocation11 + $0x64] sm:$0xf]
        %v6485 = vld [vmem:[#allocation11 + $0x68] sm:$0xf]
        %v6486 = vld [vmem:[#allocation11 + $0x6c] sm:$0xf]
        %v6487 = vld [vmem:[#allocation11 + $0x70] sm:$0xf]
        %v6488 = vld [vmem:[#allocation11 + $0x74] sm:$0xf]
        %v6489 = vld [vmem:[#allocation11 + $0x78] sm:$0xf]
        %v6490 = vld [vmem:[#allocation11 + $0x7c] sm:$0xf]
        %v6491 = vld [vmem:[#allocation11 + $0x80] sm:$0xf]
        %v6492 = vld [vmem:[#allocation11 + $0x84] sm:$0xf]
        %v6493 = vld [vmem:[#allocation11 + $0x88] sm:$0xf]
        %v6494 = vld [vmem:[#allocation11 + $0x8c] sm:$0xf]
        %v6495 = vld [vmem:[#allocation11 + $0x90] sm:$0xf]
        %v6496 = vld [vmem:[#allocation11 + $0x94] sm:$0xf]
        %v6497 = vld [vmem:[#allocation11 + $0x98] sm:$0xf]
        %v6498 = vld [vmem:[#allocation11 + $0x9c] sm:$0xf]
        %v6499 = vld [vmem:[#allocation11 + $0xa0] sm:$0xf]
        %v6500 = vld [vmem:[#allocation11 + $0xa4] sm:$0xf]
        %v6501 = vld [vmem:[#allocation11 + $0xa8] sm:$0xf]
        %v6502 = vld [vmem:[#allocation11 + $0xac] sm:$0xf]
        %v6503 = vld [vmem:[#allocation11 + $0xb0] sm:$0xf]
        %v6504 = vld [vmem:[#allocation11 + $0xb4] sm:$0xf]
        %v6505 = vld [vmem:[#allocation11 + $0xb8] sm:$0xf]
        %v6506 = vld [vmem:[#allocation11 + $0xbc] sm:$0xf]
        %v6507 = vld [vmem:[#allocation11 + $0xc0] sm:$0xf]
        %v6508 = vld [vmem:[#allocation11 + $0xc4] sm:$0xf]
        %v6509 = vld [vmem:[#allocation11 + $0xc8] sm:$0xf]
        %v6510 = vld [vmem:[#allocation11 + $0xcc] sm:$0xf]
        %v6511 = vld [vmem:[#allocation11 + $0xd0] sm:$0xf]
        %v6512 = vld [vmem:[#allocation11 + $0xd4] sm:$0xf]
        %v6513 = vld [vmem:[#allocation11 + $0xd8] sm:$0xf]
        %v6514 = vld [vmem:[#allocation11 + $0xdc] sm:$0xf]
        %v6515 = vld [vmem:[#allocation11 + $0xe0] sm:$0xf]
        %v6516 = vld [vmem:[#allocation11 + $0xe4] sm:$0xf]
        %v6517 = vld [vmem:[#allocation11 + $0xe8] sm:$0xf]
        %v6518 = vld [vmem:[#allocation11 + $0xec] sm:$0xf]
        %v6519 = vld [vmem:[#allocation11 + $0xf0] sm:$0xf]
        %v6520 = vld [vmem:[#allocation11 + $0xf4] sm:$0xf]
        %v6521 = vld [vmem:[#allocation11 + $0xf8] sm:$0xf]
        %v6522 = vld [vmem:[#allocation11 + $0xfc] sm:$0xf]
        %v6523 = vld [vmem:[#allocation11 + $0x100] sm:$0xf]
        %v6524 = vld [vmem:[#allocation11 + $0x104] sm:$0xf]
        %v6525 = vld [vmem:[#allocation11 + $0x108] sm:$0xf]
        %v6526 = vld [vmem:[#allocation11 + $0x10c] sm:$0xf]
        %v6527 = vld [vmem:[#allocation11 + $0x110] sm:$0xf]
        %v6528 = vld [vmem:[#allocation11 + $0x114] sm:$0xf]
        %v6529 = vld [vmem:[#allocation11 + $0x118] sm:$0xf]
        %v6530 = vld [vmem:[#allocation11 + $0x11c] sm:$0xf]
        %v6531 = vld [vmem:[#allocation11 + $0x120] sm:$0xf]
        %v6532 = vld [vmem:[#allocation11 + $0x124] sm:$0xf]
        %v6533 = vld [vmem:[#allocation11 + $0x128] sm:$0xf]
        %v6534 = vld [vmem:[#allocation11 + $0x12c] sm:$0xf]
        %v6535 = vld [vmem:[#allocation11 + $0x130] sm:$0xf]
        %v6536 = vld [vmem:[#allocation11 + $0x134] sm:$0xf]
        %v6537 = vld [vmem:[#allocation11 + $0x138] sm:$0xf]
        %v6538 = vld [vmem:[#allocation11 + $0x13c] sm:$0xf]
        %v6539 = vld [vmem:[#allocation11 + $0x140] sm:$0xf]
        %v6540 = vld [vmem:[#allocation11 + $0x144] sm:$0xf]
        %v6541 = vld [vmem:[#allocation11 + $0x148] sm:$0xf]
        %v6542 = vld [vmem:[#allocation11 + $0x14c] sm:$0xf]
        %v6543 = vld [vmem:[#allocation11 + $0x150] sm:$0xf]
        %v6544 = vld [vmem:[#allocation11 + $0x154] sm:$0xf]
        %v6545 = vld [vmem:[#allocation11 + $0x158] sm:$0xf]
        %v6546 = vld [vmem:[#allocation11 + $0x15c] sm:$0xf]
        %v6547 = vld [vmem:[#allocation11 + $0x160] sm:$0xf]
        %v6548 = vld [vmem:[#allocation11 + $0x164] sm:$0xf]
        %v6549 = vld [vmem:[#allocation11 + $0x168] sm:$0xf]
        %v6550 = vld [vmem:[#allocation11 + $0x16c] sm:$0xf]
        %v6551 = vld [vmem:[#allocation11 + $0x170] sm:$0xf]
        %v6552 = vld [vmem:[#allocation11 + $0x174] sm:$0xf]
        %v6553 = vld [vmem:[#allocation11 + $0x178] sm:$0xf]
        %v6554 = vld [vmem:[#allocation11 + $0x17c] sm:$0xf]
        %v6555 = vld [vmem:[#allocation11 + $0x180] sm:$0xf]
        %v6556 = vld [vmem:[#allocation11 + $0x184] sm:$0xf]
        %v6557 = vld [vmem:[#allocation11 + $0x188] sm:$0xf]
        %v6558 = vld [vmem:[#allocation11 + $0x18c] sm:$0xf]
        %v6559 = vld [vmem:[#allocation11 + $0x190] sm:$0xf]
        %v6560 = vld [vmem:[#allocation11 + $0x194] sm:$0xf]
        %v6561 = vld [vmem:[#allocation11 + $0x198] sm:$0xf]
        %v6562 = vld [vmem:[#allocation11 + $0x19c] sm:$0xf]
        %v6563 = vld [vmem:[#allocation11 + $0x1a0] sm:$0xf]
        %v6564 = vld [vmem:[#allocation11 + $0x1a4] sm:$0xf]
        %v6565 = vld [vmem:[#allocation11 + $0x1a8] sm:$0xf]
        %v6566 = vld [vmem:[#allocation11 + $0x1ac] sm:$0xf]
        %v6567 = vld [vmem:[#allocation11 + $0x1b0] sm:$0xf]
        %v6568 = vld [vmem:[#allocation11 + $0x1b4] sm:$0xf]
        %v6569 = vld [vmem:[#allocation11 + $0x1b8] sm:$0xf]
        %v6570 = vld [vmem:[#allocation11 + $0x1bc] sm:$0xf]
        %v6571 = vld [vmem:[#allocation11 + $0x1c0] sm:$0xf]
        %v6572 = vld [vmem:[#allocation11 + $0x1c4] sm:$0xf]
        %v6573 = vld [vmem:[#allocation11 + $0x1c8] sm:$0xf]
        %v6574 = vld [vmem:[#allocation11 + $0x1cc] sm:$0xf]
        %v6575 = vld [vmem:[#allocation11 + $0x1d0] sm:$0xf]
        %v6576 = vld [vmem:[#allocation11 + $0x1d4] sm:$0xf]
        %v6577 = vld [vmem:[#allocation11 + $0x1d8] sm:$0xf]
        %v6578 = vld [vmem:[#allocation11 + $0x1dc] sm:$0xf]
        %v6579 = vld [vmem:[#allocation11 + $0x1e0] sm:$0xf]
        %v6580 = vld [vmem:[#allocation11 + $0x1e4] sm:$0xf]
        %v6581 = vld [vmem:[#allocation11 + $0x1e8] sm:$0xf]
        %v6582 = vld [vmem:[#allocation11 + $0x1ec] sm:$0xf]
        %v6583 = vld [vmem:[#allocation11 + $0x1f0] sm:$0xf]
        %v6584 = vld [vmem:[#allocation11 + $0x1f4] sm:$0xf]
        %v6585 = vld [vmem:[#allocation11 + $0x1f8] sm:$0xf]
        %v6586 = vld [vmem:[#allocation11 + $0x1fc] sm:$0xf]
        %v6587 = vld [vmem:[#allocation11 + $0x200] sm:$0xf]
        %v6588 = vld [vmem:[#allocation11 + $0x204] sm:$0xf]
        %v6589 = vld [vmem:[#allocation11 + $0x208] sm:$0xf]
        %v6590 = vld [vmem:[#allocation11 + $0x20c] sm:$0xf]
        %v6591 = vld [vmem:[#allocation11 + $0x210] sm:$0xf]
        %v6592 = vld [vmem:[#allocation11 + $0x214] sm:$0xf]
        %v6593 = vld [vmem:[#allocation11 + $0x218] sm:$0xf]
        %v6594 = vld [vmem:[#allocation11 + $0x21c] sm:$0xf]
        %v6595 = vld [vmem:[#allocation11 + $0x220] sm:$0xf]
        %v6596 = vld [vmem:[#allocation11 + $0x224] sm:$0xf]
        %v6597 = vld [vmem:[#allocation11 + $0x228] sm:$0xf]
        %v6598 = vld [vmem:[#allocation11 + $0x22c] sm:$0xf]
        %v6599 = vld [vmem:[#allocation11 + $0x230] sm:$0xf]
        %v6600 = vld [vmem:[#allocation11 + $0x234] sm:$0xf]
        %v6601 = vld [vmem:[#allocation11 + $0x238] sm:$0xf]
        %v6602 = vld [vmem:[#allocation11 + $0x23c] sm:$0xf]
        %v6603 = vld [vmem:[#allocation11 + $0x240] sm:$0xf]
        %v6604 = vld [vmem:[#allocation11 + $0x244] sm:$0xf]
        %v6605 = vld [vmem:[#allocation11 + $0x248] sm:$0xf]
        %v6606 = vld [vmem:[#allocation11 + $0x24c] sm:$0xf]
        %v6607 = vld [vmem:[#allocation11 + $0x250] sm:$0xf]
        %v6608 = vld [vmem:[#allocation11 + $0x254] sm:$0xf]
        %v6609 = vld [vmem:[#allocation11 + $0x258] sm:$0xf]
        %v6610 = vld [vmem:[#allocation11 + $0x25c] sm:$0xf]
        %v6611 = vld [vmem:[#allocation11 + $0x260] sm:$0xf]
        %v6612 = vld [vmem:[#allocation11 + $0x264] sm:$0xf]
        %v6613 = vld [vmem:[#allocation11 + $0x268] sm:$0xf]
        %v6614 = vld [vmem:[#allocation11 + $0x26c] sm:$0xf]
        %v6615 = vld [vmem:[#allocation11 + $0x270] sm:$0xf]
        %v6616 = vld [vmem:[#allocation11 + $0x274] sm:$0xf]
        %v6617 = vld [vmem:[#allocation11 + $0x278] sm:$0xf]
        %v6618 = vld [vmem:[#allocation11 + $0x27c] sm:$0xf]
        %v6619 = vld [vmem:[#allocation11 + $0x280] sm:$0xf]
        %v6620 = vld [vmem:[#allocation11 + $0x284] sm:$0xf]
        %v6621 = vld [vmem:[#allocation11 + $0x288] sm:$0xf]
        %v6622 = vld [vmem:[#allocation11 + $0x28c] sm:$0xf]
        %v6623 = vld [vmem:[#allocation11 + $0x290] sm:$0xf]
        %v6624 = vld [vmem:[#allocation11 + $0x294] sm:$0xf]
        %v6625 = vld [vmem:[#allocation11 + $0x298] sm:$0xf]
        %v6626 = vld [vmem:[#allocation11 + $0x29c] sm:$0xf]
        %v6627 = vld [vmem:[#allocation11 + $0x2a0] sm:$0xf]
        %v6628 = vld [vmem:[#allocation11 + $0x2a4] sm:$0xf]
        %v6629 = vld [vmem:[#allocation11 + $0x2a8] sm:$0xf]
        %v6630 = vld [vmem:[#allocation11 + $0x2ac] sm:$0xf]
        %v6631 = vld [vmem:[#allocation11 + $0x2b0] sm:$0xf]
        %v6632 = vld [vmem:[#allocation11 + $0x2b4] sm:$0xf]
        %v6633 = vld [vmem:[#allocation11 + $0x2b8] sm:$0xf]
        %v6634 = vld [vmem:[#allocation11 + $0x2bc] sm:$0xf]
        %v6635 = vld [vmem:[#allocation11 + $0x2c0] sm:$0xf]
        %v6636 = vld [vmem:[#allocation11 + $0x2c4] sm:$0xf]
        %v6637 = vld [vmem:[#allocation11 + $0x2c8] sm:$0xf]
        %v6638 = vld [vmem:[#allocation11 + $0x2cc] sm:$0xf]
        %v6639 = vld [vmem:[#allocation11 + $0x2d0] sm:$0xf]
        %v6640 = vld [vmem:[#allocation11 + $0x2d4] sm:$0xf]
        %v6641 = vld [vmem:[#allocation11 + $0x2d8] sm:$0xf]
        %v6642 = vld [vmem:[#allocation11 + $0x2dc] sm:$0xf]
        %v6643 = vld [vmem:[#allocation11 + $0x2e0] sm:$0xf]
        %v6644 = vld [vmem:[#allocation11 + $0x2e4] sm:$0xf]
        %v6645 = vld [vmem:[#allocation11 + $0x2e8] sm:$0xf]
        %v6646 = vld [vmem:[#allocation11 + $0x2ec] sm:$0xf]
        %v6647 = vld [vmem:[#allocation11 + $0x2f0] sm:$0xf]
        %v6648 = vld [vmem:[#allocation11 + $0x2f4] sm:$0xf]
        %v6649 = vld [vmem:[#allocation11 + $0x2f8] sm:$0xf]
        %v6650 = vld [vmem:[#allocation11 + $0x2fc] sm:$0xf]
        %v6651 = vld [vmem:[#allocation11 + $0x300] sm:$0xf]
        %v6652 = vld [vmem:[#allocation11 + $0x304] sm:$0xf]
        %v6653 = vld [vmem:[#allocation11 + $0x308] sm:$0xf]
        %v6654 = vld [vmem:[#allocation11 + $0x30c] sm:$0xf]
        %v6655 = vld [vmem:[#allocation11 + $0x310] sm:$0xf]
        %v6656 = vld [vmem:[#allocation11 + $0x314] sm:$0xf]
        %v6657 = vld [vmem:[#allocation11 + $0x318] sm:$0xf]
        %v6658 = vld [vmem:[#allocation11 + $0x31c] sm:$0xf]
        %v6659 = vld [vmem:[#allocation11 + $0x320] sm:$0xf]
        %v6660 = vld [vmem:[#allocation11 + $0x324] sm:$0xf]
        %v6661 = vld [vmem:[#allocation11 + $0x328] sm:$0xf]
        %v6662 = vld [vmem:[#allocation11 + $0x32c] sm:$0xf]
        %v6663 = vld [vmem:[#allocation11 + $0x330] sm:$0xf]
        %v6664 = vld [vmem:[#allocation11 + $0x334] sm:$0xf]
        %v6665 = vld [vmem:[#allocation11 + $0x338] sm:$0xf]
        %v6666 = vld [vmem:[#allocation11 + $0x33c] sm:$0xf]
        %v6667 = vld [vmem:[#allocation11 + $0x340] sm:$0xf]
        %v6668 = vld [vmem:[#allocation11 + $0x344] sm:$0xf]
        %v6669 = vld [vmem:[#allocation11 + $0x348] sm:$0xf]
        %v6670 = vld [vmem:[#allocation11 + $0x34c] sm:$0xf]
        %v6671 = vld [vmem:[#allocation11 + $0x350] sm:$0xf]
        %v6672 = vld [vmem:[#allocation11 + $0x354] sm:$0xf]
        %v6673 = vld [vmem:[#allocation11 + $0x358] sm:$0xf]
        %v6674 = vld [vmem:[#allocation11 + $0x35c] sm:$0xf]
        %v6675 = vld [vmem:[#allocation11 + $0x360] sm:$0xf]
        %v6676 = vld [vmem:[#allocation11 + $0x364] sm:$0xf]
        %v6677 = vld [vmem:[#allocation11 + $0x368] sm:$0xf]
        %v6678 = vld [vmem:[#allocation11 + $0x36c] sm:$0xf]
        %v6679 = vld [vmem:[#allocation11 + $0x370] sm:$0xf]
        %v6680 = vld [vmem:[#allocation11 + $0x374] sm:$0xf]
        %v6681 = vld [vmem:[#allocation11 + $0x378] sm:$0xf]
        %v6682 = vld [vmem:[#allocation11 + $0x37c] sm:$0xf]
        %v6683 = vld [vmem:[#allocation11 + $0x380] sm:$0xf]
        %v6684 = vld [vmem:[#allocation11 + $0x384] sm:$0xf]
        %v6685 = vld [vmem:[#allocation11 + $0x388] sm:$0xf]
        %v6686 = vld [vmem:[#allocation11 + $0x38c] sm:$0xf]
        %v6687 = vld [vmem:[#allocation11 + $0x390] sm:$0xf]
        %v6688 = vld [vmem:[#allocation11 + $0x394] sm:$0xf]
        %v6689 = vld [vmem:[#allocation11 + $0x398] sm:$0xf]
        %v6690 = vld [vmem:[#allocation11 + $0x39c] sm:$0xf]
        %v6691 = vld [vmem:[#allocation11 + $0x3a0] sm:$0xf]
        %v6692 = vld [vmem:[#allocation11 + $0x3a4] sm:$0xf]
        %v6693 = vld [vmem:[#allocation11 + $0x3a8] sm:$0xf]
        %v6694 = vld [vmem:[#allocation11 + $0x3ac] sm:$0xf]
        %v6695 = vld [vmem:[#allocation11 + $0x3b0] sm:$0xf]
        %v6696 = vld [vmem:[#allocation11 + $0x3b4] sm:$0xf]
        %v6697 = vld [vmem:[#allocation11 + $0x3b8] sm:$0xf]
        %v6698 = vld [vmem:[#allocation11 + $0x3bc] sm:$0xf]
        %v6699 = vld [vmem:[#allocation11 + $0x3c0] sm:$0xf]
        %v6700 = vld [vmem:[#allocation11 + $0x3c4] sm:$0xf]
        %v6701 = vld [vmem:[#allocation11 + $0x3c8] sm:$0xf]
        %v6702 = vld [vmem:[#allocation11 + $0x3cc] sm:$0xf]
        %v6703 = vld [vmem:[#allocation11 + $0x3d0] sm:$0xf]
        %v6704 = vld [vmem:[#allocation11 + $0x3d4] sm:$0xf]
        %v6705 = vld [vmem:[#allocation11 + $0x3d8] sm:$0xf]
        %v6706 = vld [vmem:[#allocation11 + $0x3dc] sm:$0xf]
        %v6707 = vld [vmem:[#allocation11 + $0x3e0] sm:$0xf]
        %v6708 = vld [vmem:[#allocation11 + $0x3e4] sm:$0xf]
        %v6709 = vld [vmem:[#allocation11 + $0x3e8] sm:$0xf]
        %v6710 = vld [vmem:[#allocation11 + $0x3ec] sm:$0xf]
        %v6711 = vld [vmem:[#allocation11 + $0x3f0] sm:$0xf]
        %v6712 = vld [vmem:[#allocation11 + $0x3f4] sm:$0xf]
        %v6713 = vld [vmem:[#allocation11 + $0x3f8] sm:$0xf]
        %v6714 = vld [vmem:[#allocation11 + $0x3fc] sm:$0xf]
        %v6715 = vld [vmem:[#allocation11 + $0x400] sm:$0xf]
        %v6716 = vld [vmem:[#allocation11 + $0x404] sm:$0xf]
        %v6717 = vld [vmem:[#allocation11 + $0x408] sm:$0xf]
        %v6718 = vld [vmem:[#allocation11 + $0x40c] sm:$0xf]
        %v6719 = vld [vmem:[#allocation11 + $0x410] sm:$0xf]
        %v6720 = vld [vmem:[#allocation11 + $0x414] sm:$0xf]
        %v6721 = vld [vmem:[#allocation11 + $0x418] sm:$0xf]
        %v6722 = vld [vmem:[#allocation11 + $0x41c] sm:$0xf]
        %v6723 = vld [vmem:[#allocation11 + $0x420] sm:$0xf]
        %v6724 = vld [vmem:[#allocation11 + $0x424] sm:$0xf]
        %v6725 = vld [vmem:[#allocation11 + $0x428] sm:$0xf]
        %v6726 = vld [vmem:[#allocation11 + $0x42c] sm:$0xf]
        %v6727 = vld [vmem:[#allocation11 + $0x430] sm:$0xf]
        %v6728 = vld [vmem:[#allocation11 + $0x434] sm:$0xf]
        %v6729 = vld [vmem:[#allocation11 + $0x438] sm:$0xf]
        %v6730 = vld [vmem:[#allocation11 + $0x43c] sm:$0xf]
        %v6731 = vld [vmem:[#allocation11 + $0x440] sm:$0xf]
        %v6732 = vld [vmem:[#allocation11 + $0x444] sm:$0xf]
        %v6733 = vld [vmem:[#allocation11 + $0x448] sm:$0xf]
        %v6734 = vld [vmem:[#allocation11 + $0x44c] sm:$0xf]
        %v6735 = vld [vmem:[#allocation11 + $0x450] sm:$0xf]
        %v6736 = vld [vmem:[#allocation11 + $0x454] sm:$0xf]
        %v6737 = vld [vmem:[#allocation11 + $0x458] sm:$0xf]
        %v6738 = vld [vmem:[#allocation11 + $0x45c] sm:$0xf]
        %v6739 = vld [vmem:[#allocation11 + $0x460] sm:$0xf]
        %v6740 = vld [vmem:[#allocation11 + $0x464] sm:$0xf]
        %v6741 = vld [vmem:[#allocation11 + $0x468] sm:$0xf]
        %v6742 = vld [vmem:[#allocation11 + $0x46c] sm:$0xf]
        %v6743 = vld [vmem:[#allocation11 + $0x470] sm:$0xf]
        %v6744 = vld [vmem:[#allocation11 + $0x474] sm:$0xf]
        %v6745 = vld [vmem:[#allocation11 + $0x478] sm:$0xf]
        %v6746 = vld [vmem:[#allocation11 + $0x47c] sm:$0xf]
        %v6747 = vld [vmem:[#allocation11 + $0x480] sm:$0xf]
        %v6748 = vld [vmem:[#allocation11 + $0x484] sm:$0xf]
        %v6749 = vld [vmem:[#allocation11 + $0x488] sm:$0xf]
        %v6750 = vld [vmem:[#allocation11 + $0x48c] sm:$0xf]
        %v6751 = vld [vmem:[#allocation11 + $0x490] sm:$0xf]
        %v6752 = vld [vmem:[#allocation11 + $0x494] sm:$0xf]
        %v6753 = vld [vmem:[#allocation11 + $0x498] sm:$0xf]
        %v6754 = vld [vmem:[#allocation11 + $0x49c] sm:$0xf]
        %v6755 = vld [vmem:[#allocation11 + $0x4a0] sm:$0xf]
        %v6756 = vld [vmem:[#allocation11 + $0x4a4] sm:$0xf]
        %v6757 = vld [vmem:[#allocation11 + $0x4a8] sm:$0xf]
        %v6758 = vld [vmem:[#allocation11 + $0x4ac] sm:$0xf]
        %v6759 = vld [vmem:[#allocation11 + $0x4b0] sm:$0xf]
        %v6760 = vld [vmem:[#allocation11 + $0x4b4] sm:$0xf]
        %v6761 = vld [vmem:[#allocation11 + $0x4b8] sm:$0xf]
        %v6762 = vld [vmem:[#allocation11 + $0x4bc] sm:$0xf]
        %v6763 = vld [vmem:[#allocation11 + $0x4c0] sm:$0xf]
        %v6764 = vld [vmem:[#allocation11 + $0x4c4] sm:$0xf]
        %v6765 = vld [vmem:[#allocation11 + $0x4c8] sm:$0xf]
        %v6766 = vld [vmem:[#allocation11 + $0x4cc] sm:$0xf]
        %v6767 = vld [vmem:[#allocation11 + $0x4d0] sm:$0xf]
        %v6768 = vld [vmem:[#allocation11 + $0x4d4] sm:$0xf]
        %v6769 = vld [vmem:[#allocation11 + $0x4d8] sm:$0xf]
        %v6770 = vld [vmem:[#allocation11 + $0x4dc] sm:$0xf]
        %v6771 = vld [vmem:[#allocation11 + $0x4e0] sm:$0xf]
        %v6772 = vld [vmem:[#allocation11 + $0x4e4] sm:$0xf]
        %v6773 = vld [vmem:[#allocation11 + $0x4e8] sm:$0xf]
        %v6774 = vld [vmem:[#allocation11 + $0x4ec] sm:$0xf]
        %v6775 = vld [vmem:[#allocation11 + $0x4f0] sm:$0xf]
        %v6776 = vld [vmem:[#allocation11 + $0x4f4] sm:$0xf]
        %v6777 = vld [vmem:[#allocation11 + $0x4f8] sm:$0xf]
        %v6778 = vld [vmem:[#allocation11 + $0x4fc] sm:$0xf]
        %v6779 = vld [vmem:[#allocation11 + $0x500] sm:$0xf]
        %v6780 = vld [vmem:[#allocation11 + $0x504] sm:$0xf]
        %v6781 = vld [vmem:[#allocation11 + $0x508] sm:$0xf]
        %v6782 = vld [vmem:[#allocation11 + $0x50c] sm:$0xf]
        %v6783 = vld [vmem:[#allocation11 + $0x510] sm:$0xf]
        %v6784 = vld [vmem:[#allocation11 + $0x514] sm:$0xf]
        %v6785 = vld [vmem:[#allocation11 + $0x518] sm:$0xf]
        %v6786 = vld [vmem:[#allocation11 + $0x51c] sm:$0xf]
        %v6787 = vld [vmem:[#allocation11 + $0x520] sm:$0xf]
        %v6788 = vld [vmem:[#allocation11 + $0x524] sm:$0xf]
        %v6789 = vld [vmem:[#allocation11 + $0x528] sm:$0xf]
        %v6790 = vld [vmem:[#allocation11 + $0x52c] sm:$0xf]
        %v6791 = vld [vmem:[#allocation11 + $0x530] sm:$0xf]
        %v6792 = vld [vmem:[#allocation11 + $0x534] sm:$0xf]
        %v6793 = vld [vmem:[#allocation11 + $0x538] sm:$0xf]
        %v6794 = vld [vmem:[#allocation11 + $0x53c] sm:$0xf]
        %v6795 = vld [vmem:[#allocation11 + $0x540] sm:$0xf]
        %v6796 = vld [vmem:[#allocation11 + $0x544] sm:$0xf]
        %v6797 = vld [vmem:[#allocation11 + $0x548] sm:$0xf]
        %v6798 = vld [vmem:[#allocation11 + $0x54c] sm:$0xf]
        %v6799 = vld [vmem:[#allocation11 + $0x550] sm:$0xf]
        %v6800 = vld [vmem:[#allocation11 + $0x554] sm:$0xf]
        %v6801 = vld [vmem:[#allocation11 + $0x558] sm:$0xf]
        %v6802 = vld [vmem:[#allocation11 + $0x55c] sm:$0xf]
        %v6803 = vld [vmem:[#allocation11 + $0x560] sm:$0xf]
        %v6804 = vld [vmem:[#allocation11 + $0x564] sm:$0xf]
        %v6805 = vld [vmem:[#allocation11 + $0x568] sm:$0xf]
        %v6806 = vld [vmem:[#allocation11 + $0x56c] sm:$0xf]
        %v6807 = vld [vmem:[#allocation11 + $0x570] sm:$0xf]
        %v6808 = vld [vmem:[#allocation11 + $0x574] sm:$0xf]
        %v6809 = vld [vmem:[#allocation11 + $0x578] sm:$0xf]
        %v6810 = vld [vmem:[#allocation11 + $0x57c] sm:$0xf]
        %v6811 = vld [vmem:[#allocation11 + $0x580] sm:$0xf]
        %v6812 = vld [vmem:[#allocation11 + $0x584] sm:$0xf]
        %v6813 = vld [vmem:[#allocation11 + $0x588] sm:$0xf]
        %v6814 = vld [vmem:[#allocation11 + $0x58c] sm:$0xf]
        %v6815 = vld [vmem:[#allocation11 + $0x590] sm:$0xf]
        %v6816 = vld [vmem:[#allocation11 + $0x594] sm:$0xf]
        %v6817 = vld [vmem:[#allocation11 + $0x598] sm:$0xf]
        %v6818 = vld [vmem:[#allocation11 + $0x59c] sm:$0xf]
        %v6819 = vld [vmem:[#allocation11 + $0x5a0] sm:$0xf]
        %v6820 = vld [vmem:[#allocation11 + $0x5a4] sm:$0xf]
        %v6821 = vld [vmem:[#allocation11 + $0x5a8] sm:$0xf]
        %v6822 = vld [vmem:[#allocation11 + $0x5ac] sm:$0xf]
        %v6823 = vld [vmem:[#allocation11 + $0x5b0] sm:$0xf]
        %v6824 = vld [vmem:[#allocation11 + $0x5b4] sm:$0xf]
        %v6825 = vld [vmem:[#allocation11 + $0x5b8] sm:$0xf]
        %v6826 = vld [vmem:[#allocation11 + $0x5bc] sm:$0xf]
        %v6827 = vld [vmem:[#allocation11 + $0x5c0] sm:$0xf]
        %v6828 = vld [vmem:[#allocation11 + $0x5c4] sm:$0xf]
        %v6829 = vld [vmem:[#allocation11 + $0x5c8] sm:$0xf]
        %v6830 = vld [vmem:[#allocation11 + $0x5cc] sm:$0xf]
        %v6831 = vld [vmem:[#allocation11 + $0x5d0] sm:$0xf]
        %v6832 = vld [vmem:[#allocation11 + $0x5d4] sm:$0xf]
        %v6833 = vld [vmem:[#allocation11 + $0x5d8] sm:$0xf]
        %v6834 = vld [vmem:[#allocation11 + $0x5dc] sm:$0xf]
        %v6835 = vld [vmem:[#allocation11 + $0x5e0] sm:$0xf]
        %v6836 = vld [vmem:[#allocation11 + $0x5e4] sm:$0xf]
        %v6837 = vld [vmem:[#allocation11 + $0x5e8] sm:$0xf]
        %v6838 = vld [vmem:[#allocation11 + $0x5ec] sm:$0xf]
        %v6839 = vld [vmem:[#allocation11 + $0x5f0] sm:$0xf]
        %v6840 = vld [vmem:[#allocation11 + $0x5f4] sm:$0xf]
        %v6841 = vld [vmem:[#allocation11 + $0x5f8] sm:$0xf]
        %v6842 = vld [vmem:[#allocation11 + $0x5fc] sm:$0xf]
        %v6843 = vld [vmem:[#allocation11 + $0x600] sm:$0xf]
        %v6844 = vld [vmem:[#allocation11 + $0x604] sm:$0xf]
        %v6845 = vld [vmem:[#allocation11 + $0x608] sm:$0xf]
        %v6846 = vld [vmem:[#allocation11 + $0x60c] sm:$0xf]
        %v6847 = vld [vmem:[#allocation11 + $0x610] sm:$0xf]
        %v6848 = vld [vmem:[#allocation11 + $0x614] sm:$0xf]
        %v6849 = vld [vmem:[#allocation11 + $0x618] sm:$0xf]
        %v6850 = vld [vmem:[#allocation11 + $0x61c] sm:$0xf]
        %v6851 = vld [vmem:[#allocation11 + $0x620] sm:$0xf]
        %v6852 = vld [vmem:[#allocation11 + $0x624] sm:$0xf]
        %v6853 = vld [vmem:[#allocation11 + $0x628] sm:$0xf]
        %v6854 = vld [vmem:[#allocation11 + $0x62c] sm:$0xf]
        %v6855 = vld [vmem:[#allocation11 + $0x630] sm:$0xf]
        %v6856 = vld [vmem:[#allocation11 + $0x634] sm:$0xf]
        %v6857 = vld [vmem:[#allocation11 + $0x638] sm:$0xf]
        %v6858 = vld [vmem:[#allocation11 + $0x63c] sm:$0xf]
        %v6859 = vld [vmem:[#allocation11 + $0x640] sm:$0xf]
        %v6860 = vld [vmem:[#allocation11 + $0x644] sm:$0xf]
        %v6861 = vld [vmem:[#allocation11 + $0x648] sm:$0xf]
        %v6862 = vld [vmem:[#allocation11 + $0x64c] sm:$0xf]
        %v6863 = vld [vmem:[#allocation11 + $0x650] sm:$0xf]
        %v6864 = vld [vmem:[#allocation11 + $0x654] sm:$0xf]
        %v6865 = vld [vmem:[#allocation11 + $0x658] sm:$0xf]
        %v6866 = vld [vmem:[#allocation11 + $0x65c] sm:$0xf]
        %v6867 = vld [vmem:[#allocation11 + $0x660] sm:$0xf]
        %v6868 = vld [vmem:[#allocation11 + $0x664] sm:$0xf]
        %v6869 = vld [vmem:[#allocation11 + $0x668] sm:$0xf]
        %v6870 = vld [vmem:[#allocation11 + $0x66c] sm:$0xf]
        %v6871 = vld [vmem:[#allocation11 + $0x670] sm:$0xf]
        %v6872 = vld [vmem:[#allocation11 + $0x674] sm:$0xf]
        %v6873 = vld [vmem:[#allocation11 + $0x678] sm:$0xf]
        %v6874 = vld [vmem:[#allocation11 + $0x67c] sm:$0xf]
        %v6875 = vld [vmem:[#allocation11 + $0x680] sm:$0xf]
        %v6876 = vld [vmem:[#allocation11 + $0x684] sm:$0xf]
        %v6877 = vld [vmem:[#allocation11 + $0x688] sm:$0xf]
        %v6878 = vld [vmem:[#allocation11 + $0x68c] sm:$0xf]
        %v6879 = vld [vmem:[#allocation11 + $0x690] sm:$0xf]
        %v6880 = vld [vmem:[#allocation11 + $0x694] sm:$0xf]
        %v6881 = vld [vmem:[#allocation11 + $0x698] sm:$0xf]
        %v6882 = vld [vmem:[#allocation11 + $0x69c] sm:$0xf]
        %v6883 = vld [vmem:[#allocation11 + $0x6a0] sm:$0xf]
        %v6884 = vld [vmem:[#allocation11 + $0x6a4] sm:$0xf]
        %v6885 = vld [vmem:[#allocation11 + $0x6a8] sm:$0xf]
        %v6886 = vld [vmem:[#allocation11 + $0x6ac] sm:$0xf]
        %v6887 = vld [vmem:[#allocation11 + $0x6b0] sm:$0xf]
        %v6888 = vld [vmem:[#allocation11 + $0x6b4] sm:$0xf]
        %v6889 = vld [vmem:[#allocation11 + $0x6b8] sm:$0xf]
        %v6890 = vld [vmem:[#allocation11 + $0x6bc] sm:$0xf]
        %v6891 = vld [vmem:[#allocation11 + $0x6c0] sm:$0xf]
        %v6892 = vld [vmem:[#allocation11 + $0x6c4] sm:$0xf]
        %v6893 = vld [vmem:[#allocation11 + $0x6c8] sm:$0xf]
        %v6894 = vld [vmem:[#allocation11 + $0x6cc] sm:$0xf]
        %v6895 = vld [vmem:[#allocation11 + $0x6d0] sm:$0xf]
        %v6896 = vld [vmem:[#allocation11 + $0x6d4] sm:$0xf]
        %v6897 = vld [vmem:[#allocation11 + $0x6d8] sm:$0xf]
        %v6898 = vld [vmem:[#allocation11 + $0x6dc] sm:$0xf]
        %v6899 = vld [vmem:[#allocation11 + $0x6e0] sm:$0xf]
        %v6900 = vld [vmem:[#allocation11 + $0x6e4] sm:$0xf]
        %v6901 = vld [vmem:[#allocation11 + $0x6e8] sm:$0xf]
        %v6902 = vld [vmem:[#allocation11 + $0x6ec] sm:$0xf]
        %v6903 = vld [vmem:[#allocation11 + $0x6f0] sm:$0xf]
        %v6904 = vld [vmem:[#allocation11 + $0x6f4] sm:$0xf]
        %v6905 = vld [vmem:[#allocation11 + $0x6f8] sm:$0xf]
        %v6906 = vld [vmem:[#allocation11 + $0x6fc] sm:$0xf]
        %v6907 = vld [vmem:[#allocation11 + $0x700] sm:$0xf]
        %v6908 = vld [vmem:[#allocation11 + $0x704] sm:$0xf]
        %v6909 = vld [vmem:[#allocation11 + $0x708] sm:$0xf]
        %v6910 = vld [vmem:[#allocation11 + $0x70c] sm:$0xf]
        %v6911 = vld [vmem:[#allocation11 + $0x710] sm:$0xf]
        %v6912 = vld [vmem:[#allocation11 + $0x714] sm:$0xf]
        %v6913 = vld [vmem:[#allocation11 + $0x718] sm:$0xf]
        %v6914 = vld [vmem:[#allocation11 + $0x71c] sm:$0xf]
        %v6915 = vld [vmem:[#allocation11 + $0x720] sm:$0xf]
        %v6916 = vld [vmem:[#allocation11 + $0x724] sm:$0xf]
        %v6917 = vld [vmem:[#allocation11 + $0x728] sm:$0xf]
        %v6918 = vld [vmem:[#allocation11 + $0x72c] sm:$0xf]
        %v6919 = vld [vmem:[#allocation11 + $0x730] sm:$0xf]
        %v6920 = vld [vmem:[#allocation11 + $0x734] sm:$0xf]
        %v6921 = vld [vmem:[#allocation11 + $0x738] sm:$0xf]
        %v6922 = vld [vmem:[#allocation11 + $0x73c] sm:$0xf]
        %v6923 = vld [vmem:[#allocation11 + $0x740] sm:$0xf]
        %v6924 = vld [vmem:[#allocation11 + $0x744] sm:$0xf]
        %v6925 = vld [vmem:[#allocation11 + $0x748] sm:$0xf]
        %v6926 = vld [vmem:[#allocation11 + $0x74c] sm:$0xf]
        %v6927 = vld [vmem:[#allocation11 + $0x750] sm:$0xf]
        %v6928 = vld [vmem:[#allocation11 + $0x754] sm:$0xf]
        %v6929 = vld [vmem:[#allocation11 + $0x758] sm:$0xf]
        %v6930 = vld [vmem:[#allocation11 + $0x75c] sm:$0xf]
        %v6931 = vld [vmem:[#allocation11 + $0x760] sm:$0xf]
        %v6932 = vld [vmem:[#allocation11 + $0x764] sm:$0xf]
        %v6933 = vld [vmem:[#allocation11 + $0x768] sm:$0xf]
        %v6934 = vld [vmem:[#allocation11 + $0x76c] sm:$0xf]
        %v6935 = vld [vmem:[#allocation11 + $0x770] sm:$0xf]
        %v6936 = vld [vmem:[#allocation11 + $0x774] sm:$0xf]
        %v6937 = vld [vmem:[#allocation11 + $0x778] sm:$0xf]
        %v6938 = vld [vmem:[#allocation11 + $0x77c] sm:$0xf]
        %v6939 = vld [vmem:[%s4] sm:$0x1]
        %v6941 = vlaneseq
        %v6942 = vshrl.u32 %v6941, 7
        %v6943 = vsub.s32 0, %v6942
        %v6944 = vrot.slane %v6939, %v6943
        %v7006 = vunpack.c.l.b16 %v6399
        %v7007 = vunpack.c.h.b16 %v6399
        %v7008 = vunpack.c.l.b16 %v6400
        %v7009 = vunpack.c.h.b16 %v6400
        %v7010 = vunpack.c.l.b16 %v6401
        %v7011 = vunpack.c.h.b16 %v6401
        %v7012 = vunpack.c.l.b16 %v6402
        %v7013 = vunpack.c.h.b16 %v6402
        %v7014 = vunpack.c.l.b16 %v6403
        %v7015 = vunpack.c.h.b16 %v6403
        %v7016 = vunpack.c.l.b16 %v6404
        %v7017 = vunpack.c.h.b16 %v6404
        %v7018 = vunpack.c.l.b16 %v6405
        %v7019 = vunpack.c.h.b16 %v6405
        %v7020 = vunpack.c.l.b16 %v6406
        %v7021 = vunpack.c.h.b16 %v6406
        %v7022 = vunpack.c.l.b16 %v6407
        %v7023 = vunpack.c.h.b16 %v6407
        %v7024 = vunpack.c.l.b16 %v6408
        %v7025 = vunpack.c.h.b16 %v6408
        %v7026 = vunpack.c.l.b16 %v6409
        %v7027 = vunpack.c.h.b16 %v6409
        %v7028 = vunpack.c.l.b16 %v6410
        %v7029 = vunpack.c.h.b16 %v6410
        %v7030 = vunpack.c.l.b16 %v6411
        %v7031 = vunpack.c.h.b16 %v6411
        %v7032 = vunpack.c.l.b16 %v6412
        %v7033 = vunpack.c.h.b16 %v6412
        %v7034 = vunpack.c.l.b16 %v6413
        %v7035 = vunpack.c.h.b16 %v6413
        %v7036 = vunpack.c.l.b16 %v6414
        %v7037 = vunpack.c.h.b16 %v6414
        %v7038 = vunpack.c.l.b16 %v6415
        %v7039 = vunpack.c.h.b16 %v6415
        %v7040 = vunpack.c.l.b16 %v6416
        %v7041 = vunpack.c.h.b16 %v6416
        %v7042 = vunpack.c.l.b16 %v6417
        %v7043 = vunpack.c.h.b16 %v6417
        %v7044 = vunpack.c.l.b16 %v6418
        %v7045 = vunpack.c.h.b16 %v6418
        %v7046 = vunpack.c.l.b16 %v6419
        %v7047 = vunpack.c.h.b16 %v6419
        %v7048 = vunpack.c.l.b16 %v6420
        %v7049 = vunpack.c.h.b16 %v6420
        %v7050 = vunpack.c.l.b16 %v6421
        %v7051 = vunpack.c.h.b16 %v6421
        %v7052 = vunpack.c.l.b16 %v6422
        %v7053 = vunpack.c.h.b16 %v6422
        %v7054 = vunpack.c.l.b16 %v6423
        %v7055 = vunpack.c.h.b16 %v6423
        %v7056 = vunpack.c.l.b16 %v6424
        %v7057 = vunpack.c.h.b16 %v6424
        %v7058 = vunpack.c.l.b16 %v6425
        %v7059 = vunpack.c.h.b16 %v6425
        %v7060 = vunpack.c.l.b16 %v6426
        %v7061 = vunpack.c.h.b16 %v6426
        %v7062 = vunpack.c.l.b16 %v6427
        %v7063 = vunpack.c.h.b16 %v6427
        %v7064 = vunpack.c.l.b16 %v6428
        %v7065 = vunpack.c.h.b16 %v6428
        %v7066 = vunpack.c.l.b16 %v6429
        %v7067 = vunpack.c.h.b16 %v6429
        %v7068 = vunpack.c.l.b16 %v6430
        %v7069 = vunpack.c.h.b16 %v6430
        %v7070 = vunpack.c.l.b16 %v6431
        %v7071 = vunpack.c.h.b16 %v6431
        %v7072 = vunpack.c.l.b16 %v6432
        %v7073 = vunpack.c.h.b16 %v6432
        %v7074 = vunpack.c.l.b16 %v6433
        %v7075 = vunpack.c.h.b16 %v6433
        %v7076 = vunpack.c.l.b16 %v6434
        %v7077 = vunpack.c.h.b16 %v6434
        %v7078 = vunpack.c.l.b16 %v6435
        %v7079 = vunpack.c.h.b16 %v6435
        %v7080 = vunpack.c.l.b16 %v6436
        %v7081 = vunpack.c.h.b16 %v6436
        %v7082 = vunpack.c.l.b16 %v6437
        %v7083 = vunpack.c.h.b16 %v6437
        %v7084 = vunpack.c.l.b16 %v6438
        %v7085 = vunpack.c.h.b16 %v6438
        %v7086 = vunpack.c.l.b16 %v6439
        %v7087 = vunpack.c.h.b16 %v6439
        %v7088 = vunpack.c.l.b16 %v6440
        %v7089 = vunpack.c.h.b16 %v6440
        %v7090 = vunpack.c.l.b16 %v6441
        %v7091 = vunpack.c.h.b16 %v6441
        %v7092 = vunpack.c.l.b16 %v6442
        %v7093 = vunpack.c.h.b16 %v6442
        %v7094 = vunpack.c.l.b16 %v6443
        %v7095 = vunpack.c.h.b16 %v6443
        %v7096 = vunpack.c.l.b16 %v6444
        %v7097 = vunpack.c.h.b16 %v6444
        %v7098 = vunpack.c.l.b16 %v6445
        %v7099 = vunpack.c.h.b16 %v6445
        %v7100 = vunpack.c.l.b16 %v6446
        %v7101 = vunpack.c.h.b16 %v6446
        %v7102 = vunpack.c.l.b16 %v6447
        %v7103 = vunpack.c.h.b16 %v6447
        %v7104 = vunpack.c.l.b16 %v6448
        %v7105 = vunpack.c.h.b16 %v6448
        %v7106 = vunpack.c.l.b16 %v6449
        %v7107 = vunpack.c.h.b16 %v6449
        %v7108 = vunpack.c.l.b16 %v6450
        %v7109 = vunpack.c.h.b16 %v6450
        %v7110 = vunpack.c.l.b16 %v6451
        %v7111 = vunpack.c.h.b16 %v6451
        %v7112 = vunpack.c.l.b16 %v6452
        %v7113 = vunpack.c.h.b16 %v6452
        %v7114 = vunpack.c.l.b16 %v6453
        %v7115 = vunpack.c.h.b16 %v6453
        %v7116 = vunpack.c.l.b16 %v6454
        %v7117 = vunpack.c.h.b16 %v6454
        %v7118 = vunpack.c.l.b16 %v6455
        %v7119 = vunpack.c.h.b16 %v6455
        %v7120 = vunpack.c.l.b16 %v6456
        %v7121 = vunpack.c.h.b16 %v6456
        %v7122 = vunpack.c.l.b16 %v6457
        %v7123 = vunpack.c.h.b16 %v6457
        %v7124 = vunpack.c.l.b16 %v6458
        %v7125 = vunpack.c.h.b16 %v6458
        %v7126 = vpack.c.b16 %v7036, %v7006
        %v7127 = vpack.c.b16 %v7037, %v7007
        %v7128 = vpack.c.b16 %v7038, %v7008
        %v7129 = vpack.c.b16 %v7039, %v7009
        %v7130 = vpack.c.b16 %v7040, %v7010
        %v7131 = vpack.c.b16 %v7041, %v7011
        %v7132 = vpack.c.b16 %v7042, %v7012
        %v7133 = vpack.c.b16 %v7043, %v7013
        %v7134 = vpack.c.b16 %v7044, %v7014
        %v7135 = vpack.c.b16 %v7045, %v7015
        %v7136 = vpack.c.b16 %v7046, %v7016
        %v7137 = vpack.c.b16 %v7047, %v7017
        %v7138 = vpack.c.b16 %v7048, %v7018
        %v7139 = vpack.c.b16 %v7049, %v7019
        %v7140 = vpack.c.b16 %v7050, %v7020
        %v7141 = vpack.c.b16 %v7051, %v7021
        %v7142 = vpack.c.b16 %v7052, %v7022
        %v7143 = vpack.c.b16 %v7053, %v7023
        %v7144 = vpack.c.b16 %v7054, %v7024
        %v7145 = vpack.c.b16 %v7055, %v7025
        %v7146 = vpack.c.b16 %v7056, %v7026
        %v7147 = vpack.c.b16 %v7057, %v7027
        %v7148 = vpack.c.b16 %v7058, %v7028
        %v7149 = vpack.c.b16 %v7059, %v7029
        %v7150 = vpack.c.b16 %v7060, %v7030
        %v7151 = vpack.c.b16 %v7061, %v7031
        %v7152 = vpack.c.b16 %v7062, %v7032
        %v7153 = vpack.c.b16 %v7063, %v7033
        %v7154 = vpack.c.b16 %v7064, %v7034
        %v7155 = vpack.c.b16 %v7065, %v7035
        %v7156 = vpack.c.b16 %v7096, %v7066
        %v7157 = vpack.c.b16 %v7097, %v7067
        %v7158 = vpack.c.b16 %v7098, %v7068
        %v7159 = vpack.c.b16 %v7099, %v7069
        %v7160 = vpack.c.b16 %v7100, %v7070
        %v7161 = vpack.c.b16 %v7101, %v7071
        %v7162 = vpack.c.b16 %v7102, %v7072
        %v7163 = vpack.c.b16 %v7103, %v7073
        %v7164 = vpack.c.b16 %v7104, %v7074
        %v7165 = vpack.c.b16 %v7105, %v7075
        %v7166 = vpack.c.b16 %v7106, %v7076
        %v7167 = vpack.c.b16 %v7107, %v7077
        %v7168 = vpack.c.b16 %v7108, %v7078
        %v7169 = vpack.c.b16 %v7109, %v7079
        %v7170 = vpack.c.b16 %v7110, %v7080
        %v7171 = vpack.c.b16 %v7111, %v7081
        %v7172 = vpack.c.b16 %v7112, %v7082
        %v7173 = vpack.c.b16 %v7113, %v7083
        %v7174 = vpack.c.b16 %v7114, %v7084
        %v7175 = vpack.c.b16 %v7115, %v7085
        %v7176 = vpack.c.b16 %v7116, %v7086
        %v7177 = vpack.c.b16 %v7117, %v7087
        %v7178 = vpack.c.b16 %v7118, %v7088
        %v7179 = vpack.c.b16 %v7119, %v7089
        %v7180 = vpack.c.b16 %v7120, %v7090
        %v7181 = vpack.c.b16 %v7121, %v7091
        %v7182 = vpack.c.b16 %v7122, %v7092
        %v7183 = vpack.c.b16 %v7123, %v7093
        %v7184 = vpack.c.b16 %v7124, %v7094
        %v7185 = vpack.c.b16 %v7125, %v7095
        %v7726 = vunpack.c.l.b16 %v6459
        %v7727 = vunpack.c.l.b16 %v6460
        %v7728 = vunpack.c.l.b16 %v6461
        %v7729 = vunpack.c.l.b16 %v6462
        %v7730 = vunpack.c.l.b16 %v6463
        %v7731 = vunpack.c.l.b16 %v6464
        %v7732 = vunpack.c.l.b16 %v6465
        %v7733 = vunpack.c.l.b16 %v6466
        %v7734 = vunpack.c.l.b16 %v6467
        %v7735 = vunpack.c.l.b16 %v6468
        %v7736 = vunpack.c.l.b16 %v6469
        %v7737 = vunpack.c.l.b16 %v6470
        %v7738 = vunpack.c.l.b16 %v6471
        %v7739 = vunpack.c.l.b16 %v6472
        %v7740 = vunpack.c.l.b16 %v6473
        %v7741 = vunpack.c.l.b16 %v6474
        %v7742 = vunpack.c.l.b16 %v6475
        %v7743 = vunpack.c.l.b16 %v6476
        %v7744 = vunpack.c.l.b16 %v6477
        %v7745 = vunpack.c.l.b16 %v6478
        %v7746 = vunpack.c.l.b16 %v6479
        %v7747 = vunpack.c.l.b16 %v6480
        %v7748 = vunpack.c.l.b16 %v6481
        %v7749 = vunpack.c.l.b16 %v6482
        %v7750 = vunpack.c.l.b16 %v6483
        %v7751 = vunpack.c.l.b16 %v6484
        %v7752 = vunpack.c.l.b16 %v6485
        %v7753 = vunpack.c.l.b16 %v6486
        %v7754 = vunpack.c.l.b16 %v6487
        %v7755 = vunpack.c.l.b16 %v6488
        %v7756 = vunpack.c.l.b16 %v6489
        %v7757 = vunpack.c.l.b16 %v6490
        %v7758 = vunpack.c.l.b16 %v6491
        %v7759 = vunpack.c.l.b16 %v6492
        %v7760 = vunpack.c.l.b16 %v6493
        %v7761 = vunpack.c.l.b16 %v6494
        %v7762 = vunpack.c.l.b16 %v6495
        %v7763 = vunpack.c.l.b16 %v6496
        %v7764 = vunpack.c.l.b16 %v6497
        %v7765 = vunpack.c.l.b16 %v6498
        %v7766 = vunpack.c.l.b16 %v6499
        %v7767 = vunpack.c.l.b16 %v6500
        %v7768 = vunpack.c.l.b16 %v6501
        %v7769 = vunpack.c.l.b16 %v6502
        %v7770 = vunpack.c.l.b16 %v6503
        %v7771 = vunpack.c.l.b16 %v6504
        %v7772 = vunpack.c.l.b16 %v6505
        %v7773 = vunpack.c.l.b16 %v6506
        %v7774 = vunpack.c.l.b16 %v6507
        %v7775 = vunpack.c.l.b16 %v6508
        %v7776 = vunpack.c.l.b16 %v6509
        %v7777 = vunpack.c.l.b16 %v6510
        %v7778 = vunpack.c.l.b16 %v6511
        %v7779 = vunpack.c.l.b16 %v6512
        %v7780 = vunpack.c.l.b16 %v6513
        %v7781 = vunpack.c.l.b16 %v6514
        %v7782 = vunpack.c.l.b16 %v6515
        %v7783 = vunpack.c.l.b16 %v6516
        %v7784 = vunpack.c.l.b16 %v6517
        %v7785 = vunpack.c.l.b16 %v6518
        %v7786 = vunpack.c.l.b16 %v6519
        %v7787 = vunpack.c.l.b16 %v6520
        %v7788 = vunpack.c.l.b16 %v6521
        %v7789 = vunpack.c.l.b16 %v6522
        %v7790 = vunpack.c.l.b16 %v6523
        %v7791 = vunpack.c.l.b16 %v6524
        %v7792 = vunpack.c.l.b16 %v6525
        %v7793 = vunpack.c.l.b16 %v6526
        %v7794 = vunpack.c.l.b16 %v6527
        %v7795 = vunpack.c.l.b16 %v6528
        %v7796 = vunpack.c.l.b16 %v6529
        %v7797 = vunpack.c.l.b16 %v6530
        %v7798 = vunpack.c.l.b16 %v6531
        %v7799 = vunpack.c.l.b16 %v6532
        %v7800 = vunpack.c.l.b16 %v6533
        %v7801 = vunpack.c.l.b16 %v6534
        %v7802 = vunpack.c.l.b16 %v6535
        %v7803 = vunpack.c.l.b16 %v6536
        %v7804 = vunpack.c.l.b16 %v6537
        %v7805 = vunpack.c.l.b16 %v6538
        %v7806 = vunpack.c.l.b16 %v6539
        %v7807 = vunpack.c.l.b16 %v6540
        %v7808 = vunpack.c.l.b16 %v6541
        %v7809 = vunpack.c.l.b16 %v6542
        %v7810 = vunpack.c.l.b16 %v6543
        %v7811 = vunpack.c.l.b16 %v6544
        %v7812 = vunpack.c.l.b16 %v6545
        %v7813 = vunpack.c.l.b16 %v6546
        %v7814 = vunpack.c.l.b16 %v6547
        %v7815 = vunpack.c.l.b16 %v6548
        %v7816 = vunpack.c.l.b16 %v6549
        %v7817 = vunpack.c.l.b16 %v6550
        %v7818 = vunpack.c.l.b16 %v6551
        %v7819 = vunpack.c.l.b16 %v6552
        %v7820 = vunpack.c.l.b16 %v6553
        %v7821 = vunpack.c.l.b16 %v6554
        %v7822 = vunpack.c.l.b16 %v6555
        %v7823 = vunpack.c.l.b16 %v6556
        %v7824 = vunpack.c.l.b16 %v6557
        %v7825 = vunpack.c.l.b16 %v6558
        %v7826 = vunpack.c.l.b16 %v6559
        %v7827 = vunpack.c.l.b16 %v6560
        %v7828 = vunpack.c.l.b16 %v6561
        %v7829 = vunpack.c.l.b16 %v6562
        %v7830 = vunpack.c.l.b16 %v6563
        %v7831 = vunpack.c.l.b16 %v6564
        %v7832 = vunpack.c.l.b16 %v6565
        %v7833 = vunpack.c.l.b16 %v6566
        %v7834 = vunpack.c.l.b16 %v6567
        %v7835 = vunpack.c.l.b16 %v6568
        %v7836 = vunpack.c.l.b16 %v6569
        %v7837 = vunpack.c.l.b16 %v6570
        %v7838 = vunpack.c.l.b16 %v6571
        %v7839 = vunpack.c.l.b16 %v6572
        %v7840 = vunpack.c.l.b16 %v6573
        %v7841 = vunpack.c.l.b16 %v6574
        %v7842 = vunpack.c.l.b16 %v6575
        %v7843 = vunpack.c.l.b16 %v6576
        %v7844 = vunpack.c.l.b16 %v6577
        %v7845 = vunpack.c.l.b16 %v6578
        %v7846 = vunpack.c.l.b16 %v6579
        %v7847 = vunpack.c.l.b16 %v6580
        %v7848 = vunpack.c.l.b16 %v6581
        %v7849 = vunpack.c.l.b16 %v6582
        %v7850 = vunpack.c.l.b16 %v6583
        %v7851 = vunpack.c.l.b16 %v6584
        %v7852 = vunpack.c.l.b16 %v6585
        %v7853 = vunpack.c.l.b16 %v6586
        %v7854 = vunpack.c.l.b16 %v6587
        %v7855 = vunpack.c.l.b16 %v6588
        %v7856 = vunpack.c.l.b16 %v6589
        %v7857 = vunpack.c.l.b16 %v6590
        %v7858 = vunpack.c.l.b16 %v6591
        %v7859 = vunpack.c.l.b16 %v6592
        %v7860 = vunpack.c.l.b16 %v6593
        %v7861 = vunpack.c.l.b16 %v6594
        %v7862 = vunpack.c.l.b16 %v6595
        %v7863 = vunpack.c.l.b16 %v6596
        %v7864 = vunpack.c.l.b16 %v6597
        %v7865 = vunpack.c.l.b16 %v6598
        %v7866 = vunpack.c.l.b16 %v6599
        %v7867 = vunpack.c.l.b16 %v6600
        %v7868 = vunpack.c.l.b16 %v6601
        %v7869 = vunpack.c.l.b16 %v6602
        %v7870 = vunpack.c.l.b16 %v6603
        %v7871 = vunpack.c.l.b16 %v6604
        %v7872 = vunpack.c.l.b16 %v6605
        %v7873 = vunpack.c.l.b16 %v6606
        %v7874 = vunpack.c.l.b16 %v6607
        %v7875 = vunpack.c.l.b16 %v6608
        %v7876 = vunpack.c.l.b16 %v6609
        %v7877 = vunpack.c.l.b16 %v6610
        %v7878 = vunpack.c.l.b16 %v6611
        %v7879 = vunpack.c.l.b16 %v6612
        %v7880 = vunpack.c.l.b16 %v6613
        %v7881 = vunpack.c.l.b16 %v6614
        %v7882 = vunpack.c.l.b16 %v6615
        %v7883 = vunpack.c.l.b16 %v6616
        %v7884 = vunpack.c.l.b16 %v6617
        %v7885 = vunpack.c.l.b16 %v6618
        %v7886 = vunpack.c.l.b16 %v6619
        %v7887 = vunpack.c.l.b16 %v6620
        %v7888 = vunpack.c.l.b16 %v6621
        %v7889 = vunpack.c.l.b16 %v6622
        %v7890 = vunpack.c.l.b16 %v6623
        %v7891 = vunpack.c.l.b16 %v6624
        %v7892 = vunpack.c.l.b16 %v6625
        %v7893 = vunpack.c.l.b16 %v6626
        %v7894 = vunpack.c.l.b16 %v6627
        %v7895 = vunpack.c.l.b16 %v6628
        %v7896 = vunpack.c.l.b16 %v6629
        %v7897 = vunpack.c.l.b16 %v6630
        %v7898 = vunpack.c.l.b16 %v6631
        %v7899 = vunpack.c.l.b16 %v6632
        %v7900 = vunpack.c.l.b16 %v6633
        %v7901 = vunpack.c.l.b16 %v6634
        %v7902 = vunpack.c.l.b16 %v6635
        %v7903 = vunpack.c.l.b16 %v6636
        %v7904 = vunpack.c.l.b16 %v6637
        %v7905 = vunpack.c.l.b16 %v6638
        %v7906 = vunpack.c.l.b16 %v6639
        %v7907 = vunpack.c.l.b16 %v6640
        %v7908 = vunpack.c.l.b16 %v6641
        %v7909 = vunpack.c.l.b16 %v6642
        %v7910 = vunpack.c.l.b16 %v6643
        %v7911 = vunpack.c.l.b16 %v6644
        %v7912 = vunpack.c.l.b16 %v6645
        %v7913 = vunpack.c.l.b16 %v6646
        %v7914 = vunpack.c.l.b16 %v6647
        %v7915 = vunpack.c.l.b16 %v6648
        %v7916 = vunpack.c.l.b16 %v6649
        %v7917 = vunpack.c.l.b16 %v6650
        %v7918 = vunpack.c.l.b16 %v6651
        %v7919 = vunpack.c.l.b16 %v6652
        %v7920 = vunpack.c.l.b16 %v6653
        %v7921 = vunpack.c.l.b16 %v6654
        %v7922 = vunpack.c.l.b16 %v6655
        %v7923 = vunpack.c.l.b16 %v6656
        %v7924 = vunpack.c.l.b16 %v6657
        %v7925 = vunpack.c.l.b16 %v6658
        %v7926 = vunpack.c.l.b16 %v6659
        %v7927 = vunpack.c.l.b16 %v6660
        %v7928 = vunpack.c.l.b16 %v6661
        %v7929 = vunpack.c.l.b16 %v6662
        %v7930 = vunpack.c.l.b16 %v6663
        %v7931 = vunpack.c.l.b16 %v6664
        %v7932 = vunpack.c.l.b16 %v6665
        %v7933 = vunpack.c.l.b16 %v6666
        %v7934 = vunpack.c.l.b16 %v6667
        %v7935 = vunpack.c.l.b16 %v6668
        %v7936 = vunpack.c.l.b16 %v6669
        %v7937 = vunpack.c.l.b16 %v6670
        %v7938 = vunpack.c.l.b16 %v6671
        %v7939 = vunpack.c.l.b16 %v6672
        %v7940 = vunpack.c.l.b16 %v6673
        %v7941 = vunpack.c.l.b16 %v6674
        %v7942 = vunpack.c.l.b16 %v6675
        %v7943 = vunpack.c.l.b16 %v6676
        %v7944 = vunpack.c.l.b16 %v6677
        %v7945 = vunpack.c.l.b16 %v6678
        %v7946 = vunpack.c.l.b16 %v6679
        %v7947 = vunpack.c.l.b16 %v6680
        %v7948 = vunpack.c.l.b16 %v6681
        %v7949 = vunpack.c.l.b16 %v6682
        %v7950 = vunpack.c.l.b16 %v6683
        %v7951 = vunpack.c.l.b16 %v6684
        %v7952 = vunpack.c.l.b16 %v6685
        %v7953 = vunpack.c.l.b16 %v6686
        %v7954 = vunpack.c.l.b16 %v6687
        %v7955 = vunpack.c.l.b16 %v6688
        %v7956 = vunpack.c.l.b16 %v6689
        %v7957 = vunpack.c.l.b16 %v6690
        %v7958 = vunpack.c.l.b16 %v6691
        %v7959 = vunpack.c.l.b16 %v6692
        %v7960 = vunpack.c.l.b16 %v6693
        %v7961 = vunpack.c.l.b16 %v6694
        %v7962 = vunpack.c.l.b16 %v6695
        %v7963 = vunpack.c.l.b16 %v6696
        %v7964 = vunpack.c.l.b16 %v6697
        %v7965 = vunpack.c.l.b16 %v6698
        %v7966 = vunpack.c.l.b16 %v6699
        %v7967 = vunpack.c.l.b16 %v6700
        %v7968 = vunpack.c.l.b16 %v6701
        %v7969 = vunpack.c.l.b16 %v6702
        %v7970 = vunpack.c.l.b16 %v6703
        %v7971 = vunpack.c.l.b16 %v6704
        %v7972 = vunpack.c.l.b16 %v6705
        %v7973 = vunpack.c.l.b16 %v6706
        %v7974 = vunpack.c.l.b16 %v6707
        %v7975 = vunpack.c.l.b16 %v6708
        %v7976 = vunpack.c.l.b16 %v6709
        %v7977 = vunpack.c.l.b16 %v6710
        %v7978 = vunpack.c.l.b16 %v6711
        %v7979 = vunpack.c.l.b16 %v6712
        %v7980 = vunpack.c.l.b16 %v6713
        %v7981 = vunpack.c.l.b16 %v6714
        %v7982 = vunpack.c.l.b16 %v6715
        %v7983 = vunpack.c.l.b16 %v6716
        %v7984 = vunpack.c.l.b16 %v6717
        %v7985 = vunpack.c.l.b16 %v6718
        %v7986 = vunpack.c.l.b16 %v6719
        %v7987 = vunpack.c.l.b16 %v6720
        %v7988 = vunpack.c.l.b16 %v6721
        %v7989 = vunpack.c.l.b16 %v6722
        %v7990 = vunpack.c.l.b16 %v6723
        %v7991 = vunpack.c.l.b16 %v6724
        %v7992 = vunpack.c.l.b16 %v6725
        %v7993 = vunpack.c.l.b16 %v6726
        %v7994 = vunpack.c.l.b16 %v6727
        %v7995 = vunpack.c.l.b16 %v6728
        %v7996 = vunpack.c.l.b16 %v6729
        %v7997 = vunpack.c.l.b16 %v6730
        %v7998 = vunpack.c.l.b16 %v6731
        %v7999 = vunpack.c.l.b16 %v6732
        %v8000 = vunpack.c.l.b16 %v6733
        %v8001 = vunpack.c.l.b16 %v6734
        %v8002 = vunpack.c.l.b16 %v6735
        %v8003 = vunpack.c.l.b16 %v6736
        %v8004 = vunpack.c.l.b16 %v6737
        %v8005 = vunpack.c.l.b16 %v6738
        %v8006 = vunpack.c.l.b16 %v6739
        %v8007 = vunpack.c.l.b16 %v6740
        %v8008 = vunpack.c.l.b16 %v6741
        %v8009 = vunpack.c.l.b16 %v6742
        %v8010 = vunpack.c.l.b16 %v6743
        %v8011 = vunpack.c.l.b16 %v6744
        %v8012 = vunpack.c.l.b16 %v6745
        %v8013 = vunpack.c.l.b16 %v6746
        %v8014 = vunpack.c.l.b16 %v6747
        %v8015 = vunpack.c.l.b16 %v6748
        %v8016 = vunpack.c.l.b16 %v6749
        %v8017 = vunpack.c.l.b16 %v6750
        %v8018 = vunpack.c.l.b16 %v6751
        %v8019 = vunpack.c.l.b16 %v6752
        %v8020 = vunpack.c.l.b16 %v6753
        %v8021 = vunpack.c.l.b16 %v6754
        %v8022 = vunpack.c.l.b16 %v6755
        %v8023 = vunpack.c.l.b16 %v6756
        %v8024 = vunpack.c.l.b16 %v6757
        %v8025 = vunpack.c.l.b16 %v6758
        %v8026 = vunpack.c.l.b16 %v6759
        %v8027 = vunpack.c.l.b16 %v6760
        %v8028 = vunpack.c.l.b16 %v6761
        %v8029 = vunpack.c.l.b16 %v6762
        %v8030 = vunpack.c.l.b16 %v6763
        %v8031 = vunpack.c.l.b16 %v6764
        %v8032 = vunpack.c.l.b16 %v6765
        %v8033 = vunpack.c.l.b16 %v6766
        %v8034 = vunpack.c.l.b16 %v6767
        %v8035 = vunpack.c.l.b16 %v6768
        %v8036 = vunpack.c.l.b16 %v6769
        %v8037 = vunpack.c.l.b16 %v6770
        %v8038 = vunpack.c.l.b16 %v6771
        %v8039 = vunpack.c.l.b16 %v6772
        %v8040 = vunpack.c.l.b16 %v6773
        %v8041 = vunpack.c.l.b16 %v6774
        %v8042 = vunpack.c.l.b16 %v6775
        %v8043 = vunpack.c.l.b16 %v6776
        %v8044 = vunpack.c.l.b16 %v6777
        %v8045 = vunpack.c.l.b16 %v6778
        %v8046 = vunpack.c.l.b16 %v6779
        %v8047 = vunpack.c.l.b16 %v6780
        %v8048 = vunpack.c.l.b16 %v6781
        %v8049 = vunpack.c.l.b16 %v6782
        %v8050 = vunpack.c.l.b16 %v6783
        %v8051 = vunpack.c.l.b16 %v6784
        %v8052 = vunpack.c.l.b16 %v6785
        %v8053 = vunpack.c.l.b16 %v6786
        %v8054 = vunpack.c.l.b16 %v6787
        %v8055 = vunpack.c.l.b16 %v6788
        %v8056 = vunpack.c.l.b16 %v6789
        %v8057 = vunpack.c.l.b16 %v6790
        %v8058 = vunpack.c.l.b16 %v6791
        %v8059 = vunpack.c.l.b16 %v6792
        %v8060 = vunpack.c.l.b16 %v6793
        %v8061 = vunpack.c.l.b16 %v6794
        %v8062 = vunpack.c.l.b16 %v6795
        %v8063 = vunpack.c.l.b16 %v6796
        %v8064 = vunpack.c.l.b16 %v6797
        %v8065 = vunpack.c.l.b16 %v6798
        %v8066 = vunpack.c.l.b16 %v6799
        %v8067 = vunpack.c.l.b16 %v6800
        %v8068 = vunpack.c.l.b16 %v6801
        %v8069 = vunpack.c.l.b16 %v6802
        %v8070 = vunpack.c.l.b16 %v6803
        %v8071 = vunpack.c.l.b16 %v6804
        %v8072 = vunpack.c.l.b16 %v6805
        %v8073 = vunpack.c.l.b16 %v6806
        %v8074 = vunpack.c.l.b16 %v6807
        %v8075 = vunpack.c.l.b16 %v6808
        %v8076 = vunpack.c.l.b16 %v6809
        %v8077 = vunpack.c.l.b16 %v6810
        %v8078 = vunpack.c.l.b16 %v6811
        %v8079 = vunpack.c.l.b16 %v6812
        %v8080 = vunpack.c.l.b16 %v6813
        %v8081 = vunpack.c.l.b16 %v6814
        %v8082 = vunpack.c.l.b16 %v6815
        %v8083 = vunpack.c.l.b16 %v6816
        %v8084 = vunpack.c.l.b16 %v6817
        %v8085 = vunpack.c.l.b16 %v6818
        %v8086 = vunpack.c.l.b16 %v6819
        %v8087 = vunpack.c.l.b16 %v6820
        %v8088 = vunpack.c.l.b16 %v6821
        %v8089 = vunpack.c.l.b16 %v6822
        %v8090 = vunpack.c.l.b16 %v6823
        %v8091 = vunpack.c.l.b16 %v6824
        %v8092 = vunpack.c.l.b16 %v6825
        %v8093 = vunpack.c.l.b16 %v6826
        %v8094 = vunpack.c.l.b16 %v6827
        %v8095 = vunpack.c.l.b16 %v6828
        %v8096 = vunpack.c.l.b16 %v6829
        %v8097 = vunpack.c.l.b16 %v6830
        %v8098 = vunpack.c.l.b16 %v6831
        %v8099 = vunpack.c.l.b16 %v6832
        %v8100 = vunpack.c.l.b16 %v6833
        %v8101 = vunpack.c.l.b16 %v6834
        %v8102 = vunpack.c.l.b16 %v6835
        %v8103 = vunpack.c.l.b16 %v6836
        %v8104 = vunpack.c.l.b16 %v6837
        %v8105 = vunpack.c.l.b16 %v6838
        %v8106 = vunpack.c.l.b16 %v6839
        %v8107 = vunpack.c.l.b16 %v6840
        %v8108 = vunpack.c.l.b16 %v6841
        %v8109 = vunpack.c.l.b16 %v6842
        %v8110 = vunpack.c.l.b16 %v6843
        %v8111 = vunpack.c.l.b16 %v6844
        %v8112 = vunpack.c.l.b16 %v6845
        %v8113 = vunpack.c.l.b16 %v6846
        %v8114 = vunpack.c.l.b16 %v6847
        %v8115 = vunpack.c.l.b16 %v6848
        %v8116 = vunpack.c.l.b16 %v6849
        %v8117 = vunpack.c.l.b16 %v6850
        %v8118 = vunpack.c.l.b16 %v6851
        %v8119 = vunpack.c.l.b16 %v6852
        %v8120 = vunpack.c.l.b16 %v6853
        %v8121 = vunpack.c.l.b16 %v6854
        %v8122 = vunpack.c.l.b16 %v6855
        %v8123 = vunpack.c.l.b16 %v6856
        %v8124 = vunpack.c.l.b16 %v6857
        %v8125 = vunpack.c.l.b16 %v6858
        %v8126 = vunpack.c.l.b16 %v6859
        %v8127 = vunpack.c.l.b16 %v6860
        %v8128 = vunpack.c.l.b16 %v6861
        %v8129 = vunpack.c.l.b16 %v6862
        %v8130 = vunpack.c.l.b16 %v6863
        %v8131 = vunpack.c.l.b16 %v6864
        %v8132 = vunpack.c.l.b16 %v6865
        %v8133 = vunpack.c.l.b16 %v6866
        %v8134 = vunpack.c.l.b16 %v6867
        %v8135 = vunpack.c.l.b16 %v6868
        %v8136 = vunpack.c.l.b16 %v6869
        %v8137 = vunpack.c.l.b16 %v6870
        %v8138 = vunpack.c.l.b16 %v6871
        %v8139 = vunpack.c.l.b16 %v6872
        %v8140 = vunpack.c.l.b16 %v6873
        %v8141 = vunpack.c.l.b16 %v6874
        %v8142 = vunpack.c.l.b16 %v6875
        %v8143 = vunpack.c.l.b16 %v6876
        %v8144 = vunpack.c.l.b16 %v6877
        %v8145 = vunpack.c.l.b16 %v6878
        %v8146 = vunpack.c.l.b16 %v6879
        %v8147 = vunpack.c.l.b16 %v6880
        %v8148 = vunpack.c.l.b16 %v6881
        %v8149 = vunpack.c.l.b16 %v6882
        %v8150 = vunpack.c.l.b16 %v6883
        %v8151 = vunpack.c.l.b16 %v6884
        %v8152 = vunpack.c.l.b16 %v6885
        %v8153 = vunpack.c.l.b16 %v6886
        %v8154 = vunpack.c.l.b16 %v6887
        %v8155 = vunpack.c.l.b16 %v6888
        %v8156 = vunpack.c.l.b16 %v6889
        %v8157 = vunpack.c.l.b16 %v6890
        %v8158 = vunpack.c.l.b16 %v6891
        %v8159 = vunpack.c.l.b16 %v6892
        %v8160 = vunpack.c.l.b16 %v6893
        %v8161 = vunpack.c.l.b16 %v6894
        %v8162 = vunpack.c.l.b16 %v6895
        %v8163 = vunpack.c.l.b16 %v6896
        %v8164 = vunpack.c.l.b16 %v6897
        %v8165 = vunpack.c.l.b16 %v6898
        %v8166 = vunpack.c.l.b16 %v6899
        %v8167 = vunpack.c.l.b16 %v6900
        %v8168 = vunpack.c.l.b16 %v6901
        %v8169 = vunpack.c.l.b16 %v6902
        %v8170 = vunpack.c.l.b16 %v6903
        %v8171 = vunpack.c.l.b16 %v6904
        %v8172 = vunpack.c.l.b16 %v6905
        %v8173 = vunpack.c.l.b16 %v6906
        %v8174 = vunpack.c.l.b16 %v6907
        %v8175 = vunpack.c.l.b16 %v6908
        %v8176 = vunpack.c.l.b16 %v6909
        %v8177 = vunpack.c.l.b16 %v6910
        %v8178 = vunpack.c.l.b16 %v6911
        %v8179 = vunpack.c.l.b16 %v6912
        %v8180 = vunpack.c.l.b16 %v6913
        %v8181 = vunpack.c.l.b16 %v6914
        %v8182 = vunpack.c.l.b16 %v6915
        %v8183 = vunpack.c.l.b16 %v6916
        %v8184 = vunpack.c.l.b16 %v6917
        %v8185 = vunpack.c.l.b16 %v6918
        %v8186 = vunpack.c.l.b16 %v6919
        %v8187 = vunpack.c.l.b16 %v6920
        %v8188 = vunpack.c.l.b16 %v6921
        %v8189 = vunpack.c.l.b16 %v6922
        %v8190 = vunpack.c.l.b16 %v6923
        %v8191 = vunpack.c.l.b16 %v6924
        %v8192 = vunpack.c.l.b16 %v6925
        %v8193 = vunpack.c.l.b16 %v6926
        %v8194 = vunpack.c.l.b16 %v6927
        %v8195 = vunpack.c.l.b16 %v6928
        %v8196 = vunpack.c.l.b16 %v6929
        %v8197 = vunpack.c.l.b16 %v6930
        %v8198 = vunpack.c.l.b16 %v6931
        %v8199 = vunpack.c.l.b16 %v6932
        %v8200 = vunpack.c.l.b16 %v6933
        %v8201 = vunpack.c.l.b16 %v6934
        %v8202 = vunpack.c.l.b16 %v6935
        %v8203 = vunpack.c.l.b16 %v6936
        %v8204 = vunpack.c.l.b16 %v6937
        %v8205 = vunpack.c.l.b16 %v6938
        %v8206 = vpack.c.b16 %v7727, %v7726
        %v8207 = vpack.c.b16 %v7729, %v7728
        %v8208 = vpack.c.b16 %v7731, %v7730
        %v8209 = vpack.c.b16 %v7733, %v7732
        %v8210 = vpack.c.b16 %v7735, %v7734
        %v8211 = vpack.c.b16 %v7737, %v7736
        %v8212 = vpack.c.b16 %v7739, %v7738
        %v8213 = vpack.c.b16 %v7741, %v7740
        %v8214 = vpack.c.b16 %v7743, %v7742
        %v8215 = vpack.c.b16 %v7745, %v7744
        %v8216 = vpack.c.b16 %v7747, %v7746
        %v8217 = vpack.c.b16 %v7749, %v7748
        %v8218 = vpack.c.b16 %v7751, %v7750
        %v8219 = vpack.c.b16 %v7753, %v7752
        %v8220 = vpack.c.b16 %v7755, %v7754
        %v8221 = vpack.c.b16 %v7757, %v7756
        %v8222 = vpack.c.b16 %v7759, %v7758
        %v8223 = vpack.c.b16 %v7761, %v7760
        %v8224 = vpack.c.b16 %v7763, %v7762
        %v8225 = vpack.c.b16 %v7765, %v7764
        %v8226 = vpack.c.b16 %v7767, %v7766
        %v8227 = vpack.c.b16 %v7769, %v7768
        %v8228 = vpack.c.b16 %v7771, %v7770
        %v8229 = vpack.c.b16 %v7773, %v7772
        %v8230 = vpack.c.b16 %v7775, %v7774
        %v8231 = vpack.c.b16 %v7777, %v7776
        %v8232 = vpack.c.b16 %v7779, %v7778
        %v8233 = vpack.c.b16 %v7781, %v7780
        %v8234 = vpack.c.b16 %v7783, %v7782
        %v8235 = vpack.c.b16 %v7785, %v7784
        %v8236 = vpack.c.b16 %v7787, %v7786
        %v8237 = vpack.c.b16 %v7789, %v7788
        %v8238 = vpack.c.b16 %v7791, %v7790
        %v8239 = vpack.c.b16 %v7793, %v7792
        %v8240 = vpack.c.b16 %v7795, %v7794
        %v8241 = vpack.c.b16 %v7797, %v7796
        %v8242 = vpack.c.b16 %v7799, %v7798
        %v8243 = vpack.c.b16 %v7801, %v7800
        %v8244 = vpack.c.b16 %v7803, %v7802
        %v8245 = vpack.c.b16 %v7805, %v7804
        %v8246 = vpack.c.b16 %v7807, %v7806
        %v8247 = vpack.c.b16 %v7809, %v7808
        %v8248 = vpack.c.b16 %v7811, %v7810
        %v8249 = vpack.c.b16 %v7813, %v7812
        %v8250 = vpack.c.b16 %v7815, %v7814
        %v8251 = vpack.c.b16 %v7817, %v7816
        %v8252 = vpack.c.b16 %v7819, %v7818
        %v8253 = vpack.c.b16 %v7821, %v7820
        %v8254 = vpack.c.b16 %v7823, %v7822
        %v8255 = vpack.c.b16 %v7825, %v7824
        %v8256 = vpack.c.b16 %v7827, %v7826
        %v8257 = vpack.c.b16 %v7829, %v7828
        %v8258 = vpack.c.b16 %v7831, %v7830
        %v8259 = vpack.c.b16 %v7833, %v7832
        %v8260 = vpack.c.b16 %v7835, %v7834
        %v8261 = vpack.c.b16 %v7837, %v7836
        %v8262 = vpack.c.b16 %v7839, %v7838
        %v8263 = vpack.c.b16 %v7841, %v7840
        %v8264 = vpack.c.b16 %v7843, %v7842
        %v8265 = vpack.c.b16 %v7845, %v7844
        %v8266 = vpack.c.b16 %v7847, %v7846
        %v8267 = vpack.c.b16 %v7849, %v7848
        %v8268 = vpack.c.b16 %v7851, %v7850
        %v8269 = vpack.c.b16 %v7853, %v7852
        %v8270 = vpack.c.b16 %v7855, %v7854
        %v8271 = vpack.c.b16 %v7857, %v7856
        %v8272 = vpack.c.b16 %v7859, %v7858
        %v8273 = vpack.c.b16 %v7861, %v7860
        %v8274 = vpack.c.b16 %v7863, %v7862
        %v8275 = vpack.c.b16 %v7865, %v7864
        %v8276 = vpack.c.b16 %v7867, %v7866
        %v8277 = vpack.c.b16 %v7869, %v7868
        %v8278 = vpack.c.b16 %v7871, %v7870
        %v8279 = vpack.c.b16 %v7873, %v7872
        %v8280 = vpack.c.b16 %v7875, %v7874
        %v8281 = vpack.c.b16 %v7877, %v7876
        %v8282 = vpack.c.b16 %v7879, %v7878
        %v8283 = vpack.c.b16 %v7881, %v7880
        %v8284 = vpack.c.b16 %v7883, %v7882
        %v8285 = vpack.c.b16 %v7885, %v7884
        %v8286 = vpack.c.b16 %v7887, %v7886
        %v8287 = vpack.c.b16 %v7889, %v7888
        %v8288 = vpack.c.b16 %v7891, %v7890
        %v8289 = vpack.c.b16 %v7893, %v7892
        %v8290 = vpack.c.b16 %v7895, %v7894
        %v8291 = vpack.c.b16 %v7897, %v7896
        %v8292 = vpack.c.b16 %v7899, %v7898
        %v8293 = vpack.c.b16 %v7901, %v7900
        %v8294 = vpack.c.b16 %v7903, %v7902
        %v8295 = vpack.c.b16 %v7905, %v7904
        %v8296 = vpack.c.b16 %v7907, %v7906
        %v8297 = vpack.c.b16 %v7909, %v7908
        %v8298 = vpack.c.b16 %v7911, %v7910
        %v8299 = vpack.c.b16 %v7913, %v7912
        %v8300 = vpack.c.b16 %v7915, %v7914
        %v8301 = vpack.c.b16 %v7917, %v7916
        %v8302 = vpack.c.b16 %v7919, %v7918
        %v8303 = vpack.c.b16 %v7921, %v7920
        %v8304 = vpack.c.b16 %v7923, %v7922
        %v8305 = vpack.c.b16 %v7925, %v7924
        %v8306 = vpack.c.b16 %v7927, %v7926
        %v8307 = vpack.c.b16 %v7929, %v7928
        %v8308 = vpack.c.b16 %v7931, %v7930
        %v8309 = vpack.c.b16 %v7933, %v7932
        %v8310 = vpack.c.b16 %v7935, %v7934
        %v8311 = vpack.c.b16 %v7937, %v7936
        %v8312 = vpack.c.b16 %v7939, %v7938
        %v8313 = vpack.c.b16 %v7941, %v7940
        %v8314 = vpack.c.b16 %v7943, %v7942
        %v8315 = vpack.c.b16 %v7945, %v7944
        %v8316 = vpack.c.b16 %v7947, %v7946
        %v8317 = vpack.c.b16 %v7949, %v7948
        %v8318 = vpack.c.b16 %v7951, %v7950
        %v8319 = vpack.c.b16 %v7953, %v7952
        %v8320 = vpack.c.b16 %v7955, %v7954
        %v8321 = vpack.c.b16 %v7957, %v7956
        %v8322 = vpack.c.b16 %v7959, %v7958
        %v8323 = vpack.c.b16 %v7961, %v7960
        %v8324 = vpack.c.b16 %v7963, %v7962
        %v8325 = vpack.c.b16 %v7965, %v7964
        %v8326 = vpack.c.b16 %v7967, %v7966
        %v8327 = vpack.c.b16 %v7969, %v7968
        %v8328 = vpack.c.b16 %v7971, %v7970
        %v8329 = vpack.c.b16 %v7973, %v7972
        %v8330 = vpack.c.b16 %v7975, %v7974
        %v8331 = vpack.c.b16 %v7977, %v7976
        %v8332 = vpack.c.b16 %v7979, %v7978
        %v8333 = vpack.c.b16 %v7981, %v7980
        %v8334 = vpack.c.b16 %v7983, %v7982
        %v8335 = vpack.c.b16 %v7985, %v7984
        %v8336 = vpack.c.b16 %v7987, %v7986
        %v8337 = vpack.c.b16 %v7989, %v7988
        %v8338 = vpack.c.b16 %v7991, %v7990
        %v8339 = vpack.c.b16 %v7993, %v7992
        %v8340 = vpack.c.b16 %v7995, %v7994
        %v8341 = vpack.c.b16 %v7997, %v7996
        %v8342 = vpack.c.b16 %v7999, %v7998
        %v8343 = vpack.c.b16 %v8001, %v8000
        %v8344 = vpack.c.b16 %v8003, %v8002
        %v8345 = vpack.c.b16 %v8005, %v8004
        %v8346 = vpack.c.b16 %v8007, %v8006
        %v8347 = vpack.c.b16 %v8009, %v8008
        %v8348 = vpack.c.b16 %v8011, %v8010
        %v8349 = vpack.c.b16 %v8013, %v8012
        %v8350 = vpack.c.b16 %v8015, %v8014
        %v8351 = vpack.c.b16 %v8017, %v8016
        %v8352 = vpack.c.b16 %v8019, %v8018
        %v8353 = vpack.c.b16 %v8021, %v8020
        %v8354 = vpack.c.b16 %v8023, %v8022
        %v8355 = vpack.c.b16 %v8025, %v8024
        %v8356 = vpack.c.b16 %v8027, %v8026
        %v8357 = vpack.c.b16 %v8029, %v8028
        %v8358 = vpack.c.b16 %v8031, %v8030
        %v8359 = vpack.c.b16 %v8033, %v8032
        %v8360 = vpack.c.b16 %v8035, %v8034
        %v8361 = vpack.c.b16 %v8037, %v8036
        %v8362 = vpack.c.b16 %v8039, %v8038
        %v8363 = vpack.c.b16 %v8041, %v8040
        %v8364 = vpack.c.b16 %v8043, %v8042
        %v8365 = vpack.c.b16 %v8045, %v8044
        %v8366 = vpack.c.b16 %v8047, %v8046
        %v8367 = vpack.c.b16 %v8049, %v8048
        %v8368 = vpack.c.b16 %v8051, %v8050
        %v8369 = vpack.c.b16 %v8053, %v8052
        %v8370 = vpack.c.b16 %v8055, %v8054
        %v8371 = vpack.c.b16 %v8057, %v8056
        %v8372 = vpack.c.b16 %v8059, %v8058
        %v8373 = vpack.c.b16 %v8061, %v8060
        %v8374 = vpack.c.b16 %v8063, %v8062
        %v8375 = vpack.c.b16 %v8065, %v8064
        %v8376 = vpack.c.b16 %v8067, %v8066
        %v8377 = vpack.c.b16 %v8069, %v8068
        %v8378 = vpack.c.b16 %v8071, %v8070
        %v8379 = vpack.c.b16 %v8073, %v8072
        %v8380 = vpack.c.b16 %v8075, %v8074
        %v8381 = vpack.c.b16 %v8077, %v8076
        %v8382 = vpack.c.b16 %v8079, %v8078
        %v8383 = vpack.c.b16 %v8081, %v8080
        %v8384 = vpack.c.b16 %v8083, %v8082
        %v8385 = vpack.c.b16 %v8085, %v8084
        %v8386 = vpack.c.b16 %v8087, %v8086
        %v8387 = vpack.c.b16 %v8089, %v8088
        %v8388 = vpack.c.b16 %v8091, %v8090
        %v8389 = vpack.c.b16 %v8093, %v8092
        %v8390 = vpack.c.b16 %v8095, %v8094
        %v8391 = vpack.c.b16 %v8097, %v8096
        %v8392 = vpack.c.b16 %v8099, %v8098
        %v8393 = vpack.c.b16 %v8101, %v8100
        %v8394 = vpack.c.b16 %v8103, %v8102
        %v8395 = vpack.c.b16 %v8105, %v8104
        %v8396 = vpack.c.b16 %v8107, %v8106
        %v8397 = vpack.c.b16 %v8109, %v8108
        %v8398 = vpack.c.b16 %v8111, %v8110
        %v8399 = vpack.c.b16 %v8113, %v8112
        %v8400 = vpack.c.b16 %v8115, %v8114
        %v8401 = vpack.c.b16 %v8117, %v8116
        %v8402 = vpack.c.b16 %v8119, %v8118
        %v8403 = vpack.c.b16 %v8121, %v8120
        %v8404 = vpack.c.b16 %v8123, %v8122
        %v8405 = vpack.c.b16 %v8125, %v8124
        %v8406 = vpack.c.b16 %v8127, %v8126
        %v8407 = vpack.c.b16 %v8129, %v8128
        %v8408 = vpack.c.b16 %v8131, %v8130
        %v8409 = vpack.c.b16 %v8133, %v8132
        %v8410 = vpack.c.b16 %v8135, %v8134
        %v8411 = vpack.c.b16 %v8137, %v8136
        %v8412 = vpack.c.b16 %v8139, %v8138
        %v8413 = vpack.c.b16 %v8141, %v8140
        %v8414 = vpack.c.b16 %v8143, %v8142
        %v8415 = vpack.c.b16 %v8145, %v8144
        %v8416 = vpack.c.b16 %v8147, %v8146
        %v8417 = vpack.c.b16 %v8149, %v8148
        %v8418 = vpack.c.b16 %v8151, %v8150
        %v8419 = vpack.c.b16 %v8153, %v8152
        %v8420 = vpack.c.b16 %v8155, %v8154
        %v8421 = vpack.c.b16 %v8157, %v8156
        %v8422 = vpack.c.b16 %v8159, %v8158
        %v8423 = vpack.c.b16 %v8161, %v8160
        %v8424 = vpack.c.b16 %v8163, %v8162
        %v8425 = vpack.c.b16 %v8165, %v8164
        %v8426 = vpack.c.b16 %v8167, %v8166
        %v8427 = vpack.c.b16 %v8169, %v8168
        %v8428 = vpack.c.b16 %v8171, %v8170
        %v8429 = vpack.c.b16 %v8173, %v8172
        %v8430 = vpack.c.b16 %v8175, %v8174
        %v8431 = vpack.c.b16 %v8177, %v8176
        %v8432 = vpack.c.b16 %v8179, %v8178
        %v8433 = vpack.c.b16 %v8181, %v8180
        %v8434 = vpack.c.b16 %v8183, %v8182
        %v8435 = vpack.c.b16 %v8185, %v8184
        %v8436 = vpack.c.b16 %v8187, %v8186
        %v8437 = vpack.c.b16 %v8189, %v8188
        %v8438 = vpack.c.b16 %v8191, %v8190
        %v8439 = vpack.c.b16 %v8193, %v8192
        %v8440 = vpack.c.b16 %v8195, %v8194
        %v8441 = vpack.c.b16 %v8197, %v8196
        %v8442 = vpack.c.b16 %v8199, %v8198
        %v8443 = vpack.c.b16 %v8201, %v8200
        %v8444 = vpack.c.b16 %v8203, %v8202
        %v8445 = vpack.c.b16 %v8205, %v8204
        %8686 = vmatprep.subr.bf16.mxu0 0
        %8687 = vmatpush1.bf16.msra.mxu0 %v8206
        %8688 = vmatprep.subr.bf16.mxu0 0
        %8689 = vmatpush1.bf16.msra.mxu0 %v8207
        %8690 = vmatprep.subr.bf16.mxu0 0
        %8691 = vmatpush1.bf16.msra.mxu0 %v8208
        %8692 = vmatprep.subr.bf16.mxu0 0
        %8693 = vmatpush1.bf16.msra.mxu0 %v8209
        %8694 = vmatprep.subr.bf16.mxu0 0
        %8695 = vmatpush1.bf16.msra.mxu0 %v8210
        %8696 = vmatprep.subr.bf16.mxu0 0
        %8697 = vmatpush1.bf16.msra.mxu0 %v8211
        %8698 = vmatprep.subr.bf16.mxu0 0
        %8699 = vmatpush1.bf16.msra.mxu0 %v8212
        %8700 = vmatprep.subr.bf16.mxu0 0
        %8701 = vmatpush1.bf16.msra.mxu0 %v8213
        %8702 = vmatprep.subr.bf16.mxu0 0
        %8703 = vmatpush1.bf16.msra.mxu0 %v8214
        %8704 = vmatprep.subr.bf16.mxu0 0
        %8705 = vmatpush1.bf16.msra.mxu0 %v8215
        %8706 = vmatprep.subr.bf16.mxu0 0
        %8707 = vmatpush1.bf16.msra.mxu0 %v8216
        %8708 = vmatprep.subr.bf16.mxu0 0
        %8709 = vmatpush1.bf16.msra.mxu0 %v8217
        %8710 = vmatprep.subr.bf16.mxu0 0
        %8711 = vmatpush1.bf16.msra.mxu0 %v8218
        %8712 = vmatprep.subr.bf16.mxu0 0
        %8713 = vmatpush1.bf16.msra.mxu0 %v8219
        %8714 = vmatprep.subr.bf16.mxu0 0
        %8715 = vmatpush1.bf16.msra.mxu0 %v8220
        %8716 = vmatprep.subr.bf16.mxu0 0
        %8717 = vmatpush1.bf16.msra.mxu0 %v8221
        %8718 = vmatprep.mubr.bf16.mxu0 %v7127
        %8719 = vmatmul.mubr.bf16.gmra.mrb[0].mxu0 %v7126
        %v8720 = vpop.f32.mrb[0].mxu0
        %v8721 = vadd.f32 %v6944, %v8720
        %v8722 = vpop.f32.mrb[0].mxu0
        %v8723 = vpop.f32.mrb[0].mxu0
        %v8724 = vadd.f32 %v6944, %v8723
        %v8725 = vpop.f32.mrb[0].mxu0
        %8726 = vmatprep.mubr.bf16.mxu0 %v7157
        %8727 = vmatmul.mubr.bf16.gmra.mrb[0].mxu0 %v7156
        %v8728 = vpop.f32.mrb[0].mxu0
        %v8729 = vadd.f32 %v6944, %v8728
        %v8730 = vpop.f32.mrb[0].mxu0
        %v8731 = vpop.f32.mrb[0].mxu0
        %v8732 = vadd.f32 %v6944, %v8731
        %v8733 = vpop.f32.mrb[0].mxu0
        %8734 = vdwg.mxu0
        %8735 = vmatprep.subr.bf16.mxu0 0
        %8736 = vmatpush1.bf16.msra.mxu0 %v8222
        %8737 = vmatprep.subr.bf16.mxu0 0
        %8738 = vmatpush1.bf16.msra.mxu0 %v8223
        %8739 = vmatprep.subr.bf16.mxu0 0
        %8740 = vmatpush1.bf16.msra.mxu0 %v8224
        %8741 = vmatprep.subr.bf16.mxu0 0
        %8742 = vmatpush1.bf16.msra.mxu0 %v8225
        %8743 = vmatprep.subr.bf16.mxu0 0
        %8744 = vmatpush1.bf16.msra.mxu0 %v8226
        %8745 = vmatprep.subr.bf16.mxu0 0
        %8746 = vmatpush1.bf16.msra.mxu0 %v8227
        %8747 = vmatprep.subr.bf16.mxu0 0
        %8748 = vmatpush1.bf16.msra.mxu0 %v8228
        %8749 = vmatprep.subr.bf16.mxu0 0
        %8750 = vmatpush1.bf16.msra.mxu0 %v8229
        %8751 = vmatprep.subr.bf16.mxu0 0
        %8752 = vmatpush1.bf16.msra.mxu0 %v8230
        %8753 = vmatprep.subr.bf16.mxu0 0
        %8754 = vmatpush1.bf16.msra.mxu0 %v8231
        %8755 = vmatprep.subr.bf16.mxu0 0
        %8756 = vmatpush1.bf16.msra.mxu0 %v8232
        %8757 = vmatprep.subr.bf16.mxu0 0
        %8758 = vmatpush1.bf16.msra.mxu0 %v8233
        %8759 = vmatprep.subr.bf16.mxu0 0
        %8760 = vmatpush1.bf16.msra.mxu0 %v8234
        %8761 = vmatprep.subr.bf16.mxu0 0
        %8762 = vmatpush1.bf16.msra.mxu0 %v8235
        %8763 = vmatprep.subr.bf16.mxu0 0
        %8764 = vmatpush1.bf16.msra.mxu0 %v8236
        %8765 = vmatprep.subr.bf16.mxu0 0
        %8766 = vmatpush1.bf16.msra.mxu0 %v8237
        %8767 = vmatprep.mubr.bf16.mxu0 %v7129
        %8768 = vmatmul.mubr.bf16.gmra.mrb[0].mxu0 %v7128
        %v8769 = vpop.f32.mrb[0].mxu0
        %v8770 = vadd.f32 %v8721, %v8769
        %v8771 = vpop.f32.mrb[0].mxu0
        %v8772 = vpop.f32.mrb[0].mxu0
        %v8773 = vadd.f32 %v8724, %v8772
        %v8774 = vpop.f32.mrb[0].mxu0
        %8775 = vmatprep.mubr.bf16.mxu0 %v7159
        %8776 = vmatmul.mubr.bf16.gmra.mrb[0].mxu0 %v7158
        %v8777 = vpop.f32.mrb[0].mxu0
        %v8778 = vadd.f32 %v8729, %v8777
        %v8779 = vpop.f32.mrb[0].mxu0
        %v8780 = vpop.f32.mrb[0].mxu0
        %v8781 = vadd.f32 %v8732, %v8780
        %v8782 = vpop.f32.mrb[0].mxu0
        %8783 = vdwg.mxu0
        %8784 = vmatprep.subr.bf16.mxu0 0
        %8785 = vmatpush1.bf16.msra.mxu0 %v8238
        %8786 = vmatprep.subr.bf16.mxu0 0
        %8787 = vmatpush1.bf16.msra.mxu0 %v8239
        %8788 = vmatprep.subr.bf16.mxu0 0
        %8789 = vmatpush1.bf16.msra.mxu0 %v8240
        %8790 = vmatprep.subr.bf16.mxu0 0
        %8791 = vmatpush1.bf16.msra.mxu0 %v8241
        %8792 = vmatprep.subr.bf16.mxu0 0
        %8793 = vmatpush1.bf16.msra.mxu0 %v8242
        %8794 = vmatprep.subr.bf16.mxu0 0
        %8795 = vmatpush1.bf16.msra.mxu0 %v8243
        %8796 = vmatprep.subr.bf16.mxu0 0
        %8797 = vmatpush1.bf16.msra.mxu0 %v8244
        %8798 = vmatprep.subr.bf16.mxu0 0
        %8799 = vmatpush1.bf16.msra.mxu0 %v8245
        %8800 = vmatprep.subr.bf16.mxu0 0
        %8801 = vmatpush1.bf16.msra.mxu0 %v8246
        %8802 = vmatprep.subr.bf16.mxu0 0
        %8803 = vmatpush1.bf16.msra.mxu0 %v8247
        %8804 = vmatprep.subr.bf16.mxu0 0
        %8805 = vmatpush1.bf16.msra.mxu0 %v8248
        %8806 = vmatprep.subr.bf16.mxu0 0
        %8807 = vmatpush1.bf16.msra.mxu0 %v8249
        %8808 = vmatprep.subr.bf16.mxu0 0
        %8809 = vmatpush1.bf16.msra.mxu0 %v8250
        %8810 = vmatprep.subr.bf16.mxu0 0
        %8811 = vmatpush1.bf16.msra.mxu0 %v8251
        %8812 = vmatprep.subr.bf16.mxu0 0
        %8813 = vmatpush1.bf16.msra.mxu0 %v8252
        %8814 = vmatprep.subr.bf16.mxu0 0
        %8815 = vmatpush1.bf16.msra.mxu0 %v8253
        %8816 = vmatprep.mubr.bf16.mxu0 %v7131
        %8817 = vmatmul.mubr.bf16.gmra.mrb[0].mxu0 %v7130
        %v8818 = vpop.f32.mrb[0].mxu0
        %v8819 = vadd.f32 %v8770, %v8818
        %v8820 = vpop.f32.mrb[0].mxu0
        %v8821 = vpop.f32.mrb[0].mxu0
        %v8822 = vadd.f32 %v8773, %v8821
        %v8823 = vpop.f32.mrb[0].mxu0
        %8824 = vmatprep.mubr.bf16.mxu0 %v7161
        %8825 = vmatmul.mubr.bf16.gmra.mrb[0].mxu0 %v7160
        %v8826 = vpop.f32.mrb[0].mxu0
        %v8827 = vadd.f32 %v8778, %v8826
        %v8828 = vpop.f32.mrb[0].mxu0
        %v8829 = vpop.f32.mrb[0].mxu0
        %v8830 = vadd.f32 %v8781, %v8829
        %v8831 = vpop.f32.mrb[0].mxu0
        %8832 = vdwg.mxu0
        %8833 = vmatprep.subr.bf16.mxu0 0
        %8834 = vmatpush1.bf16.msra.mxu0 %v8254
        %8835 = vmatprep.subr.bf16.mxu0 0
        %8836 = vmatpush1.bf16.msra.mxu0 %v8255
        %8837 = vmatprep.subr.bf16.mxu0 0
        %8838 = vmatpush1.bf16.msra.mxu0 %v8256
        %8839 = vmatprep.subr.bf16.mxu0 0
        %8840 = vmatpush1.bf16.msra.mxu0 %v8257
        %8841 = vmatprep.subr.bf16.mxu0 0
        %8842 = vmatpush1.bf16.msra.mxu0 %v8258
        %8843 = vmatprep.subr.bf16.mxu0 0
        %8844 = vmatpush1.bf16.msra.mxu0 %v8259
        %8845 = vmatprep.subr.bf16.mxu0 0
        %8846 = vmatpush1.bf16.msra.mxu0 %v8260
        %8847 = vmatprep.subr.bf16.mxu0 0
        %8848 = vmatpush1.bf16.msra.mxu0 %v8261
        %8849 = vmatprep.subr.bf16.mxu0 0
        %8850 = vmatpush1.bf16.msra.mxu0 %v8262
        %8851 = vmatprep.subr.bf16.mxu0 0
        %8852 = vmatpush1.bf16.msra.mxu0 %v8263
        %8853 = vmatprep.subr.bf16.mxu0 0
        %8854 = vmatpush1.bf16.msra.mxu0 %v8264
        %8855 = vmatprep.subr.bf16.mxu0 0
        %8856 = vmatpush1.bf16.msra.mxu0 %v8265
        %8857 = vmatprep.subr.bf16.mxu0 0
        %8858 = vmatpush1.bf16.msra.mxu0 %v8266
        %8859 = vmatprep.subr.bf16.mxu0 0
        %8860 = vmatpush1.bf16.msra.mxu0 %v8267
        %8861 = vmatprep.subr.bf16.mxu0 0
        %8862 = vmatpush1.bf16.msra.mxu0 %v8268
        %8863 = vmatprep.subr.bf16.mxu0 0
        %8864 = vmatpush1.bf16.msra.mxu0 %v8269
        %8865 = vmatprep.mubr.bf16.mxu0 %v7133
        %8866 = vmatmul.mubr.bf16.gmra.mrb[0].mxu0 %v7132
        %v8867 = vpop.f32.mrb[0].mxu0
        %v8868 = vadd.f32 %v8819, %v8867
        %v8869 = vpop.f32.mrb[0].mxu0
        %v8870 = vpop.f32.mrb[0].mxu0
        %v8871 = vadd.f32 %v8822, %v8870
        %v8872 = vpop.f32.mrb[0].mxu0
        %8873 = vmatprep.mubr.bf16.mxu0 %v7163
        %8874 = vmatmul.mubr.bf16.gmra.mrb[0].mxu0 %v7162
        %v8875 = vpop.f32.mrb[0].mxu0
        %v8876 = vadd.f32 %v8827, %v8875
        %v8877 = vpop.f32.mrb[0].mxu0
        %v8878 = vpop.f32.mrb[0].mxu0
        %v8879 = vadd.f32 %v8830, %v8878
        %v8880 = vpop.f32.mrb[0].mxu0
        %8881 = vdwg.mxu0
        %8882 = vmatprep.subr.bf16.mxu0 0
        %8883 = vmatpush1.bf16.msra.mxu0 %v8270
        %8884 = vmatprep.subr.bf16.mxu0 0
        %8885 = vmatpush1.bf16.msra.mxu0 %v8271
        %8886 = vmatprep.subr.bf16.mxu0 0
        %8887 = vmatpush1.bf16.msra.mxu0 %v8272
        %8888 = vmatprep.subr.bf16.mxu0 0
        %8889 = vmatpush1.bf16.msra.mxu0 %v8273
        %8890 = vmatprep.subr.bf16.mxu0 0
        %8891 = vmatpush1.bf16.msra.mxu0 %v8274
        %8892 = vmatprep.subr.bf16.mxu0 0
        %8893 = vmatpush1.bf16.msra.mxu0 %v8275
        %8894 = vmatprep.subr.bf16.mxu0 0
        %8895 = vmatpush1.bf16.msra.mxu0 %v8276
        %8896 = vmatprep.subr.bf16.mxu0 0
        %8897 = vmatpush1.bf16.msra.mxu0 %v8277
        %8898 = vmatprep.subr.bf16.mxu0 0
        %8899 = vmatpush1.bf16.msra.mxu0 %v8278
        %8900 = vmatprep.subr.bf16.mxu0 0
        %8901 = vmatpush1.bf16.msra.mxu0 %v8279
        %8902 = vmatprep.subr.bf16.mxu0 0
        %8903 = vmatpush1.bf16.msra.mxu0 %v8280
        %8904 = vmatprep.subr.bf16.mxu0 0
        %8905 = vmatpush1.bf16.msra.mxu0 %v8281
        %8906 = vmatprep.subr.bf16.mxu0 0
        %8907 = vmatpush1.bf16.msra.mxu0 %v8282
        %8908 = vmatprep.subr.bf16.mxu0 0
        %8909 = vmatpush1.bf16.msra.mxu0 %v8283
        %8910 = vmatprep.subr.bf16.mxu0 0
        %8911 = vmatpush1.bf16.msra.mxu0 %v8284
        %8912 = vmatprep.subr.bf16.mxu0 0
        %8913 = vmatpush1.bf16.msra.mxu0 %v8285
        %8914 = vmatprep.mubr.bf16.mxu0 %v7135
        %8915 = vmatmul.mubr.bf16.gmra.mrb[0].mxu0 %v7134
        %v8916 = vpop.f32.mrb[0].mxu0
        %v8917 = vadd.f32 %v8868, %v8916
        %v8918 = vpop.f32.mrb[0].mxu0
        %v8919 = vpop.f32.mrb[0].mxu0
        %v8920 = vadd.f32 %v8871, %v8919
        %v8921 = vpop.f32.mrb[0].mxu0
        %8922 = vmatprep.mubr.bf16.mxu0 %v7165
        %8923 = vmatmul.mubr.bf16.gmra.mrb[0].mxu0 %v7164
        %v8924 = vpop.f32.mrb[0].mxu0
        %v8925 = vadd.f32 %v8876, %v8924
        %v8926 = vpop.f32.mrb[0].mxu0
        %v8927 = vpop.f32.mrb[0].mxu0
        %v8928 = vadd.f32 %v8879, %v8927
        %v8929 = vpop.f32.mrb[0].mxu0
        %8930 = vdwg.mxu0
        %8931 = vmatprep.subr.bf16.mxu0 0
        %8932 = vmatpush1.bf16.msra.mxu0 %v8286
        %8933 = vmatprep.subr.bf16.mxu0 0
        %8934 = vmatpush1.bf16.msra.mxu0 %v8287
        %8935 = vmatprep.subr.bf16.mxu0 0
        %8936 = vmatpush1.bf16.msra.mxu0 %v8288
        %8937 = vmatprep.subr.bf16.mxu0 0
        %8938 = vmatpush1.bf16.msra.mxu0 %v8289
        %8939 = vmatprep.subr.bf16.mxu0 0
        %8940 = vmatpush1.bf16.msra.mxu0 %v8290
        %8941 = vmatprep.subr.bf16.mxu0 0
        %8942 = vmatpush1.bf16.msra.mxu0 %v8291
        %8943 = vmatprep.subr.bf16.mxu0 0
        %8944 = vmatpush1.bf16.msra.mxu0 %v8292
        %8945 = vmatprep.subr.bf16.mxu0 0
        %8946 = vmatpush1.bf16.msra.mxu0 %v8293
        %8947 = vmatprep.subr.bf16.mxu0 0
        %8948 = vmatpush1.bf16.msra.mxu0 %v8294
        %8949 = vmatprep.subr.bf16.mxu0 0
        %8950 = vmatpush1.bf16.msra.mxu0 %v8295
        %8951 = vmatprep.subr.bf16.mxu0 0
        %8952 = vmatpush1.bf16.msra.mxu0 %v8296
        %8953 = vmatprep.subr.bf16.mxu0 0
        %8954 = vmatpush1.bf16.msra.mxu0 %v8297
        %8955 = vmatprep.subr.bf16.mxu0 0
        %8956 = vmatpush1.bf16.msra.mxu0 %v8298
        %8957 = vmatprep.subr.bf16.mxu0 0
        %8958 = vmatpush1.bf16.msra.mxu0 %v8299
        %8959 = vmatprep.subr.bf16.mxu0 0
        %8960 = vmatpush1.bf16.msra.mxu0 %v8300
        %8961 = vmatprep.subr.bf16.mxu0 0
        %8962 = vmatpush1.bf16.msra.mxu0 %v8301
        %8963 = vmatprep.mubr.bf16.mxu0 %v7137
        %8964 = vmatmul.mubr.bf16.gmra.mrb[0].mxu0 %v7136
        %v8965 = vpop.f32.mrb[0].mxu0
        %v8966 = vadd.f32 %v8917, %v8965
        %v8967 = vpop.f32.mrb[0].mxu0
        %v8968 = vpop.f32.mrb[0].mxu0
        %v8969 = vadd.f32 %v8920, %v8968
        %v8970 = vpop.f32.mrb[0].mxu0
        %8971 = vmatprep.mubr.bf16.mxu0 %v7167
        %8972 = vmatmul.mubr.bf16.gmra.mrb[0].mxu0 %v7166
        %v8973 = vpop.f32.mrb[0].mxu0
        %v8974 = vadd.f32 %v8925, %v8973
        %v8975 = vpop.f32.mrb[0].mxu0
        %v8976 = vpop.f32.mrb[0].mxu0
        %v8977 = vadd.f32 %v8928, %v8976
        %v8978 = vpop.f32.mrb[0].mxu0
        %8979 = vdwg.mxu0
        %8980 = vmatprep.subr.bf16.mxu0 0
        %8981 = vmatpush1.bf16.msra.mxu0 %v8302
        %8982 = vmatprep.subr.bf16.mxu0 0
        %8983 = vmatpush1.bf16.msra.mxu0 %v8303
        %8984 = vmatprep.subr.bf16.mxu0 0
        %8985 = vmatpush1.bf16.msra.mxu0 %v8304
        %8986 = vmatprep.subr.bf16.mxu0 0
        %8987 = vmatpush1.bf16.msra.mxu0 %v8305
        %8988 = vmatprep.subr.bf16.mxu0 0
        %8989 = vmatpush1.bf16.msra.mxu0 %v8306
        %8990 = vmatprep.subr.bf16.mxu0 0
        %8991 = vmatpush1.bf16.msra.mxu0 %v8307
        %8992 = vmatprep.subr.bf16.mxu0 0
        %8993 = vmatpush1.bf16.msra.mxu0 %v8308
        %8994 = vmatprep.subr.bf16.mxu0 0
        %8995 = vmatpush1.bf16.msra.mxu0 %v8309
        %8996 = vmatprep.subr.bf16.mxu0 0
        %8997 = vmatpush1.bf16.msra.mxu0 %v8310
        %8998 = vmatprep.subr.bf16.mxu0 0
        %8999 = vmatpush1.bf16.msra.mxu0 %v8311
        %9000 = vmatprep.subr.bf16.mxu0 0
        %9001 = vmatpush1.bf16.msra.mxu0 %v8312
        %9002 = vmatprep.subr.bf16.mxu0 0
        %9003 = vmatpush1.bf16.msra.mxu0 %v8313
        %9004 = vmatprep.subr.bf16.mxu0 0
        %9005 = vmatpush1.bf16.msra.mxu0 %v8314
        %9006 = vmatprep.subr.bf16.mxu0 0
        %9007 = vmatpush1.bf16.msra.mxu0 %v8315
        %9008 = vmatprep.subr.bf16.mxu0 0
        %9009 = vmatpush1.bf16.msra.mxu0 %v8316
        %9010 = vmatprep.subr.bf16.mxu0 0
        %9011 = vmatpush1.bf16.msra.mxu0 %v8317
        %9012 = vmatprep.mubr.bf16.mxu0 %v7139
        %9013 = vmatmul.mubr.bf16.gmra.mrb[0].mxu0 %v7138
        %v9014 = vpop.f32.mrb[0].mxu0
        %v9015 = vadd.f32 %v8966, %v9014
        %v9016 = vpop.f32.mrb[0].mxu0
        %v9017 = vpop.f32.mrb[0].mxu0
        %v9018 = vadd.f32 %v8969, %v9017
        %v9019 = vpop.f32.mrb[0].mxu0
        %9020 = vmatprep.mubr.bf16.mxu0 %v7169
        %9021 = vmatmul.mubr.bf16.gmra.mrb[0].mxu0 %v7168
        %v9022 = vpop.f32.mrb[0].mxu0
        %v9023 = vadd.f32 %v8974, %v9022
        %v9024 = vpop.f32.mrb[0].mxu0
        %v9025 = vpop.f32.mrb[0].mxu0
        %v9026 = vadd.f32 %v8977, %v9025
        %v9027 = vpop.f32.mrb[0].mxu0
        %9028 = vdwg.mxu0
        %9029 = vmatprep.subr.bf16.mxu0 0
        %9030 = vmatpush1.bf16.msra.mxu0 %v8318
        %9031 = vmatprep.subr.bf16.mxu0 0
        %9032 = vmatpush1.bf16.msra.mxu0 %v8319
        %9033 = vmatprep.subr.bf16.mxu0 0
        %9034 = vmatpush1.bf16.msra.mxu0 %v8320
        %9035 = vmatprep.subr.bf16.mxu0 0
        %9036 = vmatpush1.bf16.msra.mxu0 %v8321
        %9037 = vmatprep.subr.bf16.mxu0 0
        %9038 = vmatpush1.bf16.msra.mxu0 %v8322
        %9039 = vmatprep.subr.bf16.mxu0 0
        %9040 = vmatpush1.bf16.msra.mxu0 %v8323
        %9041 = vmatprep.subr.bf16.mxu0 0
        %9042 = vmatpush1.bf16.msra.mxu0 %v8324
        %9043 = vmatprep.subr.bf16.mxu0 0
        %9044 = vmatpush1.bf16.msra.mxu0 %v8325
        %9045 = vmatprep.subr.bf16.mxu0 0
        %9046 = vmatpush1.bf16.msra.mxu0 %v8326
        %9047 = vmatprep.subr.bf16.mxu0 0
        %9048 = vmatpush1.bf16.msra.mxu0 %v8327
        %9049 = vmatprep.subr.bf16.mxu0 0
        %9050 = vmatpush1.bf16.msra.mxu0 %v8328
        %9051 = vmatprep.subr.bf16.mxu0 0
        %9052 = vmatpush1.bf16.msra.mxu0 %v8329
        %9053 = vmatprep.subr.bf16.mxu0 0
        %9054 = vmatpush1.bf16.msra.mxu0 %v8330
        %9055 = vmatprep.subr.bf16.mxu0 0
        %9056 = vmatpush1.bf16.msra.mxu0 %v8331
        %9057 = vmatprep.subr.bf16.mxu0 0
        %9058 = vmatpush1.bf16.msra.mxu0 %v8332
        %9059 = vmatprep.subr.bf16.mxu0 0
        %9060 = vmatpush1.bf16.msra.mxu0 %v8333
        %9061 = vmatprep.mubr.bf16.mxu0 %v7141
        %9062 = vmatmul.mubr.bf16.gmra.mrb[0].mxu0 %v7140
        %v9063 = vpop.f32.mrb[0].mxu0
        %v9064 = vadd.f32 %v9015, %v9063
        %v9065 = vpop.f32.mrb[0].mxu0
        %v9066 = vpop.f32.mrb[0].mxu0
        %v9067 = vadd.f32 %v9018, %v9066
        %v9068 = vpop.f32.mrb[0].mxu0
        %9069 = vmatprep.mubr.bf16.mxu0 %v7171
        %9070 = vmatmul.mubr.bf16.gmra.mrb[0].mxu0 %v7170
        %v9071 = vpop.f32.mrb[0].mxu0
        %v9072 = vadd.f32 %v9023, %v9071
        %v9073 = vpop.f32.mrb[0].mxu0
        %v9074 = vpop.f32.mrb[0].mxu0
        %v9075 = vadd.f32 %v9026, %v9074
        %v9076 = vpop.f32.mrb[0].mxu0
        %9077 = vdwg.mxu0
        %9078 = vmatprep.subr.bf16.mxu0 0
        %9079 = vmatpush1.bf16.msra.mxu0 %v8334
        %9080 = vmatprep.subr.bf16.mxu0 0
        %9081 = vmatpush1.bf16.msra.mxu0 %v8335
        %9082 = vmatprep.subr.bf16.mxu0 0
        %9083 = vmatpush1.bf16.msra.mxu0 %v8336
        %9084 = vmatprep.subr.bf16.mxu0 0
        %9085 = vmatpush1.bf16.msra.mxu0 %v8337
        %9086 = vmatprep.subr.bf16.mxu0 0
        %9087 = vmatpush1.bf16.msra.mxu0 %v8338
        %9088 = vmatprep.subr.bf16.mxu0 0
        %9089 = vmatpush1.bf16.msra.mxu0 %v8339
        %9090 = vmatprep.subr.bf16.mxu0 0
        %9091 = vmatpush1.bf16.msra.mxu0 %v8340
        %9092 = vmatprep.subr.bf16.mxu0 0
        %9093 = vmatpush1.bf16.msra.mxu0 %v8341
        %9094 = vmatprep.subr.bf16.mxu0 0
        %9095 = vmatpush1.bf16.msra.mxu0 %v8342
        %9096 = vmatprep.subr.bf16.mxu0 0
        %9097 = vmatpush1.bf16.msra.mxu0 %v8343
        %9098 = vmatprep.subr.bf16.mxu0 0
        %9099 = vmatpush1.bf16.msra.mxu0 %v8344
        %9100 = vmatprep.subr.bf16.mxu0 0
        %9101 = vmatpush1.bf16.msra.mxu0 %v8345
        %9102 = vmatprep.subr.bf16.mxu0 0
        %9103 = vmatpush1.bf16.msra.mxu0 %v8346
        %9104 = vmatprep.subr.bf16.mxu0 0
        %9105 = vmatpush1.bf16.msra.mxu0 %v8347
        %9106 = vmatprep.subr.bf16.mxu0 0
        %9107 = vmatpush1.bf16.msra.mxu0 %v8348
        %9108 = vmatprep.subr.bf16.mxu0 0
        %9109 = vmatpush1.bf16.msra.mxu0 %v8349
        %9110 = vmatprep.mubr.bf16.mxu0 %v7143
        %9111 = vmatmul.mubr.bf16.gmra.mrb[0].mxu0 %v7142
        %v9112 = vpop.f32.mrb[0].mxu0
        %v9113 = vadd.f32 %v9064, %v9112
        %v9114 = vpop.f32.mrb[0].mxu0
        %v9115 = vpop.f32.mrb[0].mxu0
        %v9116 = vadd.f32 %v9067, %v9115
        %v9117 = vpop.f32.mrb[0].mxu0
        %9118 = vmatprep.mubr.bf16.mxu0 %v7173
        %9119 = vmatmul.mubr.bf16.gmra.mrb[0].mxu0 %v7172
        %v9120 = vpop.f32.mrb[0].mxu0
        %v9121 = vadd.f32 %v9072, %v9120
        %v9122 = vpop.f32.mrb[0].mxu0
        %v9123 = vpop.f32.mrb[0].mxu0
        %v9124 = vadd.f32 %v9075, %v9123
        %v9125 = vpop.f32.mrb[0].mxu0
        %9126 = vdwg.mxu0
        %9127 = vmatprep.subr.bf16.mxu0 0
        %9128 = vmatpush1.bf16.msra.mxu0 %v8350
        %9129 = vmatprep.subr.bf16.mxu0 0
        %9130 = vmatpush1.bf16.msra.mxu0 %v8351
        %9131 = vmatprep.subr.bf16.mxu0 0
        %9132 = vmatpush1.bf16.msra.mxu0 %v8352
        %9133 = vmatprep.subr.bf16.mxu0 0
        %9134 = vmatpush1.bf16.msra.mxu0 %v8353
        %9135 = vmatprep.subr.bf16.mxu0 0
        %9136 = vmatpush1.bf16.msra.mxu0 %v8354
        %9137 = vmatprep.subr.bf16.mxu0 0
        %9138 = vmatpush1.bf16.msra.mxu0 %v8355
        %9139 = vmatprep.subr.bf16.mxu0 0
        %9140 = vmatpush1.bf16.msra.mxu0 %v8356
        %9141 = vmatprep.subr.bf16.mxu0 0
        %9142 = vmatpush1.bf16.msra.mxu0 %v8357
        %9143 = vmatprep.subr.bf16.mxu0 0
        %9144 = vmatpush1.bf16.msra.mxu0 %v8358
        %9145 = vmatprep.subr.bf16.mxu0 0
        %9146 = vmatpush1.bf16.msra.mxu0 %v8359
        %9147 = vmatprep.subr.bf16.mxu0 0
        %9148 = vmatpush1.bf16.msra.mxu0 %v8360
        %9149 = vmatprep.subr.bf16.mxu0 0
        %9150 = vmatpush1.bf16.msra.mxu0 %v8361
        %9151 = vmatprep.subr.bf16.mxu0 0
        %9152 = vmatpush1.bf16.msra.mxu0 %v8362
        %9153 = vmatprep.subr.bf16.mxu0 0
        %9154 = vmatpush1.bf16.msra.mxu0 %v8363
        %9155 = vmatprep.subr.bf16.mxu0 0
        %9156 = vmatpush1.bf16.msra.mxu0 %v8364
        %9157 = vmatprep.subr.bf16.mxu0 0
        %9158 = vmatpush1.bf16.msra.mxu0 %v8365
        %9159 = vmatprep.mubr.bf16.mxu0 %v7145
        %9160 = vmatmul.mubr.bf16.gmra.mrb[0].mxu0 %v7144
        %v9161 = vpop.f32.mrb[0].mxu0
        %v9162 = vadd.f32 %v9113, %v9161
        %v9163 = vpop.f32.mrb[0].mxu0
        %v9164 = vpop.f32.mrb[0].mxu0
        %v9165 = vadd.f32 %v9116, %v9164
        %v9166 = vpop.f32.mrb[0].mxu0
        %9167 = vmatprep.mubr.bf16.mxu0 %v7175
        %9168 = vmatmul.mubr.bf16.gmra.mrb[0].mxu0 %v7174
        %v9169 = vpop.f32.mrb[0].mxu0
        %v9170 = vadd.f32 %v9121, %v9169
        %v9171 = vpop.f32.mrb[0].mxu0
        %v9172 = vpop.f32.mrb[0].mxu0
        %v9173 = vadd.f32 %v9124, %v9172
        %v9174 = vpop.f32.mrb[0].mxu0
        %9175 = vdwg.mxu0
        %9176 = vmatprep.subr.bf16.mxu0 0
        %9177 = vmatpush1.bf16.msra.mxu0 %v8366
        %9178 = vmatprep.subr.bf16.mxu0 0
        %9179 = vmatpush1.bf16.msra.mxu0 %v8367
        %9180 = vmatprep.subr.bf16.mxu0 0
        %9181 = vmatpush1.bf16.msra.mxu0 %v8368
        %9182 = vmatprep.subr.bf16.mxu0 0
        %9183 = vmatpush1.bf16.msra.mxu0 %v8369
        %9184 = vmatprep.subr.bf16.mxu0 0
        %9185 = vmatpush1.bf16.msra.mxu0 %v8370
        %9186 = vmatprep.subr.bf16.mxu0 0
        %9187 = vmatpush1.bf16.msra.mxu0 %v8371
        %9188 = vmatprep.subr.bf16.mxu0 0
        %9189 = vmatpush1.bf16.msra.mxu0 %v8372
        %9190 = vmatprep.subr.bf16.mxu0 0
        %9191 = vmatpush1.bf16.msra.mxu0 %v8373
        %9192 = vmatprep.subr.bf16.mxu0 0
        %9193 = vmatpush1.bf16.msra.mxu0 %v8374
        %9194 = vmatprep.subr.bf16.mxu0 0
        %9195 = vmatpush1.bf16.msra.mxu0 %v8375
        %9196 = vmatprep.subr.bf16.mxu0 0
        %9197 = vmatpush1.bf16.msra.mxu0 %v8376
        %9198 = vmatprep.subr.bf16.mxu0 0
        %9199 = vmatpush1.bf16.msra.mxu0 %v8377
        %9200 = vmatprep.subr.bf16.mxu0 0
        %9201 = vmatpush1.bf16.msra.mxu0 %v8378
        %9202 = vmatprep.subr.bf16.mxu0 0
        %9203 = vmatpush1.bf16.msra.mxu0 %v8379
        %9204 = vmatprep.subr.bf16.mxu0 0
        %9205 = vmatpush1.bf16.msra.mxu0 %v8380
        %9206 = vmatprep.subr.bf16.mxu0 0
        %9207 = vmatpush1.bf16.msra.mxu0 %v8381
        %9208 = vmatprep.mubr.bf16.mxu0 %v7147
        %9209 = vmatmul.mubr.bf16.gmra.mrb[0].mxu0 %v7146
        %v9210 = vpop.f32.mrb[0].mxu0
        %v9211 = vadd.f32 %v9162, %v9210
        %v9212 = vpop.f32.mrb[0].mxu0
        %v9213 = vpop.f32.mrb[0].mxu0
        %v9214 = vadd.f32 %v9165, %v9213
        %v9215 = vpop.f32.mrb[0].mxu0
        %9216 = vmatprep.mubr.bf16.mxu0 %v7177
        %9217 = vmatmul.mubr.bf16.gmra.mrb[0].mxu0 %v7176
        %v9218 = vpop.f32.mrb[0].mxu0
        %v9219 = vadd.f32 %v9170, %v9218
        %v9220 = vpop.f32.mrb[0].mxu0
        %v9221 = vpop.f32.mrb[0].mxu0
        %v9222 = vadd.f32 %v9173, %v9221
        %v9223 = vpop.f32.mrb[0].mxu0
        %9224 = vdwg.mxu0
        %9225 = vmatprep.subr.bf16.mxu0 0
        %9226 = vmatpush1.bf16.msra.mxu0 %v8382
        %9227 = vmatprep.subr.bf16.mxu0 0
        %9228 = vmatpush1.bf16.msra.mxu0 %v8383
        %9229 = vmatprep.subr.bf16.mxu0 0
        %9230 = vmatpush1.bf16.msra.mxu0 %v8384
        %9231 = vmatprep.subr.bf16.mxu0 0
        %9232 = vmatpush1.bf16.msra.mxu0 %v8385
        %9233 = vmatprep.subr.bf16.mxu0 0
        %9234 = vmatpush1.bf16.msra.mxu0 %v8386
        %9235 = vmatprep.subr.bf16.mxu0 0
        %9236 = vmatpush1.bf16.msra.mxu0 %v8387
        %9237 = vmatprep.subr.bf16.mxu0 0
        %9238 = vmatpush1.bf16.msra.mxu0 %v8388
        %9239 = vmatprep.subr.bf16.mxu0 0
        %9240 = vmatpush1.bf16.msra.mxu0 %v8389
        %9241 = vmatprep.subr.bf16.mxu0 0
        %9242 = vmatpush1.bf16.msra.mxu0 %v8390
        %9243 = vmatprep.subr.bf16.mxu0 0
        %9244 = vmatpush1.bf16.msra.mxu0 %v8391
        %9245 = vmatprep.subr.bf16.mxu0 0
        %9246 = vmatpush1.bf16.msra.mxu0 %v8392
        %9247 = vmatprep.subr.bf16.mxu0 0
        %9248 = vmatpush1.bf16.msra.mxu0 %v8393
        %9249 = vmatprep.subr.bf16.mxu0 0
        %9250 = vmatpush1.bf16.msra.mxu0 %v8394
        %9251 = vmatprep.subr.bf16.mxu0 0
        %9252 = vmatpush1.bf16.msra.mxu0 %v8395
        %9253 = vmatprep.subr.bf16.mxu0 0
        %9254 = vmatpush1.bf16.msra.mxu0 %v8396
        %9255 = vmatprep.subr.bf16.mxu0 0
        %9256 = vmatpush1.bf16.msra.mxu0 %v8397
        %9257 = vmatprep.mubr.bf16.mxu0 %v7149
        %9258 = vmatmul.mubr.bf16.gmra.mrb[0].mxu0 %v7148
        %v9259 = vpop.f32.mrb[0].mxu0
        %v9260 = vadd.f32 %v9211, %v9259
        %v9261 = vpop.f32.mrb[0].mxu0
        %v9262 = vpop.f32.mrb[0].mxu0
        %v9263 = vadd.f32 %v9214, %v9262
        %v9264 = vpop.f32.mrb[0].mxu0
        %9265 = vmatprep.mubr.bf16.mxu0 %v7179
        %9266 = vmatmul.mubr.bf16.gmra.mrb[0].mxu0 %v7178
        %v9267 = vpop.f32.mrb[0].mxu0
        %v9268 = vadd.f32 %v9219, %v9267
        %v9269 = vpop.f32.mrb[0].mxu0
        %v9270 = vpop.f32.mrb[0].mxu0
        %v9271 = vadd.f32 %v9222, %v9270
        %v9272 = vpop.f32.mrb[0].mxu0
        %9273 = vdwg.mxu0
        %9274 = vmatprep.subr.bf16.mxu0 0
        %9275 = vmatpush1.bf16.msra.mxu0 %v8398
        %9276 = vmatprep.subr.bf16.mxu0 0
        %9277 = vmatpush1.bf16.msra.mxu0 %v8399
        %9278 = vmatprep.subr.bf16.mxu0 0
        %9279 = vmatpush1.bf16.msra.mxu0 %v8400
        %9280 = vmatprep.subr.bf16.mxu0 0
        %9281 = vmatpush1.bf16.msra.mxu0 %v8401
        %9282 = vmatprep.subr.bf16.mxu0 0
        %9283 = vmatpush1.bf16.msra.mxu0 %v8402
        %9284 = vmatprep.subr.bf16.mxu0 0
        %9285 = vmatpush1.bf16.msra.mxu0 %v8403
        %9286 = vmatprep.subr.bf16.mxu0 0
        %9287 = vmatpush1.bf16.msra.mxu0 %v8404
        %9288 = vmatprep.subr.bf16.mxu0 0
        %9289 = vmatpush1.bf16.msra.mxu0 %v8405
        %9290 = vmatprep.subr.bf16.mxu0 0
        %9291 = vmatpush1.bf16.msra.mxu0 %v8406
        %9292 = vmatprep.subr.bf16.mxu0 0
        %9293 = vmatpush1.bf16.msra.mxu0 %v8407
        %9294 = vmatprep.subr.bf16.mxu0 0
        %9295 = vmatpush1.bf16.msra.mxu0 %v8408
        %9296 = vmatprep.subr.bf16.mxu0 0
        %9297 = vmatpush1.bf16.msra.mxu0 %v8409
        %9298 = vmatprep.subr.bf16.mxu0 0
        %9299 = vmatpush1.bf16.msra.mxu0 %v8410
        %9300 = vmatprep.subr.bf16.mxu0 0
        %9301 = vmatpush1.bf16.msra.mxu0 %v8411
        %9302 = vmatprep.subr.bf16.mxu0 0
        %9303 = vmatpush1.bf16.msra.mxu0 %v8412
        %9304 = vmatprep.subr.bf16.mxu0 0
        %9305 = vmatpush1.bf16.msra.mxu0 %v8413
        %9306 = vmatprep.mubr.bf16.mxu0 %v7151
        %9307 = vmatmul.mubr.bf16.gmra.mrb[0].mxu0 %v7150
        %v9308 = vpop.f32.mrb[0].mxu0
        %v9309 = vadd.f32 %v9260, %v9308
        %v9310 = vpop.f32.mrb[0].mxu0
        %v9311 = vpop.f32.mrb[0].mxu0
        %v9312 = vadd.f32 %v9263, %v9311
        %v9313 = vpop.f32.mrb[0].mxu0
        %9314 = vmatprep.mubr.bf16.mxu0 %v7181
        %9315 = vmatmul.mubr.bf16.gmra.mrb[0].mxu0 %v7180
        %v9316 = vpop.f32.mrb[0].mxu0
        %v9317 = vadd.f32 %v9268, %v9316
        %v9318 = vpop.f32.mrb[0].mxu0
        %v9319 = vpop.f32.mrb[0].mxu0
        %v9320 = vadd.f32 %v9271, %v9319
        %v9321 = vpop.f32.mrb[0].mxu0
        %9322 = vdwg.mxu0
        %9323 = vmatprep.subr.bf16.mxu0 0
        %9324 = vmatpush1.bf16.msra.mxu0 %v8414
        %9325 = vmatprep.subr.bf16.mxu0 0
        %9326 = vmatpush1.bf16.msra.mxu0 %v8415
        %9327 = vmatprep.subr.bf16.mxu0 0
        %9328 = vmatpush1.bf16.msra.mxu0 %v8416
        %9329 = vmatprep.subr.bf16.mxu0 0
        %9330 = vmatpush1.bf16.msra.mxu0 %v8417
        %9331 = vmatprep.subr.bf16.mxu0 0
        %9332 = vmatpush1.bf16.msra.mxu0 %v8418
        %9333 = vmatprep.subr.bf16.mxu0 0
        %9334 = vmatpush1.bf16.msra.mxu0 %v8419
        %9335 = vmatprep.subr.bf16.mxu0 0
        %9336 = vmatpush1.bf16.msra.mxu0 %v8420
        %9337 = vmatprep.subr.bf16.mxu0 0
        %9338 = vmatpush1.bf16.msra.mxu0 %v8421
        %9339 = vmatprep.subr.bf16.mxu0 0
        %9340 = vmatpush1.bf16.msra.mxu0 %v8422
        %9341 = vmatprep.subr.bf16.mxu0 0
        %9342 = vmatpush1.bf16.msra.mxu0 %v8423
        %9343 = vmatprep.subr.bf16.mxu0 0
        %9344 = vmatpush1.bf16.msra.mxu0 %v8424
        %9345 = vmatprep.subr.bf16.mxu0 0
        %9346 = vmatpush1.bf16.msra.mxu0 %v8425
        %9347 = vmatprep.subr.bf16.mxu0 0
        %9348 = vmatpush1.bf16.msra.mxu0 %v8426
        %9349 = vmatprep.subr.bf16.mxu0 0
        %9350 = vmatpush1.bf16.msra.mxu0 %v8427
        %9351 = vmatprep.subr.bf16.mxu0 0
        %9352 = vmatpush1.bf16.msra.mxu0 %v8428
        %9353 = vmatprep.subr.bf16.mxu0 0
        %9354 = vmatpush1.bf16.msra.mxu0 %v8429
        %9355 = vmatprep.mubr.bf16.mxu0 %v7153
        %9356 = vmatmul.mubr.bf16.gmra.mrb[0].mxu0 %v7152
        %v9357 = vpop.f32.mrb[0].mxu0
        %v9358 = vadd.f32 %v9309, %v9357
        %v9359 = vpop.f32.mrb[0].mxu0
        %v9360 = vpop.f32.mrb[0].mxu0
        %v9361 = vadd.f32 %v9312, %v9360
        %v9362 = vpop.f32.mrb[0].mxu0
        %9363 = vmatprep.mubr.bf16.mxu0 %v7183
        %9364 = vmatmul.mubr.bf16.gmra.mrb[0].mxu0 %v7182
        %v9365 = vpop.f32.mrb[0].mxu0
        %v9366 = vadd.f32 %v9317, %v9365
        %v9367 = vpop.f32.mrb[0].mxu0
        %v9368 = vpop.f32.mrb[0].mxu0
        %v9369 = vadd.f32 %v9320, %v9368
        %v9370 = vpop.f32.mrb[0].mxu0
        %9371 = vdwg.mxu0
        %9372 = vmatprep.subr.bf16.mxu0 0
        %9373 = vmatpush1.bf16.msra.mxu0 %v8430
        %9374 = vmatprep.subr.bf16.mxu0 0
        %9375 = vmatpush1.bf16.msra.mxu0 %v8431
        %9376 = vmatprep.subr.bf16.mxu0 0
        %9377 = vmatpush1.bf16.msra.mxu0 %v8432
        %9378 = vmatprep.subr.bf16.mxu0 0
        %9379 = vmatpush1.bf16.msra.mxu0 %v8433
        %9380 = vmatprep.subr.bf16.mxu0 0
        %9381 = vmatpush1.bf16.msra.mxu0 %v8434
        %9382 = vmatprep.subr.bf16.mxu0 0
        %9383 = vmatpush1.bf16.msra.mxu0 %v8435
        %9384 = vmatprep.subr.bf16.mxu0 0
        %9385 = vmatpush1.bf16.msra.mxu0 %v8436
        %9386 = vmatprep.subr.bf16.mxu0 0
        %9387 = vmatpush1.bf16.msra.mxu0 %v8437
        %9388 = vmatprep.subr.bf16.mxu0 0
        %9389 = vmatpush1.bf16.msra.mxu0 %v8438
        %9390 = vmatprep.subr.bf16.mxu0 0
        %9391 = vmatpush1.bf16.msra.mxu0 %v8439
        %9392 = vmatprep.subr.bf16.mxu0 0
        %9393 = vmatpush1.bf16.msra.mxu0 %v8440
        %9394 = vmatprep.subr.bf16.mxu0 0
        %9395 = vmatpush1.bf16.msra.mxu0 %v8441
        %9396 = vmatprep.subr.bf16.mxu0 0
        %9397 = vmatpush1.bf16.msra.mxu0 %v8442
        %9398 = vmatprep.subr.bf16.mxu0 0
        %9399 = vmatpush1.bf16.msra.mxu0 %v8443
        %9400 = vmatprep.subr.bf16.mxu0 0
        %9401 = vmatpush1.bf16.msra.mxu0 %v8444
        %9402 = vmatprep.subr.bf16.mxu0 0
        %9403 = vmatpush1.bf16.msra.mxu0 %v8445
        %9404 = vmatprep.mubr.bf16.mxu0 %v7155
        %9405 = vmatmul.mubr.bf16.gmra.mrb[0].mxu0 %v7154
        %v9406 = vpop.f32.mrb[0].mxu0
        %v9407 = vadd.f32 %v9358, %v9406
        %v9408 = vpop.f32.mrb[0].mxu0
        %v9409 = vpop.f32.mrb[0].mxu0
        %v9410 = vadd.f32 %v9361, %v9409
        %v9411 = vpop.f32.mrb[0].mxu0
        %9412 = vmatprep.mubr.bf16.mxu0 %v7185
        %9413 = vmatmul.mubr.bf16.gmra.mrb[0].mxu0 %v7184
        %v9414 = vpop.f32.mrb[0].mxu0
        %v9415 = vadd.f32 %v9366, %v9414
        %v9416 = vpop.f32.mrb[0].mxu0
        %v9417 = vpop.f32.mrb[0].mxu0
        %v9418 = vadd.f32 %v9369, %v9417
        %v9419 = vpop.f32.mrb[0].mxu0
        %9420 = vdwg.mxu0
        %v9421 = vmax.f32 %v9407, 0.0
        %v9422 = vmax.f32 %v9410, 0.0
        %v9423 = vmax.f32 %v9415, 0.0
        %v9424 = vmax.f32 %v9418, 0.0
        %v9428 = vrot.slane %v9421, 1
        %v9429 = vrot.slane %v9422, 1
        %v9430 = vsel %vm5281, %v9428, %v9429
        %v9431 = vrot.slane %v9423, 1
        %v9432 = vsel %vm5281, %v9429, %v9431
        %v9436 = vmax.f32 %v9421, %v9430
        %v9437 = vmax.f32 %v9422, %v9432
        %v9438 = vmax.f32 %v9423, %v9431
        %v9439 = vrot.slane %v9421, 2
        %v9440 = vrot.slane %v9422, 2
        %v9441 = vsel %vm5408, %v9439, %v9440
        %v9442 = vrot.slane %v9423, 2
        %v9443 = vsel %vm5408, %v9440, %v9442
        %v9447 = vmax.f32 %v9436, %v9441
        %v9448 = vmax.f32 %v9437, %v9443
        %v9449 = vmax.f32 %v9438, %v9442
        %v9450 = vrot.slane %v9421, 3
        %v9451 = vrot.slane %v9422, 3
        %v9452 = vsel %vm5535, %v9450, %v9451
        %v9453 = vrot.slane %v9423, 3
        %v9454 = vsel %vm5535, %v9451, %v9453
        %v9458 = vmax.f32 %v9447, %v9452
        %v9459 = vmax.f32 %v9448, %v9454
        %v9460 = vmax.f32 %v9449, %v9453
        %v9462 = vrot.slane %v9421, 4
        %v9463 = vrot.slane %v9422, 4
        %v9464 = vsel %vm5662, %v9462, %v9463
        %v9465 = vrot.slane %v9423, 4
        %v9466 = vsel %vm5662, %v9463, %v9465
        %v9467 = vrot.slane %v9424, 4
        %v9468 = vsel %vm5662, %v9465, %v9467
        %v9472 = vmax.f32 %v9458, %v9464
        %v9473 = vmax.f32 %v9459, %v9466
        %v9474 = vmax.f32 %v9460, %v9468
        %vm9475 = vcmask 171008
        %v9476 = vsel %vm9475, %v5808, 0
        %v9479 = vsel %vm5535, %v9474, 0
        %9481 = vmatprep.subr.mxu0 0.0
        %9482 = vmatpush1.msra.mxu0 %v9472
        %9483 = vmatprep.subr.mxu0 0.0
        %9484 = vmatpush1.msra.mxu0 %v9473
        %9485 = vmatprep.subr.mxu0 0.0
        %9486 = vmatpush1.msra.mxu0 %v9479
        %9487 = vmatprep.subr.mxu0 0.0
        %9488 = vmatpush1.msra.mxu0 0.0
        %9489 = vmatprep.subr.mxu0 0.0
        %9490 = vmatpush1.msra.mxu0 0.0
        %9491 = vmatprep.subr.mxu0 0.0
        %9492 = vmatpush1.msra.mxu0 0.0
        %9493 = vmatprep.subr.mxu0 0.0
        %9494 = vmatpush1.msra.mxu0 0.0
        %9495 = vmatprep.subr.mxu0 0.0
        %9496 = vmatpush1.msra.mxu0 0.0
        %9497 = vmatprep.subr.mxu0 0.0
        %9498 = vmatpush1.msra.mxu0 0.0
        %9499 = vmatprep.subr.mxu0 0.0
        %9500 = vmatpush1.msra.mxu0 0.0
        %9501 = vmatprep.subr.mxu0 0.0
        %9502 = vmatpush1.msra.mxu0 0.0
        %9503 = vmatprep.subr.mxu0 0.0
        %9504 = vmatpush1.msra.mxu0 0.0
        %9505 = vmatprep.subr.mxu0 0.0
        %9506 = vmatpush1.msra.mxu0 0.0
        %9507 = vmatprep.subr.mxu0 0.0
        %9508 = vmatpush1.msra.mxu0 0.0
        %9509 = vmatprep.subr.mxu0 0.0
        %9510 = vmatpush1.msra.mxu0 0.0
        %9511 = vmatprep.subr.mxu0 0.0
        %9512 = vmatpush1.msra.mxu0 0.0
        %9513 = vmatprep.subr.mxu0 0.0
        %9514 = vmatpush1.msra.mxu0 0.0
        %9515 = vmatprep.subr.mxu0 0.0
        %9516 = vmatpush1.msra.mxu0 0.0
        %9517 = vmatprep.subr.mxu0 0.0
        %9518 = vmatpush1.msra.mxu0 0.0
        %9519 = vmatprep.subr.mxu0 0.0
        %9520 = vmatpush1.msra.mxu0 0.0
        %9521 = vmatprep.subr.mxu0 0.0
        %9522 = vmatpush1.msra.mxu0 0.0
        %9523 = vmatprep.subr.mxu0 0.0
        %9524 = vmatpush1.msra.mxu0 0.0
        %9525 = vmatprep.subr.mxu0 0.0
        %9526 = vmatpush1.msra.mxu0 0.0
        %9527 = vmatprep.subr.mxu0 0.0
        %9528 = vmatpush1.msra.mxu0 0.0
        %9529 = vmatprep.subr.mxu0 0.0
        %9530 = vmatpush1.msra.mxu0 0.0
        %9531 = vmatprep.subr.mxu0 0.0
        %9532 = vmatpush1.msra.mxu0 0.0
        %9533 = vmatprep.subr.mxu0 0.0
        %9534 = vmatpush1.msra.mxu0 0.0
        %9535 = vmatprep.subr.mxu0 0.0
        %9536 = vmatpush1.msra.mxu0 0.0
        %9537 = vmatprep.subr.mxu0 0.0
        %9538 = vmatpush1.msra.mxu0 0.0
        %9539 = vmatprep.subr.mxu0 0.0
        %9540 = vmatpush1.msra.mxu0 0.0
        %9541 = vmatprep.subr.mxu0 0.0
        %9542 = vmatpush1.msra.mxu0 0.0
        %9543 = vmatprep.subr.mxu0 0.0
        %9544 = vmatpush1.msra.mxu0 0.0
        %9545 = vmatprep.mubr.f32.mxu0 0.0
        %9546 = vmatmul.mubr.f32.gmra.mrb[0].mxu0 %v9476
        %v9547 = vpop.f32.mrb[0].mxu0
        %v9548 = vadd.f32 0.0, %v9547
        %v9549 = vpop.f32.mrb[0].mxu0
        %9550 = vdwg.mxu0
        %9551 = vst [vmem:[#allocation6] sm:$0xff] 0.0
        %9552 = vst [vmem:[#allocation6 + $0x8] sm:$0xff] 0.0
        %9553 = vst [vmem:[#allocation6 + $0x10] sm:$0xf] 0.0
        %9554 = vst [vmem:[#allocation6 + $0x8] sm:$0x1f] %v9548
        %v9555 = vld [vmem:[#allocation6] sm:$0xff]
        %v9556 = vld [vmem:[#allocation6 + $0x8] sm:$0xff]
        %v9557 = vld [vmem:[#allocation6 + $0x10] sm:$0xf]
        %v9558 = vpack.c.bf16 %v9555, %v9555
        %v9560 = vunpack.c.l.b16 %v9558
        %v9561 = vpack.c.b16 %v9560, %v9560
        %v9563 = vshrl.u32 %v9561, 16
        %v9565 = vrot.slane %v9563, 4
        %v9566 = vshll.u32 %v9561, 16
        %v9568 = vrot.slane %v9566, 5
        %v9569 = vor.u32 %v9565, %v9568
        %v9570 = vrot.slane %v9569, 4
        %v9572 = vld [vmem:[#allocation7] sm:$0x7]
        %v9573 = vsel %vm660, %v9570, %v9572
        %9574 = vst [vmem:[#allocation7] sm:$0x7] %v9573
        %v9575 = vrot.slane %v9561, 5
        %v9576 = vrot.slane %v9575, 4
        %v9578 = vld [vmem:[#allocation7 + $0x4] sm:$0x7]
        %v9579 = vsel %vm660, %v9576, %v9578
        %9580 = vst [vmem:[#allocation7 + $0x4] sm:$0x7] %v9579
        %v9581 = vrot.slane %v9563, 5
        %v9582 = vrot.slane %v9566, 6
        %v9583 = vor.u32 %v9581, %v9582
        %v9584 = vrot.slane %v9583, 4
        %v9586 = vld [vmem:[#allocation7 + $0x8] sm:$0x7]
        %v9587 = vsel %vm660, %v9584, %v9586
        %9588 = vst [vmem:[#allocation7 + $0x8] sm:$0x7] %v9587
        %v9589 = vpack.c.bf16 %v9556, %v9555
        %v9591 = vunpack.c.l.b16 %v9589
        %v9592 = vunpack.c.h.b16 %v9589
        %v9593 = vpack.c.b16 %v9591, %v9591
        %v9594 = vpack.c.b16 %v9592, %v9592
        %v9595 = vrot.slane %v9593, 6
        %v9596 = vrot.slane %v9595, 4
        %v9597 = vrot.slane %v9594, 6
        %v9598 = vsel %vm868, %v9596, %v9597
        %v9600 = vld [vmem:[#allocation7 + $0xc] sm:$0x7]
        %v9601 = vsel %vm660, %v9598, %v9600
        %9602 = vst [vmem:[#allocation7 + $0xc] sm:$0x7] %v9601
        %v9604 = vshrl.u32 %v9593, 16
        %v9606 = vrot.slane %v9604, 6
        %v9607 = vshll.u32 %v9593, 16
        %v9609 = vrot.slane %v9607, 7
        %v9610 = vor.u32 %v9606, %v9609
        %v9611 = vrot.slane %v9610, 4
        %v9613 = vshrl.u32 %v9594, 16
        %v9615 = vrot.slane %v9613, 6
        %v9616 = vshll.u32 %v9594, 16
        %v9618 = vrot.slane %v9616, 7
        %v9619 = vor.u32 %v9615, %v9618
        %v9620 = vsel %vm954, %v9611, %v9619
        %v9622 = vld [vmem:[#allocation7 + $0x10] sm:$0x7]
        %v9623 = vsel %vm660, %v9620, %v9622
        %9624 = vst [vmem:[#allocation7 + $0x10] sm:$0x7] %v9623
        %v9625 = vrot.slane %v9593, 7
        %v9626 = vrot.slane %v9625, 4
        %v9627 = vrot.slane %v9594, 7
        %v9628 = vsel %vm1079, %v9626, %v9627
        %v9630 = vld [vmem:[#allocation7 + $0x14] sm:$0x7]
        %v9631 = vsel %vm660, %v9628, %v9630
        %9632 = vst [vmem:[#allocation7 + $0x14] sm:$0x7] %v9631
        %v9633 = vrot.slane %v9604, 7
        %v9634 = vrot.slane %v9633, 4
        %v9635 = vrot.slane %v9613, 7
        %v9636 = vor.u32 %v9635, %v9616
        %v9637 = vsel %vm1165, %v9634, %v9636
        %v9639 = vld [vmem:[#allocation7 + $0x18] sm:$0x7]
        %v9640 = vsel %vm660, %v9637, %v9639
        %9641 = vst [vmem:[#allocation7 + $0x18] sm:$0x7] %v9640
        %v9642 = vpack.c.bf16 %v9556, %v9556
        %v9643 = vld [vmem:[#allocation7 + $0x1c] sm:$0x7]
        %v9644 = vsel %vm660, %v9642, %v9643
        %9645 = vst [vmem:[#allocation7 + $0x1c] sm:$0x7] %v9644
        %v9647 = vunpack.c.l.b16 %v9642
        %v9648 = vpack.c.b16 %v9647, %v9647
        %v9650 = vshrl.u32 %v9648, 16
        %v9652 = vrot.slane %v9650, 4
        %v9653 = vshll.u32 %v9648, 16
        %v9655 = vrot.slane %v9653, 5
        %v9656 = vor.u32 %v9652, %v9655
        %v9657 = vrot.slane %v9656, 4
        %v9659 = vld [vmem:[#allocation7 + $0x20] sm:$0x7]
        %v9660 = vsel %vm660, %v9657, %v9659
        %9661 = vst [vmem:[#allocation7 + $0x20] sm:$0x7] %v9660
        %v9662 = vrot.slane %v9648, 5
        %v9663 = vrot.slane %v9662, 4
        %v9665 = vld [vmem:[#allocation7 + $0x24] sm:$0x7]
        %v9666 = vsel %vm660, %v9663, %v9665
        %9667 = vst [vmem:[#allocation7 + $0x24] sm:$0x7] %v9666
        %v9668 = vrot.slane %v9650, 5
        %v9669 = vrot.slane %v9653, 6
        %v9670 = vor.u32 %v9668, %v9669
        %v9671 = vrot.slane %v9670, 4
        %v9673 = vld [vmem:[#allocation7 + $0x28] sm:$0x7]
        %v9674 = vsel %vm660, %v9671, %v9673
        %9675 = vst [vmem:[#allocation7 + $0x28] sm:$0x7] %v9674
        %v9676 = vpack.c.bf16 %v9557, %v9556
        %v9678 = vunpack.c.l.b16 %v9676
        %v9679 = vunpack.c.h.b16 %v9676
        %v9680 = vpack.c.b16 %v9678, %v9678
        %v9681 = vpack.c.b16 %v9679, %v9679
        %v9682 = vrot.slane %v9680, 6
        %v9683 = vrot.slane %v9682, 4
        %v9684 = vrot.slane %v9681, 6
        %v9685 = vsel %vm868, %v9683, %v9684
        %v9687 = vld [vmem:[#allocation7 + $0x2c] sm:$0x7]
        %v9688 = vsel %vm660, %v9685, %v9687
        %9689 = vst [vmem:[#allocation7 + $0x2c] sm:$0x7] %v9688
        %v9691 = vshrl.u32 %v9680, 16
        %v9693 = vrot.slane %v9691, 6
        %v9694 = vshll.u32 %v9680, 16
        %v9696 = vrot.slane %v9694, 7
        %v9697 = vor.u32 %v9693, %v9696
        %v9698 = vrot.slane %v9697, 4
        %v9700 = vshrl.u32 %v9681, 16
        %v9702 = vrot.slane %v9700, 6
        %v9703 = vshll.u32 %v9681, 16
        %v9705 = vrot.slane %v9703, 7
        %v9706 = vor.u32 %v9702, %v9705
        %v9707 = vsel %vm954, %v9698, %v9706
        %v9709 = vld [vmem:[#allocation7 + $0x30] sm:$0x7]
        %v9710 = vsel %vm660, %v9707, %v9709
        %9711 = vst [vmem:[#allocation7 + $0x30] sm:$0x7] %v9710
        %v9712 = vrot.slane %v9680, 7
        %v9713 = vrot.slane %v9712, 4
        %v9714 = vrot.slane %v9681, 7
        %v9715 = vsel %vm1079, %v9713, %v9714
        %v9717 = vld [vmem:[#allocation7 + $0x34] sm:$0x7]
        %v9718 = vsel %vm660, %v9715, %v9717
        %9719 = vst [vmem:[#allocation7 + $0x34] sm:$0x7] %v9718
        %v9720 = vrot.slane %v9691, 7
        %v9721 = vrot.slane %v9720, 4
        %v9722 = vrot.slane %v9700, 7
        %v9723 = vor.u32 %v9722, %v9703
        %v9724 = vsel %vm1165, %v9721, %v9723
        %v9726 = vld [vmem:[#allocation7 + $0x38] sm:$0x7]
        %v9727 = vsel %vm660, %v9724, %v9726
        %9728 = vst [vmem:[#allocation7 + $0x38] sm:$0x7] %v9727
        %v9729 = vld [vmem:[#allocation7] sm:$0x77]
        %v9730 = vld [vmem:[#allocation7 + $0x8] sm:$0x77]
        %v9731 = vld [vmem:[#allocation7 + $0x10] sm:$0x77]
        %v9732 = vld [vmem:[#allocation7 + $0x18] sm:$0x77]
        %v9733 = vld [vmem:[#allocation7 + $0x20] sm:$0x77]
        %v9734 = vld [vmem:[#allocation7 + $0x28] sm:$0x77]
        %v9735 = vld [vmem:[#allocation7 + $0x30] sm:$0x77]
        %v9736 = vld [vmem:[#allocation7 + $0x38] sm:$0x7]
        %v9737 = vld [vmem:[%s5] sm:$0xf]
        %v9738 = vld [vmem:[%s5 + $0x4] sm:$0xf]
        %v9739 = vld [vmem:[%s5 + $0x8] sm:$0xf]
        %v9740 = vld [vmem:[%s5 + $0xc] sm:$0xf]
        %v9741 = vld [vmem:[%s5 + $0x10] sm:$0xf]
        %v9742 = vld [vmem:[%s5 + $0x14] sm:$0xf]
        %v9743 = vld [vmem:[%s5 + $0x18] sm:$0xf]
        %v9744 = vld [vmem:[%s5 + $0x1c] sm:$0xf]
        %v9745 = vld [vmem:[%s5 + $0x20] sm:$0xf]
        %v9746 = vld [vmem:[%s5 + $0x24] sm:$0xf]
        %v9747 = vld [vmem:[%s5 + $0x28] sm:$0xf]
        %v9748 = vld [vmem:[%s5 + $0x2c] sm:$0xf]
        %v9749 = vld [vmem:[%s5 + $0x30] sm:$0xf]
        %v9750 = vld [vmem:[%s5 + $0x34] sm:$0xf]
        %v9751 = vld [vmem:[%s5 + $0x38] sm:$0xf]
        %v9752 = vld [vmem:[%s5 + $0x3c] sm:$0xf]
        %v9753 = vld [vmem:[%s5 + $0x40] sm:$0xf]
        %v9754 = vld [vmem:[%s5 + $0x44] sm:$0xf]
        %v9755 = vld [vmem:[%s5 + $0x48] sm:$0xf]
        %v9756 = vld [vmem:[%s5 + $0x4c] sm:$0xf]
        %v9757 = vld [vmem:[%s5 + $0x50] sm:$0xf]
        %v9758 = vld [vmem:[%s5 + $0x54] sm:$0xf]
        %v9759 = vld [vmem:[%s5 + $0x58] sm:$0xf]
        %v9760 = vld [vmem:[%s5 + $0x5c] sm:$0xf]
        %v9761 = vld [vmem:[%s5 + $0x60] sm:$0xf]
        %v9762 = vld [vmem:[%s5 + $0x64] sm:$0xf]
        %v9763 = vld [vmem:[%s5 + $0x68] sm:$0xf]
        %v9764 = vld [vmem:[%s5 + $0x6c] sm:$0xf]
        %v9765 = vld [vmem:[%s5 + $0x70] sm:$0xf]
        %v9766 = vld [vmem:[%s5 + $0x74] sm:$0xf]
        %v9767 = vld [vmem:[%s5 + $0x78] sm:$0xf]
        %v9768 = vld [vmem:[%s5 + $0x7c] sm:$0xf]
        %v9769 = vld [vmem:[%s5 + $0x80] sm:$0xf]
        %v9770 = vld [vmem:[%s5 + $0x84] sm:$0xf]
        %v9771 = vld [vmem:[%s5 + $0x88] sm:$0xf]
        %v9772 = vld [vmem:[%s5 + $0x8c] sm:$0xf]
        %v9773 = vld [vmem:[%s5 + $0x90] sm:$0xf]
        %v9774 = vld [vmem:[%s5 + $0x94] sm:$0xf]
        %v9775 = vld [vmem:[%s5 + $0x98] sm:$0xf]
        %v9776 = vld [vmem:[%s5 + $0x9c] sm:$0xf]
        %v9777 = vld [vmem:[%s5 + $0xa0] sm:$0xf]
        %v9778 = vld [vmem:[%s5 + $0xa4] sm:$0xf]
        %v9779 = vld [vmem:[%s5 + $0xa8] sm:$0xf]
        %v9780 = vld [vmem:[%s5 + $0xac] sm:$0xf]
        %v9781 = vld [vmem:[%s5 + $0xb0] sm:$0xf]
        %v9782 = vld [vmem:[%s5 + $0xb4] sm:$0xf]
        %v9783 = vld [vmem:[%s5 + $0xb8] sm:$0xf]
        %v9784 = vld [vmem:[%s5 + $0xbc] sm:$0xf]
        %v9785 = vld [vmem:[%s5 + $0xc0] sm:$0xf]
        %v9786 = vld [vmem:[%s5 + $0xc4] sm:$0xf]
        %v9787 = vld [vmem:[%s5 + $0xc8] sm:$0xf]
        %v9788 = vld [vmem:[%s5 + $0xcc] sm:$0xf]
        %v9789 = vld [vmem:[%s5 + $0xd0] sm:$0xf]
        %v9790 = vld [vmem:[%s5 + $0xd4] sm:$0xf]
        %v9791 = vld [vmem:[%s5 + $0xd8] sm:$0xf]
        %v9792 = vld [vmem:[%s5 + $0xdc] sm:$0xf]
        %v9793 = vld [vmem:[%s5 + $0xe0] sm:$0xf]
        %v9794 = vld [vmem:[%s5 + $0xe4] sm:$0xf]
        %v9795 = vld [vmem:[%s5 + $0xe8] sm:$0xf]
        %v9796 = vld [vmem:[%s5 + $0xec] sm:$0xf]
        %v9797 = vld [vmem:[%s5 + $0xf0] sm:$0xf]
        %v9798 = vld [vmem:[%s5 + $0xf4] sm:$0xf]
        %v9799 = vld [vmem:[%s5 + $0xf8] sm:$0xf]
        %v9800 = vld [vmem:[%s5 + $0xfc] sm:$0xf]
        %v9801 = vld [vmem:[%s5 + $0x100] sm:$0xf]
        %v9802 = vld [vmem:[%s5 + $0x104] sm:$0xf]
        %v9803 = vld [vmem:[%s5 + $0x108] sm:$0xf]
        %v9804 = vld [vmem:[%s5 + $0x10c] sm:$0xf]
        %v9805 = vld [vmem:[%s5 + $0x110] sm:$0xf]
        %v9806 = vld [vmem:[%s5 + $0x114] sm:$0xf]
        %v9807 = vld [vmem:[%s5 + $0x118] sm:$0xf]
        %v9808 = vld [vmem:[%s5 + $0x11c] sm:$0xf]
        %v9809 = vld [vmem:[%s5 + $0x120] sm:$0xf]
        %v9810 = vld [vmem:[%s5 + $0x124] sm:$0xf]
        %v9811 = vld [vmem:[%s5 + $0x128] sm:$0xf]
        %v9812 = vld [vmem:[%s5 + $0x12c] sm:$0xf]
        %v9813 = vld [vmem:[%s5 + $0x130] sm:$0xf]
        %v9814 = vld [vmem:[%s5 + $0x134] sm:$0xf]
        %v9815 = vld [vmem:[%s5 + $0x138] sm:$0xf]
        %v9816 = vld [vmem:[%s5 + $0x13c] sm:$0xf]
        %v9817 = vld [vmem:[%s5 + $0x140] sm:$0xf]
        %v9818 = vld [vmem:[%s5 + $0x144] sm:$0xf]
        %v9819 = vld [vmem:[%s5 + $0x148] sm:$0xf]
        %v9820 = vld [vmem:[%s5 + $0x14c] sm:$0xf]
        %v9821 = vld [vmem:[%s5 + $0x150] sm:$0xf]
        %v9822 = vld [vmem:[%s5 + $0x154] sm:$0xf]
        %v9823 = vld [vmem:[%s5 + $0x158] sm:$0xf]
        %v9824 = vld [vmem:[%s5 + $0x15c] sm:$0xf]
        %v9825 = vld [vmem:[%s5 + $0x160] sm:$0xf]
        %v9826 = vld [vmem:[%s5 + $0x164] sm:$0xf]
        %v9827 = vld [vmem:[%s5 + $0x168] sm:$0xf]
        %v9828 = vld [vmem:[%s5 + $0x16c] sm:$0xf]
        %v9829 = vld [vmem:[%s5 + $0x170] sm:$0xf]
        %v9830 = vld [vmem:[%s5 + $0x174] sm:$0xf]
        %v9831 = vld [vmem:[%s5 + $0x178] sm:$0xf]
        %v9832 = vld [vmem:[%s5 + $0x17c] sm:$0xf]
        %v9833 = vld [vmem:[%s5 + $0x180] sm:$0xf]
        %v9834 = vld [vmem:[%s5 + $0x184] sm:$0xf]
        %v9835 = vld [vmem:[%s5 + $0x188] sm:$0xf]
        %v9836 = vld [vmem:[%s5 + $0x18c] sm:$0xf]
        %v9837 = vld [vmem:[%s5 + $0x190] sm:$0xf]
        %v9838 = vld [vmem:[%s5 + $0x194] sm:$0xf]
        %v9839 = vld [vmem:[%s5 + $0x198] sm:$0xf]
        %v9840 = vld [vmem:[%s5 + $0x19c] sm:$0xf]
        %v9841 = vld [vmem:[%s5 + $0x1a0] sm:$0xf]
        %v9842 = vld [vmem:[%s5 + $0x1a4] sm:$0xf]
        %v9843 = vld [vmem:[%s5 + $0x1a8] sm:$0xf]
        %v9844 = vld [vmem:[%s5 + $0x1ac] sm:$0xf]
        %v9845 = vld [vmem:[%s5 + $0x1b0] sm:$0xf]
        %v9846 = vld [vmem:[%s5 + $0x1b4] sm:$0xf]
        %v9847 = vld [vmem:[%s5 + $0x1b8] sm:$0xf]
        %v9848 = vld [vmem:[%s5 + $0x1bc] sm:$0xf]
        %v9849 = vld [vmem:[%s5 + $0x1c0] sm:$0xf]
        %v9850 = vld [vmem:[%s5 + $0x1c4] sm:$0xf]
        %v9851 = vld [vmem:[%s5 + $0x1c8] sm:$0xf]
        %v9852 = vld [vmem:[%s5 + $0x1cc] sm:$0xf]
        %v9853 = vld [vmem:[%s5 + $0x1d0] sm:$0xf]
        %v9854 = vld [vmem:[%s5 + $0x1d4] sm:$0xf]
        %v9855 = vld [vmem:[%s5 + $0x1d8] sm:$0xf]
        %v9856 = vld [vmem:[%s5 + $0x1dc] sm:$0xf]
        %v9857 = vld [vmem:[%s5 + $0x1e0] sm:$0xf]
        %v9858 = vld [vmem:[%s5 + $0x1e4] sm:$0xf]
        %v9859 = vld [vmem:[%s5 + $0x1e8] sm:$0xf]
        %v9860 = vld [vmem:[%s5 + $0x1ec] sm:$0xf]
        %v9861 = vld [vmem:[%s5 + $0x1f0] sm:$0xf]
        %v9862 = vld [vmem:[%s5 + $0x1f4] sm:$0xf]
        %v9863 = vld [vmem:[%s5 + $0x1f8] sm:$0xf]
        %v9864 = vld [vmem:[%s5 + $0x1fc] sm:$0xf]
        %v9865 = vld [vmem:[%s5 + $0x200] sm:$0xf]
        %v9866 = vld [vmem:[%s5 + $0x204] sm:$0xf]
        %v9867 = vld [vmem:[%s5 + $0x208] sm:$0xf]
        %v9868 = vld [vmem:[%s5 + $0x20c] sm:$0xf]
        %v9869 = vld [vmem:[%s5 + $0x210] sm:$0xf]
        %v9870 = vld [vmem:[%s5 + $0x214] sm:$0xf]
        %v9871 = vld [vmem:[%s5 + $0x218] sm:$0xf]
        %v9872 = vld [vmem:[%s5 + $0x21c] sm:$0xf]
        %v9873 = vld [vmem:[%s5 + $0x220] sm:$0xf]
        %v9874 = vld [vmem:[%s5 + $0x224] sm:$0xf]
        %v9875 = vld [vmem:[%s5 + $0x228] sm:$0xf]
        %v9876 = vld [vmem:[%s5 + $0x22c] sm:$0xf]
        %v9877 = vld [vmem:[%s5 + $0x230] sm:$0xf]
        %v9878 = vld [vmem:[%s5 + $0x234] sm:$0xf]
        %v9879 = vld [vmem:[%s5 + $0x238] sm:$0xf]
        %v9880 = vld [vmem:[%s5 + $0x23c] sm:$0xf]
        %v9881 = vld [vmem:[%s5 + $0x240] sm:$0xf]
        %v9882 = vld [vmem:[%s5 + $0x244] sm:$0xf]
        %v9883 = vld [vmem:[%s5 + $0x248] sm:$0xf]
        %v9884 = vld [vmem:[%s5 + $0x24c] sm:$0xf]
        %v9885 = vld [vmem:[%s5 + $0x250] sm:$0xf]
        %v9886 = vld [vmem:[%s5 + $0x254] sm:$0xf]
        %v9887 = vld [vmem:[%s5 + $0x258] sm:$0xf]
        %v9888 = vld [vmem:[%s5 + $0x25c] sm:$0xf]
        %v9889 = vld [vmem:[%s5 + $0x260] sm:$0xf]
        %v9890 = vld [vmem:[%s5 + $0x264] sm:$0xf]
        %v9891 = vld [vmem:[%s5 + $0x268] sm:$0xf]
        %v9892 = vld [vmem:[%s5 + $0x26c] sm:$0xf]
        %v9893 = vld [vmem:[%s5 + $0x270] sm:$0xf]
        %v9894 = vld [vmem:[%s5 + $0x274] sm:$0xf]
        %v9895 = vld [vmem:[%s5 + $0x278] sm:$0xf]
        %v9896 = vld [vmem:[%s5 + $0x27c] sm:$0xf]
        %v9897 = vld [vmem:[%s5 + $0x280] sm:$0xf]
        %v9898 = vld [vmem:[%s5 + $0x284] sm:$0xf]
        %v9899 = vld [vmem:[%s5 + $0x288] sm:$0xf]
        %v9900 = vld [vmem:[%s5 + $0x28c] sm:$0xf]
        %v9901 = vld [vmem:[%s5 + $0x290] sm:$0xf]
        %v9902 = vld [vmem:[%s5 + $0x294] sm:$0xf]
        %v9903 = vld [vmem:[%s5 + $0x298] sm:$0xf]
        %v9904 = vld [vmem:[%s5 + $0x29c] sm:$0xf]
        %v9905 = vld [vmem:[%s5 + $0x2a0] sm:$0xf]
        %v9906 = vld [vmem:[%s5 + $0x2a4] sm:$0xf]
        %v9907 = vld [vmem:[%s5 + $0x2a8] sm:$0xf]
        %v9908 = vld [vmem:[%s5 + $0x2ac] sm:$0xf]
        %v9909 = vld [vmem:[%s5 + $0x2b0] sm:$0xf]
        %v9910 = vld [vmem:[%s5 + $0x2b4] sm:$0xf]
        %v9911 = vld [vmem:[%s5 + $0x2b8] sm:$0xf]
        %v9912 = vld [vmem:[%s5 + $0x2bc] sm:$0xf]
        %v9913 = vld [vmem:[%s5 + $0x2c0] sm:$0xf]
        %v9914 = vld [vmem:[%s5 + $0x2c4] sm:$0xf]
        %v9915 = vld [vmem:[%s5 + $0x2c8] sm:$0xf]
        %v9916 = vld [vmem:[%s5 + $0x2cc] sm:$0xf]
        %v9917 = vld [vmem:[%s5 + $0x2d0] sm:$0xf]
        %v9918 = vld [vmem:[%s5 + $0x2d4] sm:$0xf]
        %v9919 = vld [vmem:[%s5 + $0x2d8] sm:$0xf]
        %v9920 = vld [vmem:[%s5 + $0x2dc] sm:$0xf]
        %v9921 = vld [vmem:[%s5 + $0x2e0] sm:$0xf]
        %v9922 = vld [vmem:[%s5 + $0x2e4] sm:$0xf]
        %v9923 = vld [vmem:[%s5 + $0x2e8] sm:$0xf]
        %v9924 = vld [vmem:[%s5 + $0x2ec] sm:$0xf]
        %v9925 = vld [vmem:[%s5 + $0x2f0] sm:$0xf]
        %v9926 = vld [vmem:[%s5 + $0x2f4] sm:$0xf]
        %v9927 = vld [vmem:[%s5 + $0x2f8] sm:$0xf]
        %v9928 = vld [vmem:[%s5 + $0x2fc] sm:$0xf]
        %v9929 = vld [vmem:[%s5 + $0x300] sm:$0xf]
        %v9930 = vld [vmem:[%s5 + $0x304] sm:$0xf]
        %v9931 = vld [vmem:[%s5 + $0x308] sm:$0xf]
        %v9932 = vld [vmem:[%s5 + $0x30c] sm:$0xf]
        %v9933 = vld [vmem:[%s5 + $0x310] sm:$0xf]
        %v9934 = vld [vmem:[%s5 + $0x314] sm:$0xf]
        %v9935 = vld [vmem:[%s5 + $0x318] sm:$0xf]
        %v9936 = vld [vmem:[%s5 + $0x31c] sm:$0xf]
        %v9937 = vld [vmem:[%s5 + $0x320] sm:$0xf]
        %v9938 = vld [vmem:[%s5 + $0x324] sm:$0xf]
        %v9939 = vld [vmem:[%s5 + $0x328] sm:$0xf]
        %v9940 = vld [vmem:[%s5 + $0x32c] sm:$0xf]
        %v9941 = vld [vmem:[%s5 + $0x330] sm:$0xf]
        %v9942 = vld [vmem:[%s5 + $0x334] sm:$0xf]
        %v9943 = vld [vmem:[%s5 + $0x338] sm:$0xf]
        %v9944 = vld [vmem:[%s5 + $0x33c] sm:$0xf]
        %v9945 = vld [vmem:[%s5 + $0x340] sm:$0xf]
        %v9946 = vld [vmem:[%s5 + $0x344] sm:$0xf]
        %v9947 = vld [vmem:[%s5 + $0x348] sm:$0xf]
        %v9948 = vld [vmem:[%s5 + $0x34c] sm:$0xf]
        %v9949 = vld [vmem:[%s5 + $0x350] sm:$0xf]
        %v9950 = vld [vmem:[%s5 + $0x354] sm:$0xf]
        %v9951 = vld [vmem:[%s5 + $0x358] sm:$0xf]
        %v9952 = vld [vmem:[%s5 + $0x35c] sm:$0xf]
        %v9953 = vld [vmem:[%s5 + $0x360] sm:$0xf]
        %v9954 = vld [vmem:[%s5 + $0x364] sm:$0xf]
        %v9955 = vld [vmem:[%s5 + $0x368] sm:$0xf]
        %v9956 = vld [vmem:[%s5 + $0x36c] sm:$0xf]
        %v9957 = vld [vmem:[%s5 + $0x370] sm:$0xf]
        %v9958 = vld [vmem:[%s5 + $0x374] sm:$0xf]
        %v9959 = vld [vmem:[%s5 + $0x378] sm:$0xf]
        %v9960 = vld [vmem:[%s5 + $0x37c] sm:$0xf]
        %v9961 = vld [vmem:[%s5 + $0x380] sm:$0xf]
        %v9962 = vld [vmem:[%s5 + $0x384] sm:$0xf]
        %v9963 = vld [vmem:[%s5 + $0x388] sm:$0xf]
        %v9964 = vld [vmem:[%s5 + $0x38c] sm:$0xf]
        %v9965 = vld [vmem:[%s5 + $0x390] sm:$0xf]
        %v9966 = vld [vmem:[%s5 + $0x394] sm:$0xf]
        %v9967 = vld [vmem:[%s5 + $0x398] sm:$0xf]
        %v9968 = vld [vmem:[%s5 + $0x39c] sm:$0xf]
        %v9969 = vld [vmem:[%s5 + $0x3a0] sm:$0xf]
        %v9970 = vld [vmem:[%s5 + $0x3a4] sm:$0xf]
        %v9971 = vld [vmem:[%s5 + $0x3a8] sm:$0xf]
        %v9972 = vld [vmem:[%s5 + $0x3ac] sm:$0xf]
        %v9973 = vld [vmem:[%s5 + $0x3b0] sm:$0xf]
        %v9974 = vld [vmem:[%s5 + $0x3b4] sm:$0xf]
        %v9975 = vld [vmem:[%s5 + $0x3b8] sm:$0xf]
        %v9976 = vld [vmem:[%s5 + $0x3bc] sm:$0xf]
        %v9977 = vld [vmem:[%s6] sm:$0x1]
        %v9979 = vlaneseq
        %v9980 = vshrl.u32 %v9979, 7
        %v9981 = vsub.s32 0, %v9980
        %v9982 = vrot.slane %v9977, %v9981
        %v9992 = vunpack.c.l.b16 %v9729
        %v9993 = vunpack.c.h.b16 %v9729
        %v9994 = vunpack.c.l.b16 %v9730
        %v9995 = vunpack.c.h.b16 %v9730
        %v9996 = vunpack.c.l.b16 %v9731
        %v9997 = vunpack.c.h.b16 %v9731
        %v9998 = vunpack.c.l.b16 %v9732
        %v9999 = vunpack.c.h.b16 %v9732
        %v10000 = vunpack.c.l.b16 %v9733
        %v10001 = vunpack.c.h.b16 %v9733
        %v10002 = vunpack.c.l.b16 %v9734
        %v10003 = vunpack.c.h.b16 %v9734
        %v10004 = vunpack.c.l.b16 %v9735
        %v10005 = vunpack.c.h.b16 %v9735
        %v10006 = vunpack.c.l.b16 %v9736
        %v10007 = vpack.c.b16 %v9992, %v9992
        %v10008 = vpack.c.b16 %v9993, %v9993
        %v10009 = vpack.c.b16 %v9994, %v9994
        %v10010 = vpack.c.b16 %v9995, %v9995
        %v10011 = vpack.c.b16 %v9996, %v9996
        %v10012 = vpack.c.b16 %v9997, %v9997
        %v10013 = vpack.c.b16 %v9998, %v9998
        %v10014 = vpack.c.b16 %v9999, %v9999
        %v10015 = vpack.c.b16 %v10000, %v10000
        %v10016 = vpack.c.b16 %v10001, %v10001
        %v10017 = vpack.c.b16 %v10002, %v10002
        %v10018 = vpack.c.b16 %v10003, %v10003
        %v10019 = vpack.c.b16 %v10004, %v10004
        %v10020 = vpack.c.b16 %v10005, %v10005
        %v10021 = vpack.c.b16 %v10006, %v10006
        %v10277 = vunpack.c.l.b16 %v9737
        %v10278 = vunpack.c.l.b16 %v9738
        %v10279 = vunpack.c.l.b16 %v9739
        %v10280 = vunpack.c.l.b16 %v9740
        %v10281 = vunpack.c.l.b16 %v9741
        %v10282 = vunpack.c.l.b16 %v9742
        %v10283 = vunpack.c.l.b16 %v9743
        %v10284 = vunpack.c.l.b16 %v9744
        %v10285 = vunpack.c.l.b16 %v9745
        %v10286 = vunpack.c.l.b16 %v9746
        %v10287 = vunpack.c.l.b16 %v9747
        %v10288 = vunpack.c.l.b16 %v9748
        %v10289 = vunpack.c.l.b16 %v9749
        %v10290 = vunpack.c.l.b16 %v9750
        %v10291 = vunpack.c.l.b16 %v9751
        %v10292 = vunpack.c.l.b16 %v9752
        %v10293 = vunpack.c.l.b16 %v9753
        %v10294 = vunpack.c.l.b16 %v9754
        %v10295 = vunpack.c.l.b16 %v9755
        %v10296 = vunpack.c.l.b16 %v9756
        %v10297 = vunpack.c.l.b16 %v9757
        %v10298 = vunpack.c.l.b16 %v9758
        %v10299 = vunpack.c.l.b16 %v9759
        %v10300 = vunpack.c.l.b16 %v9760
        %v10301 = vunpack.c.l.b16 %v9761
        %v10302 = vunpack.c.l.b16 %v9762
        %v10303 = vunpack.c.l.b16 %v9763
        %v10304 = vunpack.c.l.b16 %v9764
        %v10305 = vunpack.c.l.b16 %v9765
        %v10306 = vunpack.c.l.b16 %v9766
        %v10307 = vunpack.c.l.b16 %v9767
        %v10308 = vunpack.c.l.b16 %v9768
        %v10309 = vunpack.c.l.b16 %v9769
        %v10310 = vunpack.c.l.b16 %v9770
        %v10311 = vunpack.c.l.b16 %v9771
        %v10312 = vunpack.c.l.b16 %v9772
        %v10313 = vunpack.c.l.b16 %v9773
        %v10314 = vunpack.c.l.b16 %v9774
        %v10315 = vunpack.c.l.b16 %v9775
        %v10316 = vunpack.c.l.b16 %v9776
        %v10317 = vunpack.c.l.b16 %v9777
        %v10318 = vunpack.c.l.b16 %v9778
        %v10319 = vunpack.c.l.b16 %v9779
        %v10320 = vunpack.c.l.b16 %v9780
        %v10321 = vunpack.c.l.b16 %v9781
        %v10322 = vunpack.c.l.b16 %v9782
        %v10323 = vunpack.c.l.b16 %v9783
        %v10324 = vunpack.c.l.b16 %v9784
        %v10325 = vunpack.c.l.b16 %v9785
        %v10326 = vunpack.c.l.b16 %v9786
        %v10327 = vunpack.c.l.b16 %v9787
        %v10328 = vunpack.c.l.b16 %v9788
        %v10329 = vunpack.c.l.b16 %v9789
        %v10330 = vunpack.c.l.b16 %v9790
        %v10331 = vunpack.c.l.b16 %v9791
        %v10332 = vunpack.c.l.b16 %v9792
        %v10333 = vunpack.c.l.b16 %v9793
        %v10334 = vunpack.c.l.b16 %v9794
        %v10335 = vunpack.c.l.b16 %v9795
        %v10336 = vunpack.c.l.b16 %v9796
        %v10337 = vunpack.c.l.b16 %v9797
        %v10338 = vunpack.c.l.b16 %v9798
        %v10339 = vunpack.c.l.b16 %v9799
        %v10340 = vunpack.c.l.b16 %v9800
        %v10341 = vunpack.c.l.b16 %v9801
        %v10342 = vunpack.c.l.b16 %v9802
        %v10343 = vunpack.c.l.b16 %v9803
        %v10344 = vunpack.c.l.b16 %v9804
        %v10345 = vunpack.c.l.b16 %v9805
        %v10346 = vunpack.c.l.b16 %v9806
        %v10347 = vunpack.c.l.b16 %v9807
        %v10348 = vunpack.c.l.b16 %v9808
        %v10349 = vunpack.c.l.b16 %v9809
        %v10350 = vunpack.c.l.b16 %v9810
        %v10351 = vunpack.c.l.b16 %v9811
        %v10352 = vunpack.c.l.b16 %v9812
        %v10353 = vunpack.c.l.b16 %v9813
        %v10354 = vunpack.c.l.b16 %v9814
        %v10355 = vunpack.c.l.b16 %v9815
        %v10356 = vunpack.c.l.b16 %v9816
        %v10357 = vunpack.c.l.b16 %v9817
        %v10358 = vunpack.c.l.b16 %v9818
        %v10359 = vunpack.c.l.b16 %v9819
        %v10360 = vunpack.c.l.b16 %v9820
        %v10361 = vunpack.c.l.b16 %v9821
        %v10362 = vunpack.c.l.b16 %v9822
        %v10363 = vunpack.c.l.b16 %v9823
        %v10364 = vunpack.c.l.b16 %v9824
        %v10365 = vunpack.c.l.b16 %v9825
        %v10366 = vunpack.c.l.b16 %v9826
        %v10367 = vunpack.c.l.b16 %v9827
        %v10368 = vunpack.c.l.b16 %v9828
        %v10369 = vunpack.c.l.b16 %v9829
        %v10370 = vunpack.c.l.b16 %v9830
        %v10371 = vunpack.c.l.b16 %v9831
        %v10372 = vunpack.c.l.b16 %v9832
        %v10373 = vunpack.c.l.b16 %v9833
        %v10374 = vunpack.c.l.b16 %v9834
        %v10375 = vunpack.c.l.b16 %v9835
        %v10376 = vunpack.c.l.b16 %v9836
        %v10377 = vunpack.c.l.b16 %v9837
        %v10378 = vunpack.c.l.b16 %v9838
        %v10379 = vunpack.c.l.b16 %v9839
        %v10380 = vunpack.c.l.b16 %v9840
        %v10381 = vunpack.c.l.b16 %v9841
        %v10382 = vunpack.c.l.b16 %v9842
        %v10383 = vunpack.c.l.b16 %v9843
        %v10384 = vunpack.c.l.b16 %v9844
        %v10385 = vunpack.c.l.b16 %v9845
        %v10386 = vunpack.c.l.b16 %v9846
        %v10387 = vunpack.c.l.b16 %v9847
        %v10388 = vunpack.c.l.b16 %v9848
        %v10389 = vunpack.c.l.b16 %v9849
        %v10390 = vunpack.c.l.b16 %v9850
        %v10391 = vunpack.c.l.b16 %v9851
        %v10392 = vunpack.c.l.b16 %v9852
        %v10393 = vunpack.c.l.b16 %v9853
        %v10394 = vunpack.c.l.b16 %v9854
        %v10395 = vunpack.c.l.b16 %v9855
        %v10396 = vunpack.c.l.b16 %v9856
        %v10397 = vunpack.c.l.b16 %v9857
        %v10398 = vunpack.c.l.b16 %v9858
        %v10399 = vunpack.c.l.b16 %v9859
        %v10400 = vunpack.c.l.b16 %v9860
        %v10401 = vunpack.c.l.b16 %v9861
        %v10402 = vunpack.c.l.b16 %v9862
        %v10403 = vunpack.c.l.b16 %v9863
        %v10404 = vunpack.c.l.b16 %v9864
        %v10405 = vunpack.c.l.b16 %v9865
        %v10406 = vunpack.c.l.b16 %v9866
        %v10407 = vunpack.c.l.b16 %v9867
        %v10408 = vunpack.c.l.b16 %v9868
        %v10409 = vunpack.c.l.b16 %v9869
        %v10410 = vunpack.c.l.b16 %v9870
        %v10411 = vunpack.c.l.b16 %v9871
        %v10412 = vunpack.c.l.b16 %v9872
        %v10413 = vunpack.c.l.b16 %v9873
        %v10414 = vunpack.c.l.b16 %v9874
        %v10415 = vunpack.c.l.b16 %v9875
        %v10416 = vunpack.c.l.b16 %v9876
        %v10417 = vunpack.c.l.b16 %v9877
        %v10418 = vunpack.c.l.b16 %v9878
        %v10419 = vunpack.c.l.b16 %v9879
        %v10420 = vunpack.c.l.b16 %v9880
        %v10421 = vunpack.c.l.b16 %v9881
        %v10422 = vunpack.c.l.b16 %v9882
        %v10423 = vunpack.c.l.b16 %v9883
        %v10424 = vunpack.c.l.b16 %v9884
        %v10425 = vunpack.c.l.b16 %v9885
        %v10426 = vunpack.c.l.b16 %v9886
        %v10427 = vunpack.c.l.b16 %v9887
        %v10428 = vunpack.c.l.b16 %v9888
        %v10429 = vunpack.c.l.b16 %v9889
        %v10430 = vunpack.c.l.b16 %v9890
        %v10431 = vunpack.c.l.b16 %v9891
        %v10432 = vunpack.c.l.b16 %v9892
        %v10433 = vunpack.c.l.b16 %v9893
        %v10434 = vunpack.c.l.b16 %v9894
        %v10435 = vunpack.c.l.b16 %v9895
        %v10436 = vunpack.c.l.b16 %v9896
        %v10437 = vunpack.c.l.b16 %v9897
        %v10438 = vunpack.c.l.b16 %v9898
        %v10439 = vunpack.c.l.b16 %v9899
        %v10440 = vunpack.c.l.b16 %v9900
        %v10441 = vunpack.c.l.b16 %v9901
        %v10442 = vunpack.c.l.b16 %v9902
        %v10443 = vunpack.c.l.b16 %v9903
        %v10444 = vunpack.c.l.b16 %v9904
        %v10445 = vunpack.c.l.b16 %v9905
        %v10446 = vunpack.c.l.b16 %v9906
        %v10447 = vunpack.c.l.b16 %v9907
        %v10448 = vunpack.c.l.b16 %v9908
        %v10449 = vunpack.c.l.b16 %v9909
        %v10450 = vunpack.c.l.b16 %v9910
        %v10451 = vunpack.c.l.b16 %v9911
        %v10452 = vunpack.c.l.b16 %v9912
        %v10453 = vunpack.c.l.b16 %v9913
        %v10454 = vunpack.c.l.b16 %v9914
        %v10455 = vunpack.c.l.b16 %v9915
        %v10456 = vunpack.c.l.b16 %v9916
        %v10457 = vunpack.c.l.b16 %v9917
        %v10458 = vunpack.c.l.b16 %v9918
        %v10459 = vunpack.c.l.b16 %v9919
        %v10460 = vunpack.c.l.b16 %v9920
        %v10461 = vunpack.c.l.b16 %v9921
        %v10462 = vunpack.c.l.b16 %v9922
        %v10463 = vunpack.c.l.b16 %v9923
        %v10464 = vunpack.c.l.b16 %v9924
        %v10465 = vunpack.c.l.b16 %v9925
        %v10466 = vunpack.c.l.b16 %v9926
        %v10467 = vunpack.c.l.b16 %v9927
        %v10468 = vunpack.c.l.b16 %v9928
        %v10469 = vunpack.c.l.b16 %v9929
        %v10470 = vunpack.c.l.b16 %v9930
        %v10471 = vunpack.c.l.b16 %v9931
        %v10472 = vunpack.c.l.b16 %v9932
        %v10473 = vunpack.c.l.b16 %v9933
        %v10474 = vunpack.c.l.b16 %v9934
        %v10475 = vunpack.c.l.b16 %v9935
        %v10476 = vunpack.c.l.b16 %v9936
        %v10477 = vunpack.c.l.b16 %v9937
        %v10478 = vunpack.c.l.b16 %v9938
        %v10479 = vunpack.c.l.b16 %v9939
        %v10480 = vunpack.c.l.b16 %v9940
        %v10481 = vunpack.c.l.b16 %v9941
        %v10482 = vunpack.c.l.b16 %v9942
        %v10483 = vunpack.c.l.b16 %v9943
        %v10484 = vunpack.c.l.b16 %v9944
        %v10485 = vunpack.c.l.b16 %v9945
        %v10486 = vunpack.c.l.b16 %v9946
        %v10487 = vunpack.c.l.b16 %v9947
        %v10488 = vunpack.c.l.b16 %v9948
        %v10489 = vunpack.c.l.b16 %v9949
        %v10490 = vunpack.c.l.b16 %v9950
        %v10491 = vunpack.c.l.b16 %v9951
        %v10492 = vunpack.c.l.b16 %v9952
        %v10493 = vunpack.c.l.b16 %v9953
        %v10494 = vunpack.c.l.b16 %v9954
        %v10495 = vunpack.c.l.b16 %v9955
        %v10496 = vunpack.c.l.b16 %v9956
        %v10497 = vunpack.c.l.b16 %v9957
        %v10498 = vunpack.c.l.b16 %v9958
        %v10499 = vunpack.c.l.b16 %v9959
        %v10500 = vunpack.c.l.b16 %v9960
        %v10501 = vunpack.c.l.b16 %v9961
        %v10502 = vunpack.c.l.b16 %v9962
        %v10503 = vunpack.c.l.b16 %v9963
        %v10504 = vunpack.c.l.b16 %v9964
        %v10505 = vunpack.c.l.b16 %v9965
        %v10506 = vunpack.c.l.b16 %v9966
        %v10507 = vunpack.c.l.b16 %v9967
        %v10508 = vunpack.c.l.b16 %v9968
        %v10509 = vunpack.c.l.b16 %v9969
        %v10510 = vunpack.c.l.b16 %v9970
        %v10511 = vunpack.c.l.b16 %v9971
        %v10512 = vunpack.c.l.b16 %v9972
        %v10513 = vunpack.c.l.b16 %v9973
        %v10514 = vunpack.c.l.b16 %v9974
        %v10515 = vunpack.c.l.b16 %v9975
        %v10516 = vunpack.c.l.b16 %v9976
        %v10517 = vpack.c.b16 %v10278, %v10277
        %v10518 = vpack.c.b16 %v10280, %v10279
        %v10519 = vpack.c.b16 %v10282, %v10281
        %v10520 = vpack.c.b16 %v10284, %v10283
        %v10521 = vpack.c.b16 %v10286, %v10285
        %v10522 = vpack.c.b16 %v10288, %v10287
        %v10523 = vpack.c.b16 %v10290, %v10289
        %v10524 = vpack.c.b16 %v10292, %v10291
        %v10525 = vpack.c.b16 %v10294, %v10293
        %v10526 = vpack.c.b16 %v10296, %v10295
        %v10527 = vpack.c.b16 %v10298, %v10297
        %v10528 = vpack.c.b16 %v10300, %v10299
        %v10529 = vpack.c.b16 %v10302, %v10301
        %v10530 = vpack.c.b16 %v10304, %v10303
        %v10531 = vpack.c.b16 %v10306, %v10305
        %v10532 = vpack.c.b16 %v10308, %v10307
        %v10533 = vpack.c.b16 %v10310, %v10309
        %v10534 = vpack.c.b16 %v10312, %v10311
        %v10535 = vpack.c.b16 %v10314, %v10313
        %v10536 = vpack.c.b16 %v10316, %v10315
        %v10537 = vpack.c.b16 %v10318, %v10317
        %v10538 = vpack.c.b16 %v10320, %v10319
        %v10539 = vpack.c.b16 %v10322, %v10321
        %v10540 = vpack.c.b16 %v10324, %v10323
        %v10541 = vpack.c.b16 %v10326, %v10325
        %v10542 = vpack.c.b16 %v10328, %v10327
        %v10543 = vpack.c.b16 %v10330, %v10329
        %v10544 = vpack.c.b16 %v10332, %v10331
        %v10545 = vpack.c.b16 %v10334, %v10333
        %v10546 = vpack.c.b16 %v10336, %v10335
        %v10547 = vpack.c.b16 %v10338, %v10337
        %v10548 = vpack.c.b16 %v10340, %v10339
        %v10549 = vpack.c.b16 %v10342, %v10341
        %v10550 = vpack.c.b16 %v10344, %v10343
        %v10551 = vpack.c.b16 %v10346, %v10345
        %v10552 = vpack.c.b16 %v10348, %v10347
        %v10553 = vpack.c.b16 %v10350, %v10349
        %v10554 = vpack.c.b16 %v10352, %v10351
        %v10555 = vpack.c.b16 %v10354, %v10353
        %v10556 = vpack.c.b16 %v10356, %v10355
        %v10557 = vpack.c.b16 %v10358, %v10357
        %v10558 = vpack.c.b16 %v10360, %v10359
        %v10559 = vpack.c.b16 %v10362, %v10361
        %v10560 = vpack.c.b16 %v10364, %v10363
        %v10561 = vpack.c.b16 %v10366, %v10365
        %v10562 = vpack.c.b16 %v10368, %v10367
        %v10563 = vpack.c.b16 %v10370, %v10369
        %v10564 = vpack.c.b16 %v10372, %v10371
        %v10565 = vpack.c.b16 %v10374, %v10373
        %v10566 = vpack.c.b16 %v10376, %v10375
        %v10567 = vpack.c.b16 %v10378, %v10377
        %v10568 = vpack.c.b16 %v10380, %v10379
        %v10569 = vpack.c.b16 %v10382, %v10381
        %v10570 = vpack.c.b16 %v10384, %v10383
        %v10571 = vpack.c.b16 %v10386, %v10385
        %v10572 = vpack.c.b16 %v10388, %v10387
        %v10573 = vpack.c.b16 %v10390, %v10389
        %v10574 = vpack.c.b16 %v10392, %v10391
        %v10575 = vpack.c.b16 %v10394, %v10393
        %v10576 = vpack.c.b16 %v10396, %v10395
        %v10577 = vpack.c.b16 %v10398, %v10397
        %v10578 = vpack.c.b16 %v10400, %v10399
        %v10579 = vpack.c.b16 %v10402, %v10401
        %v10580 = vpack.c.b16 %v10404, %v10403
        %v10581 = vpack.c.b16 %v10406, %v10405
        %v10582 = vpack.c.b16 %v10408, %v10407
        %v10583 = vpack.c.b16 %v10410, %v10409
        %v10584 = vpack.c.b16 %v10412, %v10411
        %v10585 = vpack.c.b16 %v10414, %v10413
        %v10586 = vpack.c.b16 %v10416, %v10415
        %v10587 = vpack.c.b16 %v10418, %v10417
        %v10588 = vpack.c.b16 %v10420, %v10419
        %v10589 = vpack.c.b16 %v10422, %v10421
        %v10590 = vpack.c.b16 %v10424, %v10423
        %v10591 = vpack.c.b16 %v10426, %v10425
        %v10592 = vpack.c.b16 %v10428, %v10427
        %v10593 = vpack.c.b16 %v10430, %v10429
        %v10594 = vpack.c.b16 %v10432, %v10431
        %v10595 = vpack.c.b16 %v10434, %v10433
        %v10596 = vpack.c.b16 %v10436, %v10435
        %v10597 = vpack.c.b16 %v10438, %v10437
        %v10598 = vpack.c.b16 %v10440, %v10439
        %v10599 = vpack.c.b16 %v10442, %v10441
        %v10600 = vpack.c.b16 %v10444, %v10443
        %v10601 = vpack.c.b16 %v10446, %v10445
        %v10602 = vpack.c.b16 %v10448, %v10447
        %v10603 = vpack.c.b16 %v10450, %v10449
        %v10604 = vpack.c.b16 %v10452, %v10451
        %v10605 = vpack.c.b16 %v10454, %v10453
        %v10606 = vpack.c.b16 %v10456, %v10455
        %v10607 = vpack.c.b16 %v10458, %v10457
        %v10608 = vpack.c.b16 %v10460, %v10459
        %v10609 = vpack.c.b16 %v10462, %v10461
        %v10610 = vpack.c.b16 %v10464, %v10463
        %v10611 = vpack.c.b16 %v10466, %v10465
        %v10612 = vpack.c.b16 %v10468, %v10467
        %v10613 = vpack.c.b16 %v10470, %v10469
        %v10614 = vpack.c.b16 %v10472, %v10471
        %v10615 = vpack.c.b16 %v10474, %v10473
        %v10616 = vpack.c.b16 %v10476, %v10475
        %v10617 = vpack.c.b16 %v10478, %v10477
        %v10618 = vpack.c.b16 %v10480, %v10479
        %v10619 = vpack.c.b16 %v10482, %v10481
        %v10620 = vpack.c.b16 %v10484, %v10483
        %v10621 = vpack.c.b16 %v10486, %v10485
        %v10622 = vpack.c.b16 %v10488, %v10487
        %v10623 = vpack.c.b16 %v10490, %v10489
        %v10624 = vpack.c.b16 %v10492, %v10491
        %v10625 = vpack.c.b16 %v10494, %v10493
        %v10626 = vpack.c.b16 %v10496, %v10495
        %v10627 = vpack.c.b16 %v10498, %v10497
        %v10628 = vpack.c.b16 %v10500, %v10499
        %v10629 = vpack.c.b16 %v10502, %v10501
        %v10630 = vpack.c.b16 %v10504, %v10503
        %v10631 = vpack.c.b16 %v10506, %v10505
        %v10632 = vpack.c.b16 %v10508, %v10507
        %v10633 = vpack.c.b16 %v10510, %v10509
        %v10634 = vpack.c.b16 %v10512, %v10511
        %v10635 = vpack.c.b16 %v10514, %v10513
        %v10636 = vpack.c.b16 %v10516, %v10515
        %10757 = vmatprep.subr.bf16.mxu0 0
        %10758 = vmatpush1.bf16.msra.mxu0 %v10517
        %10759 = vmatprep.subr.bf16.mxu0 0
        %10760 = vmatpush1.bf16.msra.mxu0 %v10518
        %10761 = vmatprep.subr.bf16.mxu0 0
        %10762 = vmatpush1.bf16.msra.mxu0 %v10519
        %10763 = vmatprep.subr.bf16.mxu0 0
        %10764 = vmatpush1.bf16.msra.mxu0 %v10520
        %10765 = vmatprep.subr.bf16.mxu0 0
        %10766 = vmatpush1.bf16.msra.mxu0 %v10521
        %10767 = vmatprep.subr.bf16.mxu0 0
        %10768 = vmatpush1.bf16.msra.mxu0 %v10522
        %10769 = vmatprep.subr.bf16.mxu0 0
        %10770 = vmatpush1.bf16.msra.mxu0 %v10523
        %10771 = vmatprep.subr.bf16.mxu0 0
        %10772 = vmatpush1.bf16.msra.mxu0 %v10524
        %10773 = vmatprep.subr.bf16.mxu0 0
        %10774 = vmatpush1.bf16.msra.mxu0 %v10525
        %10775 = vmatprep.subr.bf16.mxu0 0
        %10776 = vmatpush1.bf16.msra.mxu0 %v10526
        %10777 = vmatprep.subr.bf16.mxu0 0
        %10778 = vmatpush1.bf16.msra.mxu0 %v10527
        %10779 = vmatprep.subr.bf16.mxu0 0
        %10780 = vmatpush1.bf16.msra.mxu0 %v10528
        %10781 = vmatprep.subr.bf16.mxu0 0
        %10782 = vmatpush1.bf16.msra.mxu0 %v10529
        %10783 = vmatprep.subr.bf16.mxu0 0
        %10784 = vmatpush1.bf16.msra.mxu0 %v10530
        %10785 = vmatprep.subr.bf16.mxu0 0
        %10786 = vmatpush1.bf16.msra.mxu0 %v10531
        %10787 = vmatprep.subr.bf16.mxu0 0
        %10788 = vmatpush1.bf16.msra.mxu0 %v10532
        %10789 = vmatprep.mubr.bf16.mxu0 %v10008
        %10790 = vmatmul.mubr.bf16.gmra.mrb[0].mxu0 %v10007
        %v10791 = vpop.f32.mrb[0].mxu0
        %v10792 = vadd.f32 %v9982, %v10791
        %v10793 = vpop.f32.mrb[0].mxu0
        %v10794 = vpop.f32.mrb[0].mxu0
        %v10795 = vpop.f32.mrb[0].mxu0
        %10796 = vdwg.mxu0
        %10797 = vmatprep.subr.bf16.mxu0 0
        %10798 = vmatpush1.bf16.msra.mxu0 %v10533
        %10799 = vmatprep.subr.bf16.mxu0 0
        %10800 = vmatpush1.bf16.msra.mxu0 %v10534
        %10801 = vmatprep.subr.bf16.mxu0 0
        %10802 = vmatpush1.bf16.msra.mxu0 %v10535
        %10803 = vmatprep.subr.bf16.mxu0 0
        %10804 = vmatpush1.bf16.msra.mxu0 %v10536
        %10805 = vmatprep.subr.bf16.mxu0 0
        %10806 = vmatpush1.bf16.msra.mxu0 %v10537
        %10807 = vmatprep.subr.bf16.mxu0 0
        %10808 = vmatpush1.bf16.msra.mxu0 %v10538
        %10809 = vmatprep.subr.bf16.mxu0 0
        %10810 = vmatpush1.bf16.msra.mxu0 %v10539
        %10811 = vmatprep.subr.bf16.mxu0 0
        %10812 = vmatpush1.bf16.msra.mxu0 %v10540
        %10813 = vmatprep.subr.bf16.mxu0 0
        %10814 = vmatpush1.bf16.msra.mxu0 %v10541
        %10815 = vmatprep.subr.bf16.mxu0 0
        %10816 = vmatpush1.bf16.msra.mxu0 %v10542
        %10817 = vmatprep.subr.bf16.mxu0 0
        %10818 = vmatpush1.bf16.msra.mxu0 %v10543
        %10819 = vmatprep.subr.bf16.mxu0 0
        %10820 = vmatpush1.bf16.msra.mxu0 %v10544
        %10821 = vmatprep.subr.bf16.mxu0 0
        %10822 = vmatpush1.bf16.msra.mxu0 %v10545
        %10823 = vmatprep.subr.bf16.mxu0 0
        %10824 = vmatpush1.bf16.msra.mxu0 %v10546
        %10825 = vmatprep.subr.bf16.mxu0 0
        %10826 = vmatpush1.bf16.msra.mxu0 %v10547
        %10827 = vmatprep.subr.bf16.mxu0 0
        %10828 = vmatpush1.bf16.msra.mxu0 %v10548
        %10829 = vmatprep.mubr.bf16.mxu0 %v10010
        %10830 = vmatmul.mubr.bf16.gmra.mrb[0].mxu0 %v10009
        %v10831 = vpop.f32.mrb[0].mxu0
        %v10832 = vadd.f32 %v10792, %v10831
        %v10833 = vpop.f32.mrb[0].mxu0
        %v10834 = vpop.f32.mrb[0].mxu0
        %v10835 = vpop.f32.mrb[0].mxu0
        %10836 = vdwg.mxu0
        %10837 = vmatprep.subr.bf16.mxu0 0
        %10838 = vmatpush1.bf16.msra.mxu0 %v10549
        %10839 = vmatprep.subr.bf16.mxu0 0
        %10840 = vmatpush1.bf16.msra.mxu0 %v10550
        %10841 = vmatprep.subr.bf16.mxu0 0
        %10842 = vmatpush1.bf16.msra.mxu0 %v10551
        %10843 = vmatprep.subr.bf16.mxu0 0
        %10844 = vmatpush1.bf16.msra.mxu0 %v10552
        %10845 = vmatprep.subr.bf16.mxu0 0
        %10846 = vmatpush1.bf16.msra.mxu0 %v10553
        %10847 = vmatprep.subr.bf16.mxu0 0
        %10848 = vmatpush1.bf16.msra.mxu0 %v10554
        %10849 = vmatprep.subr.bf16.mxu0 0
        %10850 = vmatpush1.bf16.msra.mxu0 %v10555
        %10851 = vmatprep.subr.bf16.mxu0 0
        %10852 = vmatpush1.bf16.msra.mxu0 %v10556
        %10853 = vmatprep.subr.bf16.mxu0 0
        %10854 = vmatpush1.bf16.msra.mxu0 %v10557
        %10855 = vmatprep.subr.bf16.mxu0 0
        %10856 = vmatpush1.bf16.msra.mxu0 %v10558
        %10857 = vmatprep.subr.bf16.mxu0 0
        %10858 = vmatpush1.bf16.msra.mxu0 %v10559
        %10859 = vmatprep.subr.bf16.mxu0 0
        %10860 = vmatpush1.bf16.msra.mxu0 %v10560
        %10861 = vmatprep.subr.bf16.mxu0 0
        %10862 = vmatpush1.bf16.msra.mxu0 %v10561
        %10863 = vmatprep.subr.bf16.mxu0 0
        %10864 = vmatpush1.bf16.msra.mxu0 %v10562
        %10865 = vmatprep.subr.bf16.mxu0 0
        %10866 = vmatpush1.bf16.msra.mxu0 %v10563
        %10867 = vmatprep.subr.bf16.mxu0 0
        %10868 = vmatpush1.bf16.msra.mxu0 %v10564
        %10869 = vmatprep.mubr.bf16.mxu0 %v10012
        %10870 = vmatmul.mubr.bf16.gmra.mrb[0].mxu0 %v10011
        %v10871 = vpop.f32.mrb[0].mxu0
        %v10872 = vadd.f32 %v10832, %v10871
        %v10873 = vpop.f32.mrb[0].mxu0
        %v10874 = vpop.f32.mrb[0].mxu0
        %v10875 = vpop.f32.mrb[0].mxu0
        %10876 = vdwg.mxu0
        %10877 = vmatprep.subr.bf16.mxu0 0
        %10878 = vmatpush1.bf16.msra.mxu0 %v10565
        %10879 = vmatprep.subr.bf16.mxu0 0
        %10880 = vmatpush1.bf16.msra.mxu0 %v10566
        %10881 = vmatprep.subr.bf16.mxu0 0
        %10882 = vmatpush1.bf16.msra.mxu0 %v10567
        %10883 = vmatprep.subr.bf16.mxu0 0
        %10884 = vmatpush1.bf16.msra.mxu0 %v10568
        %10885 = vmatprep.subr.bf16.mxu0 0
        %10886 = vmatpush1.bf16.msra.mxu0 %v10569
        %10887 = vmatprep.subr.bf16.mxu0 0
        %10888 = vmatpush1.bf16.msra.mxu0 %v10570
        %10889 = vmatprep.subr.bf16.mxu0 0
        %10890 = vmatpush1.bf16.msra.mxu0 %v10571
        %10891 = vmatprep.subr.bf16.mxu0 0
        %10892 = vmatpush1.bf16.msra.mxu0 %v10572
        %10893 = vmatprep.subr.bf16.mxu0 0
        %10894 = vmatpush1.bf16.msra.mxu0 %v10573
        %10895 = vmatprep.subr.bf16.mxu0 0
        %10896 = vmatpush1.bf16.msra.mxu0 %v10574
        %10897 = vmatprep.subr.bf16.mxu0 0
        %10898 = vmatpush1.bf16.msra.mxu0 %v10575
        %10899 = vmatprep.subr.bf16.mxu0 0
        %10900 = vmatpush1.bf16.msra.mxu0 %v10576
        %10901 = vmatprep.subr.bf16.mxu0 0
        %10902 = vmatpush1.bf16.msra.mxu0 %v10577
        %10903 = vmatprep.subr.bf16.mxu0 0
        %10904 = vmatpush1.bf16.msra.mxu0 %v10578
        %10905 = vmatprep.subr.bf16.mxu0 0
        %10906 = vmatpush1.bf16.msra.mxu0 %v10579
        %10907 = vmatprep.subr.bf16.mxu0 0
        %10908 = vmatpush1.bf16.msra.mxu0 %v10580
        %10909 = vmatprep.mubr.bf16.mxu0 %v10014
        %10910 = vmatmul.mubr.bf16.gmra.mrb[0].mxu0 %v10013
        %v10911 = vpop.f32.mrb[0].mxu0
        %v10912 = vadd.f32 %v10872, %v10911
        %v10913 = vpop.f32.mrb[0].mxu0
        %v10914 = vpop.f32.mrb[0].mxu0
        %v10915 = vpop.f32.mrb[0].mxu0
        %10916 = vdwg.mxu0
        %10917 = vmatprep.subr.bf16.mxu0 0
        %10918 = vmatpush1.bf16.msra.mxu0 %v10581
        %10919 = vmatprep.subr.bf16.mxu0 0
        %10920 = vmatpush1.bf16.msra.mxu0 %v10582
        %10921 = vmatprep.subr.bf16.mxu0 0
        %10922 = vmatpush1.bf16.msra.mxu0 %v10583
        %10923 = vmatprep.subr.bf16.mxu0 0
        %10924 = vmatpush1.bf16.msra.mxu0 %v10584
        %10925 = vmatprep.subr.bf16.mxu0 0
        %10926 = vmatpush1.bf16.msra.mxu0 %v10585
        %10927 = vmatprep.subr.bf16.mxu0 0
        %10928 = vmatpush1.bf16.msra.mxu0 %v10586
        %10929 = vmatprep.subr.bf16.mxu0 0
        %10930 = vmatpush1.bf16.msra.mxu0 %v10587
        %10931 = vmatprep.subr.bf16.mxu0 0
        %10932 = vmatpush1.bf16.msra.mxu0 %v10588
        %10933 = vmatprep.subr.bf16.mxu0 0
        %10934 = vmatpush1.bf16.msra.mxu0 %v10589
        %10935 = vmatprep.subr.bf16.mxu0 0
        %10936 = vmatpush1.bf16.msra.mxu0 %v10590
        %10937 = vmatprep.subr.bf16.mxu0 0
        %10938 = vmatpush1.bf16.msra.mxu0 %v10591
        %10939 = vmatprep.subr.bf16.mxu0 0
        %10940 = vmatpush1.bf16.msra.mxu0 %v10592
        %10941 = vmatprep.subr.bf16.mxu0 0
        %10942 = vmatpush1.bf16.msra.mxu0 %v10593
        %10943 = vmatprep.subr.bf16.mxu0 0
        %10944 = vmatpush1.bf16.msra.mxu0 %v10594
        %10945 = vmatprep.subr.bf16.mxu0 0
        %10946 = vmatpush1.bf16.msra.mxu0 %v10595
        %10947 = vmatprep.subr.bf16.mxu0 0
        %10948 = vmatpush1.bf16.msra.mxu0 %v10596
        %10949 = vmatprep.mubr.bf16.mxu0 %v10016
        %10950 = vmatmul.mubr.bf16.gmra.mrb[0].mxu0 %v10015
        %v10951 = vpop.f32.mrb[0].mxu0
        %v10952 = vadd.f32 %v10912, %v10951
        %v10953 = vpop.f32.mrb[0].mxu0
        %v10954 = vpop.f32.mrb[0].mxu0
        %v10955 = vpop.f32.mrb[0].mxu0
        %10956 = vdwg.mxu0
        %10957 = vmatprep.subr.bf16.mxu0 0
        %10958 = vmatpush1.bf16.msra.mxu0 %v10597
        %10959 = vmatprep.subr.bf16.mxu0 0
        %10960 = vmatpush1.bf16.msra.mxu0 %v10598
        %10961 = vmatprep.subr.bf16.mxu0 0
        %10962 = vmatpush1.bf16.msra.mxu0 %v10599
        %10963 = vmatprep.subr.bf16.mxu0 0
        %10964 = vmatpush1.bf16.msra.mxu0 %v10600
        %10965 = vmatprep.subr.bf16.mxu0 0
        %10966 = vmatpush1.bf16.msra.mxu0 %v10601
        %10967 = vmatprep.subr.bf16.mxu0 0
        %10968 = vmatpush1.bf16.msra.mxu0 %v10602
        %10969 = vmatprep.subr.bf16.mxu0 0
        %10970 = vmatpush1.bf16.msra.mxu0 %v10603
        %10971 = vmatprep.subr.bf16.mxu0 0
        %10972 = vmatpush1.bf16.msra.mxu0 %v10604
        %10973 = vmatprep.subr.bf16.mxu0 0
        %10974 = vmatpush1.bf16.msra.mxu0 %v10605
        %10975 = vmatprep.subr.bf16.mxu0 0
        %10976 = vmatpush1.bf16.msra.mxu0 %v10606
        %10977 = vmatprep.subr.bf16.mxu0 0
        %10978 = vmatpush1.bf16.msra.mxu0 %v10607
        %10979 = vmatprep.subr.bf16.mxu0 0
        %10980 = vmatpush1.bf16.msra.mxu0 %v10608
        %10981 = vmatprep.subr.bf16.mxu0 0
        %10982 = vmatpush1.bf16.msra.mxu0 %v10609
        %10983 = vmatprep.subr.bf16.mxu0 0
        %10984 = vmatpush1.bf16.msra.mxu0 %v10610
        %10985 = vmatprep.subr.bf16.mxu0 0
        %10986 = vmatpush1.bf16.msra.mxu0 %v10611
        %10987 = vmatprep.subr.bf16.mxu0 0
        %10988 = vmatpush1.bf16.msra.mxu0 %v10612
        %10989 = vmatprep.mubr.bf16.mxu0 %v10018
        %10990 = vmatmul.mubr.bf16.gmra.mrb[0].mxu0 %v10017
        %v10991 = vpop.f32.mrb[0].mxu0
        %v10992 = vadd.f32 %v10952, %v10991
        %v10993 = vpop.f32.mrb[0].mxu0
        %v10994 = vpop.f32.mrb[0].mxu0
        %v10995 = vpop.f32.mrb[0].mxu0
        %10996 = vdwg.mxu0
        %10997 = vmatprep.subr.bf16.mxu0 0
        %10998 = vmatpush1.bf16.msra.mxu0 %v10613
        %10999 = vmatprep.subr.bf16.mxu0 0
        %11000 = vmatpush1.bf16.msra.mxu0 %v10614
        %11001 = vmatprep.subr.bf16.mxu0 0
        %11002 = vmatpush1.bf16.msra.mxu0 %v10615
        %11003 = vmatprep.subr.bf16.mxu0 0
        %11004 = vmatpush1.bf16.msra.mxu0 %v10616
        %11005 = vmatprep.subr.bf16.mxu0 0
        %11006 = vmatpush1.bf16.msra.mxu0 %v10617
        %11007 = vmatprep.subr.bf16.mxu0 0
        %11008 = vmatpush1.bf16.msra.mxu0 %v10618
        %11009 = vmatprep.subr.bf16.mxu0 0
        %11010 = vmatpush1.bf16.msra.mxu0 %v10619
        %11011 = vmatprep.subr.bf16.mxu0 0
        %11012 = vmatpush1.bf16.msra.mxu0 %v10620
        %11013 = vmatprep.subr.bf16.mxu0 0
        %11014 = vmatpush1.bf16.msra.mxu0 %v10621
        %11015 = vmatprep.subr.bf16.mxu0 0
        %11016 = vmatpush1.bf16.msra.mxu0 %v10622
        %11017 = vmatprep.subr.bf16.mxu0 0
        %11018 = vmatpush1.bf16.msra.mxu0 %v10623
        %11019 = vmatprep.subr.bf16.mxu0 0
        %11020 = vmatpush1.bf16.msra.mxu0 %v10624
        %11021 = vmatprep.subr.bf16.mxu0 0
        %11022 = vmatpush1.bf16.msra.mxu0 %v10625
        %11023 = vmatprep.subr.bf16.mxu0 0
        %11024 = vmatpush1.bf16.msra.mxu0 %v10626
        %11025 = vmatprep.subr.bf16.mxu0 0
        %11026 = vmatpush1.bf16.msra.mxu0 %v10627
        %11027 = vmatprep.subr.bf16.mxu0 0
        %11028 = vmatpush1.bf16.msra.mxu0 %v10628
        %11029 = vmatprep.mubr.bf16.mxu0 %v10020
        %11030 = vmatmul.mubr.bf16.gmra.mrb[0].mxu0 %v10019
        %v11031 = vpop.f32.mrb[0].mxu0
        %v11032 = vadd.f32 %v10992, %v11031
        %v11033 = vpop.f32.mrb[0].mxu0
        %v11034 = vpop.f32.mrb[0].mxu0
        %v11035 = vpop.f32.mrb[0].mxu0
        %11036 = vdwg.mxu0
        %11037 = vmatprep.subr.bf16.mxu0 0
        %11038 = vmatpush1.bf16.msra.mxu0 %v10629
        %11039 = vmatprep.subr.bf16.mxu0 0
        %11040 = vmatpush1.bf16.msra.mxu0 %v10630
        %11041 = vmatprep.subr.bf16.mxu0 0
        %11042 = vmatpush1.bf16.msra.mxu0 %v10631
        %11043 = vmatprep.subr.bf16.mxu0 0
        %11044 = vmatpush1.bf16.msra.mxu0 %v10632
        %11045 = vmatprep.subr.bf16.mxu0 0
        %11046 = vmatpush1.bf16.msra.mxu0 %v10633
        %11047 = vmatprep.subr.bf16.mxu0 0
        %11048 = vmatpush1.bf16.msra.mxu0 %v10634
        %11049 = vmatprep.subr.bf16.mxu0 0
        %11050 = vmatpush1.bf16.msra.mxu0 %v10635
        %11051 = vmatprep.subr.bf16.mxu0 0
        %11052 = vmatpush1.bf16.msra.mxu0 %v10636
        %11053 = vmatprep.subr.bf16.mxu0 0
        %11054 = vmatpush1.bf16.msra.mxu0 0
        %11055 = vmatprep.subr.bf16.mxu0 0
        %11056 = vmatpush1.bf16.msra.mxu0 0
        %11057 = vmatprep.subr.bf16.mxu0 0
        %11058 = vmatpush1.bf16.msra.mxu0 0
        %11059 = vmatprep.subr.bf16.mxu0 0
        %11060 = vmatpush1.bf16.msra.mxu0 0
        %11061 = vmatprep.subr.bf16.mxu0 0
        %11062 = vmatpush1.bf16.msra.mxu0 0
        %11063 = vmatprep.subr.bf16.mxu0 0
        %11064 = vmatpush1.bf16.msra.mxu0 0
        %11065 = vmatprep.subr.bf16.mxu0 0
        %11066 = vmatpush1.bf16.msra.mxu0 0
        %11067 = vmatprep.subr.bf16.mxu0 0
        %11068 = vmatpush1.bf16.msra.mxu0 0
        %11069 = vmatprep.mubr.bf16.mxu0 0
        %11070 = vmatmul.mubr.bf16.gmra.mrb[0].mxu0 %v10021
        %v11071 = vpop.f32.mrb[0].mxu0
        %v11072 = vadd.f32 %v11032, %v11071
        %v11073 = vpop.f32.mrb[0].mxu0
        %v11074 = vpop.f32.mrb[0].mxu0
        %v11075 = vpop.f32.mrb[0].mxu0
        %11076 = vdwg.mxu0
        %v11077 = vmax.f32 %v11072, 0.0
        %v11079 = vrot.slane %v11077, 1
        %v11081 = vmax.f32 %v11077, %v11079
        %v11082 = vrot.slane %v11077, 2
        %v11084 = vmax.f32 %v11081, %v11082
        %v11085 = vrot.slane %v11077, 3
        %v11087 = vmax.f32 %v11084, %v11085
        %v11088 = vrot.slane %v11077, 4
        %v11090 = vmax.f32 %v11087, %v11088
        %vm11091 = vcmask 516096
        %11092 = vst.msk [vmem:[%s335] sm:$0x1] %vm11091, %v11090
        %p11093 = scmp.lt.s32.totalorder %s25, 1
        %s11094 = scalar_select %p11093, %s25, 1
        %s11095 = smul.addr %s11094, 8
        %s11096 = smul.addr %s11095, 8
        %s11097 = scalar_lea.vmem %s7, %s11096
        %s11098 = sand.u32 %s211, 1
        %s11099 = scalar_lea.sflag [#allocation10], %s11098
        %s11100 = sand.u32 %s211, 1
        %s11101 = scalar_lea.vmem [#allocation13], %s11100
        // Predicated region
        $region57: #{pose_encoder_dr.1} parent=47 // pred_check
          %p11102 = pneg %p195
        $region58: #{pose_encoder_dr.1} parent=47 // pred_check_branch
          %11104 = sbr.rel (%p11102) target = $region60
        $region59: #{pose_encoder_dr.1} parent=47 // pred_region
          _
        $region60: #{pose_encoder_dr.1} parent=47 // pred_fallthru
          _
        // Predicated region
        $region61: #{pose_encoder_dr.1} parent=47 // pred_check
          %p11105 = pneg %p221
        $region62: #{pose_encoder_dr.1} parent=47 // pred_check_branch
          %11107 = sbr.rel (%p11105) target = $region64
        $region63: #{pose_encoder_dr.1} parent=47 // pred_region
          %s11109 = ssub.s32 16, 16
          %11110 = vsyncadd %s11099, %s11109
          %s11111 = smul.addr %s25, 16
          %s11112 = scalar_lea.hbm %s8, %s11111
          %s11114 = sshll.u32 %s11101, 4
          %s11115 = int_to_ptr.vmem [resolvable:$true] %s11114
          %11117 = dma.vmem_to_hbm [thread:$0]  %s11115, 16, %s11112, %s11099
        $region64: #{pose_encoder_dr.1} parent=47 // pred_fallthru
          _
      $region48: #{pose_encoder_dr.1} parent=5 // pred_fallthru
        _
      %p11118 = scmp.le.s32.totalorder 2, %s20
      // Predicated region
      $region65: #{pose_encoder_dr.1} parent=5 // pred_check
        %p11119 = pneg %p11118
      $region66: #{pose_encoder_dr.1} parent=5 // pred_check_branch
        %11121 = sbr.rel (%p11119) target = $region68
      $region67: #{pose_encoder_dr.1} parent=5 // pred_region
        %s11122 = ssub.s32 %s20, 2
        // Predicated region
        $region69: #{pose_encoder_dr.1} parent=67 // pred_check
          %p11123 = pneg %p201
        $region70: #{pose_encoder_dr.1} parent=67 // pred_check_branch
          %11125 = sbr.rel (%p11123) target = $region72
        $region71: #{pose_encoder_dr.1} parent=67 // pred_region
          %p11126 = scmp.lt.s32.totalorder %s26, 1
          %s11127 = scalar_select %p11126, %s26, 1
          %s11128 = smul.addr %s11127, 8
          %s11129 = smul.addr %s11128, 8
          %s11130 = scalar_lea.vmem %s7, %s11129
        $region72: #{pose_encoder_dr.1} parent=67 // pred_fallthru
          _
        // Predicated region
        $region73: #{pose_encoder_dr.1} parent=67 // pred_check
          %p11131 = pneg %p227
        $region74: #{pose_encoder_dr.1} parent=67 // pred_check_branch
          %11133 = sbr.rel (%p11131) target = $region76
        $region75: #{pose_encoder_dr.1} parent=67 // pred_region
          %s11134 = sand.u32 %s212, 1
          %s11135 = scalar_lea.sflag [#allocation10], %s11134
          %s11136 = sand.u32 %s212, 1
          %s11137 = scalar_lea.vmem [#allocation13], %s11136
          %11138 = dma.done %s11135, 16
        $region76: #{pose_encoder_dr.1} parent=67 // pred_fallthru
          _
      $region68: #{pose_encoder_dr.1} parent=5 // pred_fallthru
        _
    $region6: #{pose_encoder_dr.1} parent=1 // loop_footer
      %s24 = sadd.s32 1, %s20
    $region7: #{pose_encoder_dr.1} parent=1 // loop_footer_branch
      %19 = sbr.rel target = $region3
    $region8: #{pose_encoder_dr.1} parent=1 // loop_exit
      _
    %11139 = vsyncpa [#allocation9], 1
    %s11140 = scalar_lea.sflag [#allocation9], 1
    %11141 = vsyncpa %s11140, 1
    %11142 = vsyncpa [#allocation12], 1
    %11143 = vsyncpa [#allocation10], 1
    %s11144 = scalar_lea.sflag [#allocation10], 1
    %11145 = vsyncpa %s11144, 1

</llo_original>
